<compile_context>
chip_gen: v7x
topology: tpu7x:2x2x1
jax: 0.10.0
libtpu: 0.0.40
codegen_flags: <defaults>
</compile_context>

<pallas_src>
import jax
import jax.numpy as jnp
from jax.experimental import pallas as pl
from jax.experimental.pallas import tpu as pltpu

EPS = 1e-5           # PyTorch BatchNorm2d default eps
H_IN, W_IN = 20, 48  # spatial extent expected by the module
H_PAD = 32           # conv_1 contraction dim padded to a sublane multiple
C_PACK = 512         # packed (h*25 + c) lane width for the conv_1/conv_2 stage
C_LANE = 128         # lane-dense channel width for all later stages
S = 48               # per-sample row stride of the combined activation slab


# --------------------------- in-kernel helpers ------------------------------

def _windows(x, offsets):
    """Row-shifted windows of x (rows, C), read through an 8-row zero
    extension so every window keeps the same height (trailing rows are junk,
    never consumed by a valid output)."""
    rows = x.shape[0]
    xe = jnp.concatenate([x, jnp.zeros((8, x.shape[1]), x.dtype)], axis=0)
    return [xe[j:j + rows, :] for j in offsets]


def _conv(x, w_ref, b_ref, kw):
    """Valid conv along rows as ONE tap-fused bf16 matmul (f32 accumulate)."""
    cols = jnp.concatenate(_windows(x, range(kw)), axis=1) if kw > 1 else x
    out = jnp.dot(cols.astype(jnp.bfloat16), w_ref[...],
                  preferred_element_type=jnp.float32)
    return out + b_ref[...]


def _row_mask(rows, n, valid):
    """(rows, 1) f32 mask selecting the first `valid` rows of each S-row
    per-sample block of the combined slab."""
    r = jax.lax.broadcasted_iota(jnp.int32, (rows, 1), 0)
    m = r < valid
    for i in range(1, n):
        m = m | ((r >= i * S) & (r < i * S + valid))
    return m.astype(jnp.float32)


def _bn_relu_pool(x, n, valid):
    """BatchNorm2d(affine=False, batch stats) + ReLU + MaxPool2d((1,2),1).

    x: combined (n*S, C) f32 slab; only the first `valid` rows of each S-row
    sample block are real data.  Junk rows are masked out of the statistics
    and are never read back by later valid outputs."""
    mask = _row_mask(x.shape[0], n, valid)
    inv = 1.0 / float(n * valid)
    mean = jnp.sum(x * mask, axis=0, keepdims=True) * inv
    d = x - mean
    var = jnp.sum(d * d * mask, axis=0, keepdims=True) * inv
    y = jnp.maximum(d * jax.lax.rsqrt(var + EPS), 0.0)
    w0, w1 = _windows(y, (0, 1))
    return jnp.maximum(w0, w1)           # valid rows per sample: valid - 1


# --------------------------------- kernel -----------------------------------

def _spike_deeptector_kernel(
        x_ref, mean_ref, e1_ref, b1_ref, g_ref, gt_ref,
        w2_ref, b2_ref, w3_ref, b3_ref, w4_ref, b4_ref,
        w5_ref, b5_ref, w6_ref, b6_ref,
        wfc1_hbm, bfc1_ref, wfc2_ref, bfc2_ref,
        out_ref, wfc1_vmem, fc1_sem):
    n = x_ref.shape[0]
    f32, bf16 = jnp.float32, jnp.bfloat16

    # conv_fc_1's weight (~0.9 MiB bf16, ~half of all weight bytes) is only
    # needed at the very end: stream it HBM->VMEM behind the conv stack.
    fc1_copy = pltpu.make_async_copy(wfc1_hbm, wfc1_vmem, fc1_sem)
    fc1_copy.start()

    # --- ZeroMean + conv_1 (padding=(0,1)); samples batched along M ---------
    # x arrives as (W+2, H_pad) per sample.  e1 is conv_1's weight expanded
    # block-diagonally so the output lands in the packed P[w, h*25+c] layout.
    mean0 = mean_ref[...]
    xs = [x_ref[i] - mean0 for i in range(n)]                    # (50, 32)
    p1 = b1_ref[...]
    for j in range(3):
        tap = jnp.concatenate([s[j:j + S, :] for s in xs], axis=0)   # (n*48, 32)
        p1 = p1 + jnp.dot(tap.astype(bf16), e1_ref[j],
                          preferred_element_type=f32)            # (n*48, 512)

    # --- BatchNorm_1 (batch stats over N,H,W in the packed layout) + ReLU ---
    # g  (512,128): packed column -> channel accumulation (0/1, exact in bf16)
    # gt (128,512): per-channel scalar -> packed-column broadcast.
    g = g_ref[...].astype(f32)
    gt = gt_ref[...].astype(f32)
    inv1 = 1.0 / float(n * W_IN * H_IN)
    tot = jnp.sum(p1, axis=0, keepdims=True)                     # (1, 512)
    mean_c = jnp.dot(tot, g, preferred_element_type=f32) * inv1
    mean_b = jnp.dot(mean_c, gt, preferred_element_type=f32)
    d = p1 - mean_b
    var_c = jnp.dot(jnp.sum(d * d, axis=0, keepdims=True), g,
                    preferred_element_type=f32) * inv1
    inv_b = jnp.dot(jax.lax.rsqrt(var_c + EPS), gt, preferred_element_type=f32)
    a = jnp.maximum(d * inv_b, 0.0)                              # (n*48, 512), V=48

    # --- conv_2 .. conv_6: one fused matmul each + BN/ReLU/maxpool epilogue --
    a = _conv(a, w2_ref, b2_ref, kw=3); a = _bn_relu_pool(a, n, 46)   # V 46 -> 45
    a = _conv(a, w3_ref, b3_ref, kw=3); a = _bn_relu_pool(a, n, 43)   # 43 -> 42
    a = _conv(a, w4_ref, b4_ref, kw=3); a = _bn_relu_pool(a, n, 40)   # 40 -> 39
    a = _conv(a, w5_ref, b5_ref, kw=5); a = _bn_relu_pool(a, n, 35)   # 35 -> 34
    a = _conv(a, w6_ref, b6_ref, kw=5); a = _bn_relu_pool(a, n, 30)   # 30 -> 29

    # --- conv_fc_1 (single flattened matmul per sample) + ReLU, conv_fc_2 ---
    fc1_copy.wait()
    wfc1 = wfc1_vmem[...]
    bfc1 = bfc1_ref[...]
    wfc2 = wfc2_ref[...]
    bfc2 = bfc2_ref[...]
    for i in range(n):
        row = jnp.concatenate(
            [a[i * S + j:i * S + j + 1, :] for j in range(29)], axis=1)  # (1, 3712)
        h = jnp.dot(row.astype(bf16), wfc1, preferred_element_type=f32) + bfc1
        h = jnp.maximum(h, 0.0)
        o = jnp.dot(h.astype(bf16), wfc2, preferred_element_type=f32) + bfc2
        out_ref[i:i + 1, :] = o


# ------------------------------- parameters ---------------------------------

_CONV_SPECS = {
    "conv_1": (25, 1, 1, 3),
    "conv_2": (25, 25, 20, 3),
    "conv_3": (50, 25, 1, 3),
    "conv_4": (100, 50, 1, 3),
    "conv_5": (100, 100, 1, 5),
    "conv_6": (100, 100, 1, 5),
    "conv_fc_1": (100, 100, 1, 29),
    "conv_fc_2": (2, 100, 1, 1),
}


def init_params(key):
    """Raw parameters in PyTorch layout: weight (Cout, Cin, kh, kw), bias (Cout,)."""
    params = {}
    keys = jax.random.split(key, len(_CONV_SPECS) + 1)
    params["mean"] = jax.random.normal(keys[0], (H_IN, W_IN), jnp.float32)
    for k, (name, shape) in zip(keys[1:], _CONV_SPECS.items()):
        kw_key, kb_key = jax.random.split(k)
        fan_in = shape[1] * shape[2] * shape[3]
        bound = 1.0 / float(fan_in) ** 0.5
        params[name + "_w"] = jax.random.uniform(
            kw_key, shape, jnp.float32, -bound, bound)
        params[name + "_b"] = jax.random.uniform(
            kb_key, (shape[0],), jnp.float32, -bound, bound)
    return params


def prepare_params(params):
    """One-time re-layout (bf16 weights, tap-stacked contraction, padding)."""
    f32, bf16 = jnp.float32, jnp.bfloat16

    # ZeroMean buffer -> (W+2, H_pad); W padded by 1 (conv_1 padding=(0,1)).
    mean_t = jnp.pad(params["mean"].T, ((1, 1), (0, H_PAD - H_IN))).astype(f32)

    # conv_1 weight expanded block-diagonally: E1[j, h, h*25+c] = w1[c,0,0,j].
    w1 = params["conv_1_w"][:, 0, 0, :]                          # (25, 3)
    eye_h = jnp.eye(H_IN, dtype=f32)
    e1 = jnp.stack([jnp.kron(eye_h, w1[:, j][None, :]) for j in range(3)])
    e1 = jnp.pad(e1, ((0, 0), (0, H_PAD - H_IN), (0, C_PACK - 25 * H_IN)))
    e1 = e1.astype(bf16)                                         # (3, 32, 512)
    b1 = jnp.pad(jnp.tile(params["conv_1_b"], H_IN),
                 (0, C_PACK - 25 * H_IN)).reshape(1, C_PACK).astype(f32)

    # 0/1 gather / broadcast matrices for BN_1 (exact in bf16; half the DMA).
    g = jnp.pad(jnp.tile(jnp.eye(25, dtype=f32), (H_IN, 1)),
                ((0, C_PACK - 25 * H_IN), (0, C_LANE - 25)))     # (512, 128)
    gt = g.T                                                     # (128, 512)
    g, gt = g.astype(bf16), gt.astype(bf16)

    # conv_2 in the packed layout, taps stacked along the contraction:
    # W2s[j*512 + (h*25+ci), co] = w2[co, ci, h, j].
    w2 = jnp.transpose(params["conv_2_w"], (3, 2, 1, 0)).reshape(3, 25 * H_IN, 25)
    w2 = jnp.pad(w2, ((0, 0), (0, C_PACK - 25 * H_IN), (0, C_LANE - 25)))
    w2s = w2.reshape(3 * C_PACK, C_LANE).astype(bf16)
    b2 = jnp.pad(params["conv_2_b"], (0, C_LANE - 25)).reshape(1, C_LANE).astype(f32)

    def prep_1xk(name):
        w, b = params[name + "_w"], params[name + "_b"]
        co, ci, _, kw = w.shape
        t = jnp.transpose(w[:, :, 0, :], (2, 1, 0))              # (kw, ci, co)
        t = jnp.pad(t, ((0, 0), (0, C_LANE - ci), (0, C_LANE - co)))
        ws = t.reshape(kw * C_LANE, C_LANE).astype(bf16)         # taps stacked on K
        return ws, jnp.pad(b, (0, C_LANE - co)).reshape(1, C_LANE).astype(f32)

    w3s, b3 = prep_1xk("conv_3")
    w4s, b4 = prep_1xk("conv_4")
    w5s, b5 = prep_1xk("conv_5")
    w6s, b6 = prep_1xk("conv_6")
    wfc1s, bfc1 = prep_1xk("conv_fc_1")                          # (3712, 128)
    wfc2s, bfc2 = prep_1xk("conv_fc_2")                          # (128, 128)

    return dict(mean_t=mean_t, e1=e1, b1=b1, g=g, gt=gt,
                w2=w2s, b2=b2, w3=w3s, b3=b3, w4=w4s, b4=b4,
                w5=w5s, b5=b5, w6=w6s, b6=b6,
                wfc1=wfc1s, bfc1=bfc1, wfc2=wfc2s, bfc2=bfc2)


# --------------------------------- forward ----------------------------------

_PARAM_ORDER = ("mean_t", "e1", "b1", "g", "gt", "w2", "b2", "w3", "b3",
                "w4", "b4", "w5", "b5", "w6", "b6", "wfc1", "bfc1",
                "wfc2", "bfc2")


def spike_deeptector_forward(prep, x_nchw):
    """x_nchw: (N, 1, 20, 48) float32 -> (N, 2, 1, 1) float32 (NCHW)."""
    n = x_nchw.shape[0]
    # Layout plumbing only: squeeze C, put W on sublanes / H on lanes,
    # zero-pad W by 1 (conv_1 padding=(0,1)) and H to 32.
    x_t = jnp.pad(jnp.transpose(x_nchw[:, 0, :, :], (0, 2, 1)),
                  ((0, 0), (1, 1), (0, H_PAD - H_IN)))

    args = (x_t,) + tuple(prep[k] for k in _PARAM_ORDER)
    vmem = pl.BlockSpec(memory_space=pltpu.MemorySpace.VMEM)
    in_specs = [vmem] * len(args)
    # conv_fc_1 weight stays in HBM; it is DMA'd manually inside the kernel so
    # its transfer overlaps the whole conv stack.
    in_specs[1 + _PARAM_ORDER.index("wfc1")] = pl.BlockSpec(memory_space=pl.ANY)

    # TODO(synk): for large batches, shard the batch over v7x's two TensorCores
    # (grid axis marked "parallel" / core_map) with cross-core BN partial sums;
    # with batch-stat BN coupling every sample and N=2, one program is optimal.
    out = pl.pallas_call(
        _spike_deeptector_kernel,
        out_shape=jax.ShapeDtypeStruct((n, C_LANE), jnp.float32),
        in_specs=in_specs,
        out_specs=vmem,
        scratch_shapes=[pltpu.VMEM((29 * C_LANE, C_LANE), jnp.bfloat16),
                        pltpu.SemaphoreType.DMA],
    )(*args)
    return out[:, :2].reshape(n, 2, 1, 1)


if __name__ == "__main__":
    key = jax.random.PRNGKey(0)
    pkey, xkey = jax.random.split(key)
    params = init_params(pkey)
    prep = prepare_params(params)             # one-time weight re-layout (bf16)
    # Shapes are dictated by the module: ZeroMean buffer (1,1,20,48) and
    # conv_2's 20-tall kernel require H=20, W=48, C_in=1.
    x = jax.random.normal(xkey, (2, 1, 20, 48), jnp.float32)

    fwd = jax.jit(spike_deeptector_forward)
    out = fwd(prep, x)
    jax.block_until_ready(out)
    assert out.shape == (2, 2, 1, 1), out.shape
    assert out.dtype == jnp.float32
    assert bool(jnp.all(jnp.isfinite(out)))
    print("KERNEL_OK")
</pallas_src>

<mosaic_0001>
module attributes {stable_mosaic.version = 11 : i64} {
  func.func @_spike_deeptector_kernel(%arg0: memref<2x50x32xf32, #tpu.memory_space<vmem>>, %arg1: memref<50x32xf32, #tpu.memory_space<vmem>>, %arg2: memref<3x32x512xbf16, #tpu.memory_space<vmem>>, %arg3: memref<1x512xf32, #tpu.memory_space<vmem>>, %arg4: memref<512x128xbf16, #tpu.memory_space<vmem>>, %arg5: memref<128x512xbf16, #tpu.memory_space<vmem>>, %arg6: memref<1536x128xbf16, #tpu.memory_space<vmem>>, %arg7: memref<1x128xf32, #tpu.memory_space<vmem>>, %arg8: memref<384x128xbf16, #tpu.memory_space<vmem>>, %arg9: memref<1x128xf32, #tpu.memory_space<vmem>>, %arg10: memref<384x128xbf16, #tpu.memory_space<vmem>>, %arg11: memref<1x128xf32, #tpu.memory_space<vmem>>, %arg12: memref<640x128xbf16, #tpu.memory_space<vmem>>, %arg13: memref<1x128xf32, #tpu.memory_space<vmem>>, %arg14: memref<640x128xbf16, #tpu.memory_space<vmem>>, %arg15: memref<1x128xf32, #tpu.memory_space<vmem>>, %arg16: memref<3712x128xbf16, #tpu.memory_space<any>>, %arg17: memref<1x128xf32, #tpu.memory_space<vmem>>, %arg18: memref<128x128xbf16, #tpu.memory_space<vmem>>, %arg19: memref<1x128xf32, #tpu.memory_space<vmem>>, %arg20: memref<2x128xf32, #tpu.memory_space<vmem>>, %arg21: memref<3712x128xbf16, #tpu.memory_space<vmem>>, %arg22: memref<!tpu.dma_semaphore, #tpu.memory_space<semaphore_mem>>) attributes {dimension_semantics = [], scalar_prefetch = 0 : i64, scratch_operands = 2 : i64, tpu.core_type = #tpu.core_type<tc>} {
    tpu.enqueue_dma source(%arg16 : memref<3712x128xbf16, #tpu.memory_space<any>>) target(%arg21 : memref<3712x128xbf16, #tpu.memory_space<vmem>>) target_semaphore(%arg22 : memref<!tpu.dma_semaphore, #tpu.memory_space<semaphore_mem>>)
    %c0 = arith.constant 0 : index
    %c0_0 = arith.constant 0 : index
    %0 = vector.load %arg1[%c0, %c0_0] : memref<50x32xf32, #tpu.memory_space<vmem>>, vector<50x32xf32>
    %c0_1 = arith.constant 0 : index
    %c0_2 = arith.constant 0 : index
    %c0_3 = arith.constant 0 : index
    %1 = vector.load %arg0[%c0_1, %c0_2, %c0_3] : memref<2x50x32xf32, #tpu.memory_space<vmem>>, vector<1x50x32xf32>
    %2 = vector.shape_cast %1 : vector<1x50x32xf32> to vector<50x32xf32>
    %3 = arith.subf %2, %0 : vector<50x32xf32>
    %c1 = arith.constant 1 : index
    %c0_4 = arith.constant 0 : index
    %c0_5 = arith.constant 0 : index
    %4 = vector.load %arg0[%c1, %c0_4, %c0_5] : memref<2x50x32xf32, #tpu.memory_space<vmem>>, vector<1x50x32xf32>
    %5 = vector.shape_cast %4 : vector<1x50x32xf32> to vector<50x32xf32>
    %6 = arith.subf %5, %0 : vector<50x32xf32>
    %c0_6 = arith.constant 0 : index
    %c0_7 = arith.constant 0 : index
    %7 = vector.load %arg3[%c0_6, %c0_7] : memref<1x512xf32, #tpu.memory_space<vmem>>, vector<1x512xf32>
    %8 = vector.extract_strided_slice %3 {offsets = [0, 0], sizes = [48, 32], strides = [1, 1]} : vector<50x32xf32> to vector<48x32xf32>
    %9 = vector.extract_strided_slice %6 {offsets = [0, 0], sizes = [48, 32], strides = [1, 1]} : vector<50x32xf32> to vector<48x32xf32>
    %10 = tpu.concatenate %8, %9 in 0 : vector<48x32xf32>, vector<48x32xf32> -> vector<96x32xf32>
    %11 = arith.truncf %10 : vector<96x32xf32> to vector<96x32xbf16>
    %c0_8 = arith.constant 0 : index
    %c0_9 = arith.constant 0 : index
    %c0_10 = arith.constant 0 : index
    %12 = vector.load %arg2[%c0_8, %c0_9, %c0_10] : memref<3x32x512xbf16, #tpu.memory_space<vmem>>, vector<1x32x512xbf16>
    %13 = vector.shape_cast %12 : vector<1x32x512xbf16> to vector<32x512xbf16>
    %cst = arith.constant dense<0.000000e+00> : vector<96x512xf32>
    %14 = tpu.matmul %11, %13, %cst {dimension_numbers = #tpu.dot_dimension_numbers<[1], [0], [0], [1], [0, 0, 1, 1], [], []>} : vector<96x32xbf16>, vector<32x512xbf16>, vector<96x512xf32> -> vector<96x512xf32>
    %15 = vector.broadcast %7 : vector<1x512xf32> to vector<96x512xf32>
    %16 = arith.addf %15, %14 : vector<96x512xf32>
    %17 = vector.extract_strided_slice %3 {offsets = [1, 0], sizes = [48, 32], strides = [1, 1]} : vector<50x32xf32> to vector<48x32xf32>
    %18 = vector.extract_strided_slice %6 {offsets = [1, 0], sizes = [48, 32], strides = [1, 1]} : vector<50x32xf32> to vector<48x32xf32>
    %19 = tpu.concatenate %17, %18 in 0 : vector<48x32xf32>, vector<48x32xf32> -> vector<96x32xf32>
    %20 = arith.truncf %19 : vector<96x32xf32> to vector<96x32xbf16>
    %c1_11 = arith.constant 1 : index
    %c0_12 = arith.constant 0 : index
    %c0_13 = arith.constant 0 : index
    %21 = vector.load %arg2[%c1_11, %c0_12, %c0_13] : memref<3x32x512xbf16, #tpu.memory_space<vmem>>, vector<1x32x512xbf16>
    %22 = vector.shape_cast %21 : vector<1x32x512xbf16> to vector<32x512xbf16>
    %cst_14 = arith.constant dense<0.000000e+00> : vector<96x512xf32>
    %23 = tpu.matmul %20, %22, %cst_14 {dimension_numbers = #tpu.dot_dimension_numbers<[1], [0], [0], [1], [0, 0, 1, 1], [], []>} : vector<96x32xbf16>, vector<32x512xbf16>, vector<96x512xf32> -> vector<96x512xf32>
    %24 = arith.addf %16, %23 : vector<96x512xf32>
    %25 = vector.extract_strided_slice %3 {offsets = [2, 0], sizes = [48, 32], strides = [1, 1]} : vector<50x32xf32> to vector<48x32xf32>
    %26 = vector.extract_strided_slice %6 {offsets = [2, 0], sizes = [48, 32], strides = [1, 1]} : vector<50x32xf32> to vector<48x32xf32>
    %27 = tpu.concatenate %25, %26 in 0 : vector<48x32xf32>, vector<48x32xf32> -> vector<96x32xf32>
    %28 = arith.truncf %27 : vector<96x32xf32> to vector<96x32xbf16>
    %c2 = arith.constant 2 : index
    %c0_15 = arith.constant 0 : index
    %c0_16 = arith.constant 0 : index
    %29 = vector.load %arg2[%c2, %c0_15, %c0_16] : memref<3x32x512xbf16, #tpu.memory_space<vmem>>, vector<1x32x512xbf16>
    %30 = vector.shape_cast %29 : vector<1x32x512xbf16> to vector<32x512xbf16>
    %cst_17 = arith.constant dense<0.000000e+00> : vector<96x512xf32>
    %31 = tpu.matmul %28, %30, %cst_17 {dimension_numbers = #tpu.dot_dimension_numbers<[1], [0], [0], [1], [0, 0, 1, 1], [], []>} : vector<96x32xbf16>, vector<32x512xbf16>, vector<96x512xf32> -> vector<96x512xf32>
    %32 = arith.addf %24, %31 : vector<96x512xf32>
    %c0_18 = arith.constant 0 : index
    %c0_19 = arith.constant 0 : index
    %33 = vector.load %arg4[%c0_18, %c0_19] : memref<512x128xbf16, #tpu.memory_space<vmem>>, vector<512x128xbf16>
    %34 = arith.extf %33 : vector<512x128xbf16> to vector<512x128xf32>
    %c0_20 = arith.constant 0 : index
    %c0_21 = arith.constant 0 : index
    %35 = vector.load %arg5[%c0_20, %c0_21] : memref<128x512xbf16, #tpu.memory_space<vmem>>, vector<128x512xbf16>
    %36 = arith.extf %35 : vector<128x512xbf16> to vector<128x512xf32>
    %cst_22 = arith.constant dense<0.000000e+00> : vector<512xf32>
    %37 = vector.multi_reduction <add>, %32, %cst_22 [0] : vector<96x512xf32> to vector<512xf32>
    %38 = vector.shape_cast %37 : vector<512xf32> to vector<1x512xf32>
    %cst_23 = arith.constant dense<0.000000e+00> : vector<1x128xf32>
    %39 = tpu.matmul %38, %34, %cst_23 {dimension_numbers = #tpu.dot_dimension_numbers<[1], [0], [0], [1], [0, 0, 1, 1], [], []>} : vector<1x512xf32>, vector<512x128xf32>, vector<1x128xf32> -> vector<1x128xf32>
    %cst_24 = arith.constant 5.2083336E-4 : f32
    %40 = vector.broadcast %cst_24 : f32 to vector<1x128xf32>
    %41 = arith.mulf %39, %40 : vector<1x128xf32>
    %cst_25 = arith.constant dense<0.000000e+00> : vector<1x512xf32>
    %42 = tpu.matmul %41, %36, %cst_25 {dimension_numbers = #tpu.dot_dimension_numbers<[1], [0], [0], [1], [0, 0, 1, 1], [], []>} : vector<1x128xf32>, vector<128x512xf32>, vector<1x512xf32> -> vector<1x512xf32>
    %43 = vector.broadcast %42 : vector<1x512xf32> to vector<96x512xf32>
    %44 = arith.subf %32, %43 : vector<96x512xf32>
    %45 = arith.mulf %44, %44 : vector<96x512xf32>
    %cst_26 = arith.constant dense<0.000000e+00> : vector<512xf32>
    %46 = vector.multi_reduction <add>, %45, %cst_26 [0] : vector<96x512xf32> to vector<512xf32>
    %47 = vector.shape_cast %46 : vector<512xf32> to vector<1x512xf32>
    %cst_27 = arith.constant dense<0.000000e+00> : vector<1x128xf32>
    %48 = tpu.matmul %47, %34, %cst_27 {dimension_numbers = #tpu.dot_dimension_numbers<[1], [0], [0], [1], [0, 0, 1, 1], [], []>} : vector<1x512xf32>, vector<512x128xf32>, vector<1x128xf32> -> vector<1x128xf32>
    %cst_28 = arith.constant 5.2083336E-4 : f32
    %49 = vector.broadcast %cst_28 : f32 to vector<1x128xf32>
    %50 = arith.mulf %48, %49 : vector<1x128xf32>
    %cst_29 = arith.constant 9.99999974E-6 : f32
    %51 = vector.broadcast %cst_29 : f32 to vector<1x128xf32>
    %52 = arith.addf %50, %51 : vector<1x128xf32>
    %53 = math.rsqrt %52 : vector<1x128xf32>
    %cst_30 = arith.constant dense<0.000000e+00> : vector<1x512xf32>
    %54 = tpu.matmul %53, %36, %cst_30 {dimension_numbers = #tpu.dot_dimension_numbers<[1], [0], [0], [1], [0, 0, 1, 1], [], []>} : vector<1x128xf32>, vector<128x512xf32>, vector<1x512xf32> -> vector<1x512xf32>
    %55 = vector.broadcast %54 : vector<1x512xf32> to vector<96x512xf32>
    %56 = arith.mulf %44, %55 : vector<96x512xf32>
    %cst_31 = arith.constant 0.000000e+00 : f32
    %57 = vector.broadcast %cst_31 : f32 to vector<96x512xf32>
    %58 = arith.maximumf %56, %57 : vector<96x512xf32>
    %cst_32 = arith.constant 0.000000e+00 : f32
    %59 = vector.broadcast %cst_32 : f32 to vector<8x512xf32>
    %60 = tpu.concatenate %58, %59 in 0 : vector<96x512xf32>, vector<8x512xf32> -> vector<104x512xf32>
    %61 = vector.extract_strided_slice %60 {offsets = [0, 0], sizes = [96, 512], strides = [1, 1]} : vector<104x512xf32> to vector<96x512xf32>
    %62 = vector.extract_strided_slice %60 {offsets = [1, 0], sizes = [96, 512], strides = [1, 1]} : vector<104x512xf32> to vector<96x512xf32>
    %63 = vector.extract_strided_slice %60 {offsets = [2, 0], sizes = [96, 512], strides = [1, 1]} : vector<104x512xf32> to vector<96x512xf32>
    %64 = tpu.concatenate %61, %62, %63 in 1 : vector<96x512xf32>, vector<96x512xf32>, vector<96x512xf32> -> vector<96x1536xf32>
    %65 = arith.truncf %64 : vector<96x1536xf32> to vector<96x1536xbf16>
    %c0_33 = arith.constant 0 : index
    %c0_34 = arith.constant 0 : index
    %66 = vector.load %arg6[%c0_33, %c0_34] : memref<1536x128xbf16, #tpu.memory_space<vmem>>, vector<1536x128xbf16>
    %cst_35 = arith.constant dense<0.000000e+00> : vector<96x128xf32>
    %67 = tpu.matmul %65, %66, %cst_35 {dimension_numbers = #tpu.dot_dimension_numbers<[1], [0], [0], [1], [0, 0, 1, 1], [], []>} : vector<96x1536xbf16>, vector<1536x128xbf16>, vector<96x128xf32> -> vector<96x128xf32>
    %c0_36 = arith.constant 0 : index
    %c0_37 = arith.constant 0 : index
    %68 = vector.load %arg7[%c0_36, %c0_37] : memref<1x128xf32, #tpu.memory_space<vmem>>, vector<1x128xf32>
    %69 = vector.broadcast %68 : vector<1x128xf32> to vector<96x128xf32>
    %70 = arith.addf %67, %69 : vector<96x128xf32>
    %71 = tpu.iota {dimensions = array<i32: 0>} : vector<96x1xi32>
    %c46_i32 = arith.constant 46 : i32
    %72 = vector.broadcast %c46_i32 : i32 to vector<96x1xi32>
    %73 = arith.cmpi slt, %71, %72 : vector<96x1xi32>
    %c48_i32 = arith.constant 48 : i32
    %74 = vector.broadcast %c48_i32 : i32 to vector<96x1xi32>
    %75 = arith.cmpi sge, %71, %74 : vector<96x1xi32>
    %c94_i32 = arith.constant 94 : i32
    %76 = vector.broadcast %c94_i32 : i32 to vector<96x1xi32>
    %77 = arith.cmpi slt, %71, %76 : vector<96x1xi32>
    %78 = arith.andi %75, %77 : vector<96x1xi1>
    %79 = arith.ori %73, %78 : vector<96x1xi1>
    %80 = arith.extui %79 : vector<96x1xi1> to vector<96x1xi32>
    %81 = arith.sitofp %80 : vector<96x1xi32> to vector<96x1xf32>
    %82 = vector.broadcast %81 : vector<96x1xf32> to vector<96x128xf32>
    %83 = arith.mulf %70, %82 : vector<96x128xf32>
    %cst_38 = arith.constant dense<0.000000e+00> : vector<128xf32>
    %84 = vector.multi_reduction <add>, %83, %cst_38 [0] : vector<96x128xf32> to vector<128xf32>
    %85 = vector.shape_cast %84 : vector<128xf32> to vector<1x128xf32>
    %cst_39 = arith.constant 0.0108695654 : f32
    %86 = vector.broadcast %cst_39 : f32 to vector<1x128xf32>
    %87 = arith.mulf %85, %86 : vector<1x128xf32>
    %88 = vector.broadcast %87 : vector<1x128xf32> to vector<96x128xf32>
    %89 = arith.subf %70, %88 : vector<96x128xf32>
    %90 = arith.mulf %89, %89 : vector<96x128xf32>
    %91 = vector.broadcast %81 : vector<96x1xf32> to vector<96x128xf32>
    %92 = arith.mulf %90, %91 : vector<96x128xf32>
    %cst_40 = arith.constant dense<0.000000e+00> : vector<128xf32>
    %93 = vector.multi_reduction <add>, %92, %cst_40 [0] : vector<96x128xf32> to vector<128xf32>
    %94 = vector.shape_cast %93 : vector<128xf32> to vector<1x128xf32>
    %cst_41 = arith.constant 0.0108695654 : f32
    %95 = vector.broadcast %cst_41 : f32 to vector<1x128xf32>
    %96 = arith.mulf %94, %95 : vector<1x128xf32>
    %cst_42 = arith.constant 9.99999974E-6 : f32
    %97 = vector.broadcast %cst_42 : f32 to vector<1x128xf32>
    %98 = arith.addf %96, %97 : vector<1x128xf32>
    %99 = math.rsqrt %98 : vector<1x128xf32>
    %100 = vector.broadcast %99 : vector<1x128xf32> to vector<96x128xf32>
    %101 = arith.mulf %89, %100 : vector<96x128xf32>
    %cst_43 = arith.constant 0.000000e+00 : f32
    %102 = vector.broadcast %cst_43 : f32 to vector<96x128xf32>
    %103 = arith.maximumf %101, %102 : vector<96x128xf32>
    %cst_44 = arith.constant 0.000000e+00 : f32
    %104 = vector.broadcast %cst_44 : f32 to vector<8x128xf32>
    %105 = tpu.concatenate %103, %104 in 0 : vector<96x128xf32>, vector<8x128xf32> -> vector<104x128xf32>
    %106 = vector.extract_strided_slice %105 {offsets = [0, 0], sizes = [96, 128], strides = [1, 1]} : vector<104x128xf32> to vector<96x128xf32>
    %107 = vector.extract_strided_slice %105 {offsets = [1, 0], sizes = [96, 128], strides = [1, 1]} : vector<104x128xf32> to vector<96x128xf32>
    %108 = arith.maximumf %106, %107 : vector<96x128xf32>
    %cst_45 = arith.constant 0.000000e+00 : f32
    %109 = vector.broadcast %cst_45 : f32 to vector<8x128xf32>
    %110 = tpu.concatenate %108, %109 in 0 : vector<96x128xf32>, vector<8x128xf32> -> vector<104x128xf32>
    %111 = vector.extract_strided_slice %110 {offsets = [0, 0], sizes = [96, 128], strides = [1, 1]} : vector<104x128xf32> to vector<96x128xf32>
    %112 = vector.extract_strided_slice %110 {offsets = [1, 0], sizes = [96, 128], strides = [1, 1]} : vector<104x128xf32> to vector<96x128xf32>
    %113 = vector.extract_strided_slice %110 {offsets = [2, 0], sizes = [96, 128], strides = [1, 1]} : vector<104x128xf32> to vector<96x128xf32>
    %114 = tpu.concatenate %111, %112, %113 in 1 : vector<96x128xf32>, vector<96x128xf32>, vector<96x128xf32> -> vector<96x384xf32>
    %115 = arith.truncf %114 : vector<96x384xf32> to vector<96x384xbf16>
    %c0_46 = arith.constant 0 : index
    %c0_47 = arith.constant 0 : index
    %116 = vector.load %arg8[%c0_46, %c0_47] : memref<384x128xbf16, #tpu.memory_space<vmem>>, vector<384x128xbf16>
    %cst_48 = arith.constant dense<0.000000e+00> : vector<96x128xf32>
    %117 = tpu.matmul %115, %116, %cst_48 {dimension_numbers = #tpu.dot_dimension_numbers<[1], [0], [0], [1], [0, 0, 1, 1], [], []>} : vector<96x384xbf16>, vector<384x128xbf16>, vector<96x128xf32> -> vector<96x128xf32>
    %c0_49 = arith.constant 0 : index
    %c0_50 = arith.constant 0 : index
    %118 = vector.load %arg9[%c0_49, %c0_50] : memref<1x128xf32, #tpu.memory_space<vmem>>, vector<1x128xf32>
    %119 = vector.broadcast %118 : vector<1x128xf32> to vector<96x128xf32>
    %120 = arith.addf %117, %119 : vector<96x128xf32>
    %121 = tpu.iota {dimensions = array<i32: 0>} : vector<96x1xi32>
    %c43_i32 = arith.constant 43 : i32
    %122 = vector.broadcast %c43_i32 : i32 to vector<96x1xi32>
    %123 = arith.cmpi slt, %121, %122 : vector<96x1xi32>
    %c48_i32_51 = arith.constant 48 : i32
    %124 = vector.broadcast %c48_i32_51 : i32 to vector<96x1xi32>
    %125 = arith.cmpi sge, %121, %124 : vector<96x1xi32>
    %c91_i32 = arith.constant 91 : i32
    %126 = vector.broadcast %c91_i32 : i32 to vector<96x1xi32>
    %127 = arith.cmpi slt, %121, %126 : vector<96x1xi32>
    %128 = arith.andi %125, %127 : vector<96x1xi1>
    %129 = arith.ori %123, %128 : vector<96x1xi1>
    %130 = arith.extui %129 : vector<96x1xi1> to vector<96x1xi32>
    %131 = arith.sitofp %130 : vector<96x1xi32> to vector<96x1xf32>
    %132 = vector.broadcast %131 : vector<96x1xf32> to vector<96x128xf32>
    %133 = arith.mulf %120, %132 : vector<96x128xf32>
    %cst_52 = arith.constant dense<0.000000e+00> : vector<128xf32>
    %134 = vector.multi_reduction <add>, %133, %cst_52 [0] : vector<96x128xf32> to vector<128xf32>
    %135 = vector.shape_cast %134 : vector<128xf32> to vector<1x128xf32>
    %cst_53 = arith.constant 0.0116279069 : f32
    %136 = vector.broadcast %cst_53 : f32 to vector<1x128xf32>
    %137 = arith.mulf %135, %136 : vector<1x128xf32>
    %138 = vector.broadcast %137 : vector<1x128xf32> to vector<96x128xf32>
    %139 = arith.subf %120, %138 : vector<96x128xf32>
    %140 = arith.mulf %139, %139 : vector<96x128xf32>
    %141 = vector.broadcast %131 : vector<96x1xf32> to vector<96x128xf32>
    %142 = arith.mulf %140, %141 : vector<96x128xf32>
    %cst_54 = arith.constant dense<0.000000e+00> : vector<128xf32>
    %143 = vector.multi_reduction <add>, %142, %cst_54 [0] : vector<96x128xf32> to vector<128xf32>
    %144 = vector.shape_cast %143 : vector<128xf32> to vector<1x128xf32>
    %cst_55 = arith.constant 0.0116279069 : f32
    %145 = vector.broadcast %cst_55 : f32 to vector<1x128xf32>
    %146 = arith.mulf %144, %145 : vector<1x128xf32>
    %cst_56 = arith.constant 9.99999974E-6 : f32
    %147 = vector.broadcast %cst_56 : f32 to vector<1x128xf32>
    %148 = arith.addf %146, %147 : vector<1x128xf32>
    %149 = math.rsqrt %148 : vector<1x128xf32>
    %150 = vector.broadcast %149 : vector<1x128xf32> to vector<96x128xf32>
    %151 = arith.mulf %139, %150 : vector<96x128xf32>
    %cst_57 = arith.constant 0.000000e+00 : f32
    %152 = vector.broadcast %cst_57 : f32 to vector<96x128xf32>
    %153 = arith.maximumf %151, %152 : vector<96x128xf32>
    %cst_58 = arith.constant 0.000000e+00 : f32
    %154 = vector.broadcast %cst_58 : f32 to vector<8x128xf32>
    %155 = tpu.concatenate %153, %154 in 0 : vector<96x128xf32>, vector<8x128xf32> -> vector<104x128xf32>
    %156 = vector.extract_strided_slice %155 {offsets = [0, 0], sizes = [96, 128], strides = [1, 1]} : vector<104x128xf32> to vector<96x128xf32>
    %157 = vector.extract_strided_slice %155 {offsets = [1, 0], sizes = [96, 128], strides = [1, 1]} : vector<104x128xf32> to vector<96x128xf32>
    %158 = arith.maximumf %156, %157 : vector<96x128xf32>
    %cst_59 = arith.constant 0.000000e+00 : f32
    %159 = vector.broadcast %cst_59 : f32 to vector<8x128xf32>
    %160 = tpu.concatenate %158, %159 in 0 : vector<96x128xf32>, vector<8x128xf32> -> vector<104x128xf32>
    %161 = vector.extract_strided_slice %160 {offsets = [0, 0], sizes = [96, 128], strides = [1, 1]} : vector<104x128xf32> to vector<96x128xf32>
    %162 = vector.extract_strided_slice %160 {offsets = [1, 0], sizes = [96, 128], strides = [1, 1]} : vector<104x128xf32> to vector<96x128xf32>
    %163 = vector.extract_strided_slice %160 {offsets = [2, 0], sizes = [96, 128], strides = [1, 1]} : vector<104x128xf32> to vector<96x128xf32>
    %164 = tpu.concatenate %161, %162, %163 in 1 : vector<96x128xf32>, vector<96x128xf32>, vector<96x128xf32> -> vector<96x384xf32>
    %165 = arith.truncf %164 : vector<96x384xf32> to vector<96x384xbf16>
    %c0_60 = arith.constant 0 : index
    %c0_61 = arith.constant 0 : index
    %166 = vector.load %arg10[%c0_60, %c0_61] : memref<384x128xbf16, #tpu.memory_space<vmem>>, vector<384x128xbf16>
    %cst_62 = arith.constant dense<0.000000e+00> : vector<96x128xf32>
    %167 = tpu.matmul %165, %166, %cst_62 {dimension_numbers = #tpu.dot_dimension_numbers<[1], [0], [0], [1], [0, 0, 1, 1], [], []>} : vector<96x384xbf16>, vector<384x128xbf16>, vector<96x128xf32> -> vector<96x128xf32>
    %c0_63 = arith.constant 0 : index
    %c0_64 = arith.constant 0 : index
    %168 = vector.load %arg11[%c0_63, %c0_64] : memref<1x128xf32, #tpu.memory_space<vmem>>, vector<1x128xf32>
    %169 = vector.broadcast %168 : vector<1x128xf32> to vector<96x128xf32>
    %170 = arith.addf %167, %169 : vector<96x128xf32>
    %171 = tpu.iota {dimensions = array<i32: 0>} : vector<96x1xi32>
    %c40_i32 = arith.constant 40 : i32
    %172 = vector.broadcast %c40_i32 : i32 to vector<96x1xi32>
    %173 = arith.cmpi slt, %171, %172 : vector<96x1xi32>
    %c48_i32_65 = arith.constant 48 : i32
    %174 = vector.broadcast %c48_i32_65 : i32 to vector<96x1xi32>
    %175 = arith.cmpi sge, %171, %174 : vector<96x1xi32>
    %c88_i32 = arith.constant 88 : i32
    %176 = vector.broadcast %c88_i32 : i32 to vector<96x1xi32>
    %177 = arith.cmpi slt, %171, %176 : vector<96x1xi32>
    %178 = arith.andi %175, %177 : vector<96x1xi1>
    %179 = arith.ori %173, %178 : vector<96x1xi1>
    %180 = arith.extui %179 : vector<96x1xi1> to vector<96x1xi32>
    %181 = arith.sitofp %180 : vector<96x1xi32> to vector<96x1xf32>
    %182 = vector.broadcast %181 : vector<96x1xf32> to vector<96x128xf32>
    %183 = arith.mulf %170, %182 : vector<96x128xf32>
    %cst_66 = arith.constant dense<0.000000e+00> : vector<128xf32>
    %184 = vector.multi_reduction <add>, %183, %cst_66 [0] : vector<96x128xf32> to vector<128xf32>
    %185 = vector.shape_cast %184 : vector<128xf32> to vector<1x128xf32>
    %cst_67 = arith.constant 1.250000e-02 : f32
    %186 = vector.broadcast %cst_67 : f32 to vector<1x128xf32>
    %187 = arith.mulf %185, %186 : vector<1x128xf32>
    %188 = vector.broadcast %187 : vector<1x128xf32> to vector<96x128xf32>
    %189 = arith.subf %170, %188 : vector<96x128xf32>
    %190 = arith.mulf %189, %189 : vector<96x128xf32>
    %191 = vector.broadcast %181 : vector<96x1xf32> to vector<96x128xf32>
    %192 = arith.mulf %190, %191 : vector<96x128xf32>
    %cst_68 = arith.constant dense<0.000000e+00> : vector<128xf32>
    %193 = vector.multi_reduction <add>, %192, %cst_68 [0] : vector<96x128xf32> to vector<128xf32>
    %194 = vector.shape_cast %193 : vector<128xf32> to vector<1x128xf32>
    %cst_69 = arith.constant 1.250000e-02 : f32
    %195 = vector.broadcast %cst_69 : f32 to vector<1x128xf32>
    %196 = arith.mulf %194, %195 : vector<1x128xf32>
    %cst_70 = arith.constant 9.99999974E-6 : f32
    %197 = vector.broadcast %cst_70 : f32 to vector<1x128xf32>
    %198 = arith.addf %196, %197 : vector<1x128xf32>
    %199 = math.rsqrt %198 : vector<1x128xf32>
    %200 = vector.broadcast %199 : vector<1x128xf32> to vector<96x128xf32>
    %201 = arith.mulf %189, %200 : vector<96x128xf32>
    %cst_71 = arith.constant 0.000000e+00 : f32
    %202 = vector.broadcast %cst_71 : f32 to vector<96x128xf32>
    %203 = arith.maximumf %201, %202 : vector<96x128xf32>
    %cst_72 = arith.constant 0.000000e+00 : f32
    %204 = vector.broadcast %cst_72 : f32 to vector<8x128xf32>
    %205 = tpu.concatenate %203, %204 in 0 : vector<96x128xf32>, vector<8x128xf32> -> vector<104x128xf32>
    %206 = vector.extract_strided_slice %205 {offsets = [0, 0], sizes = [96, 128], strides = [1, 1]} : vector<104x128xf32> to vector<96x128xf32>
    %207 = vector.extract_strided_slice %205 {offsets = [1, 0], sizes = [96, 128], strides = [1, 1]} : vector<104x128xf32> to vector<96x128xf32>
    %208 = arith.maximumf %206, %207 : vector<96x128xf32>
    %cst_73 = arith.constant 0.000000e+00 : f32
    %209 = vector.broadcast %cst_73 : f32 to vector<8x128xf32>
    %210 = tpu.concatenate %208, %209 in 0 : vector<96x128xf32>, vector<8x128xf32> -> vector<104x128xf32>
    %211 = vector.extract_strided_slice %210 {offsets = [0, 0], sizes = [96, 128], strides = [1, 1]} : vector<104x128xf32> to vector<96x128xf32>
    %212 = vector.extract_strided_slice %210 {offsets = [1, 0], sizes = [96, 128], strides = [1, 1]} : vector<104x128xf32> to vector<96x128xf32>
    %213 = vector.extract_strided_slice %210 {offsets = [2, 0], sizes = [96, 128], strides = [1, 1]} : vector<104x128xf32> to vector<96x128xf32>
    %214 = vector.extract_strided_slice %210 {offsets = [3, 0], sizes = [96, 128], strides = [1, 1]} : vector<104x128xf32> to vector<96x128xf32>
    %215 = vector.extract_strided_slice %210 {offsets = [4, 0], sizes = [96, 128], strides = [1, 1]} : vector<104x128xf32> to vector<96x128xf32>
    %216 = tpu.concatenate %211, %212, %213, %214, %215 in 1 : vector<96x128xf32>, vector<96x128xf32>, vector<96x128xf32>, vector<96x128xf32>, vector<96x128xf32> -> vector<96x640xf32>
    %217 = arith.truncf %216 : vector<96x640xf32> to vector<96x640xbf16>
    %c0_74 = arith.constant 0 : index
    %c0_75 = arith.constant 0 : index
    %218 = vector.load %arg12[%c0_74, %c0_75] : memref<640x128xbf16, #tpu.memory_space<vmem>>, vector<640x128xbf16>
    %cst_76 = arith.constant dense<0.000000e+00> : vector<96x128xf32>
    %219 = tpu.matmul %217, %218, %cst_76 {dimension_numbers = #tpu.dot_dimension_numbers<[1], [0], [0], [1], [0, 0, 1, 1], [], []>} : vector<96x640xbf16>, vector<640x128xbf16>, vector<96x128xf32> -> vector<96x128xf32>
    %c0_77 = arith.constant 0 : index
    %c0_78 = arith.constant 0 : index
    %220 = vector.load %arg13[%c0_77, %c0_78] : memref<1x128xf32, #tpu.memory_space<vmem>>, vector<1x128xf32>
    %221 = vector.broadcast %220 : vector<1x128xf32> to vector<96x128xf32>
    %222 = arith.addf %219, %221 : vector<96x128xf32>
    %223 = tpu.iota {dimensions = array<i32: 0>} : vector<96x1xi32>
    %c35_i32 = arith.constant 35 : i32
    %224 = vector.broadcast %c35_i32 : i32 to vector<96x1xi32>
    %225 = arith.cmpi slt, %223, %224 : vector<96x1xi32>
    %c48_i32_79 = arith.constant 48 : i32
    %226 = vector.broadcast %c48_i32_79 : i32 to vector<96x1xi32>
    %227 = arith.cmpi sge, %223, %226 : vector<96x1xi32>
    %c83_i32 = arith.constant 83 : i32
    %228 = vector.broadcast %c83_i32 : i32 to vector<96x1xi32>
    %229 = arith.cmpi slt, %223, %228 : vector<96x1xi32>
    %230 = arith.andi %227, %229 : vector<96x1xi1>
    %231 = arith.ori %225, %230 : vector<96x1xi1>
    %232 = arith.extui %231 : vector<96x1xi1> to vector<96x1xi32>
    %233 = arith.sitofp %232 : vector<96x1xi32> to vector<96x1xf32>
    %234 = vector.broadcast %233 : vector<96x1xf32> to vector<96x128xf32>
    %235 = arith.mulf %222, %234 : vector<96x128xf32>
    %cst_80 = arith.constant dense<0.000000e+00> : vector<128xf32>
    %236 = vector.multi_reduction <add>, %235, %cst_80 [0] : vector<96x128xf32> to vector<128xf32>
    %237 = vector.shape_cast %236 : vector<128xf32> to vector<1x128xf32>
    %cst_81 = arith.constant 0.0142857144 : f32
    %238 = vector.broadcast %cst_81 : f32 to vector<1x128xf32>
    %239 = arith.mulf %237, %238 : vector<1x128xf32>
    %240 = vector.broadcast %239 : vector<1x128xf32> to vector<96x128xf32>
    %241 = arith.subf %222, %240 : vector<96x128xf32>
    %242 = arith.mulf %241, %241 : vector<96x128xf32>
    %243 = vector.broadcast %233 : vector<96x1xf32> to vector<96x128xf32>
    %244 = arith.mulf %242, %243 : vector<96x128xf32>
    %cst_82 = arith.constant dense<0.000000e+00> : vector<128xf32>
    %245 = vector.multi_reduction <add>, %244, %cst_82 [0] : vector<96x128xf32> to vector<128xf32>
    %246 = vector.shape_cast %245 : vector<128xf32> to vector<1x128xf32>
    %cst_83 = arith.constant 0.0142857144 : f32
    %247 = vector.broadcast %cst_83 : f32 to vector<1x128xf32>
    %248 = arith.mulf %246, %247 : vector<1x128xf32>
    %cst_84 = arith.constant 9.99999974E-6 : f32
    %249 = vector.broadcast %cst_84 : f32 to vector<1x128xf32>
    %250 = arith.addf %248, %249 : vector<1x128xf32>
    %251 = math.rsqrt %250 : vector<1x128xf32>
    %252 = vector.broadcast %251 : vector<1x128xf32> to vector<96x128xf32>
    %253 = arith.mulf %241, %252 : vector<96x128xf32>
    %cst_85 = arith.constant 0.000000e+00 : f32
    %254 = vector.broadcast %cst_85 : f32 to vector<96x128xf32>
    %255 = arith.maximumf %253, %254 : vector<96x128xf32>
    %cst_86 = arith.constant 0.000000e+00 : f32
    %256 = vector.broadcast %cst_86 : f32 to vector<8x128xf32>
    %257 = tpu.concatenate %255, %256 in 0 : vector<96x128xf32>, vector<8x128xf32> -> vector<104x128xf32>
    %258 = vector.extract_strided_slice %257 {offsets = [0, 0], sizes = [96, 128], strides = [1, 1]} : vector<104x128xf32> to vector<96x128xf32>
    %259 = vector.extract_strided_slice %257 {offsets = [1, 0], sizes = [96, 128], strides = [1, 1]} : vector<104x128xf32> to vector<96x128xf32>
    %260 = arith.maximumf %258, %259 : vector<96x128xf32>
    %cst_87 = arith.constant 0.000000e+00 : f32
    %261 = vector.broadcast %cst_87 : f32 to vector<8x128xf32>
    %262 = tpu.concatenate %260, %261 in 0 : vector<96x128xf32>, vector<8x128xf32> -> vector<104x128xf32>
    %263 = vector.extract_strided_slice %262 {offsets = [0, 0], sizes = [96, 128], strides = [1, 1]} : vector<104x128xf32> to vector<96x128xf32>
    %264 = vector.extract_strided_slice %262 {offsets = [1, 0], sizes = [96, 128], strides = [1, 1]} : vector<104x128xf32> to vector<96x128xf32>
    %265 = vector.extract_strided_slice %262 {offsets = [2, 0], sizes = [96, 128], strides = [1, 1]} : vector<104x128xf32> to vector<96x128xf32>
    %266 = vector.extract_strided_slice %262 {offsets = [3, 0], sizes = [96, 128], strides = [1, 1]} : vector<104x128xf32> to vector<96x128xf32>
    %267 = vector.extract_strided_slice %262 {offsets = [4, 0], sizes = [96, 128], strides = [1, 1]} : vector<104x128xf32> to vector<96x128xf32>
    %268 = tpu.concatenate %263, %264, %265, %266, %267 in 1 : vector<96x128xf32>, vector<96x128xf32>, vector<96x128xf32>, vector<96x128xf32>, vector<96x128xf32> -> vector<96x640xf32>
    %269 = arith.truncf %268 : vector<96x640xf32> to vector<96x640xbf16>
    %c0_88 = arith.constant 0 : index
    %c0_89 = arith.constant 0 : index
    %270 = vector.load %arg14[%c0_88, %c0_89] : memref<640x128xbf16, #tpu.memory_space<vmem>>, vector<640x128xbf16>
    %cst_90 = arith.constant dense<0.000000e+00> : vector<96x128xf32>
    %271 = tpu.matmul %269, %270, %cst_90 {dimension_numbers = #tpu.dot_dimension_numbers<[1], [0], [0], [1], [0, 0, 1, 1], [], []>} : vector<96x640xbf16>, vector<640x128xbf16>, vector<96x128xf32> -> vector<96x128xf32>
    %c0_91 = arith.constant 0 : index
    %c0_92 = arith.constant 0 : index
    %272 = vector.load %arg15[%c0_91, %c0_92] : memref<1x128xf32, #tpu.memory_space<vmem>>, vector<1x128xf32>
    %273 = vector.broadcast %272 : vector<1x128xf32> to vector<96x128xf32>
    %274 = arith.addf %271, %273 : vector<96x128xf32>
    %275 = tpu.iota {dimensions = array<i32: 0>} : vector<96x1xi32>
    %c30_i32 = arith.constant 30 : i32
    %276 = vector.broadcast %c30_i32 : i32 to vector<96x1xi32>
    %277 = arith.cmpi slt, %275, %276 : vector<96x1xi32>
    %c48_i32_93 = arith.constant 48 : i32
    %278 = vector.broadcast %c48_i32_93 : i32 to vector<96x1xi32>
    %279 = arith.cmpi sge, %275, %278 : vector<96x1xi32>
    %c78_i32 = arith.constant 78 : i32
    %280 = vector.broadcast %c78_i32 : i32 to vector<96x1xi32>
    %281 = arith.cmpi slt, %275, %280 : vector<96x1xi32>
    %282 = arith.andi %279, %281 : vector<96x1xi1>
    %283 = arith.ori %277, %282 : vector<96x1xi1>
    %284 = arith.extui %283 : vector<96x1xi1> to vector<96x1xi32>
    %285 = arith.sitofp %284 : vector<96x1xi32> to vector<96x1xf32>
    %286 = vector.broadcast %285 : vector<96x1xf32> to vector<96x128xf32>
    %287 = arith.mulf %274, %286 : vector<96x128xf32>
    %cst_94 = arith.constant dense<0.000000e+00> : vector<128xf32>
    %288 = vector.multi_reduction <add>, %287, %cst_94 [0] : vector<96x128xf32> to vector<128xf32>
    %289 = vector.shape_cast %288 : vector<128xf32> to vector<1x128xf32>
    %cst_95 = arith.constant 0.0166666675 : f32
    %290 = vector.broadcast %cst_95 : f32 to vector<1x128xf32>
    %291 = arith.mulf %289, %290 : vector<1x128xf32>
    %292 = vector.broadcast %291 : vector<1x128xf32> to vector<96x128xf32>
    %293 = arith.subf %274, %292 : vector<96x128xf32>
    %294 = arith.mulf %293, %293 : vector<96x128xf32>
    %295 = vector.broadcast %285 : vector<96x1xf32> to vector<96x128xf32>
    %296 = arith.mulf %294, %295 : vector<96x128xf32>
    %cst_96 = arith.constant dense<0.000000e+00> : vector<128xf32>
    %297 = vector.multi_reduction <add>, %296, %cst_96 [0] : vector<96x128xf32> to vector<128xf32>
    %298 = vector.shape_cast %297 : vector<128xf32> to vector<1x128xf32>
    %cst_97 = arith.constant 0.0166666675 : f32
    %299 = vector.broadcast %cst_97 : f32 to vector<1x128xf32>
    %300 = arith.mulf %298, %299 : vector<1x128xf32>
    %cst_98 = arith.constant 9.99999974E-6 : f32
    %301 = vector.broadcast %cst_98 : f32 to vector<1x128xf32>
    %302 = arith.addf %300, %301 : vector<1x128xf32>
    %303 = math.rsqrt %302 : vector<1x128xf32>
    %304 = vector.broadcast %303 : vector<1x128xf32> to vector<96x128xf32>
    %305 = arith.mulf %293, %304 : vector<96x128xf32>
    %cst_99 = arith.constant 0.000000e+00 : f32
    %306 = vector.broadcast %cst_99 : f32 to vector<96x128xf32>
    %307 = arith.maximumf %305, %306 : vector<96x128xf32>
    %cst_100 = arith.constant 0.000000e+00 : f32
    %308 = vector.broadcast %cst_100 : f32 to vector<8x128xf32>
    %309 = tpu.concatenate %307, %308 in 0 : vector<96x128xf32>, vector<8x128xf32> -> vector<104x128xf32>
    %310 = vector.extract_strided_slice %309 {offsets = [0, 0], sizes = [96, 128], strides = [1, 1]} : vector<104x128xf32> to vector<96x128xf32>
    %311 = vector.extract_strided_slice %309 {offsets = [1, 0], sizes = [96, 128], strides = [1, 1]} : vector<104x128xf32> to vector<96x128xf32>
    %312 = arith.maximumf %310, %311 : vector<96x128xf32>
    tpu.wait_dma2 semaphore(%arg22 : memref<!tpu.dma_semaphore, #tpu.memory_space<semaphore_mem>>) src(%arg16 : memref<3712x128xbf16, #tpu.memory_space<any>>) dst(%arg21 : memref<3712x128xbf16, #tpu.memory_space<vmem>>)
    %c0_101 = arith.constant 0 : index
    %c0_102 = arith.constant 0 : index
    %313 = vector.load %arg21[%c0_101, %c0_102] : memref<3712x128xbf16, #tpu.memory_space<vmem>>, vector<3712x128xbf16>
    %c0_103 = arith.constant 0 : index
    %c0_104 = arith.constant 0 : index
    %314 = vector.load %arg17[%c0_103, %c0_104] : memref<1x128xf32, #tpu.memory_space<vmem>>, vector<1x128xf32>
    %c0_105 = arith.constant 0 : index
    %c0_106 = arith.constant 0 : index
    %315 = vector.load %arg18[%c0_105, %c0_106] : memref<128x128xbf16, #tpu.memory_space<vmem>>, vector<128x128xbf16>
    %c0_107 = arith.constant 0 : index
    %c0_108 = arith.constant 0 : index
    %316 = vector.load %arg19[%c0_107, %c0_108] : memref<1x128xf32, #tpu.memory_space<vmem>>, vector<1x128xf32>
    %317 = vector.extract_strided_slice %312 {offsets = [0, 0], sizes = [1, 128], strides = [1, 1]} : vector<96x128xf32> to vector<1x128xf32>
    %318 = vector.extract_strided_slice %312 {offsets = [1, 0], sizes = [1, 128], strides = [1, 1]} : vector<96x128xf32> to vector<1x128xf32>
    %319 = vector.extract_strided_slice %312 {offsets = [2, 0], sizes = [1, 128], strides = [1, 1]} : vector<96x128xf32> to vector<1x128xf32>
    %320 = vector.extract_strided_slice %312 {offsets = [3, 0], sizes = [1, 128], strides = [1, 1]} : vector<96x128xf32> to vector<1x128xf32>
    %321 = vector.extract_strided_slice %312 {offsets = [4, 0], sizes = [1, 128], strides = [1, 1]} : vector<96x128xf32> to vector<1x128xf32>
    %322 = vector.extract_strided_slice %312 {offsets = [5, 0], sizes = [1, 128], strides = [1, 1]} : vector<96x128xf32> to vector<1x128xf32>
    %323 = vector.extract_strided_slice %312 {offsets = [6, 0], sizes = [1, 128], strides = [1, 1]} : vector<96x128xf32> to vector<1x128xf32>
    %324 = vector.extract_strided_slice %312 {offsets = [7, 0], sizes = [1, 128], strides = [1, 1]} : vector<96x128xf32> to vector<1x128xf32>
    %325 = vector.extract_strided_slice %312 {offsets = [8, 0], sizes = [1, 128], strides = [1, 1]} : vector<96x128xf32> to vector<1x128xf32>
    %326 = vector.extract_strided_slice %312 {offsets = [9, 0], sizes = [1, 128], strides = [1, 1]} : vector<96x128xf32> to vector<1x128xf32>
    %327 = vector.extract_strided_slice %312 {offsets = [10, 0], sizes = [1, 128], strides = [1, 1]} : vector<96x128xf32> to vector<1x128xf32>
    %328 = vector.extract_strided_slice %312 {offsets = [11, 0], sizes = [1, 128], strides = [1, 1]} : vector<96x128xf32> to vector<1x128xf32>
    %329 = vector.extract_strided_slice %312 {offsets = [12, 0], sizes = [1, 128], strides = [1, 1]} : vector<96x128xf32> to vector<1x128xf32>
    %330 = vector.extract_strided_slice %312 {offsets = [13, 0], sizes = [1, 128], strides = [1, 1]} : vector<96x128xf32> to vector<1x128xf32>
    %331 = vector.extract_strided_slice %312 {offsets = [14, 0], sizes = [1, 128], strides = [1, 1]} : vector<96x128xf32> to vector<1x128xf32>
    %332 = vector.extract_strided_slice %312 {offsets = [15, 0], sizes = [1, 128], strides = [1, 1]} : vector<96x128xf32> to vector<1x128xf32>
    %333 = vector.extract_strided_slice %312 {offsets = [16, 0], sizes = [1, 128], strides = [1, 1]} : vector<96x128xf32> to vector<1x128xf32>
    %334 = vector.extract_strided_slice %312 {offsets = [17, 0], sizes = [1, 128], strides = [1, 1]} : vector<96x128xf32> to vector<1x128xf32>
    %335 = vector.extract_strided_slice %312 {offsets = [18, 0], sizes = [1, 128], strides = [1, 1]} : vector<96x128xf32> to vector<1x128xf32>
    %336 = vector.extract_strided_slice %312 {offsets = [19, 0], sizes = [1, 128], strides = [1, 1]} : vector<96x128xf32> to vector<1x128xf32>
    %337 = vector.extract_strided_slice %312 {offsets = [20, 0], sizes = [1, 128], strides = [1, 1]} : vector<96x128xf32> to vector<1x128xf32>
    %338 = vector.extract_strided_slice %312 {offsets = [21, 0], sizes = [1, 128], strides = [1, 1]} : vector<96x128xf32> to vector<1x128xf32>
    %339 = vector.extract_strided_slice %312 {offsets = [22, 0], sizes = [1, 128], strides = [1, 1]} : vector<96x128xf32> to vector<1x128xf32>
    %340 = vector.extract_strided_slice %312 {offsets = [23, 0], sizes = [1, 128], strides = [1, 1]} : vector<96x128xf32> to vector<1x128xf32>
    %341 = vector.extract_strided_slice %312 {offsets = [24, 0], sizes = [1, 128], strides = [1, 1]} : vector<96x128xf32> to vector<1x128xf32>
    %342 = vector.extract_strided_slice %312 {offsets = [25, 0], sizes = [1, 128], strides = [1, 1]} : vector<96x128xf32> to vector<1x128xf32>
    %343 = vector.extract_strided_slice %312 {offsets = [26, 0], sizes = [1, 128], strides = [1, 1]} : vector<96x128xf32> to vector<1x128xf32>
    %344 = vector.extract_strided_slice %312 {offsets = [27, 0], sizes = [1, 128], strides = [1, 1]} : vector<96x128xf32> to vector<1x128xf32>
    %345 = vector.extract_strided_slice %312 {offsets = [28, 0], sizes = [1, 128], strides = [1, 1]} : vector<96x128xf32> to vector<1x128xf32>
    %346 = tpu.concatenate %317, %318, %319, %320, %321, %322, %323, %324, %325, %326, %327, %328, %329, %330, %331, %332 in 1 : vector<1x128xf32>, vector<1x128xf32>, vector<1x128xf32>, vector<1x128xf32>, vector<1x128xf32>, vector<1x128xf32>, vector<1x128xf32>, vector<1x128xf32>, vector<1x128xf32>, vector<1x128xf32>, vector<1x128xf32>, vector<1x128xf32>, vector<1x128xf32>, vector<1x128xf32>, vector<1x128xf32>, vector<1x128xf32> -> vector<1x2048xf32>
    %347 = tpu.concatenate %333, %334, %335, %336, %337, %338, %339, %340, %341, %342, %343, %344, %345 in 1 : vector<1x128xf32>, vector<1x128xf32>, vector<1x128xf32>, vector<1x128xf32>, vector<1x128xf32>, vector<1x128xf32>, vector<1x128xf32>, vector<1x128xf32>, vector<1x128xf32>, vector<1x128xf32>, vector<1x128xf32>, vector<1x128xf32>, vector<1x128xf32> -> vector<1x1664xf32>
    %348 = tpu.concatenate %346, %347 in 1 : vector<1x2048xf32>, vector<1x1664xf32> -> vector<1x3712xf32>
    %349 = arith.truncf %348 : vector<1x3712xf32> to vector<1x3712xbf16>
    %cst_109 = arith.constant dense<0.000000e+00> : vector<1x128xf32>
    %350 = tpu.matmul %349, %313, %cst_109 {dimension_numbers = #tpu.dot_dimension_numbers<[1], [0], [0], [1], [0, 0, 1, 1], [], []>} : vector<1x3712xbf16>, vector<3712x128xbf16>, vector<1x128xf32> -> vector<1x128xf32>
    %351 = arith.addf %350, %314 : vector<1x128xf32>
    %cst_110 = arith.constant 0.000000e+00 : f32
    %352 = vector.broadcast %cst_110 : f32 to vector<1x128xf32>
    %353 = arith.maximumf %351, %352 : vector<1x128xf32>
    %354 = arith.truncf %353 : vector<1x128xf32> to vector<1x128xbf16>
    %cst_111 = arith.constant dense<0.000000e+00> : vector<1x128xf32>
    %355 = tpu.matmul %354, %315, %cst_111 {dimension_numbers = #tpu.dot_dimension_numbers<[1], [0], [0], [1], [0, 0, 1, 1], [], []>} : vector<1x128xbf16>, vector<128x128xbf16>, vector<1x128xf32> -> vector<1x128xf32>
    %356 = arith.addf %355, %316 : vector<1x128xf32>
    %c0_112 = arith.constant 0 : index
    %c0_113 = arith.constant 0 : index
    %357 = vector.load %arg20[%c0_112, %c0_113] : memref<2x128xf32, #tpu.memory_space<vmem>>, vector<1x128xf32>
    tpu.vector_store %arg20[%c0_112, %c0_113], %356 {strides = array<i32>} : memref<2x128xf32, #tpu.memory_space<vmem>>, vector<1x128xf32>,
    %358 = vector.extract_strided_slice %312 {offsets = [48, 0], sizes = [1, 128], strides = [1, 1]} : vector<96x128xf32> to vector<1x128xf32>
    %359 = vector.extract_strided_slice %312 {offsets = [49, 0], sizes = [1, 128], strides = [1, 1]} : vector<96x128xf32> to vector<1x128xf32>
    %360 = vector.extract_strided_slice %312 {offsets = [50, 0], sizes = [1, 128], strides = [1, 1]} : vector<96x128xf32> to vector<1x128xf32>
    %361 = vector.extract_strided_slice %312 {offsets = [51, 0], sizes = [1, 128], strides = [1, 1]} : vector<96x128xf32> to vector<1x128xf32>
    %362 = vector.extract_strided_slice %312 {offsets = [52, 0], sizes = [1, 128], strides = [1, 1]} : vector<96x128xf32> to vector<1x128xf32>
    %363 = vector.extract_strided_slice %312 {offsets = [53, 0], sizes = [1, 128], strides = [1, 1]} : vector<96x128xf32> to vector<1x128xf32>
    %364 = vector.extract_strided_slice %312 {offsets = [54, 0], sizes = [1, 128], strides = [1, 1]} : vector<96x128xf32> to vector<1x128xf32>
    %365 = vector.extract_strided_slice %312 {offsets = [55, 0], sizes = [1, 128], strides = [1, 1]} : vector<96x128xf32> to vector<1x128xf32>
    %366 = vector.extract_strided_slice %312 {offsets = [56, 0], sizes = [1, 128], strides = [1, 1]} : vector<96x128xf32> to vector<1x128xf32>
    %367 = vector.extract_strided_slice %312 {offsets = [57, 0], sizes = [1, 128], strides = [1, 1]} : vector<96x128xf32> to vector<1x128xf32>
    %368 = vector.extract_strided_slice %312 {offsets = [58, 0], sizes = [1, 128], strides = [1, 1]} : vector<96x128xf32> to vector<1x128xf32>
    %369 = vector.extract_strided_slice %312 {offsets = [59, 0], sizes = [1, 128], strides = [1, 1]} : vector<96x128xf32> to vector<1x128xf32>
    %370 = vector.extract_strided_slice %312 {offsets = [60, 0], sizes = [1, 128], strides = [1, 1]} : vector<96x128xf32> to vector<1x128xf32>
    %371 = vector.extract_strided_slice %312 {offsets = [61, 0], sizes = [1, 128], strides = [1, 1]} : vector<96x128xf32> to vector<1x128xf32>
    %372 = vector.extract_strided_slice %312 {offsets = [62, 0], sizes = [1, 128], strides = [1, 1]} : vector<96x128xf32> to vector<1x128xf32>
    %373 = vector.extract_strided_slice %312 {offsets = [63, 0], sizes = [1, 128], strides = [1, 1]} : vector<96x128xf32> to vector<1x128xf32>
    %374 = vector.extract_strided_slice %312 {offsets = [64, 0], sizes = [1, 128], strides = [1, 1]} : vector<96x128xf32> to vector<1x128xf32>
    %375 = vector.extract_strided_slice %312 {offsets = [65, 0], sizes = [1, 128], strides = [1, 1]} : vector<96x128xf32> to vector<1x128xf32>
    %376 = vector.extract_strided_slice %312 {offsets = [66, 0], sizes = [1, 128], strides = [1, 1]} : vector<96x128xf32> to vector<1x128xf32>
    %377 = vector.extract_strided_slice %312 {offsets = [67, 0], sizes = [1, 128], strides = [1, 1]} : vector<96x128xf32> to vector<1x128xf32>
    %378 = vector.extract_strided_slice %312 {offsets = [68, 0], sizes = [1, 128], strides = [1, 1]} : vector<96x128xf32> to vector<1x128xf32>
    %379 = vector.extract_strided_slice %312 {offsets = [69, 0], sizes = [1, 128], strides = [1, 1]} : vector<96x128xf32> to vector<1x128xf32>
    %380 = vector.extract_strided_slice %312 {offsets = [70, 0], sizes = [1, 128], strides = [1, 1]} : vector<96x128xf32> to vector<1x128xf32>
    %381 = vector.extract_strided_slice %312 {offsets = [71, 0], sizes = [1, 128], strides = [1, 1]} : vector<96x128xf32> to vector<1x128xf32>
    %382 = vector.extract_strided_slice %312 {offsets = [72, 0], sizes = [1, 128], strides = [1, 1]} : vector<96x128xf32> to vector<1x128xf32>
    %383 = vector.extract_strided_slice %312 {offsets = [73, 0], sizes = [1, 128], strides = [1, 1]} : vector<96x128xf32> to vector<1x128xf32>
    %384 = vector.extract_strided_slice %312 {offsets = [74, 0], sizes = [1, 128], strides = [1, 1]} : vector<96x128xf32> to vector<1x128xf32>
    %385 = vector.extract_strided_slice %312 {offsets = [75, 0], sizes = [1, 128], strides = [1, 1]} : vector<96x128xf32> to vector<1x128xf32>
    %386 = vector.extract_strided_slice %312 {offsets = [76, 0], sizes = [1, 128], strides = [1, 1]} : vector<96x128xf32> to vector<1x128xf32>
    %387 = tpu.concatenate %358, %359, %360, %361, %362, %363, %364, %365, %366, %367, %368, %369, %370, %371, %372, %373 in 1 : vector<1x128xf32>, vector<1x128xf32>, vector<1x128xf32>, vector<1x128xf32>, vector<1x128xf32>, vector<1x128xf32>, vector<1x128xf32>, vector<1x128xf32>, vector<1x128xf32>, vector<1x128xf32>, vector<1x128xf32>, vector<1x128xf32>, vector<1x128xf32>, vector<1x128xf32>, vector<1x128xf32>, vector<1x128xf32> -> vector<1x2048xf32>
    %388 = tpu.concatenate %374, %375, %376, %377, %378, %379, %380, %381, %382, %383, %384, %385, %386 in 1 : vector<1x128xf32>, vector<1x128xf32>, vector<1x128xf32>, vector<1x128xf32>, vector<1x128xf32>, vector<1x128xf32>, vector<1x128xf32>, vector<1x128xf32>, vector<1x128xf32>, vector<1x128xf32>, vector<1x128xf32>, vector<1x128xf32>, vector<1x128xf32> -> vector<1x1664xf32>
    %389 = tpu.concatenate %387, %388 in 1 : vector<1x2048xf32>, vector<1x1664xf32> -> vector<1x3712xf32>
    %390 = arith.truncf %389 : vector<1x3712xf32> to vector<1x3712xbf16>
    %cst_114 = arith.constant dense<0.000000e+00> : vector<1x128xf32>
    %391 = tpu.matmul %390, %313, %cst_114 {dimension_numbers = #tpu.dot_dimension_numbers<[1], [0], [0], [1], [0, 0, 1, 1], [], []>} : vector<1x3712xbf16>, vector<3712x128xbf16>, vector<1x128xf32> -> vector<1x128xf32>
    %392 = arith.addf %391, %314 : vector<1x128xf32>
    %cst_115 = arith.constant 0.000000e+00 : f32
    %393 = vector.broadcast %cst_115 : f32 to vector<1x128xf32>
    %394 = arith.maximumf %392, %393 : vector<1x128xf32>
    %395 = arith.truncf %394 : vector<1x128xf32> to vector<1x128xbf16>
    %cst_116 = arith.constant dense<0.000000e+00> : vector<1x128xf32>
    %396 = tpu.matmul %395, %315, %cst_116 {dimension_numbers = #tpu.dot_dimension_numbers<[1], [0], [0], [1], [0, 0, 1, 1], [], []>} : vector<1x128xbf16>, vector<128x128xbf16>, vector<1x128xf32> -> vector<1x128xf32>
    %397 = arith.addf %396, %316 : vector<1x128xf32>
    %c1_117 = arith.constant 1 : index
    %c0_118 = arith.constant 0 : index
    %398 = vector.load %arg20[%c1_117, %c0_118] : memref<2x128xf32, #tpu.memory_space<vmem>>, vector<1x128xf32>
    tpu.vector_store %arg20[%c1_117, %c0_118], %397 {strides = array<i32>} : memref<2x128xf32, #tpu.memory_space<vmem>>, vector<1x128xf32>,
    return
  }
}

</mosaic_0001>

<llo_original>
// kernel: spike_deeptector_forward.1
$region0: #{spike_deeptector_forward.1}
  #allocation0 [shape = 'u32[]', space=smem, size = 0x4, offset = 0x4, fixed_abs, tag = 'smem constant byte address 0x4 - core index']
  #allocation1 [shape = 'u32[144,128]{1,0:T(1,128)}', space=vmem, size = 0x12000, scoped, tag = 'internal scratch']
  #allocation2 [shape = 'bf16[3712,128]{1,0:T(16,128)(2,1)}', space=vmem, size = 0xe8000, scoped, tag = 'scratch operand']
  #allocation3 [shape = 's32[1]{0}', space=sflag, size = 0x4, scoped, tag = 'scratch operand']
  #allocation17 [shape = 's32[]', space=sflag, size = 0x4, offset = 0, fixed_abs, tag = 'sflag constant byte address 0x0 - dummy sync flag']
  #allocation18 [shape = 's32[]', space=sflag, size = 0x4, offset = 0, fixed_abs, tag = 'sflag constant byte address 0x0 - dummy sync flag']
  #allocation19 [shape = 'u32[]', space=smem, size = 0x4, offset = 0x44, fixed_abs, tag = 'smem constant byte address 0x44 - assertion arg 0']
  #allocation20 [shape = 'u32[]', space=smem, size = 0x4, offset = 0x48, fixed_abs, tag = 'smem constant byte address 0x48 - assertion arg 1']
  %s0 = inlined_call_operand.vmem [shape: f32[2,50,32], index: 0, kind: input, shape index: {}]
  %s1 = inlined_call_operand.vmem [shape: f32[50,32], index: 1, kind: input, shape index: {}]
  %s2 = inlined_call_operand.hbm [shape: bf16[3,32,512], index: 2, kind: input, shape index: {}]
  %s3 = inlined_call_operand.vmem [shape: f32[1,512], index: 3, kind: input, shape index: {}]
  %s4 = inlined_call_operand.hbm [shape: bf16[512,128], index: 4, kind: input, shape index: {}]
  %s5 = inlined_call_operand.hbm [shape: bf16[128,512], index: 5, kind: input, shape index: {}]
  %s6 = inlined_call_operand.hbm [shape: bf16[1536,128], index: 6, kind: input, shape index: {}]
  %s7 = inlined_call_operand.vmem [shape: f32[1,128], index: 7, kind: input, shape index: {}]
  %s8 = inlined_call_operand.hbm [shape: bf16[384,128], index: 8, kind: input, shape index: {}]
  %s9 = inlined_call_operand.vmem [shape: f32[1,128], index: 9, kind: input, shape index: {}]
  %s10 = inlined_call_operand.hbm [shape: bf16[384,128], index: 10, kind: input, shape index: {}]
  %s11 = inlined_call_operand.vmem [shape: f32[1,128], index: 11, kind: input, shape index: {}]
  %s12 = inlined_call_operand.vmem [shape: bf16[640,128], index: 12, kind: input, shape index: {}]
  %s13 = inlined_call_operand.vmem [shape: f32[1,128], index: 13, kind: input, shape index: {}]
  %s14 = inlined_call_operand.hbm [shape: bf16[640,128], index: 14, kind: input, shape index: {}]
  %s15 = inlined_call_operand.vmem [shape: f32[1,128], index: 15, kind: input, shape index: {}]
  %s16 = inlined_call_operand.hbm [shape: bf16[3712,128], index: 16, kind: input, shape index: {}]
  %s17 = inlined_call_operand.vmem [shape: f32[1,128], index: 17, kind: input, shape index: {}]
  %s18 = inlined_call_operand.vmem [shape: bf16[128,128], index: 18, kind: input, shape index: {}]
  %s19 = inlined_call_operand.vmem [shape: f32[1,128], index: 19, kind: input, shape index: {}]
  %s20 = inlined_call_operand.hbm [shape: f32[2,128], index: 20, kind: output, shape index: {}]
  %s21 = sld [smem:[#allocation0]]
  $region118: #{spike_deeptector_forward.1} parent=0
    _
  %s23 = ssub.s32 1, %s21
  %s24 = scalar_select 0, %s23, %s21
  $region1: #{spike_deeptector_forward.1} parent=0
    #allocation4 [shape = 'u8[98304]{0}', space=vmem, size = 0x18000, scoped, tag = 'input window, operand 2, single buffered']
    #allocation5 [shape = 's32[1]{0}', space=sflag, size = 0x4, scoped, tag = 'scoped memory for spike_deeptector_forward.1']
    #allocation6 [shape = 's32[1]{0}', space=sflag, size = 0x4, scoped, tag = 'scoped memory for spike_deeptector_forward.1']
    #allocation7 [shape = 'u8[131072]{0}', space=vmem, size = 0x20000, scoped, tag = 'input window, operand 4, single buffered']
    #allocation8 [shape = 's32[1]{0}', space=sflag, size = 0x4, scoped, tag = 'scoped memory for spike_deeptector_forward.1']
    #allocation9 [shape = 'u8[131072]{0}', space=vmem, size = 0x20000, scoped, tag = 'input window, operand 5, single buffered']
    #allocation10 [shape = 'u8[393216]{0}', space=vmem, size = 0x60000, scoped, tag = 'input window, operand 6, single buffered']
    #allocation11 [shape = 's32[1]{0}', space=sflag, size = 0x4, scoped, tag = 'scoped memory for spike_deeptector_forward.1']
    #allocation12 [shape = 'u8[98304]{0}', space=vmem, size = 0x18000, scoped, tag = 'input window, operand 8, single buffered']
    #allocation13 [shape = 'u8[98304]{0}', space=vmem, size = 0x18000, scoped, tag = 'input window, operand 10, single buffered']
    #allocation14 [shape = 's32[1]{0}', space=sflag, size = 0x4, scoped, tag = 'scoped memory for spike_deeptector_forward.1']
    #allocation15 [shape = 'u8[163840]{0}', space=vmem, size = 0x28000, scoped, tag = 'input window, operand 14, single buffered']
    #allocation16 [shape = 'u8[1024]{0}', space=vmem, size = 0x400, scoped, tag = 'output window, operand 0, single buffered']
    %25 = vsyncpa [#allocation5], 0
    %26 = vsyncpa [#allocation8], 0
    %27 = vsyncpa [#allocation11], 0
    %28 = vsyncpa [#allocation14], 0
    %29 = vsyncpa [#allocation6], 0
    // Predicated region
    $region2: #{spike_deeptector_forward.1} parent=1 // pred_check
      _
    $region3: #{spike_deeptector_forward.1} parent=1 // pred_check_branch
      %31 = sbr.rel (0) target = $region5
    $region4: #{spike_deeptector_forward.1} parent=1 // pred_region
      _
    $region5: #{spike_deeptector_forward.1} parent=1 // pred_fallthru
      _
    // Predicated region
    $region6: #{spike_deeptector_forward.1} parent=1 // pred_check
      _
    $region7: #{spike_deeptector_forward.1} parent=1 // pred_check_branch
      %33 = sbr.rel (0) target = $region9
    $region8: #{spike_deeptector_forward.1} parent=1 // pred_region
      _
    $region9: #{spike_deeptector_forward.1} parent=1 // pred_fallthru
      _
    // Predicated region
    $region10: #{spike_deeptector_forward.1} parent=1 // pred_check
      _
    $region11: #{spike_deeptector_forward.1} parent=1 // pred_check_branch
      %35 = sbr.rel (0) target = $region13
    $region12: #{spike_deeptector_forward.1} parent=1 // pred_region
      %s37 = ssub.s32 3072, 3072
      %38 = vsyncadd [#allocation5], %s37
      %s39 = sshll.u32 [#allocation4], 4
      %s40 = int_to_ptr.vmem [resolvable:$true] %s39
      %45 = dma.hbm_to_vmem [thread:$0]  %s2, 3072, %s40, [#allocation5], 256, 256, 16
    $region13: #{spike_deeptector_forward.1} parent=1 // pred_fallthru
      _
    // Predicated region
    $region14: #{spike_deeptector_forward.1} parent=1 // pred_check
      _
    $region15: #{spike_deeptector_forward.1} parent=1 // pred_check_branch
      %47 = sbr.rel (0) target = $region17
    $region16: #{spike_deeptector_forward.1} parent=1 // pred_region
      _
    $region17: #{spike_deeptector_forward.1} parent=1 // pred_fallthru
      _
    // Predicated region
    $region18: #{spike_deeptector_forward.1} parent=1 // pred_check
      _
    $region19: #{spike_deeptector_forward.1} parent=1 // pred_check_branch
      %49 = sbr.rel (0) target = $region21
    $region20: #{spike_deeptector_forward.1} parent=1 // pred_region
      %s51 = ssub.s32 4096, 4096
      %52 = vsyncadd [#allocation8], %s51
      %s53 = sshll.u32 [#allocation7], 4
      %s54 = int_to_ptr.vmem [resolvable:$true] %s53
      %59 = dma.hbm_to_vmem [thread:$0]  %s4, 4096, %s54, [#allocation8], 64, 64, 4
    $region21: #{spike_deeptector_forward.1} parent=1 // pred_fallthru
      _
    // Predicated region
    $region22: #{spike_deeptector_forward.1} parent=1 // pred_check
      _
    $region23: #{spike_deeptector_forward.1} parent=1 // pred_check_branch
      %61 = sbr.rel (0) target = $region25
    $region24: #{spike_deeptector_forward.1} parent=1 // pred_region
      %s63 = ssub.s32 4096, 4096
      %64 = vsyncadd [#allocation8], %s63
      %s65 = sshll.u32 [#allocation9], 4
      %s66 = int_to_ptr.vmem [resolvable:$true] %s65
      %71 = dma.hbm_to_vmem [thread:$0]  %s5, 4096, %s66, [#allocation8], 256, 256, 16
    $region25: #{spike_deeptector_forward.1} parent=1 // pred_fallthru
      _
    // Predicated region
    $region26: #{spike_deeptector_forward.1} parent=1 // pred_check
      _
    $region27: #{spike_deeptector_forward.1} parent=1 // pred_check_branch
      %73 = sbr.rel (0) target = $region29
    $region28: #{spike_deeptector_forward.1} parent=1 // pred_region
      %s75 = ssub.s32 12288, 12288
      %76 = vsyncadd [#allocation11], %s75
      %s77 = sshll.u32 [#allocation10], 4
      %s78 = int_to_ptr.vmem [resolvable:$true] %s77
      %83 = dma.hbm_to_vmem [thread:$0]  %s6, 12288, %s78, [#allocation11], 64, 64, 4
    $region29: #{spike_deeptector_forward.1} parent=1 // pred_fallthru
      _
    // Predicated region
    $region30: #{spike_deeptector_forward.1} parent=1 // pred_check
      _
    $region31: #{spike_deeptector_forward.1} parent=1 // pred_check_branch
      %85 = sbr.rel (0) target = $region33
    $region32: #{spike_deeptector_forward.1} parent=1 // pred_region
      _
    $region33: #{spike_deeptector_forward.1} parent=1 // pred_fallthru
      _
    // Predicated region
    $region34: #{spike_deeptector_forward.1} parent=1 // pred_check
      _
    $region35: #{spike_deeptector_forward.1} parent=1 // pred_check_branch
      %87 = sbr.rel (0) target = $region37
    $region36: #{spike_deeptector_forward.1} parent=1 // pred_region
      %s89 = ssub.s32 3072, 3072
      %90 = vsyncadd [#allocation11], %s89
      %s91 = sshll.u32 [#allocation12], 4
      %s92 = int_to_ptr.vmem [resolvable:$true] %s91
      %97 = dma.hbm_to_vmem [thread:$0]  %s8, 3072, %s92, [#allocation11], 64, 64, 4
    $region37: #{spike_deeptector_forward.1} parent=1 // pred_fallthru
      _
    // Predicated region
    $region38: #{spike_deeptector_forward.1} parent=1 // pred_check
      _
    $region39: #{spike_deeptector_forward.1} parent=1 // pred_check_branch
      %99 = sbr.rel (0) target = $region41
    $region40: #{spike_deeptector_forward.1} parent=1 // pred_region
      _
    $region41: #{spike_deeptector_forward.1} parent=1 // pred_fallthru
      _
    // Predicated region
    $region42: #{spike_deeptector_forward.1} parent=1 // pred_check
      _
    $region43: #{spike_deeptector_forward.1} parent=1 // pred_check_branch
      %101 = sbr.rel (0) target = $region45
    $region44: #{spike_deeptector_forward.1} parent=1 // pred_region
      %s103 = ssub.s32 3072, 3072
      %104 = vsyncadd [#allocation14], %s103
      %s105 = sshll.u32 [#allocation13], 4
      %s106 = int_to_ptr.vmem [resolvable:$true] %s105
      %111 = dma.hbm_to_vmem [thread:$0]  %s10, 3072, %s106, [#allocation14], 64, 64, 4
    $region45: #{spike_deeptector_forward.1} parent=1 // pred_fallthru
      _
    // Predicated region
    $region46: #{spike_deeptector_forward.1} parent=1 // pred_check
      _
    $region47: #{spike_deeptector_forward.1} parent=1 // pred_check_branch
      %113 = sbr.rel (0) target = $region49
    $region48: #{spike_deeptector_forward.1} parent=1 // pred_region
      _
    $region49: #{spike_deeptector_forward.1} parent=1 // pred_fallthru
      _
    // Predicated region
    $region50: #{spike_deeptector_forward.1} parent=1 // pred_check
      _
    $region51: #{spike_deeptector_forward.1} parent=1 // pred_check_branch
      %115 = sbr.rel (0) target = $region53
    $region52: #{spike_deeptector_forward.1} parent=1 // pred_region
      _
    $region53: #{spike_deeptector_forward.1} parent=1 // pred_fallthru
      _
    // Predicated region
    $region54: #{spike_deeptector_forward.1} parent=1 // pred_check
      _
    $region55: #{spike_deeptector_forward.1} parent=1 // pred_check_branch
      %117 = sbr.rel (0) target = $region57
    $region56: #{spike_deeptector_forward.1} parent=1 // pred_region
      _
    $region57: #{spike_deeptector_forward.1} parent=1 // pred_fallthru
      _
    // Predicated region
    $region58: #{spike_deeptector_forward.1} parent=1 // pred_check
      _
    $region59: #{spike_deeptector_forward.1} parent=1 // pred_check_branch
      %119 = sbr.rel (0) target = $region61
    $region60: #{spike_deeptector_forward.1} parent=1 // pred_region
      %s121 = ssub.s32 5120, 5120
      %122 = vsyncadd [#allocation14], %s121
      %s123 = sshll.u32 [#allocation15], 4
      %s124 = int_to_ptr.vmem [resolvable:$true] %s123
      %129 = dma.hbm_to_vmem [thread:$0]  %s14, 5120, %s124, [#allocation14], 64, 64, 4
    $region61: #{spike_deeptector_forward.1} parent=1 // pred_fallthru
      _
    // Predicated region
    $region62: #{spike_deeptector_forward.1} parent=1 // pred_check
      _
    $region63: #{spike_deeptector_forward.1} parent=1 // pred_check_branch
      %131 = sbr.rel (0) target = $region65
    $region64: #{spike_deeptector_forward.1} parent=1 // pred_region
      _
    $region65: #{spike_deeptector_forward.1} parent=1 // pred_fallthru
      _
    // Predicated region
    $region66: #{spike_deeptector_forward.1} parent=1 // pred_check
      _
    $region67: #{spike_deeptector_forward.1} parent=1 // pred_check_branch
      %133 = sbr.rel (0) target = $region69
    $region68: #{spike_deeptector_forward.1} parent=1 // pred_region
      _
    $region69: #{spike_deeptector_forward.1} parent=1 // pred_fallthru
      _
    // Predicated region
    $region70: #{spike_deeptector_forward.1} parent=1 // pred_check
      _
    $region71: #{spike_deeptector_forward.1} parent=1 // pred_check_branch
      %135 = sbr.rel (0) target = $region73
    $region72: #{spike_deeptector_forward.1} parent=1 // pred_region
      _
    $region73: #{spike_deeptector_forward.1} parent=1 // pred_fallthru
      _
    // Predicated region
    $region74: #{spike_deeptector_forward.1} parent=1 // pred_check
      _
    $region75: #{spike_deeptector_forward.1} parent=1 // pred_check_branch
      %137 = sbr.rel (0) target = $region77
    $region76: #{spike_deeptector_forward.1} parent=1 // pred_region
      _
    $region77: #{spike_deeptector_forward.1} parent=1 // pred_fallthru
      _
    // Predicated region
    $region78: #{spike_deeptector_forward.1} parent=1 // pred_check
      _
    $region79: #{spike_deeptector_forward.1} parent=1 // pred_check_branch
      %139 = sbr.rel (0) target = $region81
    $region80: #{spike_deeptector_forward.1} parent=1 // pred_region
      %140 = dma.done [#allocation5], 3072
    $region81: #{spike_deeptector_forward.1} parent=1 // pred_fallthru
      _
    // Predicated region
    $region82: #{spike_deeptector_forward.1} parent=1 // pred_check
      _
    $region83: #{spike_deeptector_forward.1} parent=1 // pred_check_branch
      %142 = sbr.rel (0) target = $region85
    $region84: #{spike_deeptector_forward.1} parent=1 // pred_region
      %143 = dma.done [#allocation8], 4096
    $region85: #{spike_deeptector_forward.1} parent=1 // pred_fallthru
      _
    // Predicated region
    $region86: #{spike_deeptector_forward.1} parent=1 // pred_check
      _
    $region87: #{spike_deeptector_forward.1} parent=1 // pred_check_branch
      %145 = sbr.rel (0) target = $region89
    $region88: #{spike_deeptector_forward.1} parent=1 // pred_region
      %146 = dma.done [#allocation8], 4096
    $region89: #{spike_deeptector_forward.1} parent=1 // pred_fallthru
      _
    // Predicated region
    $region90: #{spike_deeptector_forward.1} parent=1 // pred_check
      _
    $region91: #{spike_deeptector_forward.1} parent=1 // pred_check_branch
      %148 = sbr.rel (0) target = $region93
    $region92: #{spike_deeptector_forward.1} parent=1 // pred_region
      %149 = dma.done [#allocation11], 12288
    $region93: #{spike_deeptector_forward.1} parent=1 // pred_fallthru
      _
    // Predicated region
    $region94: #{spike_deeptector_forward.1} parent=1 // pred_check
      _
    $region95: #{spike_deeptector_forward.1} parent=1 // pred_check_branch
      %151 = sbr.rel (0) target = $region97
    $region96: #{spike_deeptector_forward.1} parent=1 // pred_region
      %152 = dma.done [#allocation11], 3072
    $region97: #{spike_deeptector_forward.1} parent=1 // pred_fallthru
      _
    // Predicated region
    $region98: #{spike_deeptector_forward.1} parent=1 // pred_check
      _
    $region99: #{spike_deeptector_forward.1} parent=1 // pred_check_branch
      %154 = sbr.rel (0) target = $region101
    $region100: #{spike_deeptector_forward.1} parent=1 // pred_region
      %155 = dma.done [#allocation14], 3072
    $region101: #{spike_deeptector_forward.1} parent=1 // pred_fallthru
      _
    // Predicated region
    $region102: #{spike_deeptector_forward.1} parent=1 // pred_check
      _
    $region103: #{spike_deeptector_forward.1} parent=1 // pred_check_branch
      %157 = sbr.rel (0) target = $region105
    $region104: #{spike_deeptector_forward.1} parent=1 // pred_region
      %158 = dma.done [#allocation14], 5120
    $region105: #{spike_deeptector_forward.1} parent=1 // pred_fallthru
      _
    // Predicated region
    $region106: #{spike_deeptector_forward.1} parent=1 // pred_check
      _
    $region107: #{spike_deeptector_forward.1} parent=1 // pred_check_branch
      %161 = sbr.rel target = $region109
    $region108: #{spike_deeptector_forward.1} parent=1 // pred_region
      %162 = sst [smem:[#allocation19]] [#allocation18]
      %163 = sst [smem:[#allocation20]] [#allocation17]
    $region109: #{spike_deeptector_forward.1} parent=1 // pred_fallthru
      _
    %165 = shalt.err (0)
    %s167 = sshll.u32 [#allocation2], 4
    %s168 = int_to_ptr.vmem [resolvable:$true] %s167
    %170 = dma.hbm_to_vmem [thread:$0]  %s16, 29696, %s168, [#allocation3]
    %v171 = vld [vmem:[%s1] sm:$0xff]
    %v172 = vld [vmem:[%s1 + $0x8] sm:$0xff]
    %v173 = vld [vmem:[%s1 + $0x10] sm:$0xff]
    %v174 = vld [vmem:[%s1 + $0x18] sm:$0xff]
    %v175 = vld [vmem:[%s1 + $0x20] sm:$0xff]
    %v176 = vld [vmem:[%s1 + $0x28] sm:$0xff]
    %v177 = vld [vmem:[%s1 + $0x30] sm:$0x3]
    %v178 = vld [vmem:[%s0] sm:$0xff]
    %v179 = vld [vmem:[%s0 + $0x8] sm:$0xff]
    %v180 = vld [vmem:[%s0 + $0x10] sm:$0xff]
    %v181 = vld [vmem:[%s0 + $0x18] sm:$0xff]
    %v182 = vld [vmem:[%s0 + $0x20] sm:$0xff]
    %v183 = vld [vmem:[%s0 + $0x28] sm:$0xff]
    %v184 = vld [vmem:[%s0 + $0x30] sm:$0x3]
    %v185 = vsub.f32 %v178, %v171
    %v186 = vsub.f32 %v179, %v172
    %v187 = vsub.f32 %v180, %v173
    %v188 = vsub.f32 %v181, %v174
    %v189 = vsub.f32 %v182, %v175
    %v190 = vsub.f32 %v183, %v176
    %v191 = vsub.f32 %v184, %v177
    %s192 = scalar_lea.vmem %s0, 56
    %v193 = vld [vmem:[%s192] sm:$0xff]
    %v194 = vld [vmem:[%s192 + $0x8] sm:$0xff]
    %v195 = vld [vmem:[%s192 + $0x10] sm:$0xff]
    %v196 = vld [vmem:[%s192 + $0x18] sm:$0xff]
    %v197 = vld [vmem:[%s192 + $0x20] sm:$0xff]
    %v198 = vld [vmem:[%s192 + $0x28] sm:$0xff]
    %v199 = vld [vmem:[%s192 + $0x30] sm:$0x3]
    %v200 = vsub.f32 %v193, %v171
    %v201 = vsub.f32 %v194, %v172
    %v202 = vsub.f32 %v195, %v173
    %v203 = vsub.f32 %v196, %v174
    %v204 = vsub.f32 %v197, %v175
    %v205 = vsub.f32 %v198, %v176
    %v206 = vsub.f32 %v199, %v177
    %v207 = vld [vmem:[%s3] sm:$0xf]
    %v208 = vpack.c.bf16 %v186, %v185
    %v209 = vpack.c.bf16 %v188, %v187
    %v210 = vpack.c.bf16 %v190, %v189
    %v211 = vpack.c.bf16 %v201, %v200
    %v212 = vpack.c.bf16 %v203, %v202
    %v213 = vpack.c.bf16 %v205, %v204
    %v214 = vld [vmem:[#allocation4] sm:$0xff]
    %v215 = vld [vmem:[#allocation4 + $0x8] sm:$0xff]
    %v216 = vld [vmem:[#allocation4 + $0x10] sm:$0xff]
    %v217 = vld [vmem:[#allocation4 + $0x18] sm:$0xff]
    %v218 = vld [vmem:[#allocation4 + $0x20] sm:$0xff]
    %v219 = vld [vmem:[#allocation4 + $0x28] sm:$0xff]
    %v220 = vld [vmem:[#allocation4 + $0x30] sm:$0xff]
    %v221 = vld [vmem:[#allocation4 + $0x38] sm:$0xff]
    %v230 = vunpack.c.l.b16 %v214
    %v231 = vunpack.c.h.b16 %v214
    %v232 = vunpack.c.l.b16 %v215
    %v233 = vunpack.c.h.b16 %v215
    %v234 = vunpack.c.l.b16 %v216
    %v235 = vunpack.c.h.b16 %v216
    %v236 = vunpack.c.l.b16 %v217
    %v237 = vunpack.c.h.b16 %v217
    %v238 = vunpack.c.l.b16 %v218
    %v239 = vunpack.c.h.b16 %v218
    %v240 = vunpack.c.l.b16 %v219
    %v241 = vunpack.c.h.b16 %v219
    %v242 = vunpack.c.l.b16 %v220
    %v243 = vunpack.c.h.b16 %v220
    %v244 = vunpack.c.l.b16 %v221
    %v245 = vunpack.c.h.b16 %v221
    %v246 = vpack.c.b16 %v234, %v230
    %v247 = vpack.c.b16 %v235, %v231
    %v248 = vpack.c.b16 %v236, %v232
    %v249 = vpack.c.b16 %v237, %v233
    %v250 = vpack.c.b16 %v242, %v238
    %v251 = vpack.c.b16 %v243, %v239
    %v252 = vpack.c.b16 %v244, %v240
    %v253 = vpack.c.b16 %v245, %v241
    %vm262 = vcmask 261120
    %v264 = vsel %vm262, %v208, 0
    %v267 = vsel %vm262, %v209, 0
    %v270 = vsel %vm262, %v210, 0
    %v273 = vsel %vm262, %v211, 0
    %v276 = vsel %vm262, %v212, 0
    %v279 = vsel %vm262, %v213, 0
    %281 = vmatprep.subr.bf16.mxu0 %v247
    %282 = vmatpush1.bf16.msra.mxu0 %v246
    %283 = vmatprep.subr.bf16.mxu0 %v251
    %284 = vmatpush1.bf16.msra.mxu0 %v250
    %285 = vmatprep.subr.bf16.mxu0 0
    %286 = vmatpush1.bf16.msra.mxu0 0
    %287 = vmatprep.subr.bf16.mxu0 0
    %288 = vmatpush1.bf16.msra.mxu0 0
    %289 = vmatprep.subr.bf16.mxu0 0
    %290 = vmatpush1.bf16.msra.mxu0 0
    %291 = vmatprep.subr.bf16.mxu0 0
    %292 = vmatpush1.bf16.msra.mxu0 0
    %293 = vmatprep.subr.bf16.mxu0 0
    %294 = vmatpush1.bf16.msra.mxu0 0
    %295 = vmatprep.subr.bf16.mxu0 0
    %296 = vmatpush1.bf16.msra.mxu0 0
    %297 = vmatprep.subr.bf16.mxu0 0
    %298 = vmatpush1.bf16.msra.mxu0 0
    %299 = vmatprep.subr.bf16.mxu0 0
    %300 = vmatpush1.bf16.msra.mxu0 0
    %301 = vmatprep.subr.bf16.mxu0 0
    %302 = vmatpush1.bf16.msra.mxu0 0
    %303 = vmatprep.subr.bf16.mxu0 0
    %304 = vmatpush1.bf16.msra.mxu0 0
    %305 = vmatprep.subr.bf16.mxu0 0
    %306 = vmatpush1.bf16.msra.mxu0 0
    %307 = vmatprep.subr.bf16.mxu0 0
    %308 = vmatpush1.bf16.msra.mxu0 0
    %309 = vmatprep.subr.bf16.mxu0 0
    %310 = vmatpush1.bf16.msra.mxu0 0
    %311 = vmatprep.subr.bf16.mxu0 0
    %312 = vmatpush1.bf16.msra.mxu0 0
    %313 = vmatprep.mubr.bf16.mxu0 0
    %314 = vmatmul.mubr.bf16.gmra.mrb[0].mxu0 %v264
    %v315 = vpop.f32.mrb[0].mxu0
    %v316 = vadd.f32 0.0, %v315
    %v317 = vpop.f32.mrb[0].mxu0
    %v318 = vadd.f32 0.0, %v317
    %v319 = vpop.f32.mrb[0].mxu0
    %v320 = vadd.f32 0.0, %v319
    %v321 = vpop.f32.mrb[0].mxu0
    %v322 = vadd.f32 0.0, %v321
    %323 = vmatprep.mubr.bf16.mxu0 0
    %324 = vmatmul.mubr.bf16.gmra.mrb[0].mxu0 %v267
    %v325 = vpop.f32.mrb[0].mxu0
    %v326 = vadd.f32 0.0, %v325
    %v327 = vpop.f32.mrb[0].mxu0
    %v328 = vadd.f32 0.0, %v327
    %v329 = vpop.f32.mrb[0].mxu0
    %v330 = vadd.f32 0.0, %v329
    %v331 = vpop.f32.mrb[0].mxu0
    %v332 = vadd.f32 0.0, %v331
    %333 = vmatprep.mubr.bf16.mxu0 0
    %334 = vmatmul.mubr.bf16.gmra.mrb[0].mxu0 %v270
    %v335 = vpop.f32.mrb[0].mxu0
    %v336 = vadd.f32 0.0, %v335
    %v337 = vpop.f32.mrb[0].mxu0
    %v338 = vadd.f32 0.0, %v337
    %v339 = vpop.f32.mrb[0].mxu0
    %v340 = vadd.f32 0.0, %v339
    %v341 = vpop.f32.mrb[0].mxu0
    %v342 = vadd.f32 0.0, %v341
    %343 = vmatprep.mubr.bf16.mxu0 0
    %344 = vmatmul.mubr.bf16.gmra.mrb[0].mxu0 %v273
    %v345 = vpop.f32.mrb[0].mxu0
    %v346 = vadd.f32 0.0, %v345
    %v347 = vpop.f32.mrb[0].mxu0
    %v348 = vadd.f32 0.0, %v347
    %v349 = vpop.f32.mrb[0].mxu0
    %v350 = vadd.f32 0.0, %v349
    %v351 = vpop.f32.mrb[0].mxu0
    %v352 = vadd.f32 0.0, %v351
    %353 = vmatprep.mubr.bf16.mxu0 0
    %354 = vmatmul.mubr.bf16.gmra.mrb[0].mxu0 %v276
    %v355 = vpop.f32.mrb[0].mxu0
    %v356 = vadd.f32 0.0, %v355
    %v357 = vpop.f32.mrb[0].mxu0
    %v358 = vadd.f32 0.0, %v357
    %v359 = vpop.f32.mrb[0].mxu0
    %v360 = vadd.f32 0.0, %v359
    %v361 = vpop.f32.mrb[0].mxu0
    %v362 = vadd.f32 0.0, %v361
    %363 = vmatprep.mubr.bf16.mxu0 0
    %364 = vmatmul.mubr.bf16.gmra.mrb[0].mxu0 %v279
    %v365 = vpop.f32.mrb[0].mxu0
    %v366 = vadd.f32 0.0, %v365
    %v367 = vpop.f32.mrb[0].mxu0
    %v368 = vadd.f32 0.0, %v367
    %v369 = vpop.f32.mrb[0].mxu0
    %v370 = vadd.f32 0.0, %v369
    %v371 = vpop.f32.mrb[0].mxu0
    %v372 = vadd.f32 0.0, %v371
    %373 = vdwg.mxu0
    %374 = vmatprep.subr.bf16.mxu0 %v249
    %375 = vmatpush1.bf16.msra.mxu0 %v248
    %376 = vmatprep.subr.bf16.mxu0 %v253
    %377 = vmatpush1.bf16.msra.mxu0 %v252
    %378 = vmatprep.subr.bf16.mxu0 0
    %379 = vmatpush1.bf16.msra.mxu0 0
    %380 = vmatprep.subr.bf16.mxu0 0
    %381 = vmatpush1.bf16.msra.mxu0 0
    %382 = vmatprep.subr.bf16.mxu0 0
    %383 = vmatpush1.bf16.msra.mxu0 0
    %384 = vmatprep.subr.bf16.mxu0 0
    %385 = vmatpush1.bf16.msra.mxu0 0
    %386 = vmatprep.subr.bf16.mxu0 0
    %387 = vmatpush1.bf16.msra.mxu0 0
    %388 = vmatprep.subr.bf16.mxu0 0
    %389 = vmatpush1.bf16.msra.mxu0 0
    %390 = vmatprep.subr.bf16.mxu0 0
    %391 = vmatpush1.bf16.msra.mxu0 0
    %392 = vmatprep.subr.bf16.mxu0 0
    %393 = vmatpush1.bf16.msra.mxu0 0
    %394 = vmatprep.subr.bf16.mxu0 0
    %395 = vmatpush1.bf16.msra.mxu0 0
    %396 = vmatprep.subr.bf16.mxu0 0
    %397 = vmatpush1.bf16.msra.mxu0 0
    %398 = vmatprep.subr.bf16.mxu0 0
    %399 = vmatpush1.bf16.msra.mxu0 0
    %400 = vmatprep.subr.bf16.mxu0 0
    %401 = vmatpush1.bf16.msra.mxu0 0
    %402 = vmatprep.subr.bf16.mxu0 0
    %403 = vmatpush1.bf16.msra.mxu0 0
    %404 = vmatprep.subr.bf16.mxu0 0
    %405 = vmatpush1.bf16.msra.mxu0 0
    %406 = vmatprep.mubr.bf16.mxu0 0
    %407 = vmatmul.mubr.bf16.gmra.mrb[0].mxu0 %v264
    %v408 = vpop.f32.mrb[0].mxu0
    %v409 = vadd.f32 0.0, %v408
    %v410 = vpop.f32.mrb[0].mxu0
    %v411 = vadd.f32 0.0, %v410
    %v412 = vpop.f32.mrb[0].mxu0
    %v413 = vadd.f32 0.0, %v412
    %v414 = vpop.f32.mrb[0].mxu0
    %v415 = vadd.f32 0.0, %v414
    %416 = vmatprep.mubr.bf16.mxu0 0
    %417 = vmatmul.mubr.bf16.gmra.mrb[0].mxu0 %v267
    %v418 = vpop.f32.mrb[0].mxu0
    %v419 = vadd.f32 0.0, %v418
    %v420 = vpop.f32.mrb[0].mxu0
    %v421 = vadd.f32 0.0, %v420
    %v422 = vpop.f32.mrb[0].mxu0
    %v423 = vadd.f32 0.0, %v422
    %v424 = vpop.f32.mrb[0].mxu0
    %v425 = vadd.f32 0.0, %v424
    %426 = vmatprep.mubr.bf16.mxu0 0
    %427 = vmatmul.mubr.bf16.gmra.mrb[0].mxu0 %v270
    %v428 = vpop.f32.mrb[0].mxu0
    %v429 = vadd.f32 0.0, %v428
    %v430 = vpop.f32.mrb[0].mxu0
    %v431 = vadd.f32 0.0, %v430
    %v432 = vpop.f32.mrb[0].mxu0
    %v433 = vadd.f32 0.0, %v432
    %v434 = vpop.f32.mrb[0].mxu0
    %v435 = vadd.f32 0.0, %v434
    %436 = vmatprep.mubr.bf16.mxu0 0
    %437 = vmatmul.mubr.bf16.gmra.mrb[0].mxu0 %v273
    %v438 = vpop.f32.mrb[0].mxu0
    %v439 = vadd.f32 0.0, %v438
    %v440 = vpop.f32.mrb[0].mxu0
    %v441 = vadd.f32 0.0, %v440
    %v442 = vpop.f32.mrb[0].mxu0
    %v443 = vadd.f32 0.0, %v442
    %v444 = vpop.f32.mrb[0].mxu0
    %v445 = vadd.f32 0.0, %v444
    %446 = vmatprep.mubr.bf16.mxu0 0
    %447 = vmatmul.mubr.bf16.gmra.mrb[0].mxu0 %v276
    %v448 = vpop.f32.mrb[0].mxu0
    %v449 = vadd.f32 0.0, %v448
    %v450 = vpop.f32.mrb[0].mxu0
    %v451 = vadd.f32 0.0, %v450
    %v452 = vpop.f32.mrb[0].mxu0
    %v453 = vadd.f32 0.0, %v452
    %v454 = vpop.f32.mrb[0].mxu0
    %v455 = vadd.f32 0.0, %v454
    %456 = vmatprep.mubr.bf16.mxu0 0
    %457 = vmatmul.mubr.bf16.gmra.mrb[0].mxu0 %v279
    %v458 = vpop.f32.mrb[0].mxu0
    %v459 = vadd.f32 0.0, %v458
    %v460 = vpop.f32.mrb[0].mxu0
    %v461 = vadd.f32 0.0, %v460
    %v462 = vpop.f32.mrb[0].mxu0
    %v463 = vadd.f32 0.0, %v462
    %v464 = vpop.f32.mrb[0].mxu0
    %v465 = vadd.f32 0.0, %v464
    %466 = vdwg.mxu0
    %v468 = vlaneseq
    %v469 = vshrl.u32 %v468, 7
    %v470 = vsub.s32 0, %v469
    %v471 = vrot.slane %v207, %v470
    %v472 = vlaneseq
    %v473 = vshrl.u32 %v472, 7
    %v474 = vsub.s32 1, %v473
    %v475 = vrot.slane %v207, %v474
    %v476 = vlaneseq
    %v477 = vshrl.u32 %v476, 7
    %v478 = vsub.s32 2, %v477
    %v479 = vrot.slane %v207, %v478
    %v480 = vlaneseq
    %v481 = vshrl.u32 %v480, 7
    %v482 = vsub.s32 3, %v481
    %v483 = vrot.slane %v207, %v482
    %v488 = vadd.f32 %v471, %v316
    %v489 = vadd.f32 %v475, %v318
    %v490 = vadd.f32 %v479, %v409
    %v491 = vadd.f32 %v483, %v411
    %v492 = vadd.f32 %v471, %v320
    %v493 = vadd.f32 %v475, %v322
    %v494 = vadd.f32 %v479, %v413
    %v495 = vadd.f32 %v483, %v415
    %v496 = vadd.f32 %v471, %v326
    %v497 = vadd.f32 %v475, %v328
    %v498 = vadd.f32 %v479, %v419
    %v499 = vadd.f32 %v483, %v421
    %v500 = vadd.f32 %v471, %v330
    %v501 = vadd.f32 %v475, %v332
    %v502 = vadd.f32 %v479, %v423
    %v503 = vadd.f32 %v483, %v425
    %v504 = vadd.f32 %v471, %v336
    %v505 = vadd.f32 %v475, %v338
    %v506 = vadd.f32 %v479, %v429
    %v507 = vadd.f32 %v483, %v431
    %v508 = vadd.f32 %v471, %v340
    %v509 = vadd.f32 %v475, %v342
    %v510 = vadd.f32 %v479, %v433
    %v511 = vadd.f32 %v483, %v435
    %v512 = vadd.f32 %v471, %v346
    %v513 = vadd.f32 %v475, %v348
    %v514 = vadd.f32 %v479, %v439
    %v515 = vadd.f32 %v483, %v441
    %v516 = vadd.f32 %v471, %v350
    %v517 = vadd.f32 %v475, %v352
    %v518 = vadd.f32 %v479, %v443
    %v519 = vadd.f32 %v483, %v445
    %v520 = vadd.f32 %v471, %v356
    %v521 = vadd.f32 %v475, %v358
    %v522 = vadd.f32 %v479, %v449
    %v523 = vadd.f32 %v483, %v451
    %v524 = vadd.f32 %v471, %v360
    %v525 = vadd.f32 %v475, %v362
    %v526 = vadd.f32 %v479, %v453
    %v527 = vadd.f32 %v483, %v455
    %v528 = vadd.f32 %v471, %v366
    %v529 = vadd.f32 %v475, %v368
    %v530 = vadd.f32 %v479, %v459
    %v531 = vadd.f32 %v483, %v461
    %v532 = vadd.f32 %v471, %v370
    %v533 = vadd.f32 %v475, %v372
    %v534 = vadd.f32 %v479, %v463
    %v535 = vadd.f32 %v483, %v465
    %vm543 = vcmask 1046528
    %v544 = vrot.slane %v185, 1
    %v545 = vrot.slane %v186, 1
    %v546 = vsel %vm543, %v544, %v545
    %v547 = vrot.slane %v187, 1
    %v548 = vsel %vm543, %v545, %v547
    %v549 = vrot.slane %v188, 1
    %v550 = vsel %vm543, %v547, %v549
    %v551 = vrot.slane %v189, 1
    %v552 = vsel %vm543, %v549, %v551
    %v553 = vrot.slane %v190, 1
    %v554 = vsel %vm543, %v551, %v553
    %v555 = vrot.slane %v191, 1
    %v556 = vsel %vm543, %v553, %v555
    %v570 = vrot.slane %v200, 1
    %v571 = vrot.slane %v201, 1
    %v572 = vsel %vm543, %v570, %v571
    %v573 = vrot.slane %v202, 1
    %v574 = vsel %vm543, %v571, %v573
    %v575 = vrot.slane %v203, 1
    %v576 = vsel %vm543, %v573, %v575
    %v577 = vrot.slane %v204, 1
    %v578 = vsel %vm543, %v575, %v577
    %v579 = vrot.slane %v205, 1
    %v580 = vsel %vm543, %v577, %v579
    %v581 = vrot.slane %v206, 1
    %v582 = vsel %vm543, %v579, %v581
    %v589 = vpack.c.bf16 %v548, %v546
    %v590 = vpack.c.bf16 %v552, %v550
    %v591 = vpack.c.bf16 %v556, %v554
    %v592 = vpack.c.bf16 %v574, %v572
    %v593 = vpack.c.bf16 %v578, %v576
    %v594 = vpack.c.bf16 %v582, %v580
    %s595 = scalar_lea.vmem [#allocation4], 64
    %v596 = vld [vmem:[%s595] sm:$0xff]
    %v597 = vld [vmem:[%s595 + $0x8] sm:$0xff]
    %v598 = vld [vmem:[%s595 + $0x10] sm:$0xff]
    %v599 = vld [vmem:[%s595 + $0x18] sm:$0xff]
    %v600 = vld [vmem:[%s595 + $0x20] sm:$0xff]
    %v601 = vld [vmem:[%s595 + $0x28] sm:$0xff]
    %v602 = vld [vmem:[%s595 + $0x30] sm:$0xff]
    %v603 = vld [vmem:[%s595 + $0x38] sm:$0xff]
    %v612 = vunpack.c.l.b16 %v596
    %v613 = vunpack.c.h.b16 %v596
    %v614 = vunpack.c.l.b16 %v597
    %v615 = vunpack.c.h.b16 %v597
    %v616 = vunpack.c.l.b16 %v598
    %v617 = vunpack.c.h.b16 %v598
    %v618 = vunpack.c.l.b16 %v599
    %v619 = vunpack.c.h.b16 %v599
    %v620 = vunpack.c.l.b16 %v600
    %v621 = vunpack.c.h.b16 %v600
    %v622 = vunpack.c.l.b16 %v601
    %v623 = vunpack.c.h.b16 %v601
    %v624 = vunpack.c.l.b16 %v602
    %v625 = vunpack.c.h.b16 %v602
    %v626 = vunpack.c.l.b16 %v603
    %v627 = vunpack.c.h.b16 %v603
    %v628 = vpack.c.b16 %v616, %v612
    %v629 = vpack.c.b16 %v617, %v613
    %v630 = vpack.c.b16 %v618, %v614
    %v631 = vpack.c.b16 %v619, %v615
    %v632 = vpack.c.b16 %v624, %v620
    %v633 = vpack.c.b16 %v625, %v621
    %v634 = vpack.c.b16 %v626, %v622
    %v635 = vpack.c.b16 %v627, %v623
    %v645 = vsel %vm262, %v589, 0
    %v648 = vsel %vm262, %v590, 0
    %v651 = vsel %vm262, %v591, 0
    %v654 = vsel %vm262, %v592, 0
    %v657 = vsel %vm262, %v593, 0
    %v660 = vsel %vm262, %v594, 0
    %662 = vmatprep.subr.bf16.mxu0 %v629
    %663 = vmatpush1.bf16.msra.mxu0 %v628
    %664 = vmatprep.subr.bf16.mxu0 %v633
    %665 = vmatpush1.bf16.msra.mxu0 %v632
    %666 = vmatprep.subr.bf16.mxu0 0
    %667 = vmatpush1.bf16.msra.mxu0 0
    %668 = vmatprep.subr.bf16.mxu0 0
    %669 = vmatpush1.bf16.msra.mxu0 0
    %670 = vmatprep.subr.bf16.mxu0 0
    %671 = vmatpush1.bf16.msra.mxu0 0
    %672 = vmatprep.subr.bf16.mxu0 0
    %673 = vmatpush1.bf16.msra.mxu0 0
    %674 = vmatprep.subr.bf16.mxu0 0
    %675 = vmatpush1.bf16.msra.mxu0 0
    %676 = vmatprep.subr.bf16.mxu0 0
    %677 = vmatpush1.bf16.msra.mxu0 0
    %678 = vmatprep.subr.bf16.mxu0 0
    %679 = vmatpush1.bf16.msra.mxu0 0
    %680 = vmatprep.subr.bf16.mxu0 0
    %681 = vmatpush1.bf16.msra.mxu0 0
    %682 = vmatprep.subr.bf16.mxu0 0
    %683 = vmatpush1.bf16.msra.mxu0 0
    %684 = vmatprep.subr.bf16.mxu0 0
    %685 = vmatpush1.bf16.msra.mxu0 0
    %686 = vmatprep.subr.bf16.mxu0 0
    %687 = vmatpush1.bf16.msra.mxu0 0
    %688 = vmatprep.subr.bf16.mxu0 0
    %689 = vmatpush1.bf16.msra.mxu0 0
    %690 = vmatprep.subr.bf16.mxu0 0
    %691 = vmatpush1.bf16.msra.mxu0 0
    %692 = vmatprep.subr.bf16.mxu0 0
    %693 = vmatpush1.bf16.msra.mxu0 0
    %694 = vmatprep.mubr.bf16.mxu0 0
    %695 = vmatmul.mubr.bf16.gmra.mrb[0].mxu0 %v645
    %v696 = vpop.f32.mrb[0].mxu0
    %v697 = vadd.f32 0.0, %v696
    %v698 = vpop.f32.mrb[0].mxu0
    %v699 = vadd.f32 0.0, %v698
    %v700 = vpop.f32.mrb[0].mxu0
    %v701 = vadd.f32 0.0, %v700
    %v702 = vpop.f32.mrb[0].mxu0
    %v703 = vadd.f32 0.0, %v702
    %704 = vmatprep.mubr.bf16.mxu0 0
    %705 = vmatmul.mubr.bf16.gmra.mrb[0].mxu0 %v648
    %v706 = vpop.f32.mrb[0].mxu0
    %v707 = vadd.f32 0.0, %v706
    %v708 = vpop.f32.mrb[0].mxu0
    %v709 = vadd.f32 0.0, %v708
    %v710 = vpop.f32.mrb[0].mxu0
    %v711 = vadd.f32 0.0, %v710
    %v712 = vpop.f32.mrb[0].mxu0
    %v713 = vadd.f32 0.0, %v712
    %714 = vmatprep.mubr.bf16.mxu0 0
    %715 = vmatmul.mubr.bf16.gmra.mrb[0].mxu0 %v651
    %v716 = vpop.f32.mrb[0].mxu0
    %v717 = vadd.f32 0.0, %v716
    %v718 = vpop.f32.mrb[0].mxu0
    %v719 = vadd.f32 0.0, %v718
    %v720 = vpop.f32.mrb[0].mxu0
    %v721 = vadd.f32 0.0, %v720
    %v722 = vpop.f32.mrb[0].mxu0
    %v723 = vadd.f32 0.0, %v722
    %724 = vmatprep.mubr.bf16.mxu0 0
    %725 = vmatmul.mubr.bf16.gmra.mrb[0].mxu0 %v654
    %v726 = vpop.f32.mrb[0].mxu0
    %v727 = vadd.f32 0.0, %v726
    %v728 = vpop.f32.mrb[0].mxu0
    %v729 = vadd.f32 0.0, %v728
    %v730 = vpop.f32.mrb[0].mxu0
    %v731 = vadd.f32 0.0, %v730
    %v732 = vpop.f32.mrb[0].mxu0
    %v733 = vadd.f32 0.0, %v732
    %734 = vmatprep.mubr.bf16.mxu0 0
    %735 = vmatmul.mubr.bf16.gmra.mrb[0].mxu0 %v657
    %v736 = vpop.f32.mrb[0].mxu0
    %v737 = vadd.f32 0.0, %v736
    %v738 = vpop.f32.mrb[0].mxu0
    %v739 = vadd.f32 0.0, %v738
    %v740 = vpop.f32.mrb[0].mxu0
    %v741 = vadd.f32 0.0, %v740
    %v742 = vpop.f32.mrb[0].mxu0
    %v743 = vadd.f32 0.0, %v742
    %744 = vmatprep.mubr.bf16.mxu0 0
    %745 = vmatmul.mubr.bf16.gmra.mrb[0].mxu0 %v660
    %v746 = vpop.f32.mrb[0].mxu0
    %v747 = vadd.f32 0.0, %v746
    %v748 = vpop.f32.mrb[0].mxu0
    %v749 = vadd.f32 0.0, %v748
    %v750 = vpop.f32.mrb[0].mxu0
    %v751 = vadd.f32 0.0, %v750
    %v752 = vpop.f32.mrb[0].mxu0
    %v753 = vadd.f32 0.0, %v752
    %754 = vdwg.mxu0
    %755 = vmatprep.subr.bf16.mxu0 %v631
    %756 = vmatpush1.bf16.msra.mxu0 %v630
    %757 = vmatprep.subr.bf16.mxu0 %v635
    %758 = vmatpush1.bf16.msra.mxu0 %v634
    %759 = vmatprep.subr.bf16.mxu0 0
    %760 = vmatpush1.bf16.msra.mxu0 0
    %761 = vmatprep.subr.bf16.mxu0 0
    %762 = vmatpush1.bf16.msra.mxu0 0
    %763 = vmatprep.subr.bf16.mxu0 0
    %764 = vmatpush1.bf16.msra.mxu0 0
    %765 = vmatprep.subr.bf16.mxu0 0
    %766 = vmatpush1.bf16.msra.mxu0 0
    %767 = vmatprep.subr.bf16.mxu0 0
    %768 = vmatpush1.bf16.msra.mxu0 0
    %769 = vmatprep.subr.bf16.mxu0 0
    %770 = vmatpush1.bf16.msra.mxu0 0
    %771 = vmatprep.subr.bf16.mxu0 0
    %772 = vmatpush1.bf16.msra.mxu0 0
    %773 = vmatprep.subr.bf16.mxu0 0
    %774 = vmatpush1.bf16.msra.mxu0 0
    %775 = vmatprep.subr.bf16.mxu0 0
    %776 = vmatpush1.bf16.msra.mxu0 0
    %777 = vmatprep.subr.bf16.mxu0 0
    %778 = vmatpush1.bf16.msra.mxu0 0
    %779 = vmatprep.subr.bf16.mxu0 0
    %780 = vmatpush1.bf16.msra.mxu0 0
    %781 = vmatprep.subr.bf16.mxu0 0
    %782 = vmatpush1.bf16.msra.mxu0 0
    %783 = vmatprep.subr.bf16.mxu0 0
    %784 = vmatpush1.bf16.msra.mxu0 0
    %785 = vmatprep.subr.bf16.mxu0 0
    %786 = vmatpush1.bf16.msra.mxu0 0
    %787 = vmatprep.mubr.bf16.mxu0 0
    %788 = vmatmul.mubr.bf16.gmra.mrb[0].mxu0 %v645
    %v789 = vpop.f32.mrb[0].mxu0
    %v790 = vadd.f32 0.0, %v789
    %v791 = vpop.f32.mrb[0].mxu0
    %v792 = vadd.f32 0.0, %v791
    %v793 = vpop.f32.mrb[0].mxu0
    %v794 = vadd.f32 0.0, %v793
    %v795 = vpop.f32.mrb[0].mxu0
    %v796 = vadd.f32 0.0, %v795
    %797 = vmatprep.mubr.bf16.mxu0 0
    %798 = vmatmul.mubr.bf16.gmra.mrb[0].mxu0 %v648
    %v799 = vpop.f32.mrb[0].mxu0
    %v800 = vadd.f32 0.0, %v799
    %v801 = vpop.f32.mrb[0].mxu0
    %v802 = vadd.f32 0.0, %v801
    %v803 = vpop.f32.mrb[0].mxu0
    %v804 = vadd.f32 0.0, %v803
    %v805 = vpop.f32.mrb[0].mxu0
    %v806 = vadd.f32 0.0, %v805
    %807 = vmatprep.mubr.bf16.mxu0 0
    %808 = vmatmul.mubr.bf16.gmra.mrb[0].mxu0 %v651
    %v809 = vpop.f32.mrb[0].mxu0
    %v810 = vadd.f32 0.0, %v809
    %v811 = vpop.f32.mrb[0].mxu0
    %v812 = vadd.f32 0.0, %v811
    %v813 = vpop.f32.mrb[0].mxu0
    %v814 = vadd.f32 0.0, %v813
    %v815 = vpop.f32.mrb[0].mxu0
    %v816 = vadd.f32 0.0, %v815
    %817 = vmatprep.mubr.bf16.mxu0 0
    %818 = vmatmul.mubr.bf16.gmra.mrb[0].mxu0 %v654
    %v819 = vpop.f32.mrb[0].mxu0
    %v820 = vadd.f32 0.0, %v819
    %v821 = vpop.f32.mrb[0].mxu0
    %v822 = vadd.f32 0.0, %v821
    %v823 = vpop.f32.mrb[0].mxu0
    %v824 = vadd.f32 0.0, %v823
    %v825 = vpop.f32.mrb[0].mxu0
    %v826 = vadd.f32 0.0, %v825
    %827 = vmatprep.mubr.bf16.mxu0 0
    %828 = vmatmul.mubr.bf16.gmra.mrb[0].mxu0 %v657
    %v829 = vpop.f32.mrb[0].mxu0
    %v830 = vadd.f32 0.0, %v829
    %v831 = vpop.f32.mrb[0].mxu0
    %v832 = vadd.f32 0.0, %v831
    %v833 = vpop.f32.mrb[0].mxu0
    %v834 = vadd.f32 0.0, %v833
    %v835 = vpop.f32.mrb[0].mxu0
    %v836 = vadd.f32 0.0, %v835
    %837 = vmatprep.mubr.bf16.mxu0 0
    %838 = vmatmul.mubr.bf16.gmra.mrb[0].mxu0 %v660
    %v839 = vpop.f32.mrb[0].mxu0
    %v840 = vadd.f32 0.0, %v839
    %v841 = vpop.f32.mrb[0].mxu0
    %v842 = vadd.f32 0.0, %v841
    %v843 = vpop.f32.mrb[0].mxu0
    %v844 = vadd.f32 0.0, %v843
    %v845 = vpop.f32.mrb[0].mxu0
    %v846 = vadd.f32 0.0, %v845
    %847 = vdwg.mxu0
    %v848 = vadd.f32 %v488, %v697
    %v849 = vadd.f32 %v489, %v699
    %v850 = vadd.f32 %v490, %v790
    %v851 = vadd.f32 %v491, %v792
    %v852 = vadd.f32 %v492, %v701
    %v853 = vadd.f32 %v493, %v703
    %v854 = vadd.f32 %v494, %v794
    %v855 = vadd.f32 %v495, %v796
    %v856 = vadd.f32 %v496, %v707
    %v857 = vadd.f32 %v497, %v709
    %v858 = vadd.f32 %v498, %v800
    %v859 = vadd.f32 %v499, %v802
    %v860 = vadd.f32 %v500, %v711
    %v861 = vadd.f32 %v501, %v713
    %v862 = vadd.f32 %v502, %v804
    %v863 = vadd.f32 %v503, %v806
    %v864 = vadd.f32 %v504, %v717
    %v865 = vadd.f32 %v505, %v719
    %v866 = vadd.f32 %v506, %v810
    %v867 = vadd.f32 %v507, %v812
    %v868 = vadd.f32 %v508, %v721
    %v869 = vadd.f32 %v509, %v723
    %v870 = vadd.f32 %v510, %v814
    %v871 = vadd.f32 %v511, %v816
    %v872 = vadd.f32 %v512, %v727
    %v873 = vadd.f32 %v513, %v729
    %v874 = vadd.f32 %v514, %v820
    %v875 = vadd.f32 %v515, %v822
    %v876 = vadd.f32 %v516, %v731
    %v877 = vadd.f32 %v517, %v733
    %v878 = vadd.f32 %v518, %v824
    %v879 = vadd.f32 %v519, %v826
    %v880 = vadd.f32 %v520, %v737
    %v881 = vadd.f32 %v521, %v739
    %v882 = vadd.f32 %v522, %v830
    %v883 = vadd.f32 %v523, %v832
    %v884 = vadd.f32 %v524, %v741
    %v885 = vadd.f32 %v525, %v743
    %v886 = vadd.f32 %v526, %v834
    %v887 = vadd.f32 %v527, %v836
    %v888 = vadd.f32 %v528, %v747
    %v889 = vadd.f32 %v529, %v749
    %v890 = vadd.f32 %v530, %v840
    %v891 = vadd.f32 %v531, %v842
    %v892 = vadd.f32 %v532, %v751
    %v893 = vadd.f32 %v533, %v753
    %v894 = vadd.f32 %v534, %v844
    %v895 = vadd.f32 %v535, %v846
    %vm896 = vcmask 1045504
    %v897 = vrot.slane %v185, 2
    %v898 = vrot.slane %v186, 2
    %v899 = vsel %vm896, %v897, %v898
    %v900 = vrot.slane %v187, 2
    %v901 = vsel %vm896, %v898, %v900
    %v902 = vrot.slane %v188, 2
    %v903 = vsel %vm896, %v900, %v902
    %v904 = vrot.slane %v189, 2
    %v905 = vsel %vm896, %v902, %v904
    %v906 = vrot.slane %v190, 2
    %v907 = vsel %vm896, %v904, %v906
    %v908 = vrot.slane %v191, 2
    %v909 = vsel %vm896, %v906, %v908
    %v916 = vrot.slane %v200, 2
    %v917 = vrot.slane %v201, 2
    %v918 = vsel %vm896, %v916, %v917
    %v919 = vrot.slane %v202, 2
    %v920 = vsel %vm896, %v917, %v919
    %v921 = vrot.slane %v203, 2
    %v922 = vsel %vm896, %v919, %v921
    %v923 = vrot.slane %v204, 2
    %v924 = vsel %vm896, %v921, %v923
    %v925 = vrot.slane %v205, 2
    %v926 = vsel %vm896, %v923, %v925
    %v927 = vrot.slane %v206, 2
    %v928 = vsel %vm896, %v925, %v927
    %v935 = vpack.c.bf16 %v901, %v899
    %v936 = vpack.c.bf16 %v905, %v903
    %v937 = vpack.c.bf16 %v909, %v907
    %v938 = vpack.c.bf16 %v920, %v918
    %v939 = vpack.c.bf16 %v924, %v922
    %v940 = vpack.c.bf16 %v928, %v926
    %s941 = scalar_lea.vmem [#allocation4], 128
    %v942 = vld [vmem:[%s941] sm:$0xff]
    %v943 = vld [vmem:[%s941 + $0x8] sm:$0xff]
    %v944 = vld [vmem:[%s941 + $0x10] sm:$0xff]
    %v945 = vld [vmem:[%s941 + $0x18] sm:$0xff]
    %v946 = vld [vmem:[%s941 + $0x20] sm:$0xff]
    %v947 = vld [vmem:[%s941 + $0x28] sm:$0xff]
    %v948 = vld [vmem:[%s941 + $0x30] sm:$0xff]
    %v949 = vld [vmem:[%s941 + $0x38] sm:$0xff]
    %v958 = vunpack.c.l.b16 %v942
    %v959 = vunpack.c.h.b16 %v942
    %v960 = vunpack.c.l.b16 %v943
    %v961 = vunpack.c.h.b16 %v943
    %v962 = vunpack.c.l.b16 %v944
    %v963 = vunpack.c.h.b16 %v944
    %v964 = vunpack.c.l.b16 %v945
    %v965 = vunpack.c.h.b16 %v945
    %v966 = vunpack.c.l.b16 %v946
    %v967 = vunpack.c.h.b16 %v946
    %v968 = vunpack.c.l.b16 %v947
    %v969 = vunpack.c.h.b16 %v947
    %v970 = vunpack.c.l.b16 %v948
    %v971 = vunpack.c.h.b16 %v948
    %v972 = vunpack.c.l.b16 %v949
    %v973 = vunpack.c.h.b16 %v949
    %v974 = vpack.c.b16 %v962, %v958
    %v975 = vpack.c.b16 %v963, %v959
    %v976 = vpack.c.b16 %v964, %v960
    %v977 = vpack.c.b16 %v965, %v961
    %v978 = vpack.c.b16 %v970, %v966
    %v979 = vpack.c.b16 %v971, %v967
    %v980 = vpack.c.b16 %v972, %v968
    %v981 = vpack.c.b16 %v973, %v969
    %v991 = vsel %vm262, %v935, 0
    %v994 = vsel %vm262, %v936, 0
    %v997 = vsel %vm262, %v937, 0
    %v1000 = vsel %vm262, %v938, 0
    %v1003 = vsel %vm262, %v939, 0
    %v1006 = vsel %vm262, %v940, 0
    %1008 = vmatprep.subr.bf16.mxu0 %v975
    %1009 = vmatpush1.bf16.msra.mxu0 %v974
    %1010 = vmatprep.subr.bf16.mxu0 %v979
    %1011 = vmatpush1.bf16.msra.mxu0 %v978
    %1012 = vmatprep.subr.bf16.mxu0 0
    %1013 = vmatpush1.bf16.msra.mxu0 0
    %1014 = vmatprep.subr.bf16.mxu0 0
    %1015 = vmatpush1.bf16.msra.mxu0 0
    %1016 = vmatprep.subr.bf16.mxu0 0
    %1017 = vmatpush1.bf16.msra.mxu0 0
    %1018 = vmatprep.subr.bf16.mxu0 0
    %1019 = vmatpush1.bf16.msra.mxu0 0
    %1020 = vmatprep.subr.bf16.mxu0 0
    %1021 = vmatpush1.bf16.msra.mxu0 0
    %1022 = vmatprep.subr.bf16.mxu0 0
    %1023 = vmatpush1.bf16.msra.mxu0 0
    %1024 = vmatprep.subr.bf16.mxu0 0
    %1025 = vmatpush1.bf16.msra.mxu0 0
    %1026 = vmatprep.subr.bf16.mxu0 0
    %1027 = vmatpush1.bf16.msra.mxu0 0
    %1028 = vmatprep.subr.bf16.mxu0 0
    %1029 = vmatpush1.bf16.msra.mxu0 0
    %1030 = vmatprep.subr.bf16.mxu0 0
    %1031 = vmatpush1.bf16.msra.mxu0 0
    %1032 = vmatprep.subr.bf16.mxu0 0
    %1033 = vmatpush1.bf16.msra.mxu0 0
    %1034 = vmatprep.subr.bf16.mxu0 0
    %1035 = vmatpush1.bf16.msra.mxu0 0
    %1036 = vmatprep.subr.bf16.mxu0 0
    %1037 = vmatpush1.bf16.msra.mxu0 0
    %1038 = vmatprep.subr.bf16.mxu0 0
    %1039 = vmatpush1.bf16.msra.mxu0 0
    %1040 = vmatprep.mubr.bf16.mxu0 0
    %1041 = vmatmul.mubr.bf16.gmra.mrb[0].mxu0 %v991
    %v1042 = vpop.f32.mrb[0].mxu0
    %v1043 = vadd.f32 0.0, %v1042
    %v1044 = vpop.f32.mrb[0].mxu0
    %v1045 = vadd.f32 0.0, %v1044
    %v1046 = vpop.f32.mrb[0].mxu0
    %v1047 = vadd.f32 0.0, %v1046
    %v1048 = vpop.f32.mrb[0].mxu0
    %v1049 = vadd.f32 0.0, %v1048
    %1050 = vmatprep.mubr.bf16.mxu0 0
    %1051 = vmatmul.mubr.bf16.gmra.mrb[0].mxu0 %v994
    %v1052 = vpop.f32.mrb[0].mxu0
    %v1053 = vadd.f32 0.0, %v1052
    %v1054 = vpop.f32.mrb[0].mxu0
    %v1055 = vadd.f32 0.0, %v1054
    %v1056 = vpop.f32.mrb[0].mxu0
    %v1057 = vadd.f32 0.0, %v1056
    %v1058 = vpop.f32.mrb[0].mxu0
    %v1059 = vadd.f32 0.0, %v1058
    %1060 = vmatprep.mubr.bf16.mxu0 0
    %1061 = vmatmul.mubr.bf16.gmra.mrb[0].mxu0 %v997
    %v1062 = vpop.f32.mrb[0].mxu0
    %v1063 = vadd.f32 0.0, %v1062
    %v1064 = vpop.f32.mrb[0].mxu0
    %v1065 = vadd.f32 0.0, %v1064
    %v1066 = vpop.f32.mrb[0].mxu0
    %v1067 = vadd.f32 0.0, %v1066
    %v1068 = vpop.f32.mrb[0].mxu0
    %v1069 = vadd.f32 0.0, %v1068
    %1070 = vmatprep.mubr.bf16.mxu0 0
    %1071 = vmatmul.mubr.bf16.gmra.mrb[0].mxu0 %v1000
    %v1072 = vpop.f32.mrb[0].mxu0
    %v1073 = vadd.f32 0.0, %v1072
    %v1074 = vpop.f32.mrb[0].mxu0
    %v1075 = vadd.f32 0.0, %v1074
    %v1076 = vpop.f32.mrb[0].mxu0
    %v1077 = vadd.f32 0.0, %v1076
    %v1078 = vpop.f32.mrb[0].mxu0
    %v1079 = vadd.f32 0.0, %v1078
    %1080 = vmatprep.mubr.bf16.mxu0 0
    %1081 = vmatmul.mubr.bf16.gmra.mrb[0].mxu0 %v1003
    %v1082 = vpop.f32.mrb[0].mxu0
    %v1083 = vadd.f32 0.0, %v1082
    %v1084 = vpop.f32.mrb[0].mxu0
    %v1085 = vadd.f32 0.0, %v1084
    %v1086 = vpop.f32.mrb[0].mxu0
    %v1087 = vadd.f32 0.0, %v1086
    %v1088 = vpop.f32.mrb[0].mxu0
    %v1089 = vadd.f32 0.0, %v1088
    %1090 = vmatprep.mubr.bf16.mxu0 0
    %1091 = vmatmul.mubr.bf16.gmra.mrb[0].mxu0 %v1006
    %v1092 = vpop.f32.mrb[0].mxu0
    %v1093 = vadd.f32 0.0, %v1092
    %v1094 = vpop.f32.mrb[0].mxu0
    %v1095 = vadd.f32 0.0, %v1094
    %v1096 = vpop.f32.mrb[0].mxu0
    %v1097 = vadd.f32 0.0, %v1096
    %v1098 = vpop.f32.mrb[0].mxu0
    %v1099 = vadd.f32 0.0, %v1098
    %1100 = vdwg.mxu0
    %1101 = vmatprep.subr.bf16.mxu0 %v977
    %1102 = vmatpush1.bf16.msra.mxu0 %v976
    %1103 = vmatprep.subr.bf16.mxu0 %v981
    %1104 = vmatpush1.bf16.msra.mxu0 %v980
    %1105 = vmatprep.subr.bf16.mxu0 0
    %1106 = vmatpush1.bf16.msra.mxu0 0
    %1107 = vmatprep.subr.bf16.mxu0 0
    %1108 = vmatpush1.bf16.msra.mxu0 0
    %1109 = vmatprep.subr.bf16.mxu0 0
    %1110 = vmatpush1.bf16.msra.mxu0 0
    %1111 = vmatprep.subr.bf16.mxu0 0
    %1112 = vmatpush1.bf16.msra.mxu0 0
    %1113 = vmatprep.subr.bf16.mxu0 0
    %1114 = vmatpush1.bf16.msra.mxu0 0
    %1115 = vmatprep.subr.bf16.mxu0 0
    %1116 = vmatpush1.bf16.msra.mxu0 0
    %1117 = vmatprep.subr.bf16.mxu0 0
    %1118 = vmatpush1.bf16.msra.mxu0 0
    %1119 = vmatprep.subr.bf16.mxu0 0
    %1120 = vmatpush1.bf16.msra.mxu0 0
    %1121 = vmatprep.subr.bf16.mxu0 0
    %1122 = vmatpush1.bf16.msra.mxu0 0
    %1123 = vmatprep.subr.bf16.mxu0 0
    %1124 = vmatpush1.bf16.msra.mxu0 0
    %1125 = vmatprep.subr.bf16.mxu0 0
    %1126 = vmatpush1.bf16.msra.mxu0 0
    %1127 = vmatprep.subr.bf16.mxu0 0
    %1128 = vmatpush1.bf16.msra.mxu0 0
    %1129 = vmatprep.subr.bf16.mxu0 0
    %1130 = vmatpush1.bf16.msra.mxu0 0
    %1131 = vmatprep.subr.bf16.mxu0 0
    %1132 = vmatpush1.bf16.msra.mxu0 0
    %1133 = vmatprep.mubr.bf16.mxu0 0
    %1134 = vmatmul.mubr.bf16.gmra.mrb[0].mxu0 %v991
    %v1135 = vpop.f32.mrb[0].mxu0
    %v1136 = vadd.f32 0.0, %v1135
    %v1137 = vpop.f32.mrb[0].mxu0
    %v1138 = vadd.f32 0.0, %v1137
    %v1139 = vpop.f32.mrb[0].mxu0
    %v1140 = vadd.f32 0.0, %v1139
    %v1141 = vpop.f32.mrb[0].mxu0
    %v1142 = vadd.f32 0.0, %v1141
    %1143 = vmatprep.mubr.bf16.mxu0 0
    %1144 = vmatmul.mubr.bf16.gmra.mrb[0].mxu0 %v994
    %v1145 = vpop.f32.mrb[0].mxu0
    %v1146 = vadd.f32 0.0, %v1145
    %v1147 = vpop.f32.mrb[0].mxu0
    %v1148 = vadd.f32 0.0, %v1147
    %v1149 = vpop.f32.mrb[0].mxu0
    %v1150 = vadd.f32 0.0, %v1149
    %v1151 = vpop.f32.mrb[0].mxu0
    %v1152 = vadd.f32 0.0, %v1151
    %1153 = vmatprep.mubr.bf16.mxu0 0
    %1154 = vmatmul.mubr.bf16.gmra.mrb[0].mxu0 %v997
    %v1155 = vpop.f32.mrb[0].mxu0
    %v1156 = vadd.f32 0.0, %v1155
    %v1157 = vpop.f32.mrb[0].mxu0
    %v1158 = vadd.f32 0.0, %v1157
    %v1159 = vpop.f32.mrb[0].mxu0
    %v1160 = vadd.f32 0.0, %v1159
    %v1161 = vpop.f32.mrb[0].mxu0
    %v1162 = vadd.f32 0.0, %v1161
    %1163 = vmatprep.mubr.bf16.mxu0 0
    %1164 = vmatmul.mubr.bf16.gmra.mrb[0].mxu0 %v1000
    %v1165 = vpop.f32.mrb[0].mxu0
    %v1166 = vadd.f32 0.0, %v1165
    %v1167 = vpop.f32.mrb[0].mxu0
    %v1168 = vadd.f32 0.0, %v1167
    %v1169 = vpop.f32.mrb[0].mxu0
    %v1170 = vadd.f32 0.0, %v1169
    %v1171 = vpop.f32.mrb[0].mxu0
    %v1172 = vadd.f32 0.0, %v1171
    %1173 = vmatprep.mubr.bf16.mxu0 0
    %1174 = vmatmul.mubr.bf16.gmra.mrb[0].mxu0 %v1003
    %v1175 = vpop.f32.mrb[0].mxu0
    %v1176 = vadd.f32 0.0, %v1175
    %v1177 = vpop.f32.mrb[0].mxu0
    %v1178 = vadd.f32 0.0, %v1177
    %v1179 = vpop.f32.mrb[0].mxu0
    %v1180 = vadd.f32 0.0, %v1179
    %v1181 = vpop.f32.mrb[0].mxu0
    %v1182 = vadd.f32 0.0, %v1181
    %1183 = vmatprep.mubr.bf16.mxu0 0
    %1184 = vmatmul.mubr.bf16.gmra.mrb[0].mxu0 %v1006
    %v1185 = vpop.f32.mrb[0].mxu0
    %v1186 = vadd.f32 0.0, %v1185
    %v1187 = vpop.f32.mrb[0].mxu0
    %v1188 = vadd.f32 0.0, %v1187
    %v1189 = vpop.f32.mrb[0].mxu0
    %v1190 = vadd.f32 0.0, %v1189
    %v1191 = vpop.f32.mrb[0].mxu0
    %v1192 = vadd.f32 0.0, %v1191
    %1193 = vdwg.mxu0
    %v1194 = vadd.f32 %v848, %v1043
    %v1195 = vadd.f32 %v849, %v1045
    %v1196 = vadd.f32 %v850, %v1136
    %v1197 = vadd.f32 %v851, %v1138
    %v1198 = vadd.f32 %v852, %v1047
    %v1199 = vadd.f32 %v853, %v1049
    %v1200 = vadd.f32 %v854, %v1140
    %v1201 = vadd.f32 %v855, %v1142
    %v1202 = vadd.f32 %v856, %v1053
    %v1203 = vadd.f32 %v857, %v1055
    %v1204 = vadd.f32 %v858, %v1146
    %v1205 = vadd.f32 %v859, %v1148
    %v1206 = vadd.f32 %v860, %v1057
    %v1207 = vadd.f32 %v861, %v1059
    %v1208 = vadd.f32 %v862, %v1150
    %v1209 = vadd.f32 %v863, %v1152
    %v1210 = vadd.f32 %v864, %v1063
    %v1211 = vadd.f32 %v865, %v1065
    %v1212 = vadd.f32 %v866, %v1156
    %v1213 = vadd.f32 %v867, %v1158
    %v1214 = vadd.f32 %v868, %v1067
    %v1215 = vadd.f32 %v869, %v1069
    %v1216 = vadd.f32 %v870, %v1160
    %v1217 = vadd.f32 %v871, %v1162
    %v1218 = vadd.f32 %v872, %v1073
    %v1219 = vadd.f32 %v873, %v1075
    %v1220 = vadd.f32 %v874, %v1166
    %v1221 = vadd.f32 %v875, %v1168
    %v1222 = vadd.f32 %v876, %v1077
    %v1223 = vadd.f32 %v877, %v1079
    %v1224 = vadd.f32 %v878, %v1170
    %v1225 = vadd.f32 %v879, %v1172
    %v1226 = vadd.f32 %v880, %v1083
    %v1227 = vadd.f32 %v881, %v1085
    %v1228 = vadd.f32 %v882, %v1176
    %v1229 = vadd.f32 %v883, %v1178
    %v1230 = vadd.f32 %v884, %v1087
    %v1231 = vadd.f32 %v885, %v1089
    %v1232 = vadd.f32 %v886, %v1180
    %v1233 = vadd.f32 %v887, %v1182
    %v1234 = vadd.f32 %v888, %v1093
    %v1235 = vadd.f32 %v889, %v1095
    %v1236 = vadd.f32 %v890, %v1186
    %v1237 = vadd.f32 %v891, %v1188
    %v1238 = vadd.f32 %v892, %v1097
    %v1239 = vadd.f32 %v893, %v1099
    %v1240 = vadd.f32 %v894, %v1190
    %v1241 = vadd.f32 %v895, %v1192
    %v1242 = vld [vmem:[#allocation7] sm:$0xf]
    %v1243 = vld [vmem:[#allocation7 + $0x4] sm:$0xf]
    %v1244 = vld [vmem:[#allocation7 + $0x8] sm:$0xf]
    %v1245 = vld [vmem:[#allocation7 + $0xc] sm:$0xf]
    %v1246 = vld [vmem:[#allocation7 + $0x10] sm:$0xf]
    %v1247 = vld [vmem:[#allocation7 + $0x14] sm:$0xf]
    %v1248 = vld [vmem:[#allocation7 + $0x18] sm:$0xf]
    %v1249 = vld [vmem:[#allocation7 + $0x1c] sm:$0xf]
    %v1250 = vld [vmem:[#allocation7 + $0x20] sm:$0xf]
    %v1251 = vld [vmem:[#allocation7 + $0x24] sm:$0xf]
    %v1252 = vld [vmem:[#allocation7 + $0x28] sm:$0xf]
    %v1253 = vld [vmem:[#allocation7 + $0x2c] sm:$0xf]
    %v1254 = vld [vmem:[#allocation7 + $0x30] sm:$0xf]
    %v1255 = vld [vmem:[#allocation7 + $0x34] sm:$0xf]
    %v1256 = vld [vmem:[#allocation7 + $0x38] sm:$0xf]
    %v1257 = vld [vmem:[#allocation7 + $0x3c] sm:$0xf]
    %v1258 = vld [vmem:[#allocation7 + $0x40] sm:$0xf]
    %v1259 = vld [vmem:[#allocation7 + $0x44] sm:$0xf]
    %v1260 = vld [vmem:[#allocation7 + $0x48] sm:$0xf]
    %v1261 = vld [vmem:[#allocation7 + $0x4c] sm:$0xf]
    %v1262 = vld [vmem:[#allocation7 + $0x50] sm:$0xf]
    %v1263 = vld [vmem:[#allocation7 + $0x54] sm:$0xf]
    %v1264 = vld [vmem:[#allocation7 + $0x58] sm:$0xf]
    %v1265 = vld [vmem:[#allocation7 + $0x5c] sm:$0xf]
    %v1266 = vld [vmem:[#allocation7 + $0x60] sm:$0xf]
    %v1267 = vld [vmem:[#allocation7 + $0x64] sm:$0xf]
    %v1268 = vld [vmem:[#allocation7 + $0x68] sm:$0xf]
    %v1269 = vld [vmem:[#allocation7 + $0x6c] sm:$0xf]
    %v1270 = vld [vmem:[#allocation7 + $0x70] sm:$0xf]
    %v1271 = vld [vmem:[#allocation7 + $0x74] sm:$0xf]
    %v1272 = vld [vmem:[#allocation7 + $0x78] sm:$0xf]
    %v1273 = vld [vmem:[#allocation7 + $0x7c] sm:$0xf]
    %v1274 = vld [vmem:[#allocation7 + $0x80] sm:$0xf]
    %v1275 = vld [vmem:[#allocation7 + $0x84] sm:$0xf]
    %v1276 = vld [vmem:[#allocation7 + $0x88] sm:$0xf]
    %v1277 = vld [vmem:[#allocation7 + $0x8c] sm:$0xf]
    %v1278 = vld [vmem:[#allocation7 + $0x90] sm:$0xf]
    %v1279 = vld [vmem:[#allocation7 + $0x94] sm:$0xf]
    %v1280 = vld [vmem:[#allocation7 + $0x98] sm:$0xf]
    %v1281 = vld [vmem:[#allocation7 + $0x9c] sm:$0xf]
    %v1282 = vld [vmem:[#allocation7 + $0xa0] sm:$0xf]
    %v1283 = vld [vmem:[#allocation7 + $0xa4] sm:$0xf]
    %v1284 = vld [vmem:[#allocation7 + $0xa8] sm:$0xf]
    %v1285 = vld [vmem:[#allocation7 + $0xac] sm:$0xf]
    %v1286 = vld [vmem:[#allocation7 + $0xb0] sm:$0xf]
    %v1287 = vld [vmem:[#allocation7 + $0xb4] sm:$0xf]
    %v1288 = vld [vmem:[#allocation7 + $0xb8] sm:$0xf]
    %v1289 = vld [vmem:[#allocation7 + $0xbc] sm:$0xf]
    %v1290 = vld [vmem:[#allocation7 + $0xc0] sm:$0xf]
    %v1291 = vld [vmem:[#allocation7 + $0xc4] sm:$0xf]
    %v1292 = vld [vmem:[#allocation7 + $0xc8] sm:$0xf]
    %v1293 = vld [vmem:[#allocation7 + $0xcc] sm:$0xf]
    %v1294 = vld [vmem:[#allocation7 + $0xd0] sm:$0xf]
    %v1295 = vld [vmem:[#allocation7 + $0xd4] sm:$0xf]
    %v1296 = vld [vmem:[#allocation7 + $0xd8] sm:$0xf]
    %v1297 = vld [vmem:[#allocation7 + $0xdc] sm:$0xf]
    %v1298 = vld [vmem:[#allocation7 + $0xe0] sm:$0xf]
    %v1299 = vld [vmem:[#allocation7 + $0xe4] sm:$0xf]
    %v1300 = vld [vmem:[#allocation7 + $0xe8] sm:$0xf]
    %v1301 = vld [vmem:[#allocation7 + $0xec] sm:$0xf]
    %v1302 = vld [vmem:[#allocation7 + $0xf0] sm:$0xf]
    %v1303 = vld [vmem:[#allocation7 + $0xf4] sm:$0xf]
    %v1304 = vld [vmem:[#allocation7 + $0xf8] sm:$0xf]
    %v1305 = vld [vmem:[#allocation7 + $0xfc] sm:$0xf]
    %v1306 = vunpack.c.l.bf16 %v1242
    %v1307 = vunpack.c.l.bf16 %v1243
    %v1308 = vunpack.c.l.bf16 %v1244
    %v1309 = vunpack.c.l.bf16 %v1245
    %v1310 = vunpack.c.l.bf16 %v1246
    %v1311 = vunpack.c.l.bf16 %v1247
    %v1312 = vunpack.c.l.bf16 %v1248
    %v1313 = vunpack.c.l.bf16 %v1249
    %v1314 = vunpack.c.l.bf16 %v1250
    %v1315 = vunpack.c.l.bf16 %v1251
    %v1316 = vunpack.c.l.bf16 %v1252
    %v1317 = vunpack.c.l.bf16 %v1253
    %v1318 = vunpack.c.l.bf16 %v1254
    %v1319 = vunpack.c.l.bf16 %v1255
    %v1320 = vunpack.c.l.bf16 %v1256
    %v1321 = vunpack.c.l.bf16 %v1257
    %v1322 = vunpack.c.l.bf16 %v1258
    %v1323 = vunpack.c.l.bf16 %v1259
    %v1324 = vunpack.c.l.bf16 %v1260
    %v1325 = vunpack.c.l.bf16 %v1261
    %v1326 = vunpack.c.l.bf16 %v1262
    %v1327 = vunpack.c.l.bf16 %v1263
    %v1328 = vunpack.c.l.bf16 %v1264
    %v1329 = vunpack.c.l.bf16 %v1265
    %v1330 = vunpack.c.l.bf16 %v1266
    %v1331 = vunpack.c.l.bf16 %v1267
    %v1332 = vunpack.c.l.bf16 %v1268
    %v1333 = vunpack.c.l.bf16 %v1269
    %v1334 = vunpack.c.l.bf16 %v1270
    %v1335 = vunpack.c.l.bf16 %v1271
    %v1336 = vunpack.c.l.bf16 %v1272
    %v1337 = vunpack.c.l.bf16 %v1273
    %v1338 = vunpack.c.l.bf16 %v1274
    %v1339 = vunpack.c.l.bf16 %v1275
    %v1340 = vunpack.c.l.bf16 %v1276
    %v1341 = vunpack.c.l.bf16 %v1277
    %v1342 = vunpack.c.l.bf16 %v1278
    %v1343 = vunpack.c.l.bf16 %v1279
    %v1344 = vunpack.c.l.bf16 %v1280
    %v1345 = vunpack.c.l.bf16 %v1281
    %v1346 = vunpack.c.l.bf16 %v1282
    %v1347 = vunpack.c.l.bf16 %v1283
    %v1348 = vunpack.c.l.bf16 %v1284
    %v1349 = vunpack.c.l.bf16 %v1285
    %v1350 = vunpack.c.l.bf16 %v1286
    %v1351 = vunpack.c.l.bf16 %v1287
    %v1352 = vunpack.c.l.bf16 %v1288
    %v1353 = vunpack.c.l.bf16 %v1289
    %v1354 = vunpack.c.l.bf16 %v1290
    %v1355 = vunpack.c.l.bf16 %v1291
    %v1356 = vunpack.c.l.bf16 %v1292
    %v1357 = vunpack.c.l.bf16 %v1293
    %v1358 = vunpack.c.l.bf16 %v1294
    %v1359 = vunpack.c.l.bf16 %v1295
    %v1360 = vunpack.c.l.bf16 %v1296
    %v1361 = vunpack.c.l.bf16 %v1297
    %v1362 = vunpack.c.l.bf16 %v1298
    %v1363 = vunpack.c.l.bf16 %v1299
    %v1364 = vunpack.c.l.bf16 %v1300
    %v1365 = vunpack.c.l.bf16 %v1301
    %v1366 = vunpack.c.l.bf16 %v1302
    %v1367 = vunpack.c.l.bf16 %v1303
    %v1368 = vunpack.c.l.bf16 %v1304
    %v1369 = vunpack.c.l.bf16 %v1305
    %v1370 = vld [vmem:[#allocation9] sm:$0xff]
    %v1371 = vld [vmem:[#allocation9 + $0x8] sm:$0xff]
    %v1372 = vld [vmem:[#allocation9 + $0x10] sm:$0xff]
    %v1373 = vld [vmem:[#allocation9 + $0x18] sm:$0xff]
    %v1374 = vld [vmem:[#allocation9 + $0x20] sm:$0xff]
    %v1375 = vld [vmem:[#allocation9 + $0x28] sm:$0xff]
    %v1376 = vld [vmem:[#allocation9 + $0x30] sm:$0xff]
    %v1377 = vld [vmem:[#allocation9 + $0x38] sm:$0xff]
    %v1378 = vld [vmem:[#allocation9 + $0x40] sm:$0xff]
    %v1379 = vld [vmem:[#allocation9 + $0x48] sm:$0xff]
    %v1380 = vld [vmem:[#allocation9 + $0x50] sm:$0xff]
    %v1381 = vld [vmem:[#allocation9 + $0x58] sm:$0xff]
    %v1382 = vld [vmem:[#allocation9 + $0x60] sm:$0xff]
    %v1383 = vld [vmem:[#allocation9 + $0x68] sm:$0xff]
    %v1384 = vld [vmem:[#allocation9 + $0x70] sm:$0xff]
    %v1385 = vld [vmem:[#allocation9 + $0x78] sm:$0xff]
    %v1386 = vld [vmem:[#allocation9 + $0x80] sm:$0xff]
    %v1387 = vld [vmem:[#allocation9 + $0x88] sm:$0xff]
    %v1388 = vld [vmem:[#allocation9 + $0x90] sm:$0xff]
    %v1389 = vld [vmem:[#allocation9 + $0x98] sm:$0xff]
    %v1390 = vld [vmem:[#allocation9 + $0xa0] sm:$0xff]
    %v1391 = vld [vmem:[#allocation9 + $0xa8] sm:$0xff]
    %v1392 = vld [vmem:[#allocation9 + $0xb0] sm:$0xff]
    %v1393 = vld [vmem:[#allocation9 + $0xb8] sm:$0xff]
    %v1394 = vld [vmem:[#allocation9 + $0xc0] sm:$0xff]
    %v1395 = vld [vmem:[#allocation9 + $0xc8] sm:$0xff]
    %v1396 = vld [vmem:[#allocation9 + $0xd0] sm:$0xff]
    %v1397 = vld [vmem:[#allocation9 + $0xd8] sm:$0xff]
    %v1398 = vld [vmem:[#allocation9 + $0xe0] sm:$0xff]
    %v1399 = vld [vmem:[#allocation9 + $0xe8] sm:$0xff]
    %v1400 = vld [vmem:[#allocation9 + $0xf0] sm:$0xff]
    %v1401 = vld [vmem:[#allocation9 + $0xf8] sm:$0xff]
    %v1402 = vunpack.c.l.bf16 %v1370
    %v1403 = vunpack.c.h.bf16 %v1370
    %v1404 = vunpack.c.l.bf16 %v1371
    %v1405 = vunpack.c.h.bf16 %v1371
    %v1406 = vunpack.c.l.bf16 %v1372
    %v1407 = vunpack.c.h.bf16 %v1372
    %v1408 = vunpack.c.l.bf16 %v1373
    %v1409 = vunpack.c.h.bf16 %v1373
    %v1410 = vunpack.c.l.bf16 %v1374
    %v1411 = vunpack.c.h.bf16 %v1374
    %v1412 = vunpack.c.l.bf16 %v1375
    %v1413 = vunpack.c.h.bf16 %v1375
    %v1414 = vunpack.c.l.bf16 %v1376
    %v1415 = vunpack.c.h.bf16 %v1376
    %v1416 = vunpack.c.l.bf16 %v1377
    %v1417 = vunpack.c.h.bf16 %v1377
    %v1418 = vunpack.c.l.bf16 %v1378
    %v1419 = vunpack.c.h.bf16 %v1378
    %v1420 = vunpack.c.l.bf16 %v1379
    %v1421 = vunpack.c.h.bf16 %v1379
    %v1422 = vunpack.c.l.bf16 %v1380
    %v1423 = vunpack.c.h.bf16 %v1380
    %v1424 = vunpack.c.l.bf16 %v1381
    %v1425 = vunpack.c.h.bf16 %v1381
    %v1426 = vunpack.c.l.bf16 %v1382
    %v1427 = vunpack.c.h.bf16 %v1382
    %v1428 = vunpack.c.l.bf16 %v1383
    %v1429 = vunpack.c.h.bf16 %v1383
    %v1430 = vunpack.c.l.bf16 %v1384
    %v1431 = vunpack.c.h.bf16 %v1384
    %v1432 = vunpack.c.l.bf16 %v1385
    %v1433 = vunpack.c.h.bf16 %v1385
    %v1434 = vunpack.c.l.bf16 %v1386
    %v1435 = vunpack.c.h.bf16 %v1386
    %v1436 = vunpack.c.l.bf16 %v1387
    %v1437 = vunpack.c.h.bf16 %v1387
    %v1438 = vunpack.c.l.bf16 %v1388
    %v1439 = vunpack.c.h.bf16 %v1388
    %v1440 = vunpack.c.l.bf16 %v1389
    %v1441 = vunpack.c.h.bf16 %v1389
    %v1442 = vunpack.c.l.bf16 %v1390
    %v1443 = vunpack.c.h.bf16 %v1390
    %v1444 = vunpack.c.l.bf16 %v1391
    %v1445 = vunpack.c.h.bf16 %v1391
    %v1446 = vunpack.c.l.bf16 %v1392
    %v1447 = vunpack.c.h.bf16 %v1392
    %v1448 = vunpack.c.l.bf16 %v1393
    %v1449 = vunpack.c.h.bf16 %v1393
    %v1450 = vunpack.c.l.bf16 %v1394
    %v1451 = vunpack.c.h.bf16 %v1394
    %v1452 = vunpack.c.l.bf16 %v1395
    %v1453 = vunpack.c.h.bf16 %v1395
    %v1454 = vunpack.c.l.bf16 %v1396
    %v1455 = vunpack.c.h.bf16 %v1396
    %v1456 = vunpack.c.l.bf16 %v1397
    %v1457 = vunpack.c.h.bf16 %v1397
    %v1458 = vunpack.c.l.bf16 %v1398
    %v1459 = vunpack.c.h.bf16 %v1398
    %v1460 = vunpack.c.l.bf16 %v1399
    %v1461 = vunpack.c.h.bf16 %v1399
    %v1462 = vunpack.c.l.bf16 %v1400
    %v1463 = vunpack.c.h.bf16 %v1400
    %v1464 = vunpack.c.l.bf16 %v1401
    %v1465 = vunpack.c.h.bf16 %v1401
    %v1466 = vadd.f32 %v1194, %v1198
    %v1467 = vadd.f32 %v1466, %v1202
    %v1468 = vadd.f32 %v1467, %v1206
    %v1469 = vadd.f32 %v1468, %v1210
    %v1470 = vadd.f32 %v1469, %v1214
    %v1471 = vadd.f32 %v1470, %v1218
    %v1472 = vadd.f32 %v1471, %v1222
    %v1473 = vadd.f32 %v1472, %v1226
    %v1474 = vadd.f32 %v1473, %v1230
    %v1475 = vadd.f32 %v1474, %v1234
    %v1476 = vadd.f32 %v1475, %v1238
    %v1477 = vrot.slane %v1476, 4
    %v1478 = vadd.f32 %v1476, %v1477
    %v1479 = vrot.slane %v1478, 2
    %v1480 = vadd.f32 %v1478, %v1479
    %v1481 = vrot.slane %v1480, 1
    %v1482 = vadd.f32 %v1480, %v1481
    %v1483 = vadd.f32 %v1195, %v1199
    %v1484 = vadd.f32 %v1483, %v1203
    %v1485 = vadd.f32 %v1484, %v1207
    %v1486 = vadd.f32 %v1485, %v1211
    %v1487 = vadd.f32 %v1486, %v1215
    %v1488 = vadd.f32 %v1487, %v1219
    %v1489 = vadd.f32 %v1488, %v1223
    %v1490 = vadd.f32 %v1489, %v1227
    %v1491 = vadd.f32 %v1490, %v1231
    %v1492 = vadd.f32 %v1491, %v1235
    %v1493 = vadd.f32 %v1492, %v1239
    %v1494 = vrot.slane %v1493, 4
    %v1495 = vadd.f32 %v1493, %v1494
    %v1496 = vrot.slane %v1495, 2
    %v1497 = vadd.f32 %v1495, %v1496
    %v1498 = vrot.slane %v1497, 1
    %v1499 = vadd.f32 %v1497, %v1498
    %v1500 = vadd.f32 %v1196, %v1200
    %v1501 = vadd.f32 %v1500, %v1204
    %v1502 = vadd.f32 %v1501, %v1208
    %v1503 = vadd.f32 %v1502, %v1212
    %v1504 = vadd.f32 %v1503, %v1216
    %v1505 = vadd.f32 %v1504, %v1220
    %v1506 = vadd.f32 %v1505, %v1224
    %v1507 = vadd.f32 %v1506, %v1228
    %v1508 = vadd.f32 %v1507, %v1232
    %v1509 = vadd.f32 %v1508, %v1236
    %v1510 = vadd.f32 %v1509, %v1240
    %v1511 = vrot.slane %v1510, 4
    %v1512 = vadd.f32 %v1510, %v1511
    %v1513 = vrot.slane %v1512, 2
    %v1514 = vadd.f32 %v1512, %v1513
    %v1515 = vrot.slane %v1514, 1
    %v1516 = vadd.f32 %v1514, %v1515
    %v1517 = vadd.f32 %v1197, %v1201
    %v1518 = vadd.f32 %v1517, %v1205
    %v1519 = vadd.f32 %v1518, %v1209
    %v1520 = vadd.f32 %v1519, %v1213
    %v1521 = vadd.f32 %v1520, %v1217
    %v1522 = vadd.f32 %v1521, %v1221
    %v1523 = vadd.f32 %v1522, %v1225
    %v1524 = vadd.f32 %v1523, %v1229
    %v1525 = vadd.f32 %v1524, %v1233
    %v1526 = vadd.f32 %v1525, %v1237
    %v1527 = vadd.f32 %v1526, %v1241
    %v1528 = vrot.slane %v1527, 4
    %v1529 = vadd.f32 %v1527, %v1528
    %v1530 = vrot.slane %v1529, 2
    %v1531 = vadd.f32 %v1529, %v1530
    %v1532 = vrot.slane %v1531, 1
    %v1533 = vadd.f32 %v1531, %v1532
    %1534 = vmatprep.subr.mxu0 0.0
    %1535 = vmatpush1.msra.mxu0 %v1306
    %1536 = vmatprep.subr.mxu0 0.0
    %1537 = vmatpush1.msra.mxu0 %v1307
    %1538 = vmatprep.subr.mxu0 0.0
    %1539 = vmatpush1.msra.mxu0 %v1308
    %1540 = vmatprep.subr.mxu0 0.0
    %1541 = vmatpush1.msra.mxu0 %v1309
    %1542 = vmatprep.subr.mxu0 0.0
    %1543 = vmatpush1.msra.mxu0 %v1310
    %1544 = vmatprep.subr.mxu0 0.0
    %1545 = vmatpush1.msra.mxu0 %v1311
    %1546 = vmatprep.subr.mxu0 0.0
    %1547 = vmatpush1.msra.mxu0 %v1312
    %1548 = vmatprep.subr.mxu0 0.0
    %1549 = vmatpush1.msra.mxu0 %v1313
    %1550 = vmatprep.subr.mxu0 0.0
    %1551 = vmatpush1.msra.mxu0 %v1314
    %1552 = vmatprep.subr.mxu0 0.0
    %1553 = vmatpush1.msra.mxu0 %v1315
    %1554 = vmatprep.subr.mxu0 0.0
    %1555 = vmatpush1.msra.mxu0 %v1316
    %1556 = vmatprep.subr.mxu0 0.0
    %1557 = vmatpush1.msra.mxu0 %v1317
    %1558 = vmatprep.subr.mxu0 0.0
    %1559 = vmatpush1.msra.mxu0 %v1318
    %1560 = vmatprep.subr.mxu0 0.0
    %1561 = vmatpush1.msra.mxu0 %v1319
    %1562 = vmatprep.subr.mxu0 0.0
    %1563 = vmatpush1.msra.mxu0 %v1320
    %1564 = vmatprep.subr.mxu0 0.0
    %1565 = vmatpush1.msra.mxu0 %v1321
    %1566 = vmatprep.subr.mxu0 0.0
    %1567 = vmatpush1.msra.mxu0 %v1322
    %1568 = vmatprep.subr.mxu0 0.0
    %1569 = vmatpush1.msra.mxu0 %v1323
    %1570 = vmatprep.subr.mxu0 0.0
    %1571 = vmatpush1.msra.mxu0 %v1324
    %1572 = vmatprep.subr.mxu0 0.0
    %1573 = vmatpush1.msra.mxu0 %v1325
    %1574 = vmatprep.subr.mxu0 0.0
    %1575 = vmatpush1.msra.mxu0 %v1326
    %1576 = vmatprep.subr.mxu0 0.0
    %1577 = vmatpush1.msra.mxu0 %v1327
    %1578 = vmatprep.subr.mxu0 0.0
    %1579 = vmatpush1.msra.mxu0 %v1328
    %1580 = vmatprep.subr.mxu0 0.0
    %1581 = vmatpush1.msra.mxu0 %v1329
    %1582 = vmatprep.subr.mxu0 0.0
    %1583 = vmatpush1.msra.mxu0 %v1330
    %1584 = vmatprep.subr.mxu0 0.0
    %1585 = vmatpush1.msra.mxu0 %v1331
    %1586 = vmatprep.subr.mxu0 0.0
    %1587 = vmatpush1.msra.mxu0 %v1332
    %1588 = vmatprep.subr.mxu0 0.0
    %1589 = vmatpush1.msra.mxu0 %v1333
    %1590 = vmatprep.subr.mxu0 0.0
    %1591 = vmatpush1.msra.mxu0 %v1334
    %1592 = vmatprep.subr.mxu0 0.0
    %1593 = vmatpush1.msra.mxu0 %v1335
    %1594 = vmatprep.subr.mxu0 0.0
    %1595 = vmatpush1.msra.mxu0 %v1336
    %1596 = vmatprep.subr.mxu0 0.0
    %1597 = vmatpush1.msra.mxu0 %v1337
    %1598 = vmatprep.mubr.f32.mxu0 %v1499
    %1599 = vmatmul.mubr.f32.gmra.mrb[0].mxu0 %v1482
    %v1600 = vpop.f32.mrb[0].mxu0
    %v1601 = vadd.f32 0.0, %v1600
    %v1602 = vpop.f32.mrb[0].mxu0
    %1603 = vdwg.mxu0
    %1604 = vmatprep.subr.mxu0 0.0
    %1605 = vmatpush1.msra.mxu0 %v1338
    %1606 = vmatprep.subr.mxu0 0.0
    %1607 = vmatpush1.msra.mxu0 %v1339
    %1608 = vmatprep.subr.mxu0 0.0
    %1609 = vmatpush1.msra.mxu0 %v1340
    %1610 = vmatprep.subr.mxu0 0.0
    %1611 = vmatpush1.msra.mxu0 %v1341
    %1612 = vmatprep.subr.mxu0 0.0
    %1613 = vmatpush1.msra.mxu0 %v1342
    %1614 = vmatprep.subr.mxu0 0.0
    %1615 = vmatpush1.msra.mxu0 %v1343
    %1616 = vmatprep.subr.mxu0 0.0
    %1617 = vmatpush1.msra.mxu0 %v1344
    %1618 = vmatprep.subr.mxu0 0.0
    %1619 = vmatpush1.msra.mxu0 %v1345
    %1620 = vmatprep.subr.mxu0 0.0
    %1621 = vmatpush1.msra.mxu0 %v1346
    %1622 = vmatprep.subr.mxu0 0.0
    %1623 = vmatpush1.msra.mxu0 %v1347
    %1624 = vmatprep.subr.mxu0 0.0
    %1625 = vmatpush1.msra.mxu0 %v1348
    %1626 = vmatprep.subr.mxu0 0.0
    %1627 = vmatpush1.msra.mxu0 %v1349
    %1628 = vmatprep.subr.mxu0 0.0
    %1629 = vmatpush1.msra.mxu0 %v1350
    %1630 = vmatprep.subr.mxu0 0.0
    %1631 = vmatpush1.msra.mxu0 %v1351
    %1632 = vmatprep.subr.mxu0 0.0
    %1633 = vmatpush1.msra.mxu0 %v1352
    %1634 = vmatprep.subr.mxu0 0.0
    %1635 = vmatpush1.msra.mxu0 %v1353
    %1636 = vmatprep.subr.mxu0 0.0
    %1637 = vmatpush1.msra.mxu0 %v1354
    %1638 = vmatprep.subr.mxu0 0.0
    %1639 = vmatpush1.msra.mxu0 %v1355
    %1640 = vmatprep.subr.mxu0 0.0
    %1641 = vmatpush1.msra.mxu0 %v1356
    %1642 = vmatprep.subr.mxu0 0.0
    %1643 = vmatpush1.msra.mxu0 %v1357
    %1644 = vmatprep.subr.mxu0 0.0
    %1645 = vmatpush1.msra.mxu0 %v1358
    %1646 = vmatprep.subr.mxu0 0.0
    %1647 = vmatpush1.msra.mxu0 %v1359
    %1648 = vmatprep.subr.mxu0 0.0
    %1649 = vmatpush1.msra.mxu0 %v1360
    %1650 = vmatprep.subr.mxu0 0.0
    %1651 = vmatpush1.msra.mxu0 %v1361
    %1652 = vmatprep.subr.mxu0 0.0
    %1653 = vmatpush1.msra.mxu0 %v1362
    %1654 = vmatprep.subr.mxu0 0.0
    %1655 = vmatpush1.msra.mxu0 %v1363
    %1656 = vmatprep.subr.mxu0 0.0
    %1657 = vmatpush1.msra.mxu0 %v1364
    %1658 = vmatprep.subr.mxu0 0.0
    %1659 = vmatpush1.msra.mxu0 %v1365
    %1660 = vmatprep.subr.mxu0 0.0
    %1661 = vmatpush1.msra.mxu0 %v1366
    %1662 = vmatprep.subr.mxu0 0.0
    %1663 = vmatpush1.msra.mxu0 %v1367
    %1664 = vmatprep.subr.mxu0 0.0
    %1665 = vmatpush1.msra.mxu0 %v1368
    %1666 = vmatprep.subr.mxu0 0.0
    %1667 = vmatpush1.msra.mxu0 %v1369
    %1668 = vmatprep.mubr.f32.mxu0 %v1533
    %1669 = vmatmul.mubr.f32.gmra.mrb[0].mxu0 %v1516
    %v1670 = vpop.f32.mrb[0].mxu0
    %v1671 = vadd.f32 %v1601, %v1670
    %v1672 = vpop.f32.mrb[0].mxu0
    %1673 = vdwg.mxu0
    %v1674 = vmul.f32 %v1671, 0.00052083336
    %1675 = vmatprep.subr.mxu0 %v1403
    %1676 = vmatpush1.msra.mxu0 %v1402
    %1677 = vmatprep.subr.mxu0 %v1407
    %1678 = vmatpush1.msra.mxu0 %v1406
    %1679 = vmatprep.subr.mxu0 %v1411
    %1680 = vmatpush1.msra.mxu0 %v1410
    %1681 = vmatprep.subr.mxu0 %v1415
    %1682 = vmatpush1.msra.mxu0 %v1414
    %1683 = vmatprep.subr.mxu0 %v1419
    %1684 = vmatpush1.msra.mxu0 %v1418
    %1685 = vmatprep.subr.mxu0 %v1423
    %1686 = vmatpush1.msra.mxu0 %v1422
    %1687 = vmatprep.subr.mxu0 %v1427
    %1688 = vmatpush1.msra.mxu0 %v1426
    %1689 = vmatprep.subr.mxu0 %v1431
    %1690 = vmatpush1.msra.mxu0 %v1430
    %1691 = vmatprep.subr.mxu0 %v1435
    %1692 = vmatpush1.msra.mxu0 %v1434
    %1693 = vmatprep.subr.mxu0 %v1439
    %1694 = vmatpush1.msra.mxu0 %v1438
    %1695 = vmatprep.subr.mxu0 %v1443
    %1696 = vmatpush1.msra.mxu0 %v1442
    %1697 = vmatprep.subr.mxu0 %v1447
    %1698 = vmatpush1.msra.mxu0 %v1446
    %1699 = vmatprep.subr.mxu0 %v1451
    %1700 = vmatpush1.msra.mxu0 %v1450
    %1701 = vmatprep.subr.mxu0 %v1455
    %1702 = vmatpush1.msra.mxu0 %v1454
    %1703 = vmatprep.subr.mxu0 %v1459
    %1704 = vmatpush1.msra.mxu0 %v1458
    %1705 = vmatprep.subr.mxu0 %v1463
    %1706 = vmatpush1.msra.mxu0 %v1462
    %1707 = vmatprep.subr.mxu0 0.0
    %1708 = vmatpush1.msra.mxu0 0.0
    %1709 = vmatprep.subr.mxu0 0.0
    %1710 = vmatpush1.msra.mxu0 0.0
    %1711 = vmatprep.subr.mxu0 0.0
    %1712 = vmatpush1.msra.mxu0 0.0
    %1713 = vmatprep.subr.mxu0 0.0
    %1714 = vmatpush1.msra.mxu0 0.0
    %1715 = vmatprep.subr.mxu0 0.0
    %1716 = vmatpush1.msra.mxu0 0.0
    %1717 = vmatprep.subr.mxu0 0.0
    %1718 = vmatpush1.msra.mxu0 0.0
    %1719 = vmatprep.subr.mxu0 0.0
    %1720 = vmatpush1.msra.mxu0 0.0
    %1721 = vmatprep.subr.mxu0 0.0
    %1722 = vmatpush1.msra.mxu0 0.0
    %1723 = vmatprep.subr.mxu0 0.0
    %1724 = vmatpush1.msra.mxu0 0.0
    %1725 = vmatprep.subr.mxu0 0.0
    %1726 = vmatpush1.msra.mxu0 0.0
    %1727 = vmatprep.subr.mxu0 0.0
    %1728 = vmatpush1.msra.mxu0 0.0
    %1729 = vmatprep.subr.mxu0 0.0
    %1730 = vmatpush1.msra.mxu0 0.0
    %1731 = vmatprep.subr.mxu0 0.0
    %1732 = vmatpush1.msra.mxu0 0.0
    %1733 = vmatprep.subr.mxu0 0.0
    %1734 = vmatpush1.msra.mxu0 0.0
    %1735 = vmatprep.subr.mxu0 0.0
    %1736 = vmatpush1.msra.mxu0 0.0
    %1737 = vmatprep.subr.mxu0 0.0
    %1738 = vmatpush1.msra.mxu0 0.0
    %1739 = vmatprep.mubr.f32.mxu0 0.0
    %1740 = vmatmul.mubr.f32.gmra.mrb[0].mxu0 %v1674
    %v1741 = vpop.f32.mrb[0].mxu0
    %v1742 = vadd.f32 0.0, %v1741
    %v1743 = vpop.f32.mrb[0].mxu0
    %v1744 = vadd.f32 0.0, %v1743
    %1745 = vdwg.mxu0
    %1746 = vmatprep.subr.mxu0 %v1405
    %1747 = vmatpush1.msra.mxu0 %v1404
    %1748 = vmatprep.subr.mxu0 %v1409
    %1749 = vmatpush1.msra.mxu0 %v1408
    %1750 = vmatprep.subr.mxu0 %v1413
    %1751 = vmatpush1.msra.mxu0 %v1412
    %1752 = vmatprep.subr.mxu0 %v1417
    %1753 = vmatpush1.msra.mxu0 %v1416
    %1754 = vmatprep.subr.mxu0 %v1421
    %1755 = vmatpush1.msra.mxu0 %v1420
    %1756 = vmatprep.subr.mxu0 %v1425
    %1757 = vmatpush1.msra.mxu0 %v1424
    %1758 = vmatprep.subr.mxu0 %v1429
    %1759 = vmatpush1.msra.mxu0 %v1428
    %1760 = vmatprep.subr.mxu0 %v1433
    %1761 = vmatpush1.msra.mxu0 %v1432
    %1762 = vmatprep.subr.mxu0 %v1437
    %1763 = vmatpush1.msra.mxu0 %v1436
    %1764 = vmatprep.subr.mxu0 %v1441
    %1765 = vmatpush1.msra.mxu0 %v1440
    %1766 = vmatprep.subr.mxu0 %v1445
    %1767 = vmatpush1.msra.mxu0 %v1444
    %1768 = vmatprep.subr.mxu0 %v1449
    %1769 = vmatpush1.msra.mxu0 %v1448
    %1770 = vmatprep.subr.mxu0 %v1453
    %1771 = vmatpush1.msra.mxu0 %v1452
    %1772 = vmatprep.subr.mxu0 %v1457
    %1773 = vmatpush1.msra.mxu0 %v1456
    %1774 = vmatprep.subr.mxu0 %v1461
    %1775 = vmatpush1.msra.mxu0 %v1460
    %1776 = vmatprep.subr.mxu0 %v1465
    %1777 = vmatpush1.msra.mxu0 %v1464
    %1778 = vmatprep.subr.mxu0 0.0
    %1779 = vmatpush1.msra.mxu0 0.0
    %1780 = vmatprep.subr.mxu0 0.0
    %1781 = vmatpush1.msra.mxu0 0.0
    %1782 = vmatprep.subr.mxu0 0.0
    %1783 = vmatpush1.msra.mxu0 0.0
    %1784 = vmatprep.subr.mxu0 0.0
    %1785 = vmatpush1.msra.mxu0 0.0
    %1786 = vmatprep.subr.mxu0 0.0
    %1787 = vmatpush1.msra.mxu0 0.0
    %1788 = vmatprep.subr.mxu0 0.0
    %1789 = vmatpush1.msra.mxu0 0.0
    %1790 = vmatprep.subr.mxu0 0.0
    %1791 = vmatpush1.msra.mxu0 0.0
    %1792 = vmatprep.subr.mxu0 0.0
    %1793 = vmatpush1.msra.mxu0 0.0
    %1794 = vmatprep.subr.mxu0 0.0
    %1795 = vmatpush1.msra.mxu0 0.0
    %1796 = vmatprep.subr.mxu0 0.0
    %1797 = vmatpush1.msra.mxu0 0.0
    %1798 = vmatprep.subr.mxu0 0.0
    %1799 = vmatpush1.msra.mxu0 0.0
    %1800 = vmatprep.subr.mxu0 0.0
    %1801 = vmatpush1.msra.mxu0 0.0
    %1802 = vmatprep.subr.mxu0 0.0
    %1803 = vmatpush1.msra.mxu0 0.0
    %1804 = vmatprep.subr.mxu0 0.0
    %1805 = vmatpush1.msra.mxu0 0.0
    %1806 = vmatprep.subr.mxu0 0.0
    %1807 = vmatpush1.msra.mxu0 0.0
    %1808 = vmatprep.subr.mxu0 0.0
    %1809 = vmatpush1.msra.mxu0 0.0
    %1810 = vmatprep.mubr.f32.mxu0 0.0
    %1811 = vmatmul.mubr.f32.gmra.mrb[0].mxu0 %v1674
    %v1812 = vpop.f32.mrb[0].mxu0
    %v1813 = vadd.f32 0.0, %v1812
    %v1814 = vpop.f32.mrb[0].mxu0
    %v1815 = vadd.f32 0.0, %v1814
    %1816 = vdwg.mxu0
    %v1817 = vlaneseq
    %v1818 = vshrl.u32 %v1817, 7
    %v1819 = vsub.s32 0, %v1818
    %v1820 = vrot.slane %v1742, %v1819
    %v1821 = vlaneseq
    %v1822 = vshrl.u32 %v1821, 7
    %v1823 = vsub.s32 0, %v1822
    %v1824 = vrot.slane %v1744, %v1823
    %v1825 = vlaneseq
    %v1826 = vshrl.u32 %v1825, 7
    %v1827 = vsub.s32 0, %v1826
    %v1828 = vrot.slane %v1813, %v1827
    %v1829 = vlaneseq
    %v1830 = vshrl.u32 %v1829, 7
    %v1831 = vsub.s32 0, %v1830
    %v1832 = vrot.slane %v1815, %v1831
    %v1833 = vsub.f32 %v1194, %v1820
    %v1834 = vsub.f32 %v1195, %v1824
    %v1835 = vsub.f32 %v1196, %v1828
    %v1836 = vsub.f32 %v1197, %v1832
    %v1837 = vsub.f32 %v1198, %v1820
    %v1838 = vsub.f32 %v1199, %v1824
    %v1839 = vsub.f32 %v1200, %v1828
    %v1840 = vsub.f32 %v1201, %v1832
    %v1841 = vsub.f32 %v1202, %v1820
    %v1842 = vsub.f32 %v1203, %v1824
    %v1843 = vsub.f32 %v1204, %v1828
    %v1844 = vsub.f32 %v1205, %v1832
    %v1845 = vsub.f32 %v1206, %v1820
    %v1846 = vsub.f32 %v1207, %v1824
    %v1847 = vsub.f32 %v1208, %v1828
    %v1848 = vsub.f32 %v1209, %v1832
    %v1849 = vsub.f32 %v1210, %v1820
    %v1850 = vsub.f32 %v1211, %v1824
    %v1851 = vsub.f32 %v1212, %v1828
    %v1852 = vsub.f32 %v1213, %v1832
    %v1853 = vsub.f32 %v1214, %v1820
    %v1854 = vsub.f32 %v1215, %v1824
    %v1855 = vsub.f32 %v1216, %v1828
    %v1856 = vsub.f32 %v1217, %v1832
    %v1857 = vsub.f32 %v1218, %v1820
    %v1858 = vsub.f32 %v1219, %v1824
    %v1859 = vsub.f32 %v1220, %v1828
    %v1860 = vsub.f32 %v1221, %v1832
    %v1861 = vsub.f32 %v1222, %v1820
    %v1862 = vsub.f32 %v1223, %v1824
    %v1863 = vsub.f32 %v1224, %v1828
    %v1864 = vsub.f32 %v1225, %v1832
    %v1865 = vsub.f32 %v1226, %v1820
    %v1866 = vsub.f32 %v1227, %v1824
    %v1867 = vsub.f32 %v1228, %v1828
    %v1868 = vsub.f32 %v1229, %v1832
    %v1869 = vsub.f32 %v1230, %v1820
    %v1870 = vsub.f32 %v1231, %v1824
    %v1871 = vsub.f32 %v1232, %v1828
    %v1872 = vsub.f32 %v1233, %v1832
    %v1873 = vsub.f32 %v1234, %v1820
    %v1874 = vsub.f32 %v1235, %v1824
    %v1875 = vsub.f32 %v1236, %v1828
    %v1876 = vsub.f32 %v1237, %v1832
    %v1877 = vsub.f32 %v1238, %v1820
    %v1878 = vsub.f32 %v1239, %v1824
    %v1879 = vsub.f32 %v1240, %v1828
    %v1880 = vsub.f32 %v1241, %v1832
    %v1881 = vmul.f32 %v1833, %v1833
    %v1882 = vmul.f32 %v1834, %v1834
    %v1883 = vmul.f32 %v1835, %v1835
    %v1884 = vmul.f32 %v1836, %v1836
    %v1885 = vmul.f32 %v1837, %v1837
    %v1886 = vmul.f32 %v1838, %v1838
    %v1887 = vmul.f32 %v1839, %v1839
    %v1888 = vmul.f32 %v1840, %v1840
    %v1889 = vmul.f32 %v1841, %v1841
    %v1890 = vmul.f32 %v1842, %v1842
    %v1891 = vmul.f32 %v1843, %v1843
    %v1892 = vmul.f32 %v1844, %v1844
    %v1893 = vmul.f32 %v1845, %v1845
    %v1894 = vmul.f32 %v1846, %v1846
    %v1895 = vmul.f32 %v1847, %v1847
    %v1896 = vmul.f32 %v1848, %v1848
    %v1897 = vmul.f32 %v1849, %v1849
    %v1898 = vmul.f32 %v1850, %v1850
    %v1899 = vmul.f32 %v1851, %v1851
    %v1900 = vmul.f32 %v1852, %v1852
    %v1901 = vmul.f32 %v1853, %v1853
    %v1902 = vmul.f32 %v1854, %v1854
    %v1903 = vmul.f32 %v1855, %v1855
    %v1904 = vmul.f32 %v1856, %v1856
    %v1905 = vmul.f32 %v1857, %v1857
    %v1906 = vmul.f32 %v1858, %v1858
    %v1907 = vmul.f32 %v1859, %v1859
    %v1908 = vmul.f32 %v1860, %v1860
    %v1909 = vmul.f32 %v1861, %v1861
    %v1910 = vmul.f32 %v1862, %v1862
    %v1911 = vmul.f32 %v1863, %v1863
    %v1912 = vmul.f32 %v1864, %v1864
    %v1913 = vmul.f32 %v1865, %v1865
    %v1914 = vmul.f32 %v1866, %v1866
    %v1915 = vmul.f32 %v1867, %v1867
    %v1916 = vmul.f32 %v1868, %v1868
    %v1917 = vmul.f32 %v1869, %v1869
    %v1918 = vmul.f32 %v1870, %v1870
    %v1919 = vmul.f32 %v1871, %v1871
    %v1920 = vmul.f32 %v1872, %v1872
    %v1921 = vmul.f32 %v1873, %v1873
    %v1922 = vmul.f32 %v1874, %v1874
    %v1923 = vmul.f32 %v1875, %v1875
    %v1924 = vmul.f32 %v1876, %v1876
    %v1925 = vmul.f32 %v1877, %v1877
    %v1926 = vmul.f32 %v1878, %v1878
    %v1927 = vmul.f32 %v1879, %v1879
    %v1928 = vmul.f32 %v1880, %v1880
    %v1929 = vadd.f32 %v1881, %v1885
    %v1930 = vadd.f32 %v1929, %v1889
    %v1931 = vadd.f32 %v1930, %v1893
    %v1932 = vadd.f32 %v1931, %v1897
    %v1933 = vadd.f32 %v1932, %v1901
    %v1934 = vadd.f32 %v1933, %v1905
    %v1935 = vadd.f32 %v1934, %v1909
    %v1936 = vadd.f32 %v1935, %v1913
    %v1937 = vadd.f32 %v1936, %v1917
    %v1938 = vadd.f32 %v1937, %v1921
    %v1939 = vadd.f32 %v1938, %v1925
    %v1940 = vrot.slane %v1939, 4
    %v1941 = vadd.f32 %v1939, %v1940
    %v1942 = vrot.slane %v1941, 2
    %v1943 = vadd.f32 %v1941, %v1942
    %v1944 = vrot.slane %v1943, 1
    %v1945 = vadd.f32 %v1943, %v1944
    %v1946 = vadd.f32 %v1882, %v1886
    %v1947 = vadd.f32 %v1946, %v1890
    %v1948 = vadd.f32 %v1947, %v1894
    %v1949 = vadd.f32 %v1948, %v1898
    %v1950 = vadd.f32 %v1949, %v1902
    %v1951 = vadd.f32 %v1950, %v1906
    %v1952 = vadd.f32 %v1951, %v1910
    %v1953 = vadd.f32 %v1952, %v1914
    %v1954 = vadd.f32 %v1953, %v1918
    %v1955 = vadd.f32 %v1954, %v1922
    %v1956 = vadd.f32 %v1955, %v1926
    %v1957 = vrot.slane %v1956, 4
    %v1958 = vadd.f32 %v1956, %v1957
    %v1959 = vrot.slane %v1958, 2
    %v1960 = vadd.f32 %v1958, %v1959
    %v1961 = vrot.slane %v1960, 1
    %v1962 = vadd.f32 %v1960, %v1961
    %v1963 = vadd.f32 %v1883, %v1887
    %v1964 = vadd.f32 %v1963, %v1891
    %v1965 = vadd.f32 %v1964, %v1895
    %v1966 = vadd.f32 %v1965, %v1899
    %v1967 = vadd.f32 %v1966, %v1903
    %v1968 = vadd.f32 %v1967, %v1907
    %v1969 = vadd.f32 %v1968, %v1911
    %v1970 = vadd.f32 %v1969, %v1915
    %v1971 = vadd.f32 %v1970, %v1919
    %v1972 = vadd.f32 %v1971, %v1923
    %v1973 = vadd.f32 %v1972, %v1927
    %v1974 = vrot.slane %v1973, 4
    %v1975 = vadd.f32 %v1973, %v1974
    %v1976 = vrot.slane %v1975, 2
    %v1977 = vadd.f32 %v1975, %v1976
    %v1978 = vrot.slane %v1977, 1
    %v1979 = vadd.f32 %v1977, %v1978
    %v1980 = vadd.f32 %v1884, %v1888
    %v1981 = vadd.f32 %v1980, %v1892
    %v1982 = vadd.f32 %v1981, %v1896
    %v1983 = vadd.f32 %v1982, %v1900
    %v1984 = vadd.f32 %v1983, %v1904
    %v1985 = vadd.f32 %v1984, %v1908
    %v1986 = vadd.f32 %v1985, %v1912
    %v1987 = vadd.f32 %v1986, %v1916
    %v1988 = vadd.f32 %v1987, %v1920
    %v1989 = vadd.f32 %v1988, %v1924
    %v1990 = vadd.f32 %v1989, %v1928
    %v1991 = vrot.slane %v1990, 4
    %v1992 = vadd.f32 %v1990, %v1991
    %v1993 = vrot.slane %v1992, 2
    %v1994 = vadd.f32 %v1992, %v1993
    %v1995 = vrot.slane %v1994, 1
    %v1996 = vadd.f32 %v1994, %v1995
    %1997 = vmatprep.subr.mxu0 0.0
    %1998 = vmatpush1.msra.mxu0 %v1306
    %1999 = vmatprep.subr.mxu0 0.0
    %2000 = vmatpush1.msra.mxu0 %v1307
    %2001 = vmatprep.subr.mxu0 0.0
    %2002 = vmatpush1.msra.mxu0 %v1308
    %2003 = vmatprep.subr.mxu0 0.0
    %2004 = vmatpush1.msra.mxu0 %v1309
    %2005 = vmatprep.subr.mxu0 0.0
    %2006 = vmatpush1.msra.mxu0 %v1310
    %2007 = vmatprep.subr.mxu0 0.0
    %2008 = vmatpush1.msra.mxu0 %v1311
    %2009 = vmatprep.subr.mxu0 0.0
    %2010 = vmatpush1.msra.mxu0 %v1312
    %2011 = vmatprep.subr.mxu0 0.0
    %2012 = vmatpush1.msra.mxu0 %v1313
    %2013 = vmatprep.subr.mxu0 0.0
    %2014 = vmatpush1.msra.mxu0 %v1314
    %2015 = vmatprep.subr.mxu0 0.0
    %2016 = vmatpush1.msra.mxu0 %v1315
    %2017 = vmatprep.subr.mxu0 0.0
    %2018 = vmatpush1.msra.mxu0 %v1316
    %2019 = vmatprep.subr.mxu0 0.0
    %2020 = vmatpush1.msra.mxu0 %v1317
    %2021 = vmatprep.subr.mxu0 0.0
    %2022 = vmatpush1.msra.mxu0 %v1318
    %2023 = vmatprep.subr.mxu0 0.0
    %2024 = vmatpush1.msra.mxu0 %v1319
    %2025 = vmatprep.subr.mxu0 0.0
    %2026 = vmatpush1.msra.mxu0 %v1320
    %2027 = vmatprep.subr.mxu0 0.0
    %2028 = vmatpush1.msra.mxu0 %v1321
    %2029 = vmatprep.subr.mxu0 0.0
    %2030 = vmatpush1.msra.mxu0 %v1322
    %2031 = vmatprep.subr.mxu0 0.0
    %2032 = vmatpush1.msra.mxu0 %v1323
    %2033 = vmatprep.subr.mxu0 0.0
    %2034 = vmatpush1.msra.mxu0 %v1324
    %2035 = vmatprep.subr.mxu0 0.0
    %2036 = vmatpush1.msra.mxu0 %v1325
    %2037 = vmatprep.subr.mxu0 0.0
    %2038 = vmatpush1.msra.mxu0 %v1326
    %2039 = vmatprep.subr.mxu0 0.0
    %2040 = vmatpush1.msra.mxu0 %v1327
    %2041 = vmatprep.subr.mxu0 0.0
    %2042 = vmatpush1.msra.mxu0 %v1328
    %2043 = vmatprep.subr.mxu0 0.0
    %2044 = vmatpush1.msra.mxu0 %v1329
    %2045 = vmatprep.subr.mxu0 0.0
    %2046 = vmatpush1.msra.mxu0 %v1330
    %2047 = vmatprep.subr.mxu0 0.0
    %2048 = vmatpush1.msra.mxu0 %v1331
    %2049 = vmatprep.subr.mxu0 0.0
    %2050 = vmatpush1.msra.mxu0 %v1332
    %2051 = vmatprep.subr.mxu0 0.0
    %2052 = vmatpush1.msra.mxu0 %v1333
    %2053 = vmatprep.subr.mxu0 0.0
    %2054 = vmatpush1.msra.mxu0 %v1334
    %2055 = vmatprep.subr.mxu0 0.0
    %2056 = vmatpush1.msra.mxu0 %v1335
    %2057 = vmatprep.subr.mxu0 0.0
    %2058 = vmatpush1.msra.mxu0 %v1336
    %2059 = vmatprep.subr.mxu0 0.0
    %2060 = vmatpush1.msra.mxu0 %v1337
    %2061 = vmatprep.mubr.f32.mxu0 %v1962
    %2062 = vmatmul.mubr.f32.gmra.mrb[0].mxu0 %v1945
    %v2063 = vpop.f32.mrb[0].mxu0
    %v2064 = vadd.f32 0.0, %v2063
    %v2065 = vpop.f32.mrb[0].mxu0
    %2066 = vdwg.mxu0
    %2067 = vmatprep.subr.mxu0 0.0
    %2068 = vmatpush1.msra.mxu0 %v1338
    %2069 = vmatprep.subr.mxu0 0.0
    %2070 = vmatpush1.msra.mxu0 %v1339
    %2071 = vmatprep.subr.mxu0 0.0
    %2072 = vmatpush1.msra.mxu0 %v1340
    %2073 = vmatprep.subr.mxu0 0.0
    %2074 = vmatpush1.msra.mxu0 %v1341
    %2075 = vmatprep.subr.mxu0 0.0
    %2076 = vmatpush1.msra.mxu0 %v1342
    %2077 = vmatprep.subr.mxu0 0.0
    %2078 = vmatpush1.msra.mxu0 %v1343
    %2079 = vmatprep.subr.mxu0 0.0
    %2080 = vmatpush1.msra.mxu0 %v1344
    %2081 = vmatprep.subr.mxu0 0.0
    %2082 = vmatpush1.msra.mxu0 %v1345
    %2083 = vmatprep.subr.mxu0 0.0
    %2084 = vmatpush1.msra.mxu0 %v1346
    %2085 = vmatprep.subr.mxu0 0.0
    %2086 = vmatpush1.msra.mxu0 %v1347
    %2087 = vmatprep.subr.mxu0 0.0
    %2088 = vmatpush1.msra.mxu0 %v1348
    %2089 = vmatprep.subr.mxu0 0.0
    %2090 = vmatpush1.msra.mxu0 %v1349
    %2091 = vmatprep.subr.mxu0 0.0
    %2092 = vmatpush1.msra.mxu0 %v1350
    %2093 = vmatprep.subr.mxu0 0.0
    %2094 = vmatpush1.msra.mxu0 %v1351
    %2095 = vmatprep.subr.mxu0 0.0
    %2096 = vmatpush1.msra.mxu0 %v1352
    %2097 = vmatprep.subr.mxu0 0.0
    %2098 = vmatpush1.msra.mxu0 %v1353
    %2099 = vmatprep.subr.mxu0 0.0
    %2100 = vmatpush1.msra.mxu0 %v1354
    %2101 = vmatprep.subr.mxu0 0.0
    %2102 = vmatpush1.msra.mxu0 %v1355
    %2103 = vmatprep.subr.mxu0 0.0
    %2104 = vmatpush1.msra.mxu0 %v1356
    %2105 = vmatprep.subr.mxu0 0.0
    %2106 = vmatpush1.msra.mxu0 %v1357
    %2107 = vmatprep.subr.mxu0 0.0
    %2108 = vmatpush1.msra.mxu0 %v1358
    %2109 = vmatprep.subr.mxu0 0.0
    %2110 = vmatpush1.msra.mxu0 %v1359
    %2111 = vmatprep.subr.mxu0 0.0
    %2112 = vmatpush1.msra.mxu0 %v1360
    %2113 = vmatprep.subr.mxu0 0.0
    %2114 = vmatpush1.msra.mxu0 %v1361
    %2115 = vmatprep.subr.mxu0 0.0
    %2116 = vmatpush1.msra.mxu0 %v1362
    %2117 = vmatprep.subr.mxu0 0.0
    %2118 = vmatpush1.msra.mxu0 %v1363
    %2119 = vmatprep.subr.mxu0 0.0
    %2120 = vmatpush1.msra.mxu0 %v1364
    %2121 = vmatprep.subr.mxu0 0.0
    %2122 = vmatpush1.msra.mxu0 %v1365
    %2123 = vmatprep.subr.mxu0 0.0
    %2124 = vmatpush1.msra.mxu0 %v1366
    %2125 = vmatprep.subr.mxu0 0.0
    %2126 = vmatpush1.msra.mxu0 %v1367
    %2127 = vmatprep.subr.mxu0 0.0
    %2128 = vmatpush1.msra.mxu0 %v1368
    %2129 = vmatprep.subr.mxu0 0.0
    %2130 = vmatpush1.msra.mxu0 %v1369
    %2131 = vmatprep.mubr.f32.mxu0 %v1996
    %2132 = vmatmul.mubr.f32.gmra.mrb[0].mxu0 %v1979
    %v2133 = vpop.f32.mrb[0].mxu0
    %v2134 = vadd.f32 %v2064, %v2133
    %v2135 = vpop.f32.mrb[0].mxu0
    %2136 = vdwg.mxu0
    %v2137 = vmul.f32 %v2134, 0.00052083336
    %v2138 = vadd.f32 %v2137, 1e-05
    %v2139 = vrsqrt.pop %v2138
    %2140 = vmatprep.subr.mxu0 %v1403
    %2141 = vmatpush1.msra.mxu0 %v1402
    %2142 = vmatprep.subr.mxu0 %v1407
    %2143 = vmatpush1.msra.mxu0 %v1406
    %2144 = vmatprep.subr.mxu0 %v1411
    %2145 = vmatpush1.msra.mxu0 %v1410
    %2146 = vmatprep.subr.mxu0 %v1415
    %2147 = vmatpush1.msra.mxu0 %v1414
    %2148 = vmatprep.subr.mxu0 %v1419
    %2149 = vmatpush1.msra.mxu0 %v1418
    %2150 = vmatprep.subr.mxu0 %v1423
    %2151 = vmatpush1.msra.mxu0 %v1422
    %2152 = vmatprep.subr.mxu0 %v1427
    %2153 = vmatpush1.msra.mxu0 %v1426
    %2154 = vmatprep.subr.mxu0 %v1431
    %2155 = vmatpush1.msra.mxu0 %v1430
    %2156 = vmatprep.subr.mxu0 %v1435
    %2157 = vmatpush1.msra.mxu0 %v1434
    %2158 = vmatprep.subr.mxu0 %v1439
    %2159 = vmatpush1.msra.mxu0 %v1438
    %2160 = vmatprep.subr.mxu0 %v1443
    %2161 = vmatpush1.msra.mxu0 %v1442
    %2162 = vmatprep.subr.mxu0 %v1447
    %2163 = vmatpush1.msra.mxu0 %v1446
    %2164 = vmatprep.subr.mxu0 %v1451
    %2165 = vmatpush1.msra.mxu0 %v1450
    %2166 = vmatprep.subr.mxu0 %v1455
    %2167 = vmatpush1.msra.mxu0 %v1454
    %2168 = vmatprep.subr.mxu0 %v1459
    %2169 = vmatpush1.msra.mxu0 %v1458
    %2170 = vmatprep.subr.mxu0 %v1463
    %2171 = vmatpush1.msra.mxu0 %v1462
    %2172 = vmatprep.subr.mxu0 0.0
    %2173 = vmatpush1.msra.mxu0 0.0
    %2174 = vmatprep.subr.mxu0 0.0
    %2175 = vmatpush1.msra.mxu0 0.0
    %2176 = vmatprep.subr.mxu0 0.0
    %2177 = vmatpush1.msra.mxu0 0.0
    %2178 = vmatprep.subr.mxu0 0.0
    %2179 = vmatpush1.msra.mxu0 0.0
    %2180 = vmatprep.subr.mxu0 0.0
    %2181 = vmatpush1.msra.mxu0 0.0
    %2182 = vmatprep.subr.mxu0 0.0
    %2183 = vmatpush1.msra.mxu0 0.0
    %2184 = vmatprep.subr.mxu0 0.0
    %2185 = vmatpush1.msra.mxu0 0.0
    %2186 = vmatprep.subr.mxu0 0.0
    %2187 = vmatpush1.msra.mxu0 0.0
    %2188 = vmatprep.subr.mxu0 0.0
    %2189 = vmatpush1.msra.mxu0 0.0
    %2190 = vmatprep.subr.mxu0 0.0
    %2191 = vmatpush1.msra.mxu0 0.0
    %2192 = vmatprep.subr.mxu0 0.0
    %2193 = vmatpush1.msra.mxu0 0.0
    %2194 = vmatprep.subr.mxu0 0.0
    %2195 = vmatpush1.msra.mxu0 0.0
    %2196 = vmatprep.subr.mxu0 0.0
    %2197 = vmatpush1.msra.mxu0 0.0
    %2198 = vmatprep.subr.mxu0 0.0
    %2199 = vmatpush1.msra.mxu0 0.0
    %2200 = vmatprep.subr.mxu0 0.0
    %2201 = vmatpush1.msra.mxu0 0.0
    %2202 = vmatprep.subr.mxu0 0.0
    %2203 = vmatpush1.msra.mxu0 0.0
    %2204 = vmatprep.mubr.f32.mxu0 0.0
    %2205 = vmatmul.mubr.f32.gmra.mrb[0].mxu0 %v2139
    %v2206 = vpop.f32.mrb[0].mxu0
    %v2207 = vadd.f32 0.0, %v2206
    %v2208 = vpop.f32.mrb[0].mxu0
    %v2209 = vadd.f32 0.0, %v2208
    %2210 = vdwg.mxu0
    %2211 = vmatprep.subr.mxu0 %v1405
    %2212 = vmatpush1.msra.mxu0 %v1404
    %2213 = vmatprep.subr.mxu0 %v1409
    %2214 = vmatpush1.msra.mxu0 %v1408
    %2215 = vmatprep.subr.mxu0 %v1413
    %2216 = vmatpush1.msra.mxu0 %v1412
    %2217 = vmatprep.subr.mxu0 %v1417
    %2218 = vmatpush1.msra.mxu0 %v1416
    %2219 = vmatprep.subr.mxu0 %v1421
    %2220 = vmatpush1.msra.mxu0 %v1420
    %2221 = vmatprep.subr.mxu0 %v1425
    %2222 = vmatpush1.msra.mxu0 %v1424
    %2223 = vmatprep.subr.mxu0 %v1429
    %2224 = vmatpush1.msra.mxu0 %v1428
    %2225 = vmatprep.subr.mxu0 %v1433
    %2226 = vmatpush1.msra.mxu0 %v1432
    %2227 = vmatprep.subr.mxu0 %v1437
    %2228 = vmatpush1.msra.mxu0 %v1436
    %2229 = vmatprep.subr.mxu0 %v1441
    %2230 = vmatpush1.msra.mxu0 %v1440
    %2231 = vmatprep.subr.mxu0 %v1445
    %2232 = vmatpush1.msra.mxu0 %v1444
    %2233 = vmatprep.subr.mxu0 %v1449
    %2234 = vmatpush1.msra.mxu0 %v1448
    %2235 = vmatprep.subr.mxu0 %v1453
    %2236 = vmatpush1.msra.mxu0 %v1452
    %2237 = vmatprep.subr.mxu0 %v1457
    %2238 = vmatpush1.msra.mxu0 %v1456
    %2239 = vmatprep.subr.mxu0 %v1461
    %2240 = vmatpush1.msra.mxu0 %v1460
    %2241 = vmatprep.subr.mxu0 %v1465
    %2242 = vmatpush1.msra.mxu0 %v1464
    %2243 = vmatprep.subr.mxu0 0.0
    %2244 = vmatpush1.msra.mxu0 0.0
    %2245 = vmatprep.subr.mxu0 0.0
    %2246 = vmatpush1.msra.mxu0 0.0
    %2247 = vmatprep.subr.mxu0 0.0
    %2248 = vmatpush1.msra.mxu0 0.0
    %2249 = vmatprep.subr.mxu0 0.0
    %2250 = vmatpush1.msra.mxu0 0.0
    %2251 = vmatprep.subr.mxu0 0.0
    %2252 = vmatpush1.msra.mxu0 0.0
    %2253 = vmatprep.subr.mxu0 0.0
    %2254 = vmatpush1.msra.mxu0 0.0
    %2255 = vmatprep.subr.mxu0 0.0
    %2256 = vmatpush1.msra.mxu0 0.0
    %2257 = vmatprep.subr.mxu0 0.0
    %2258 = vmatpush1.msra.mxu0 0.0
    %2259 = vmatprep.subr.mxu0 0.0
    %2260 = vmatpush1.msra.mxu0 0.0
    %2261 = vmatprep.subr.mxu0 0.0
    %2262 = vmatpush1.msra.mxu0 0.0
    %2263 = vmatprep.subr.mxu0 0.0
    %2264 = vmatpush1.msra.mxu0 0.0
    %2265 = vmatprep.subr.mxu0 0.0
    %2266 = vmatpush1.msra.mxu0 0.0
    %2267 = vmatprep.subr.mxu0 0.0
    %2268 = vmatpush1.msra.mxu0 0.0
    %2269 = vmatprep.subr.mxu0 0.0
    %2270 = vmatpush1.msra.mxu0 0.0
    %2271 = vmatprep.subr.mxu0 0.0
    %2272 = vmatpush1.msra.mxu0 0.0
    %2273 = vmatprep.subr.mxu0 0.0
    %2274 = vmatpush1.msra.mxu0 0.0
    %2275 = vmatprep.mubr.f32.mxu0 0.0
    %2276 = vmatmul.mubr.f32.gmra.mrb[0].mxu0 %v2139
    %v2277 = vpop.f32.mrb[0].mxu0
    %v2278 = vadd.f32 0.0, %v2277
    %v2279 = vpop.f32.mrb[0].mxu0
    %v2280 = vadd.f32 0.0, %v2279
    %2281 = vdwg.mxu0
    %v2282 = vlaneseq
    %v2283 = vshrl.u32 %v2282, 7
    %v2284 = vsub.s32 0, %v2283
    %v2285 = vrot.slane %v2207, %v2284
    %v2286 = vlaneseq
    %v2287 = vshrl.u32 %v2286, 7
    %v2288 = vsub.s32 0, %v2287
    %v2289 = vrot.slane %v2209, %v2288
    %v2290 = vlaneseq
    %v2291 = vshrl.u32 %v2290, 7
    %v2292 = vsub.s32 0, %v2291
    %v2293 = vrot.slane %v2278, %v2292
    %v2294 = vlaneseq
    %v2295 = vshrl.u32 %v2294, 7
    %v2296 = vsub.s32 0, %v2295
    %v2297 = vrot.slane %v2280, %v2296
    %v2298 = vmul.f32 %v1833, %v2285
    %v2299 = vmul.f32 %v1834, %v2289
    %v2300 = vmul.f32 %v1835, %v2293
    %v2301 = vmul.f32 %v1836, %v2297
    %v2302 = vmul.f32 %v1837, %v2285
    %v2303 = vmul.f32 %v1838, %v2289
    %v2304 = vmul.f32 %v1839, %v2293
    %v2305 = vmul.f32 %v1840, %v2297
    %v2306 = vmul.f32 %v1841, %v2285
    %v2307 = vmul.f32 %v1842, %v2289
    %v2308 = vmul.f32 %v1843, %v2293
    %v2309 = vmul.f32 %v1844, %v2297
    %v2310 = vmul.f32 %v1845, %v2285
    %v2311 = vmul.f32 %v1846, %v2289
    %v2312 = vmul.f32 %v1847, %v2293
    %v2313 = vmul.f32 %v1848, %v2297
    %v2314 = vmul.f32 %v1849, %v2285
    %v2315 = vmul.f32 %v1850, %v2289
    %v2316 = vmul.f32 %v1851, %v2293
    %v2317 = vmul.f32 %v1852, %v2297
    %v2318 = vmul.f32 %v1853, %v2285
    %v2319 = vmul.f32 %v1854, %v2289
    %v2320 = vmul.f32 %v1855, %v2293
    %v2321 = vmul.f32 %v1856, %v2297
    %v2322 = vmul.f32 %v1857, %v2285
    %v2323 = vmul.f32 %v1858, %v2289
    %v2324 = vmul.f32 %v1859, %v2293
    %v2325 = vmul.f32 %v1860, %v2297
    %v2326 = vmul.f32 %v1861, %v2285
    %v2327 = vmul.f32 %v1862, %v2289
    %v2328 = vmul.f32 %v1863, %v2293
    %v2329 = vmul.f32 %v1864, %v2297
    %v2330 = vmul.f32 %v1865, %v2285
    %v2331 = vmul.f32 %v1866, %v2289
    %v2332 = vmul.f32 %v1867, %v2293
    %v2333 = vmul.f32 %v1868, %v2297
    %v2334 = vmul.f32 %v1869, %v2285
    %v2335 = vmul.f32 %v1870, %v2289
    %v2336 = vmul.f32 %v1871, %v2293
    %v2337 = vmul.f32 %v1872, %v2297
    %v2338 = vmul.f32 %v1873, %v2285
    %v2339 = vmul.f32 %v1874, %v2289
    %v2340 = vmul.f32 %v1875, %v2293
    %v2341 = vmul.f32 %v1876, %v2297
    %v2342 = vmul.f32 %v1877, %v2285
    %v2343 = vmul.f32 %v1878, %v2289
    %v2344 = vmul.f32 %v1879, %v2293
    %v2345 = vmul.f32 %v1880, %v2297
    %v2346 = vmax.f32 %v2298, 0.0
    %v2347 = vmax.f32 %v2299, 0.0
    %v2348 = vmax.f32 %v2300, 0.0
    %v2349 = vmax.f32 %v2301, 0.0
    %v2350 = vmax.f32 %v2302, 0.0
    %v2351 = vmax.f32 %v2303, 0.0
    %v2352 = vmax.f32 %v2304, 0.0
    %v2353 = vmax.f32 %v2305, 0.0
    %v2354 = vmax.f32 %v2306, 0.0
    %v2355 = vmax.f32 %v2307, 0.0
    %v2356 = vmax.f32 %v2308, 0.0
    %v2357 = vmax.f32 %v2309, 0.0
    %v2358 = vmax.f32 %v2310, 0.0
    %v2359 = vmax.f32 %v2311, 0.0
    %v2360 = vmax.f32 %v2312, 0.0
    %v2361 = vmax.f32 %v2313, 0.0
    %v2362 = vmax.f32 %v2314, 0.0
    %v2363 = vmax.f32 %v2315, 0.0
    %v2364 = vmax.f32 %v2316, 0.0
    %v2365 = vmax.f32 %v2317, 0.0
    %v2366 = vmax.f32 %v2318, 0.0
    %v2367 = vmax.f32 %v2319, 0.0
    %v2368 = vmax.f32 %v2320, 0.0
    %v2369 = vmax.f32 %v2321, 0.0
    %v2370 = vmax.f32 %v2322, 0.0
    %v2371 = vmax.f32 %v2323, 0.0
    %v2372 = vmax.f32 %v2324, 0.0
    %v2373 = vmax.f32 %v2325, 0.0
    %v2374 = vmax.f32 %v2326, 0.0
    %v2375 = vmax.f32 %v2327, 0.0
    %v2376 = vmax.f32 %v2328, 0.0
    %v2377 = vmax.f32 %v2329, 0.0
    %v2378 = vmax.f32 %v2330, 0.0
    %v2379 = vmax.f32 %v2331, 0.0
    %v2380 = vmax.f32 %v2332, 0.0
    %v2381 = vmax.f32 %v2333, 0.0
    %v2382 = vmax.f32 %v2334, 0.0
    %v2383 = vmax.f32 %v2335, 0.0
    %v2384 = vmax.f32 %v2336, 0.0
    %v2385 = vmax.f32 %v2337, 0.0
    %v2386 = vmax.f32 %v2338, 0.0
    %v2387 = vmax.f32 %v2339, 0.0
    %v2388 = vmax.f32 %v2340, 0.0
    %v2389 = vmax.f32 %v2341, 0.0
    %v2390 = vmax.f32 %v2342, 0.0
    %v2391 = vmax.f32 %v2343, 0.0
    %v2392 = vmax.f32 %v2344, 0.0
    %v2393 = vmax.f32 %v2345, 0.0
    %v2443 = vrot.slane %v2346, 1
    %v2444 = vrot.slane %v2350, 1
    %v2445 = vsel %vm543, %v2443, %v2444
    %v2446 = vrot.slane %v2347, 1
    %v2447 = vrot.slane %v2351, 1
    %v2448 = vsel %vm543, %v2446, %v2447
    %v2449 = vrot.slane %v2348, 1
    %v2450 = vrot.slane %v2352, 1
    %v2451 = vsel %vm543, %v2449, %v2450
    %v2452 = vrot.slane %v2349, 1
    %v2453 = vrot.slane %v2353, 1
    %v2454 = vsel %vm543, %v2452, %v2453
    %v2455 = vrot.slane %v2354, 1
    %v2456 = vsel %vm543, %v2444, %v2455
    %v2457 = vrot.slane %v2355, 1
    %v2458 = vsel %vm543, %v2447, %v2457
    %v2459 = vrot.slane %v2356, 1
    %v2460 = vsel %vm543, %v2450, %v2459
    %v2461 = vrot.slane %v2357, 1
    %v2462 = vsel %vm543, %v2453, %v2461
    %v2463 = vrot.slane %v2358, 1
    %v2464 = vsel %vm543, %v2455, %v2463
    %v2465 = vrot.slane %v2359, 1
    %v2466 = vsel %vm543, %v2457, %v2465
    %v2467 = vrot.slane %v2360, 1
    %v2468 = vsel %vm543, %v2459, %v2467
    %v2469 = vrot.slane %v2361, 1
    %v2470 = vsel %vm543, %v2461, %v2469
    %v2471 = vrot.slane %v2362, 1
    %v2472 = vsel %vm543, %v2463, %v2471
    %v2473 = vrot.slane %v2363, 1
    %v2474 = vsel %vm543, %v2465, %v2473
    %v2475 = vrot.slane %v2364, 1
    %v2476 = vsel %vm543, %v2467, %v2475
    %v2477 = vrot.slane %v2365, 1
    %v2478 = vsel %vm543, %v2469, %v2477
    %v2479 = vrot.slane %v2366, 1
    %v2480 = vsel %vm543, %v2471, %v2479
    %v2481 = vrot.slane %v2367, 1
    %v2482 = vsel %vm543, %v2473, %v2481
    %v2483 = vrot.slane %v2368, 1
    %v2484 = vsel %vm543, %v2475, %v2483
    %v2485 = vrot.slane %v2369, 1
    %v2486 = vsel %vm543, %v2477, %v2485
    %v2487 = vrot.slane %v2370, 1
    %v2488 = vsel %vm543, %v2479, %v2487
    %v2489 = vrot.slane %v2371, 1
    %v2490 = vsel %vm543, %v2481, %v2489
    %v2491 = vrot.slane %v2372, 1
    %v2492 = vsel %vm543, %v2483, %v2491
    %v2493 = vrot.slane %v2373, 1
    %v2494 = vsel %vm543, %v2485, %v2493
    %v2495 = vrot.slane %v2374, 1
    %v2496 = vsel %vm543, %v2487, %v2495
    %v2497 = vrot.slane %v2375, 1
    %v2498 = vsel %vm543, %v2489, %v2497
    %v2499 = vrot.slane %v2376, 1
    %v2500 = vsel %vm543, %v2491, %v2499
    %v2501 = vrot.slane %v2377, 1
    %v2502 = vsel %vm543, %v2493, %v2501
    %v2503 = vrot.slane %v2378, 1
    %v2504 = vsel %vm543, %v2495, %v2503
    %v2505 = vrot.slane %v2379, 1
    %v2506 = vsel %vm543, %v2497, %v2505
    %v2507 = vrot.slane %v2380, 1
    %v2508 = vsel %vm543, %v2499, %v2507
    %v2509 = vrot.slane %v2381, 1
    %v2510 = vsel %vm543, %v2501, %v2509
    %v2511 = vrot.slane %v2382, 1
    %v2512 = vsel %vm543, %v2503, %v2511
    %v2513 = vrot.slane %v2383, 1
    %v2514 = vsel %vm543, %v2505, %v2513
    %v2515 = vrot.slane %v2384, 1
    %v2516 = vsel %vm543, %v2507, %v2515
    %v2517 = vrot.slane %v2385, 1
    %v2518 = vsel %vm543, %v2509, %v2517
    %v2519 = vrot.slane %v2386, 1
    %v2520 = vsel %vm543, %v2511, %v2519
    %v2521 = vrot.slane %v2387, 1
    %v2522 = vsel %vm543, %v2513, %v2521
    %v2523 = vrot.slane %v2388, 1
    %v2524 = vsel %vm543, %v2515, %v2523
    %v2525 = vrot.slane %v2389, 1
    %v2526 = vsel %vm543, %v2517, %v2525
    %v2527 = vrot.slane %v2390, 1
    %v2528 = vsel %vm543, %v2519, %v2527
    %v2529 = vrot.slane %v2391, 1
    %v2530 = vsel %vm543, %v2521, %v2529
    %v2531 = vrot.slane %v2392, 1
    %v2532 = vsel %vm543, %v2523, %v2531
    %v2533 = vrot.slane %v2393, 1
    %v2534 = vsel %vm543, %v2525, %v2533
    %v2535 = vrot.slane 0.0, 1
    %v2536 = vsel %vm543, %v2527, %v2535
    %v2537 = vsel %vm543, %v2529, %v2535
    %v2538 = vsel %vm543, %v2531, %v2535
    %v2539 = vsel %vm543, %v2533, %v2535
    %v2588 = vrot.slane %v2346, 2
    %v2589 = vrot.slane %v2350, 2
    %v2590 = vsel %vm896, %v2588, %v2589
    %v2591 = vrot.slane %v2347, 2
    %v2592 = vrot.slane %v2351, 2
    %v2593 = vsel %vm896, %v2591, %v2592
    %v2594 = vrot.slane %v2348, 2
    %v2595 = vrot.slane %v2352, 2
    %v2596 = vsel %vm896, %v2594, %v2595
    %v2597 = vrot.slane %v2349, 2
    %v2598 = vrot.slane %v2353, 2
    %v2599 = vsel %vm896, %v2597, %v2598
    %v2600 = vrot.slane %v2354, 2
    %v2601 = vsel %vm896, %v2589, %v2600
    %v2602 = vrot.slane %v2355, 2
    %v2603 = vsel %vm896, %v2592, %v2602
    %v2604 = vrot.slane %v2356, 2
    %v2605 = vsel %vm896, %v2595, %v2604
    %v2606 = vrot.slane %v2357, 2
    %v2607 = vsel %vm896, %v2598, %v2606
    %v2608 = vrot.slane %v2358, 2
    %v2609 = vsel %vm896, %v2600, %v2608
    %v2610 = vrot.slane %v2359, 2
    %v2611 = vsel %vm896, %v2602, %v2610
    %v2612 = vrot.slane %v2360, 2
    %v2613 = vsel %vm896, %v2604, %v2612
    %v2614 = vrot.slane %v2361, 2
    %v2615 = vsel %vm896, %v2606, %v2614
    %v2616 = vrot.slane %v2362, 2
    %v2617 = vsel %vm896, %v2608, %v2616
    %v2618 = vrot.slane %v2363, 2
    %v2619 = vsel %vm896, %v2610, %v2618
    %v2620 = vrot.slane %v2364, 2
    %v2621 = vsel %vm896, %v2612, %v2620
    %v2622 = vrot.slane %v2365, 2
    %v2623 = vsel %vm896, %v2614, %v2622
    %v2624 = vrot.slane %v2366, 2
    %v2625 = vsel %vm896, %v2616, %v2624
    %v2626 = vrot.slane %v2367, 2
    %v2627 = vsel %vm896, %v2618, %v2626
    %v2628 = vrot.slane %v2368, 2
    %v2629 = vsel %vm896, %v2620, %v2628
    %v2630 = vrot.slane %v2369, 2
    %v2631 = vsel %vm896, %v2622, %v2630
    %v2632 = vrot.slane %v2370, 2
    %v2633 = vsel %vm896, %v2624, %v2632
    %v2634 = vrot.slane %v2371, 2
    %v2635 = vsel %vm896, %v2626, %v2634
    %v2636 = vrot.slane %v2372, 2
    %v2637 = vsel %vm896, %v2628, %v2636
    %v2638 = vrot.slane %v2373, 2
    %v2639 = vsel %vm896, %v2630, %v2638
    %v2640 = vrot.slane %v2374, 2
    %v2641 = vsel %vm896, %v2632, %v2640
    %v2642 = vrot.slane %v2375, 2
    %v2643 = vsel %vm896, %v2634, %v2642
    %v2644 = vrot.slane %v2376, 2
    %v2645 = vsel %vm896, %v2636, %v2644
    %v2646 = vrot.slane %v2377, 2
    %v2647 = vsel %vm896, %v2638, %v2646
    %v2648 = vrot.slane %v2378, 2
    %v2649 = vsel %vm896, %v2640, %v2648
    %v2650 = vrot.slane %v2379, 2
    %v2651 = vsel %vm896, %v2642, %v2650
    %v2652 = vrot.slane %v2380, 2
    %v2653 = vsel %vm896, %v2644, %v2652
    %v2654 = vrot.slane %v2381, 2
    %v2655 = vsel %vm896, %v2646, %v2654
    %v2656 = vrot.slane %v2382, 2
    %v2657 = vsel %vm896, %v2648, %v2656
    %v2658 = vrot.slane %v2383, 2
    %v2659 = vsel %vm896, %v2650, %v2658
    %v2660 = vrot.slane %v2384, 2
    %v2661 = vsel %vm896, %v2652, %v2660
    %v2662 = vrot.slane %v2385, 2
    %v2663 = vsel %vm896, %v2654, %v2662
    %v2664 = vrot.slane %v2386, 2
    %v2665 = vsel %vm896, %v2656, %v2664
    %v2666 = vrot.slane %v2387, 2
    %v2667 = vsel %vm896, %v2658, %v2666
    %v2668 = vrot.slane %v2388, 2
    %v2669 = vsel %vm896, %v2660, %v2668
    %v2670 = vrot.slane %v2389, 2
    %v2671 = vsel %vm896, %v2662, %v2670
    %v2672 = vrot.slane %v2390, 2
    %v2673 = vsel %vm896, %v2664, %v2672
    %v2674 = vrot.slane %v2391, 2
    %v2675 = vsel %vm896, %v2666, %v2674
    %v2676 = vrot.slane %v2392, 2
    %v2677 = vsel %vm896, %v2668, %v2676
    %v2678 = vrot.slane %v2393, 2
    %v2679 = vsel %vm896, %v2670, %v2678
    %v2680 = vrot.slane 0.0, 2
    %v2681 = vsel %vm896, %v2672, %v2680
    %v2682 = vsel %vm896, %v2674, %v2680
    %v2683 = vsel %vm896, %v2676, %v2680
    %v2684 = vsel %vm896, %v2678, %v2680
    %v2733 = vpack.c.bf16 %v2350, %v2346
    %v2734 = vpack.c.bf16 %v2351, %v2347
    %v2735 = vpack.c.bf16 %v2352, %v2348
    %v2736 = vpack.c.bf16 %v2353, %v2349
    %v2737 = vpack.c.bf16 %v2456, %v2445
    %v2738 = vpack.c.bf16 %v2458, %v2448
    %v2739 = vpack.c.bf16 %v2460, %v2451
    %v2740 = vpack.c.bf16 %v2462, %v2454
    %v2741 = vpack.c.bf16 %v2601, %v2590
    %v2742 = vpack.c.bf16 %v2603, %v2593
    %v2743 = vpack.c.bf16 %v2605, %v2596
    %v2744 = vpack.c.bf16 %v2607, %v2599
    %v2745 = vpack.c.bf16 %v2358, %v2354
    %v2746 = vpack.c.bf16 %v2359, %v2355
    %v2747 = vpack.c.bf16 %v2360, %v2356
    %v2748 = vpack.c.bf16 %v2361, %v2357
    %v2749 = vpack.c.bf16 %v2472, %v2464
    %v2750 = vpack.c.bf16 %v2474, %v2466
    %v2751 = vpack.c.bf16 %v2476, %v2468
    %v2752 = vpack.c.bf16 %v2478, %v2470
    %v2753 = vpack.c.bf16 %v2617, %v2609
    %v2754 = vpack.c.bf16 %v2619, %v2611
    %v2755 = vpack.c.bf16 %v2621, %v2613
    %v2756 = vpack.c.bf16 %v2623, %v2615
    %v2757 = vpack.c.bf16 %v2366, %v2362
    %v2758 = vpack.c.bf16 %v2367, %v2363
    %v2759 = vpack.c.bf16 %v2368, %v2364
    %v2760 = vpack.c.bf16 %v2369, %v2365
    %v2761 = vpack.c.bf16 %v2488, %v2480
    %v2762 = vpack.c.bf16 %v2490, %v2482
    %v2763 = vpack.c.bf16 %v2492, %v2484
    %v2764 = vpack.c.bf16 %v2494, %v2486
    %v2765 = vpack.c.bf16 %v2633, %v2625
    %v2766 = vpack.c.bf16 %v2635, %v2627
    %v2767 = vpack.c.bf16 %v2637, %v2629
    %v2768 = vpack.c.bf16 %v2639, %v2631
    %v2769 = vpack.c.bf16 %v2374, %v2370
    %v2770 = vpack.c.bf16 %v2375, %v2371
    %v2771 = vpack.c.bf16 %v2376, %v2372
    %v2772 = vpack.c.bf16 %v2377, %v2373
    %v2773 = vpack.c.bf16 %v2504, %v2496
    %v2774 = vpack.c.bf16 %v2506, %v2498
    %v2775 = vpack.c.bf16 %v2508, %v2500
    %v2776 = vpack.c.bf16 %v2510, %v2502
    %v2777 = vpack.c.bf16 %v2649, %v2641
    %v2778 = vpack.c.bf16 %v2651, %v2643
    %v2779 = vpack.c.bf16 %v2653, %v2645
    %v2780 = vpack.c.bf16 %v2655, %v2647
    %v2781 = vpack.c.bf16 %v2382, %v2378
    %v2782 = vpack.c.bf16 %v2383, %v2379
    %v2783 = vpack.c.bf16 %v2384, %v2380
    %v2784 = vpack.c.bf16 %v2385, %v2381
    %v2785 = vpack.c.bf16 %v2520, %v2512
    %v2786 = vpack.c.bf16 %v2522, %v2514
    %v2787 = vpack.c.bf16 %v2524, %v2516
    %v2788 = vpack.c.bf16 %v2526, %v2518
    %v2789 = vpack.c.bf16 %v2665, %v2657
    %v2790 = vpack.c.bf16 %v2667, %v2659
    %v2791 = vpack.c.bf16 %v2669, %v2661
    %v2792 = vpack.c.bf16 %v2671, %v2663
    %v2793 = vpack.c.bf16 %v2390, %v2386
    %v2794 = vpack.c.bf16 %v2391, %v2387
    %v2795 = vpack.c.bf16 %v2392, %v2388
    %v2796 = vpack.c.bf16 %v2393, %v2389
    %v2797 = vpack.c.bf16 %v2536, %v2528
    %v2798 = vpack.c.bf16 %v2537, %v2530
    %v2799 = vpack.c.bf16 %v2538, %v2532
    %v2800 = vpack.c.bf16 %v2539, %v2534
    %v2801 = vpack.c.bf16 %v2681, %v2673
    %v2802 = vpack.c.bf16 %v2682, %v2675
    %v2803 = vpack.c.bf16 %v2683, %v2677
    %v2804 = vpack.c.bf16 %v2684, %v2679
    %v2805 = vld [vmem:[#allocation10] sm:$0xf]
    %v2806 = vld [vmem:[#allocation10 + $0x4] sm:$0xf]
    %v2807 = vld [vmem:[#allocation10 + $0x8] sm:$0xf]
    %v2808 = vld [vmem:[#allocation10 + $0xc] sm:$0xf]
    %v2809 = vld [vmem:[#allocation10 + $0x10] sm:$0xf]
    %v2810 = vld [vmem:[#allocation10 + $0x14] sm:$0xf]
    %v2811 = vld [vmem:[#allocation10 + $0x18] sm:$0xf]
    %v2812 = vld [vmem:[#allocation10 + $0x1c] sm:$0xf]
    %v2813 = vld [vmem:[#allocation10 + $0x20] sm:$0xf]
    %v2814 = vld [vmem:[#allocation10 + $0x24] sm:$0xf]
    %v2815 = vld [vmem:[#allocation10 + $0x28] sm:$0xf]
    %v2816 = vld [vmem:[#allocation10 + $0x2c] sm:$0xf]
    %v2817 = vld [vmem:[#allocation10 + $0x30] sm:$0xf]
    %v2818 = vld [vmem:[#allocation10 + $0x34] sm:$0xf]
    %v2819 = vld [vmem:[#allocation10 + $0x38] sm:$0xf]
    %v2820 = vld [vmem:[#allocation10 + $0x3c] sm:$0xf]
    %v2821 = vld [vmem:[#allocation10 + $0x40] sm:$0xf]
    %v2822 = vld [vmem:[#allocation10 + $0x44] sm:$0xf]
    %v2823 = vld [vmem:[#allocation10 + $0x48] sm:$0xf]
    %v2824 = vld [vmem:[#allocation10 + $0x4c] sm:$0xf]
    %v2825 = vld [vmem:[#allocation10 + $0x50] sm:$0xf]
    %v2826 = vld [vmem:[#allocation10 + $0x54] sm:$0xf]
    %v2827 = vld [vmem:[#allocation10 + $0x58] sm:$0xf]
    %v2828 = vld [vmem:[#allocation10 + $0x5c] sm:$0xf]
    %v2829 = vld [vmem:[#allocation10 + $0x60] sm:$0xf]
    %v2830 = vld [vmem:[#allocation10 + $0x64] sm:$0xf]
    %v2831 = vld [vmem:[#allocation10 + $0x68] sm:$0xf]
    %v2832 = vld [vmem:[#allocation10 + $0x6c] sm:$0xf]
    %v2833 = vld [vmem:[#allocation10 + $0x70] sm:$0xf]
    %v2834 = vld [vmem:[#allocation10 + $0x74] sm:$0xf]
    %v2835 = vld [vmem:[#allocation10 + $0x78] sm:$0xf]
    %v2836 = vld [vmem:[#allocation10 + $0x7c] sm:$0xf]
    %v2837 = vld [vmem:[#allocation10 + $0x80] sm:$0xf]
    %v2838 = vld [vmem:[#allocation10 + $0x84] sm:$0xf]
    %v2839 = vld [vmem:[#allocation10 + $0x88] sm:$0xf]
    %v2840 = vld [vmem:[#allocation10 + $0x8c] sm:$0xf]
    %v2841 = vld [vmem:[#allocation10 + $0x90] sm:$0xf]
    %v2842 = vld [vmem:[#allocation10 + $0x94] sm:$0xf]
    %v2843 = vld [vmem:[#allocation10 + $0x98] sm:$0xf]
    %v2844 = vld [vmem:[#allocation10 + $0x9c] sm:$0xf]
    %v2845 = vld [vmem:[#allocation10 + $0xa0] sm:$0xf]
    %v2846 = vld [vmem:[#allocation10 + $0xa4] sm:$0xf]
    %v2847 = vld [vmem:[#allocation10 + $0xa8] sm:$0xf]
    %v2848 = vld [vmem:[#allocation10 + $0xac] sm:$0xf]
    %v2849 = vld [vmem:[#allocation10 + $0xb0] sm:$0xf]
    %v2850 = vld [vmem:[#allocation10 + $0xb4] sm:$0xf]
    %v2851 = vld [vmem:[#allocation10 + $0xb8] sm:$0xf]
    %v2852 = vld [vmem:[#allocation10 + $0xbc] sm:$0xf]
    %v2853 = vld [vmem:[#allocation10 + $0xc0] sm:$0xf]
    %v2854 = vld [vmem:[#allocation10 + $0xc4] sm:$0xf]
    %v2855 = vld [vmem:[#allocation10 + $0xc8] sm:$0xf]
    %v2856 = vld [vmem:[#allocation10 + $0xcc] sm:$0xf]
    %v2857 = vld [vmem:[#allocation10 + $0xd0] sm:$0xf]
    %v2858 = vld [vmem:[#allocation10 + $0xd4] sm:$0xf]
    %v2859 = vld [vmem:[#allocation10 + $0xd8] sm:$0xf]
    %v2860 = vld [vmem:[#allocation10 + $0xdc] sm:$0xf]
    %v2861 = vld [vmem:[#allocation10 + $0xe0] sm:$0xf]
    %v2862 = vld [vmem:[#allocation10 + $0xe4] sm:$0xf]
    %v2863 = vld [vmem:[#allocation10 + $0xe8] sm:$0xf]
    %v2864 = vld [vmem:[#allocation10 + $0xec] sm:$0xf]
    %v2865 = vld [vmem:[#allocation10 + $0xf0] sm:$0xf]
    %v2866 = vld [vmem:[#allocation10 + $0xf4] sm:$0xf]
    %v2867 = vld [vmem:[#allocation10 + $0xf8] sm:$0xf]
    %v2868 = vld [vmem:[#allocation10 + $0xfc] sm:$0xf]
    %v2869 = vld [vmem:[#allocation10 + $0x100] sm:$0xf]
    %v2870 = vld [vmem:[#allocation10 + $0x104] sm:$0xf]
    %v2871 = vld [vmem:[#allocation10 + $0x108] sm:$0xf]
    %v2872 = vld [vmem:[#allocation10 + $0x10c] sm:$0xf]
    %v2873 = vld [vmem:[#allocation10 + $0x110] sm:$0xf]
    %v2874 = vld [vmem:[#allocation10 + $0x114] sm:$0xf]
    %v2875 = vld [vmem:[#allocation10 + $0x118] sm:$0xf]
    %v2876 = vld [vmem:[#allocation10 + $0x11c] sm:$0xf]
    %v2877 = vld [vmem:[#allocation10 + $0x120] sm:$0xf]
    %v2878 = vld [vmem:[#allocation10 + $0x124] sm:$0xf]
    %v2879 = vld [vmem:[#allocation10 + $0x128] sm:$0xf]
    %v2880 = vld [vmem:[#allocation10 + $0x12c] sm:$0xf]
    %v2881 = vld [vmem:[#allocation10 + $0x130] sm:$0xf]
    %v2882 = vld [vmem:[#allocation10 + $0x134] sm:$0xf]
    %v2883 = vld [vmem:[#allocation10 + $0x138] sm:$0xf]
    %v2884 = vld [vmem:[#allocation10 + $0x13c] sm:$0xf]
    %v2885 = vld [vmem:[#allocation10 + $0x140] sm:$0xf]
    %v2886 = vld [vmem:[#allocation10 + $0x144] sm:$0xf]
    %v2887 = vld [vmem:[#allocation10 + $0x148] sm:$0xf]
    %v2888 = vld [vmem:[#allocation10 + $0x14c] sm:$0xf]
    %v2889 = vld [vmem:[#allocation10 + $0x150] sm:$0xf]
    %v2890 = vld [vmem:[#allocation10 + $0x154] sm:$0xf]
    %v2891 = vld [vmem:[#allocation10 + $0x158] sm:$0xf]
    %v2892 = vld [vmem:[#allocation10 + $0x15c] sm:$0xf]
    %v2893 = vld [vmem:[#allocation10 + $0x160] sm:$0xf]
    %v2894 = vld [vmem:[#allocation10 + $0x164] sm:$0xf]
    %v2895 = vld [vmem:[#allocation10 + $0x168] sm:$0xf]
    %v2896 = vld [vmem:[#allocation10 + $0x16c] sm:$0xf]
    %v2897 = vld [vmem:[#allocation10 + $0x170] sm:$0xf]
    %v2898 = vld [vmem:[#allocation10 + $0x174] sm:$0xf]
    %v2899 = vld [vmem:[#allocation10 + $0x178] sm:$0xf]
    %v2900 = vld [vmem:[#allocation10 + $0x17c] sm:$0xf]
    %v2901 = vld [vmem:[#allocation10 + $0x180] sm:$0xf]
    %v2902 = vld [vmem:[#allocation10 + $0x184] sm:$0xf]
    %v2903 = vld [vmem:[#allocation10 + $0x188] sm:$0xf]
    %v2904 = vld [vmem:[#allocation10 + $0x18c] sm:$0xf]
    %v2905 = vld [vmem:[#allocation10 + $0x190] sm:$0xf]
    %v2906 = vld [vmem:[#allocation10 + $0x194] sm:$0xf]
    %v2907 = vld [vmem:[#allocation10 + $0x198] sm:$0xf]
    %v2908 = vld [vmem:[#allocation10 + $0x19c] sm:$0xf]
    %v2909 = vld [vmem:[#allocation10 + $0x1a0] sm:$0xf]
    %v2910 = vld [vmem:[#allocation10 + $0x1a4] sm:$0xf]
    %v2911 = vld [vmem:[#allocation10 + $0x1a8] sm:$0xf]
    %v2912 = vld [vmem:[#allocation10 + $0x1ac] sm:$0xf]
    %v2913 = vld [vmem:[#allocation10 + $0x1b0] sm:$0xf]
    %v2914 = vld [vmem:[#allocation10 + $0x1b4] sm:$0xf]
    %v2915 = vld [vmem:[#allocation10 + $0x1b8] sm:$0xf]
    %v2916 = vld [vmem:[#allocation10 + $0x1bc] sm:$0xf]
    %v2917 = vld [vmem:[#allocation10 + $0x1c0] sm:$0xf]
    %v2918 = vld [vmem:[#allocation10 + $0x1c4] sm:$0xf]
    %v2919 = vld [vmem:[#allocation10 + $0x1c8] sm:$0xf]
    %v2920 = vld [vmem:[#allocation10 + $0x1cc] sm:$0xf]
    %v2921 = vld [vmem:[#allocation10 + $0x1d0] sm:$0xf]
    %v2922 = vld [vmem:[#allocation10 + $0x1d4] sm:$0xf]
    %v2923 = vld [vmem:[#allocation10 + $0x1d8] sm:$0xf]
    %v2924 = vld [vmem:[#allocation10 + $0x1dc] sm:$0xf]
    %v2925 = vld [vmem:[#allocation10 + $0x1e0] sm:$0xf]
    %v2926 = vld [vmem:[#allocation10 + $0x1e4] sm:$0xf]
    %v2927 = vld [vmem:[#allocation10 + $0x1e8] sm:$0xf]
    %v2928 = vld [vmem:[#allocation10 + $0x1ec] sm:$0xf]
    %v2929 = vld [vmem:[#allocation10 + $0x1f0] sm:$0xf]
    %v2930 = vld [vmem:[#allocation10 + $0x1f4] sm:$0xf]
    %v2931 = vld [vmem:[#allocation10 + $0x1f8] sm:$0xf]
    %v2932 = vld [vmem:[#allocation10 + $0x1fc] sm:$0xf]
    %v2933 = vld [vmem:[#allocation10 + $0x200] sm:$0xf]
    %v2934 = vld [vmem:[#allocation10 + $0x204] sm:$0xf]
    %v2935 = vld [vmem:[#allocation10 + $0x208] sm:$0xf]
    %v2936 = vld [vmem:[#allocation10 + $0x20c] sm:$0xf]
    %v2937 = vld [vmem:[#allocation10 + $0x210] sm:$0xf]
    %v2938 = vld [vmem:[#allocation10 + $0x214] sm:$0xf]
    %v2939 = vld [vmem:[#allocation10 + $0x218] sm:$0xf]
    %v2940 = vld [vmem:[#allocation10 + $0x21c] sm:$0xf]
    %v2941 = vld [vmem:[#allocation10 + $0x220] sm:$0xf]
    %v2942 = vld [vmem:[#allocation10 + $0x224] sm:$0xf]
    %v2943 = vld [vmem:[#allocation10 + $0x228] sm:$0xf]
    %v2944 = vld [vmem:[#allocation10 + $0x22c] sm:$0xf]
    %v2945 = vld [vmem:[#allocation10 + $0x230] sm:$0xf]
    %v2946 = vld [vmem:[#allocation10 + $0x234] sm:$0xf]
    %v2947 = vld [vmem:[#allocation10 + $0x238] sm:$0xf]
    %v2948 = vld [vmem:[#allocation10 + $0x23c] sm:$0xf]
    %v2949 = vld [vmem:[#allocation10 + $0x240] sm:$0xf]
    %v2950 = vld [vmem:[#allocation10 + $0x244] sm:$0xf]
    %v2951 = vld [vmem:[#allocation10 + $0x248] sm:$0xf]
    %v2952 = vld [vmem:[#allocation10 + $0x24c] sm:$0xf]
    %v2953 = vld [vmem:[#allocation10 + $0x250] sm:$0xf]
    %v2954 = vld [vmem:[#allocation10 + $0x254] sm:$0xf]
    %v2955 = vld [vmem:[#allocation10 + $0x258] sm:$0xf]
    %v2956 = vld [vmem:[#allocation10 + $0x25c] sm:$0xf]
    %v2957 = vld [vmem:[#allocation10 + $0x260] sm:$0xf]
    %v2958 = vld [vmem:[#allocation10 + $0x264] sm:$0xf]
    %v2959 = vld [vmem:[#allocation10 + $0x268] sm:$0xf]
    %v2960 = vld [vmem:[#allocation10 + $0x26c] sm:$0xf]
    %v2961 = vld [vmem:[#allocation10 + $0x270] sm:$0xf]
    %v2962 = vld [vmem:[#allocation10 + $0x274] sm:$0xf]
    %v2963 = vld [vmem:[#allocation10 + $0x278] sm:$0xf]
    %v2964 = vld [vmem:[#allocation10 + $0x27c] sm:$0xf]
    %v2965 = vld [vmem:[#allocation10 + $0x280] sm:$0xf]
    %v2966 = vld [vmem:[#allocation10 + $0x284] sm:$0xf]
    %v2967 = vld [vmem:[#allocation10 + $0x288] sm:$0xf]
    %v2968 = vld [vmem:[#allocation10 + $0x28c] sm:$0xf]
    %v2969 = vld [vmem:[#allocation10 + $0x290] sm:$0xf]
    %v2970 = vld [vmem:[#allocation10 + $0x294] sm:$0xf]
    %v2971 = vld [vmem:[#allocation10 + $0x298] sm:$0xf]
    %v2972 = vld [vmem:[#allocation10 + $0x29c] sm:$0xf]
    %v2973 = vld [vmem:[#allocation10 + $0x2a0] sm:$0xf]
    %v2974 = vld [vmem:[#allocation10 + $0x2a4] sm:$0xf]
    %v2975 = vld [vmem:[#allocation10 + $0x2a8] sm:$0xf]
    %v2976 = vld [vmem:[#allocation10 + $0x2ac] sm:$0xf]
    %v2977 = vld [vmem:[#allocation10 + $0x2b0] sm:$0xf]
    %v2978 = vld [vmem:[#allocation10 + $0x2b4] sm:$0xf]
    %v2979 = vld [vmem:[#allocation10 + $0x2b8] sm:$0xf]
    %v2980 = vld [vmem:[#allocation10 + $0x2bc] sm:$0xf]
    %v2981 = vld [vmem:[#allocation10 + $0x2c0] sm:$0xf]
    %v2982 = vld [vmem:[#allocation10 + $0x2c4] sm:$0xf]
    %v2983 = vld [vmem:[#allocation10 + $0x2c8] sm:$0xf]
    %v2984 = vld [vmem:[#allocation10 + $0x2cc] sm:$0xf]
    %v2985 = vld [vmem:[#allocation10 + $0x2d0] sm:$0xf]
    %v2986 = vld [vmem:[#allocation10 + $0x2d4] sm:$0xf]
    %v2987 = vld [vmem:[#allocation10 + $0x2d8] sm:$0xf]
    %v2988 = vld [vmem:[#allocation10 + $0x2dc] sm:$0xf]
    %v2989 = vld [vmem:[#allocation10 + $0x2e0] sm:$0xf]
    %v2990 = vld [vmem:[#allocation10 + $0x2e4] sm:$0xf]
    %v2991 = vld [vmem:[#allocation10 + $0x2e8] sm:$0xf]
    %v2992 = vld [vmem:[#allocation10 + $0x2ec] sm:$0xf]
    %v2993 = vld [vmem:[#allocation10 + $0x2f0] sm:$0xf]
    %v2994 = vld [vmem:[#allocation10 + $0x2f4] sm:$0xf]
    %v2995 = vld [vmem:[#allocation10 + $0x2f8] sm:$0xf]
    %v2996 = vld [vmem:[#allocation10 + $0x2fc] sm:$0xf]
    %v2997 = vld [vmem:[%s7] sm:$0x1]
    %v2999 = vlaneseq
    %v3000 = vshrl.u32 %v2999, 7
    %v3001 = vsub.s32 0, %v3000
    %v3002 = vrot.slane %v2997, %v3001
    %v3196 = vunpack.c.l.b16 %v2805
    %v3197 = vunpack.c.l.b16 %v2806
    %v3198 = vunpack.c.l.b16 %v2807
    %v3199 = vunpack.c.l.b16 %v2808
    %v3200 = vunpack.c.l.b16 %v2809
    %v3201 = vunpack.c.l.b16 %v2810
    %v3202 = vunpack.c.l.b16 %v2811
    %v3203 = vunpack.c.l.b16 %v2812
    %v3204 = vunpack.c.l.b16 %v2813
    %v3205 = vunpack.c.l.b16 %v2814
    %v3206 = vunpack.c.l.b16 %v2815
    %v3207 = vunpack.c.l.b16 %v2816
    %v3208 = vunpack.c.l.b16 %v2817
    %v3209 = vunpack.c.l.b16 %v2818
    %v3210 = vunpack.c.l.b16 %v2819
    %v3211 = vunpack.c.l.b16 %v2820
    %v3212 = vunpack.c.l.b16 %v2821
    %v3213 = vunpack.c.l.b16 %v2822
    %v3214 = vunpack.c.l.b16 %v2823
    %v3215 = vunpack.c.l.b16 %v2824
    %v3216 = vunpack.c.l.b16 %v2825
    %v3217 = vunpack.c.l.b16 %v2826
    %v3218 = vunpack.c.l.b16 %v2827
    %v3219 = vunpack.c.l.b16 %v2828
    %v3220 = vunpack.c.l.b16 %v2829
    %v3221 = vunpack.c.l.b16 %v2830
    %v3222 = vunpack.c.l.b16 %v2831
    %v3223 = vunpack.c.l.b16 %v2832
    %v3224 = vunpack.c.l.b16 %v2833
    %v3225 = vunpack.c.l.b16 %v2834
    %v3226 = vunpack.c.l.b16 %v2835
    %v3227 = vunpack.c.l.b16 %v2836
    %v3228 = vunpack.c.l.b16 %v2837
    %v3229 = vunpack.c.l.b16 %v2838
    %v3230 = vunpack.c.l.b16 %v2839
    %v3231 = vunpack.c.l.b16 %v2840
    %v3232 = vunpack.c.l.b16 %v2841
    %v3233 = vunpack.c.l.b16 %v2842
    %v3234 = vunpack.c.l.b16 %v2843
    %v3235 = vunpack.c.l.b16 %v2844
    %v3236 = vunpack.c.l.b16 %v2845
    %v3237 = vunpack.c.l.b16 %v2846
    %v3238 = vunpack.c.l.b16 %v2847
    %v3239 = vunpack.c.l.b16 %v2848
    %v3240 = vunpack.c.l.b16 %v2849
    %v3241 = vunpack.c.l.b16 %v2850
    %v3242 = vunpack.c.l.b16 %v2851
    %v3243 = vunpack.c.l.b16 %v2852
    %v3244 = vunpack.c.l.b16 %v2853
    %v3245 = vunpack.c.l.b16 %v2854
    %v3246 = vunpack.c.l.b16 %v2855
    %v3247 = vunpack.c.l.b16 %v2856
    %v3248 = vunpack.c.l.b16 %v2857
    %v3249 = vunpack.c.l.b16 %v2858
    %v3250 = vunpack.c.l.b16 %v2859
    %v3251 = vunpack.c.l.b16 %v2860
    %v3252 = vunpack.c.l.b16 %v2861
    %v3253 = vunpack.c.l.b16 %v2862
    %v3254 = vunpack.c.l.b16 %v2863
    %v3255 = vunpack.c.l.b16 %v2864
    %v3256 = vunpack.c.l.b16 %v2865
    %v3257 = vunpack.c.l.b16 %v2866
    %v3258 = vunpack.c.l.b16 %v2867
    %v3259 = vunpack.c.l.b16 %v2868
    %v3260 = vunpack.c.l.b16 %v2869
    %v3261 = vunpack.c.l.b16 %v2870
    %v3262 = vunpack.c.l.b16 %v2871
    %v3263 = vunpack.c.l.b16 %v2872
    %v3264 = vunpack.c.l.b16 %v2873
    %v3265 = vunpack.c.l.b16 %v2874
    %v3266 = vunpack.c.l.b16 %v2875
    %v3267 = vunpack.c.l.b16 %v2876
    %v3268 = vunpack.c.l.b16 %v2877
    %v3269 = vunpack.c.l.b16 %v2878
    %v3270 = vunpack.c.l.b16 %v2879
    %v3271 = vunpack.c.l.b16 %v2880
    %v3272 = vunpack.c.l.b16 %v2881
    %v3273 = vunpack.c.l.b16 %v2882
    %v3274 = vunpack.c.l.b16 %v2883
    %v3275 = vunpack.c.l.b16 %v2884
    %v3276 = vunpack.c.l.b16 %v2885
    %v3277 = vunpack.c.l.b16 %v2886
    %v3278 = vunpack.c.l.b16 %v2887
    %v3279 = vunpack.c.l.b16 %v2888
    %v3280 = vunpack.c.l.b16 %v2889
    %v3281 = vunpack.c.l.b16 %v2890
    %v3282 = vunpack.c.l.b16 %v2891
    %v3283 = vunpack.c.l.b16 %v2892
    %v3284 = vunpack.c.l.b16 %v2893
    %v3285 = vunpack.c.l.b16 %v2894
    %v3286 = vunpack.c.l.b16 %v2895
    %v3287 = vunpack.c.l.b16 %v2896
    %v3288 = vunpack.c.l.b16 %v2897
    %v3289 = vunpack.c.l.b16 %v2898
    %v3290 = vunpack.c.l.b16 %v2899
    %v3291 = vunpack.c.l.b16 %v2900
    %v3292 = vunpack.c.l.b16 %v2901
    %v3293 = vunpack.c.l.b16 %v2902
    %v3294 = vunpack.c.l.b16 %v2903
    %v3295 = vunpack.c.l.b16 %v2904
    %v3296 = vunpack.c.l.b16 %v2905
    %v3297 = vunpack.c.l.b16 %v2906
    %v3298 = vunpack.c.l.b16 %v2907
    %v3299 = vunpack.c.l.b16 %v2908
    %v3300 = vunpack.c.l.b16 %v2909
    %v3301 = vunpack.c.l.b16 %v2910
    %v3302 = vunpack.c.l.b16 %v2911
    %v3303 = vunpack.c.l.b16 %v2912
    %v3304 = vunpack.c.l.b16 %v2913
    %v3305 = vunpack.c.l.b16 %v2914
    %v3306 = vunpack.c.l.b16 %v2915
    %v3307 = vunpack.c.l.b16 %v2916
    %v3308 = vunpack.c.l.b16 %v2917
    %v3309 = vunpack.c.l.b16 %v2918
    %v3310 = vunpack.c.l.b16 %v2919
    %v3311 = vunpack.c.l.b16 %v2920
    %v3312 = vunpack.c.l.b16 %v2921
    %v3313 = vunpack.c.l.b16 %v2922
    %v3314 = vunpack.c.l.b16 %v2923
    %v3315 = vunpack.c.l.b16 %v2924
    %v3316 = vunpack.c.l.b16 %v2925
    %v3317 = vunpack.c.l.b16 %v2926
    %v3318 = vunpack.c.l.b16 %v2927
    %v3319 = vunpack.c.l.b16 %v2928
    %v3320 = vunpack.c.l.b16 %v2929
    %v3321 = vunpack.c.l.b16 %v2930
    %v3322 = vunpack.c.l.b16 %v2931
    %v3323 = vunpack.c.l.b16 %v2932
    %v3324 = vunpack.c.l.b16 %v2933
    %v3325 = vunpack.c.l.b16 %v2934
    %v3326 = vunpack.c.l.b16 %v2935
    %v3327 = vunpack.c.l.b16 %v2936
    %v3328 = vunpack.c.l.b16 %v2937
    %v3329 = vunpack.c.l.b16 %v2938
    %v3330 = vunpack.c.l.b16 %v2939
    %v3331 = vunpack.c.l.b16 %v2940
    %v3332 = vunpack.c.l.b16 %v2941
    %v3333 = vunpack.c.l.b16 %v2942
    %v3334 = vunpack.c.l.b16 %v2943
    %v3335 = vunpack.c.l.b16 %v2944
    %v3336 = vunpack.c.l.b16 %v2945
    %v3337 = vunpack.c.l.b16 %v2946
    %v3338 = vunpack.c.l.b16 %v2947
    %v3339 = vunpack.c.l.b16 %v2948
    %v3340 = vunpack.c.l.b16 %v2949
    %v3341 = vunpack.c.l.b16 %v2950
    %v3342 = vunpack.c.l.b16 %v2951
    %v3343 = vunpack.c.l.b16 %v2952
    %v3344 = vunpack.c.l.b16 %v2953
    %v3345 = vunpack.c.l.b16 %v2954
    %v3346 = vunpack.c.l.b16 %v2955
    %v3347 = vunpack.c.l.b16 %v2956
    %v3348 = vunpack.c.l.b16 %v2957
    %v3349 = vunpack.c.l.b16 %v2958
    %v3350 = vunpack.c.l.b16 %v2959
    %v3351 = vunpack.c.l.b16 %v2960
    %v3352 = vunpack.c.l.b16 %v2961
    %v3353 = vunpack.c.l.b16 %v2962
    %v3354 = vunpack.c.l.b16 %v2963
    %v3355 = vunpack.c.l.b16 %v2964
    %v3356 = vunpack.c.l.b16 %v2965
    %v3357 = vunpack.c.l.b16 %v2966
    %v3358 = vunpack.c.l.b16 %v2967
    %v3359 = vunpack.c.l.b16 %v2968
    %v3360 = vunpack.c.l.b16 %v2969
    %v3361 = vunpack.c.l.b16 %v2970
    %v3362 = vunpack.c.l.b16 %v2971
    %v3363 = vunpack.c.l.b16 %v2972
    %v3364 = vunpack.c.l.b16 %v2973
    %v3365 = vunpack.c.l.b16 %v2974
    %v3366 = vunpack.c.l.b16 %v2975
    %v3367 = vunpack.c.l.b16 %v2976
    %v3368 = vunpack.c.l.b16 %v2977
    %v3369 = vunpack.c.l.b16 %v2978
    %v3370 = vunpack.c.l.b16 %v2979
    %v3371 = vunpack.c.l.b16 %v2980
    %v3372 = vunpack.c.l.b16 %v2981
    %v3373 = vunpack.c.l.b16 %v2982
    %v3374 = vunpack.c.l.b16 %v2983
    %v3375 = vunpack.c.l.b16 %v2984
    %v3376 = vunpack.c.l.b16 %v2985
    %v3377 = vunpack.c.l.b16 %v2986
    %v3378 = vunpack.c.l.b16 %v2987
    %v3379 = vunpack.c.l.b16 %v2988
    %v3380 = vunpack.c.l.b16 %v2989
    %v3381 = vunpack.c.l.b16 %v2990
    %v3382 = vunpack.c.l.b16 %v2991
    %v3383 = vunpack.c.l.b16 %v2992
    %v3384 = vunpack.c.l.b16 %v2993
    %v3385 = vunpack.c.l.b16 %v2994
    %v3386 = vunpack.c.l.b16 %v2995
    %v3387 = vunpack.c.l.b16 %v2996
    %v3388 = vpack.c.b16 %v3197, %v3196
    %v3389 = vpack.c.b16 %v3199, %v3198
    %v3390 = vpack.c.b16 %v3201, %v3200
    %v3391 = vpack.c.b16 %v3203, %v3202
    %v3392 = vpack.c.b16 %v3205, %v3204
    %v3393 = vpack.c.b16 %v3207, %v3206
    %v3394 = vpack.c.b16 %v3209, %v3208
    %v3395 = vpack.c.b16 %v3211, %v3210
    %v3396 = vpack.c.b16 %v3213, %v3212
    %v3397 = vpack.c.b16 %v3215, %v3214
    %v3398 = vpack.c.b16 %v3217, %v3216
    %v3399 = vpack.c.b16 %v3219, %v3218
    %v3400 = vpack.c.b16 %v3221, %v3220
    %v3401 = vpack.c.b16 %v3223, %v3222
    %v3402 = vpack.c.b16 %v3225, %v3224
    %v3403 = vpack.c.b16 %v3227, %v3226
    %v3404 = vpack.c.b16 %v3229, %v3228
    %v3405 = vpack.c.b16 %v3231, %v3230
    %v3406 = vpack.c.b16 %v3233, %v3232
    %v3407 = vpack.c.b16 %v3235, %v3234
    %v3408 = vpack.c.b16 %v3237, %v3236
    %v3409 = vpack.c.b16 %v3239, %v3238
    %v3410 = vpack.c.b16 %v3241, %v3240
    %v3411 = vpack.c.b16 %v3243, %v3242
    %v3412 = vpack.c.b16 %v3245, %v3244
    %v3413 = vpack.c.b16 %v3247, %v3246
    %v3414 = vpack.c.b16 %v3249, %v3248
    %v3415 = vpack.c.b16 %v3251, %v3250
    %v3416 = vpack.c.b16 %v3253, %v3252
    %v3417 = vpack.c.b16 %v3255, %v3254
    %v3418 = vpack.c.b16 %v3257, %v3256
    %v3419 = vpack.c.b16 %v3259, %v3258
    %v3420 = vpack.c.b16 %v3261, %v3260
    %v3421 = vpack.c.b16 %v3263, %v3262
    %v3422 = vpack.c.b16 %v3265, %v3264
    %v3423 = vpack.c.b16 %v3267, %v3266
    %v3424 = vpack.c.b16 %v3269, %v3268
    %v3425 = vpack.c.b16 %v3271, %v3270
    %v3426 = vpack.c.b16 %v3273, %v3272
    %v3427 = vpack.c.b16 %v3275, %v3274
    %v3428 = vpack.c.b16 %v3277, %v3276
    %v3429 = vpack.c.b16 %v3279, %v3278
    %v3430 = vpack.c.b16 %v3281, %v3280
    %v3431 = vpack.c.b16 %v3283, %v3282
    %v3432 = vpack.c.b16 %v3285, %v3284
    %v3433 = vpack.c.b16 %v3287, %v3286
    %v3434 = vpack.c.b16 %v3289, %v3288
    %v3435 = vpack.c.b16 %v3291, %v3290
    %v3436 = vpack.c.b16 %v3293, %v3292
    %v3437 = vpack.c.b16 %v3295, %v3294
    %v3438 = vpack.c.b16 %v3297, %v3296
    %v3439 = vpack.c.b16 %v3299, %v3298
    %v3440 = vpack.c.b16 %v3301, %v3300
    %v3441 = vpack.c.b16 %v3303, %v3302
    %v3442 = vpack.c.b16 %v3305, %v3304
    %v3443 = vpack.c.b16 %v3307, %v3306
    %v3444 = vpack.c.b16 %v3309, %v3308
    %v3445 = vpack.c.b16 %v3311, %v3310
    %v3446 = vpack.c.b16 %v3313, %v3312
    %v3447 = vpack.c.b16 %v3315, %v3314
    %v3448 = vpack.c.b16 %v3317, %v3316
    %v3449 = vpack.c.b16 %v3319, %v3318
    %v3450 = vpack.c.b16 %v3321, %v3320
    %v3451 = vpack.c.b16 %v3323, %v3322
    %v3452 = vpack.c.b16 %v3325, %v3324
    %v3453 = vpack.c.b16 %v3327, %v3326
    %v3454 = vpack.c.b16 %v3329, %v3328
    %v3455 = vpack.c.b16 %v3331, %v3330
    %v3456 = vpack.c.b16 %v3333, %v3332
    %v3457 = vpack.c.b16 %v3335, %v3334
    %v3458 = vpack.c.b16 %v3337, %v3336
    %v3459 = vpack.c.b16 %v3339, %v3338
    %v3460 = vpack.c.b16 %v3341, %v3340
    %v3461 = vpack.c.b16 %v3343, %v3342
    %v3462 = vpack.c.b16 %v3345, %v3344
    %v3463 = vpack.c.b16 %v3347, %v3346
    %v3464 = vpack.c.b16 %v3349, %v3348
    %v3465 = vpack.c.b16 %v3351, %v3350
    %v3466 = vpack.c.b16 %v3353, %v3352
    %v3467 = vpack.c.b16 %v3355, %v3354
    %v3468 = vpack.c.b16 %v3357, %v3356
    %v3469 = vpack.c.b16 %v3359, %v3358
    %v3470 = vpack.c.b16 %v3361, %v3360
    %v3471 = vpack.c.b16 %v3363, %v3362
    %v3472 = vpack.c.b16 %v3365, %v3364
    %v3473 = vpack.c.b16 %v3367, %v3366
    %v3474 = vpack.c.b16 %v3369, %v3368
    %v3475 = vpack.c.b16 %v3371, %v3370
    %v3476 = vpack.c.b16 %v3373, %v3372
    %v3477 = vpack.c.b16 %v3375, %v3374
    %v3478 = vpack.c.b16 %v3377, %v3376
    %v3479 = vpack.c.b16 %v3379, %v3378
    %v3480 = vpack.c.b16 %v3381, %v3380
    %v3481 = vpack.c.b16 %v3383, %v3382
    %v3482 = vpack.c.b16 %v3385, %v3384
    %v3483 = vpack.c.b16 %v3387, %v3386
    %3580 = vmatprep.subr.bf16.mxu0 0
    %3581 = vmatpush1.bf16.msra.mxu0 %v3388
    %3582 = vmatprep.subr.bf16.mxu0 0
    %3583 = vmatpush1.bf16.msra.mxu0 %v3389
    %3584 = vmatprep.subr.bf16.mxu0 0
    %3585 = vmatpush1.bf16.msra.mxu0 %v3390
    %3586 = vmatprep.subr.bf16.mxu0 0
    %3587 = vmatpush1.bf16.msra.mxu0 %v3391
    %3588 = vmatprep.subr.bf16.mxu0 0
    %3589 = vmatpush1.bf16.msra.mxu0 %v3392
    %3590 = vmatprep.subr.bf16.mxu0 0
    %3591 = vmatpush1.bf16.msra.mxu0 %v3393
    %3592 = vmatprep.subr.bf16.mxu0 0
    %3593 = vmatpush1.bf16.msra.mxu0 %v3394
    %3594 = vmatprep.subr.bf16.mxu0 0
    %3595 = vmatpush1.bf16.msra.mxu0 %v3395
    %3596 = vmatprep.subr.bf16.mxu0 0
    %3597 = vmatpush1.bf16.msra.mxu0 %v3396
    %3598 = vmatprep.subr.bf16.mxu0 0
    %3599 = vmatpush1.bf16.msra.mxu0 %v3397
    %3600 = vmatprep.subr.bf16.mxu0 0
    %3601 = vmatpush1.bf16.msra.mxu0 %v3398
    %3602 = vmatprep.subr.bf16.mxu0 0
    %3603 = vmatpush1.bf16.msra.mxu0 %v3399
    %3604 = vmatprep.subr.bf16.mxu0 0
    %3605 = vmatpush1.bf16.msra.mxu0 %v3400
    %3606 = vmatprep.subr.bf16.mxu0 0
    %3607 = vmatpush1.bf16.msra.mxu0 %v3401
    %3608 = vmatprep.subr.bf16.mxu0 0
    %3609 = vmatpush1.bf16.msra.mxu0 %v3402
    %3610 = vmatprep.subr.bf16.mxu0 0
    %3611 = vmatpush1.bf16.msra.mxu0 %v3403
    %3612 = vmatprep.mubr.bf16.mxu0 %v2734
    %3613 = vmatmul.mubr.bf16.gmra.mrb[0].mxu0 %v2733
    %v3614 = vpop.f32.mrb[0].mxu0
    %v3615 = vadd.f32 %v3002, %v3614
    %v3616 = vpop.f32.mrb[0].mxu0
    %v3617 = vpop.f32.mrb[0].mxu0
    %v3618 = vadd.f32 %v3002, %v3617
    %v3619 = vpop.f32.mrb[0].mxu0
    %3620 = vmatprep.mubr.bf16.mxu0 %v2746
    %3621 = vmatmul.mubr.bf16.gmra.mrb[0].mxu0 %v2745
    %v3622 = vpop.f32.mrb[0].mxu0
    %v3623 = vadd.f32 %v3002, %v3622
    %v3624 = vpop.f32.mrb[0].mxu0
    %v3625 = vpop.f32.mrb[0].mxu0
    %v3626 = vadd.f32 %v3002, %v3625
    %v3627 = vpop.f32.mrb[0].mxu0
    %3628 = vmatprep.mubr.bf16.mxu0 %v2758
    %3629 = vmatmul.mubr.bf16.gmra.mrb[0].mxu0 %v2757
    %v3630 = vpop.f32.mrb[0].mxu0
    %v3631 = vadd.f32 %v3002, %v3630
    %v3632 = vpop.f32.mrb[0].mxu0
    %v3633 = vpop.f32.mrb[0].mxu0
    %v3634 = vadd.f32 %v3002, %v3633
    %v3635 = vpop.f32.mrb[0].mxu0
    %3636 = vmatprep.mubr.bf16.mxu0 %v2770
    %3637 = vmatmul.mubr.bf16.gmra.mrb[0].mxu0 %v2769
    %v3638 = vpop.f32.mrb[0].mxu0
    %v3639 = vadd.f32 %v3002, %v3638
    %v3640 = vpop.f32.mrb[0].mxu0
    %v3641 = vpop.f32.mrb[0].mxu0
    %v3642 = vadd.f32 %v3002, %v3641
    %v3643 = vpop.f32.mrb[0].mxu0
    %3644 = vmatprep.mubr.bf16.mxu0 %v2782
    %3645 = vmatmul.mubr.bf16.gmra.mrb[0].mxu0 %v2781
    %v3646 = vpop.f32.mrb[0].mxu0
    %v3647 = vadd.f32 %v3002, %v3646
    %v3648 = vpop.f32.mrb[0].mxu0
    %v3649 = vpop.f32.mrb[0].mxu0
    %v3650 = vadd.f32 %v3002, %v3649
    %v3651 = vpop.f32.mrb[0].mxu0
    %3652 = vmatprep.mubr.bf16.mxu0 %v2794
    %3653 = vmatmul.mubr.bf16.gmra.mrb[0].mxu0 %v2793
    %v3654 = vpop.f32.mrb[0].mxu0
    %v3655 = vadd.f32 %v3002, %v3654
    %v3656 = vpop.f32.mrb[0].mxu0
    %v3657 = vpop.f32.mrb[0].mxu0
    %v3658 = vadd.f32 %v3002, %v3657
    %v3659 = vpop.f32.mrb[0].mxu0
    %3660 = vdwg.mxu0
    %3661 = vmatprep.subr.bf16.mxu0 0
    %3662 = vmatpush1.bf16.msra.mxu0 %v3404
    %3663 = vmatprep.subr.bf16.mxu0 0
    %3664 = vmatpush1.bf16.msra.mxu0 %v3405
    %3665 = vmatprep.subr.bf16.mxu0 0
    %3666 = vmatpush1.bf16.msra.mxu0 %v3406
    %3667 = vmatprep.subr.bf16.mxu0 0
    %3668 = vmatpush1.bf16.msra.mxu0 %v3407
    %3669 = vmatprep.subr.bf16.mxu0 0
    %3670 = vmatpush1.bf16.msra.mxu0 %v3408
    %3671 = vmatprep.subr.bf16.mxu0 0
    %3672 = vmatpush1.bf16.msra.mxu0 %v3409
    %3673 = vmatprep.subr.bf16.mxu0 0
    %3674 = vmatpush1.bf16.msra.mxu0 %v3410
    %3675 = vmatprep.subr.bf16.mxu0 0
    %3676 = vmatpush1.bf16.msra.mxu0 %v3411
    %3677 = vmatprep.subr.bf16.mxu0 0
    %3678 = vmatpush1.bf16.msra.mxu0 %v3412
    %3679 = vmatprep.subr.bf16.mxu0 0
    %3680 = vmatpush1.bf16.msra.mxu0 %v3413
    %3681 = vmatprep.subr.bf16.mxu0 0
    %3682 = vmatpush1.bf16.msra.mxu0 %v3414
    %3683 = vmatprep.subr.bf16.mxu0 0
    %3684 = vmatpush1.bf16.msra.mxu0 %v3415
    %3685 = vmatprep.subr.bf16.mxu0 0
    %3686 = vmatpush1.bf16.msra.mxu0 %v3416
    %3687 = vmatprep.subr.bf16.mxu0 0
    %3688 = vmatpush1.bf16.msra.mxu0 %v3417
    %3689 = vmatprep.subr.bf16.mxu0 0
    %3690 = vmatpush1.bf16.msra.mxu0 %v3418
    %3691 = vmatprep.subr.bf16.mxu0 0
    %3692 = vmatpush1.bf16.msra.mxu0 %v3419
    %3693 = vmatprep.mubr.bf16.mxu0 %v2736
    %3694 = vmatmul.mubr.bf16.gmra.mrb[0].mxu0 %v2735
    %v3695 = vpop.f32.mrb[0].mxu0
    %v3696 = vadd.f32 %v3615, %v3695
    %v3697 = vpop.f32.mrb[0].mxu0
    %v3698 = vpop.f32.mrb[0].mxu0
    %v3699 = vadd.f32 %v3618, %v3698
    %v3700 = vpop.f32.mrb[0].mxu0
    %3701 = vmatprep.mubr.bf16.mxu0 %v2748
    %3702 = vmatmul.mubr.bf16.gmra.mrb[0].mxu0 %v2747
    %v3703 = vpop.f32.mrb[0].mxu0
    %v3704 = vadd.f32 %v3623, %v3703
    %v3705 = vpop.f32.mrb[0].mxu0
    %v3706 = vpop.f32.mrb[0].mxu0
    %v3707 = vadd.f32 %v3626, %v3706
    %v3708 = vpop.f32.mrb[0].mxu0
    %3709 = vmatprep.mubr.bf16.mxu0 %v2760
    %3710 = vmatmul.mubr.bf16.gmra.mrb[0].mxu0 %v2759
    %v3711 = vpop.f32.mrb[0].mxu0
    %v3712 = vadd.f32 %v3631, %v3711
    %v3713 = vpop.f32.mrb[0].mxu0
    %v3714 = vpop.f32.mrb[0].mxu0
    %v3715 = vadd.f32 %v3634, %v3714
    %v3716 = vpop.f32.mrb[0].mxu0
    %3717 = vmatprep.mubr.bf16.mxu0 %v2772
    %3718 = vmatmul.mubr.bf16.gmra.mrb[0].mxu0 %v2771
    %v3719 = vpop.f32.mrb[0].mxu0
    %v3720 = vadd.f32 %v3639, %v3719
    %v3721 = vpop.f32.mrb[0].mxu0
    %v3722 = vpop.f32.mrb[0].mxu0
    %v3723 = vadd.f32 %v3642, %v3722
    %v3724 = vpop.f32.mrb[0].mxu0
    %3725 = vmatprep.mubr.bf16.mxu0 %v2784
    %3726 = vmatmul.mubr.bf16.gmra.mrb[0].mxu0 %v2783
    %v3727 = vpop.f32.mrb[0].mxu0
    %v3728 = vadd.f32 %v3647, %v3727
    %v3729 = vpop.f32.mrb[0].mxu0
    %v3730 = vpop.f32.mrb[0].mxu0
    %v3731 = vadd.f32 %v3650, %v3730
    %v3732 = vpop.f32.mrb[0].mxu0
    %3733 = vmatprep.mubr.bf16.mxu0 %v2796
    %3734 = vmatmul.mubr.bf16.gmra.mrb[0].mxu0 %v2795
    %v3735 = vpop.f32.mrb[0].mxu0
    %v3736 = vadd.f32 %v3655, %v3735
    %v3737 = vpop.f32.mrb[0].mxu0
    %v3738 = vpop.f32.mrb[0].mxu0
    %v3739 = vadd.f32 %v3658, %v3738
    %v3740 = vpop.f32.mrb[0].mxu0
    %3741 = vdwg.mxu0
    %3742 = vmatprep.subr.bf16.mxu0 0
    %3743 = vmatpush1.bf16.msra.mxu0 %v3420
    %3744 = vmatprep.subr.bf16.mxu0 0
    %3745 = vmatpush1.bf16.msra.mxu0 %v3421
    %3746 = vmatprep.subr.bf16.mxu0 0
    %3747 = vmatpush1.bf16.msra.mxu0 %v3422
    %3748 = vmatprep.subr.bf16.mxu0 0
    %3749 = vmatpush1.bf16.msra.mxu0 %v3423
    %3750 = vmatprep.subr.bf16.mxu0 0
    %3751 = vmatpush1.bf16.msra.mxu0 %v3424
    %3752 = vmatprep.subr.bf16.mxu0 0
    %3753 = vmatpush1.bf16.msra.mxu0 %v3425
    %3754 = vmatprep.subr.bf16.mxu0 0
    %3755 = vmatpush1.bf16.msra.mxu0 %v3426
    %3756 = vmatprep.subr.bf16.mxu0 0
    %3757 = vmatpush1.bf16.msra.mxu0 %v3427
    %3758 = vmatprep.subr.bf16.mxu0 0
    %3759 = vmatpush1.bf16.msra.mxu0 %v3428
    %3760 = vmatprep.subr.bf16.mxu0 0
    %3761 = vmatpush1.bf16.msra.mxu0 %v3429
    %3762 = vmatprep.subr.bf16.mxu0 0
    %3763 = vmatpush1.bf16.msra.mxu0 %v3430
    %3764 = vmatprep.subr.bf16.mxu0 0
    %3765 = vmatpush1.bf16.msra.mxu0 %v3431
    %3766 = vmatprep.subr.bf16.mxu0 0
    %3767 = vmatpush1.bf16.msra.mxu0 %v3432
    %3768 = vmatprep.subr.bf16.mxu0 0
    %3769 = vmatpush1.bf16.msra.mxu0 %v3433
    %3770 = vmatprep.subr.bf16.mxu0 0
    %3771 = vmatpush1.bf16.msra.mxu0 %v3434
    %3772 = vmatprep.subr.bf16.mxu0 0
    %3773 = vmatpush1.bf16.msra.mxu0 %v3435
    %3774 = vmatprep.mubr.bf16.mxu0 %v2738
    %3775 = vmatmul.mubr.bf16.gmra.mrb[0].mxu0 %v2737
    %v3776 = vpop.f32.mrb[0].mxu0
    %v3777 = vadd.f32 %v3696, %v3776
    %v3778 = vpop.f32.mrb[0].mxu0
    %v3779 = vpop.f32.mrb[0].mxu0
    %v3780 = vadd.f32 %v3699, %v3779
    %v3781 = vpop.f32.mrb[0].mxu0
    %3782 = vmatprep.mubr.bf16.mxu0 %v2750
    %3783 = vmatmul.mubr.bf16.gmra.mrb[0].mxu0 %v2749
    %v3784 = vpop.f32.mrb[0].mxu0
    %v3785 = vadd.f32 %v3704, %v3784
    %v3786 = vpop.f32.mrb[0].mxu0
    %v3787 = vpop.f32.mrb[0].mxu0
    %v3788 = vadd.f32 %v3707, %v3787
    %v3789 = vpop.f32.mrb[0].mxu0
    %3790 = vmatprep.mubr.bf16.mxu0 %v2762
    %3791 = vmatmul.mubr.bf16.gmra.mrb[0].mxu0 %v2761
    %v3792 = vpop.f32.mrb[0].mxu0
    %v3793 = vadd.f32 %v3712, %v3792
    %v3794 = vpop.f32.mrb[0].mxu0
    %v3795 = vpop.f32.mrb[0].mxu0
    %v3796 = vadd.f32 %v3715, %v3795
    %v3797 = vpop.f32.mrb[0].mxu0
    %3798 = vmatprep.mubr.bf16.mxu0 %v2774
    %3799 = vmatmul.mubr.bf16.gmra.mrb[0].mxu0 %v2773
    %v3800 = vpop.f32.mrb[0].mxu0
    %v3801 = vadd.f32 %v3720, %v3800
    %v3802 = vpop.f32.mrb[0].mxu0
    %v3803 = vpop.f32.mrb[0].mxu0
    %v3804 = vadd.f32 %v3723, %v3803
    %v3805 = vpop.f32.mrb[0].mxu0
    %3806 = vmatprep.mubr.bf16.mxu0 %v2786
    %3807 = vmatmul.mubr.bf16.gmra.mrb[0].mxu0 %v2785
    %v3808 = vpop.f32.mrb[0].mxu0
    %v3809 = vadd.f32 %v3728, %v3808
    %v3810 = vpop.f32.mrb[0].mxu0
    %v3811 = vpop.f32.mrb[0].mxu0
    %v3812 = vadd.f32 %v3731, %v3811
    %v3813 = vpop.f32.mrb[0].mxu0
    %3814 = vmatprep.mubr.bf16.mxu0 %v2798
    %3815 = vmatmul.mubr.bf16.gmra.mrb[0].mxu0 %v2797
    %v3816 = vpop.f32.mrb[0].mxu0
    %v3817 = vadd.f32 %v3736, %v3816
    %v3818 = vpop.f32.mrb[0].mxu0
    %v3819 = vpop.f32.mrb[0].mxu0
    %v3820 = vadd.f32 %v3739, %v3819
    %v3821 = vpop.f32.mrb[0].mxu0
    %3822 = vdwg.mxu0
    %3823 = vmatprep.subr.bf16.mxu0 0
    %3824 = vmatpush1.bf16.msra.mxu0 %v3436
    %3825 = vmatprep.subr.bf16.mxu0 0
    %3826 = vmatpush1.bf16.msra.mxu0 %v3437
    %3827 = vmatprep.subr.bf16.mxu0 0
    %3828 = vmatpush1.bf16.msra.mxu0 %v3438
    %3829 = vmatprep.subr.bf16.mxu0 0
    %3830 = vmatpush1.bf16.msra.mxu0 %v3439
    %3831 = vmatprep.subr.bf16.mxu0 0
    %3832 = vmatpush1.bf16.msra.mxu0 %v3440
    %3833 = vmatprep.subr.bf16.mxu0 0
    %3834 = vmatpush1.bf16.msra.mxu0 %v3441
    %3835 = vmatprep.subr.bf16.mxu0 0
    %3836 = vmatpush1.bf16.msra.mxu0 %v3442
    %3837 = vmatprep.subr.bf16.mxu0 0
    %3838 = vmatpush1.bf16.msra.mxu0 %v3443
    %3839 = vmatprep.subr.bf16.mxu0 0
    %3840 = vmatpush1.bf16.msra.mxu0 %v3444
    %3841 = vmatprep.subr.bf16.mxu0 0
    %3842 = vmatpush1.bf16.msra.mxu0 %v3445
    %3843 = vmatprep.subr.bf16.mxu0 0
    %3844 = vmatpush1.bf16.msra.mxu0 %v3446
    %3845 = vmatprep.subr.bf16.mxu0 0
    %3846 = vmatpush1.bf16.msra.mxu0 %v3447
    %3847 = vmatprep.subr.bf16.mxu0 0
    %3848 = vmatpush1.bf16.msra.mxu0 %v3448
    %3849 = vmatprep.subr.bf16.mxu0 0
    %3850 = vmatpush1.bf16.msra.mxu0 %v3449
    %3851 = vmatprep.subr.bf16.mxu0 0
    %3852 = vmatpush1.bf16.msra.mxu0 %v3450
    %3853 = vmatprep.subr.bf16.mxu0 0
    %3854 = vmatpush1.bf16.msra.mxu0 %v3451
    %3855 = vmatprep.mubr.bf16.mxu0 %v2740
    %3856 = vmatmul.mubr.bf16.gmra.mrb[0].mxu0 %v2739
    %v3857 = vpop.f32.mrb[0].mxu0
    %v3858 = vadd.f32 %v3777, %v3857
    %v3859 = vpop.f32.mrb[0].mxu0
    %v3860 = vpop.f32.mrb[0].mxu0
    %v3861 = vadd.f32 %v3780, %v3860
    %v3862 = vpop.f32.mrb[0].mxu0
    %3863 = vmatprep.mubr.bf16.mxu0 %v2752
    %3864 = vmatmul.mubr.bf16.gmra.mrb[0].mxu0 %v2751
    %v3865 = vpop.f32.mrb[0].mxu0
    %v3866 = vadd.f32 %v3785, %v3865
    %v3867 = vpop.f32.mrb[0].mxu0
    %v3868 = vpop.f32.mrb[0].mxu0
    %v3869 = vadd.f32 %v3788, %v3868
    %v3870 = vpop.f32.mrb[0].mxu0
    %3871 = vmatprep.mubr.bf16.mxu0 %v2764
    %3872 = vmatmul.mubr.bf16.gmra.mrb[0].mxu0 %v2763
    %v3873 = vpop.f32.mrb[0].mxu0
    %v3874 = vadd.f32 %v3793, %v3873
    %v3875 = vpop.f32.mrb[0].mxu0
    %v3876 = vpop.f32.mrb[0].mxu0
    %v3877 = vadd.f32 %v3796, %v3876
    %v3878 = vpop.f32.mrb[0].mxu0
    %3879 = vmatprep.mubr.bf16.mxu0 %v2776
    %3880 = vmatmul.mubr.bf16.gmra.mrb[0].mxu0 %v2775
    %v3881 = vpop.f32.mrb[0].mxu0
    %v3882 = vadd.f32 %v3801, %v3881
    %v3883 = vpop.f32.mrb[0].mxu0
    %v3884 = vpop.f32.mrb[0].mxu0
    %v3885 = vadd.f32 %v3804, %v3884
    %v3886 = vpop.f32.mrb[0].mxu0
    %3887 = vmatprep.mubr.bf16.mxu0 %v2788
    %3888 = vmatmul.mubr.bf16.gmra.mrb[0].mxu0 %v2787
    %v3889 = vpop.f32.mrb[0].mxu0
    %v3890 = vadd.f32 %v3809, %v3889
    %v3891 = vpop.f32.mrb[0].mxu0
    %v3892 = vpop.f32.mrb[0].mxu0
    %v3893 = vadd.f32 %v3812, %v3892
    %v3894 = vpop.f32.mrb[0].mxu0
    %3895 = vmatprep.mubr.bf16.mxu0 %v2800
    %3896 = vmatmul.mubr.bf16.gmra.mrb[0].mxu0 %v2799
    %v3897 = vpop.f32.mrb[0].mxu0
    %v3898 = vadd.f32 %v3817, %v3897
    %v3899 = vpop.f32.mrb[0].mxu0
    %v3900 = vpop.f32.mrb[0].mxu0
    %v3901 = vadd.f32 %v3820, %v3900
    %v3902 = vpop.f32.mrb[0].mxu0
    %3903 = vdwg.mxu0
    %3904 = vmatprep.subr.bf16.mxu0 0
    %3905 = vmatpush1.bf16.msra.mxu0 %v3452
    %3906 = vmatprep.subr.bf16.mxu0 0
    %3907 = vmatpush1.bf16.msra.mxu0 %v3453
    %3908 = vmatprep.subr.bf16.mxu0 0
    %3909 = vmatpush1.bf16.msra.mxu0 %v3454
    %3910 = vmatprep.subr.bf16.mxu0 0
    %3911 = vmatpush1.bf16.msra.mxu0 %v3455
    %3912 = vmatprep.subr.bf16.mxu0 0
    %3913 = vmatpush1.bf16.msra.mxu0 %v3456
    %3914 = vmatprep.subr.bf16.mxu0 0
    %3915 = vmatpush1.bf16.msra.mxu0 %v3457
    %3916 = vmatprep.subr.bf16.mxu0 0
    %3917 = vmatpush1.bf16.msra.mxu0 %v3458
    %3918 = vmatprep.subr.bf16.mxu0 0
    %3919 = vmatpush1.bf16.msra.mxu0 %v3459
    %3920 = vmatprep.subr.bf16.mxu0 0
    %3921 = vmatpush1.bf16.msra.mxu0 %v3460
    %3922 = vmatprep.subr.bf16.mxu0 0
    %3923 = vmatpush1.bf16.msra.mxu0 %v3461
    %3924 = vmatprep.subr.bf16.mxu0 0
    %3925 = vmatpush1.bf16.msra.mxu0 %v3462
    %3926 = vmatprep.subr.bf16.mxu0 0
    %3927 = vmatpush1.bf16.msra.mxu0 %v3463
    %3928 = vmatprep.subr.bf16.mxu0 0
    %3929 = vmatpush1.bf16.msra.mxu0 %v3464
    %3930 = vmatprep.subr.bf16.mxu0 0
    %3931 = vmatpush1.bf16.msra.mxu0 %v3465
    %3932 = vmatprep.subr.bf16.mxu0 0
    %3933 = vmatpush1.bf16.msra.mxu0 %v3466
    %3934 = vmatprep.subr.bf16.mxu0 0
    %3935 = vmatpush1.bf16.msra.mxu0 %v3467
    %3936 = vmatprep.mubr.bf16.mxu0 %v2742
    %3937 = vmatmul.mubr.bf16.gmra.mrb[0].mxu0 %v2741
    %v3938 = vpop.f32.mrb[0].mxu0
    %v3939 = vadd.f32 %v3858, %v3938
    %v3940 = vpop.f32.mrb[0].mxu0
    %v3941 = vpop.f32.mrb[0].mxu0
    %v3942 = vadd.f32 %v3861, %v3941
    %v3943 = vpop.f32.mrb[0].mxu0
    %3944 = vmatprep.mubr.bf16.mxu0 %v2754
    %3945 = vmatmul.mubr.bf16.gmra.mrb[0].mxu0 %v2753
    %v3946 = vpop.f32.mrb[0].mxu0
    %v3947 = vadd.f32 %v3866, %v3946
    %v3948 = vpop.f32.mrb[0].mxu0
    %v3949 = vpop.f32.mrb[0].mxu0
    %v3950 = vadd.f32 %v3869, %v3949
    %v3951 = vpop.f32.mrb[0].mxu0
    %3952 = vmatprep.mubr.bf16.mxu0 %v2766
    %3953 = vmatmul.mubr.bf16.gmra.mrb[0].mxu0 %v2765
    %v3954 = vpop.f32.mrb[0].mxu0
    %v3955 = vadd.f32 %v3874, %v3954
    %v3956 = vpop.f32.mrb[0].mxu0
    %v3957 = vpop.f32.mrb[0].mxu0
    %v3958 = vadd.f32 %v3877, %v3957
    %v3959 = vpop.f32.mrb[0].mxu0
    %3960 = vmatprep.mubr.bf16.mxu0 %v2778
    %3961 = vmatmul.mubr.bf16.gmra.mrb[0].mxu0 %v2777
    %v3962 = vpop.f32.mrb[0].mxu0
    %v3963 = vadd.f32 %v3882, %v3962
    %v3964 = vpop.f32.mrb[0].mxu0
    %v3965 = vpop.f32.mrb[0].mxu0
    %v3966 = vadd.f32 %v3885, %v3965
    %v3967 = vpop.f32.mrb[0].mxu0
    %3968 = vmatprep.mubr.bf16.mxu0 %v2790
    %3969 = vmatmul.mubr.bf16.gmra.mrb[0].mxu0 %v2789
    %v3970 = vpop.f32.mrb[0].mxu0
    %v3971 = vadd.f32 %v3890, %v3970
    %v3972 = vpop.f32.mrb[0].mxu0
    %v3973 = vpop.f32.mrb[0].mxu0
    %v3974 = vadd.f32 %v3893, %v3973
    %v3975 = vpop.f32.mrb[0].mxu0
    %3976 = vmatprep.mubr.bf16.mxu0 %v2802
    %3977 = vmatmul.mubr.bf16.gmra.mrb[0].mxu0 %v2801
    %v3978 = vpop.f32.mrb[0].mxu0
    %v3979 = vadd.f32 %v3898, %v3978
    %v3980 = vpop.f32.mrb[0].mxu0
    %v3981 = vpop.f32.mrb[0].mxu0
    %v3982 = vadd.f32 %v3901, %v3981
    %v3983 = vpop.f32.mrb[0].mxu0
    %3984 = vdwg.mxu0
    %3985 = vmatprep.subr.bf16.mxu0 0
    %3986 = vmatpush1.bf16.msra.mxu0 %v3468
    %3987 = vmatprep.subr.bf16.mxu0 0
    %3988 = vmatpush1.bf16.msra.mxu0 %v3469
    %3989 = vmatprep.subr.bf16.mxu0 0
    %3990 = vmatpush1.bf16.msra.mxu0 %v3470
    %3991 = vmatprep.subr.bf16.mxu0 0
    %3992 = vmatpush1.bf16.msra.mxu0 %v3471
    %3993 = vmatprep.subr.bf16.mxu0 0
    %3994 = vmatpush1.bf16.msra.mxu0 %v3472
    %3995 = vmatprep.subr.bf16.mxu0 0
    %3996 = vmatpush1.bf16.msra.mxu0 %v3473
    %3997 = vmatprep.subr.bf16.mxu0 0
    %3998 = vmatpush1.bf16.msra.mxu0 %v3474
    %3999 = vmatprep.subr.bf16.mxu0 0
    %4000 = vmatpush1.bf16.msra.mxu0 %v3475
    %4001 = vmatprep.subr.bf16.mxu0 0
    %4002 = vmatpush1.bf16.msra.mxu0 %v3476
    %4003 = vmatprep.subr.bf16.mxu0 0
    %4004 = vmatpush1.bf16.msra.mxu0 %v3477
    %4005 = vmatprep.subr.bf16.mxu0 0
    %4006 = vmatpush1.bf16.msra.mxu0 %v3478
    %4007 = vmatprep.subr.bf16.mxu0 0
    %4008 = vmatpush1.bf16.msra.mxu0 %v3479
    %4009 = vmatprep.subr.bf16.mxu0 0
    %4010 = vmatpush1.bf16.msra.mxu0 %v3480
    %4011 = vmatprep.subr.bf16.mxu0 0
    %4012 = vmatpush1.bf16.msra.mxu0 %v3481
    %4013 = vmatprep.subr.bf16.mxu0 0
    %4014 = vmatpush1.bf16.msra.mxu0 %v3482
    %4015 = vmatprep.subr.bf16.mxu0 0
    %4016 = vmatpush1.bf16.msra.mxu0 %v3483
    %4017 = vmatprep.mubr.bf16.mxu0 %v2744
    %4018 = vmatmul.mubr.bf16.gmra.mrb[0].mxu0 %v2743
    %v4019 = vpop.f32.mrb[0].mxu0
    %v4020 = vadd.f32 %v3939, %v4019
    %v4021 = vpop.f32.mrb[0].mxu0
    %v4022 = vpop.f32.mrb[0].mxu0
    %v4023 = vadd.f32 %v3942, %v4022
    %v4024 = vpop.f32.mrb[0].mxu0
    %4025 = vmatprep.mubr.bf16.mxu0 %v2756
    %4026 = vmatmul.mubr.bf16.gmra.mrb[0].mxu0 %v2755
    %v4027 = vpop.f32.mrb[0].mxu0
    %v4028 = vadd.f32 %v3947, %v4027
    %v4029 = vpop.f32.mrb[0].mxu0
    %v4030 = vpop.f32.mrb[0].mxu0
    %v4031 = vadd.f32 %v3950, %v4030
    %v4032 = vpop.f32.mrb[0].mxu0
    %4033 = vmatprep.mubr.bf16.mxu0 %v2768
    %4034 = vmatmul.mubr.bf16.gmra.mrb[0].mxu0 %v2767
    %v4035 = vpop.f32.mrb[0].mxu0
    %v4036 = vadd.f32 %v3955, %v4035
    %v4037 = vpop.f32.mrb[0].mxu0
    %v4038 = vpop.f32.mrb[0].mxu0
    %v4039 = vadd.f32 %v3958, %v4038
    %v4040 = vpop.f32.mrb[0].mxu0
    %4041 = vmatprep.mubr.bf16.mxu0 %v2780
    %4042 = vmatmul.mubr.bf16.gmra.mrb[0].mxu0 %v2779
    %v4043 = vpop.f32.mrb[0].mxu0
    %v4044 = vadd.f32 %v3963, %v4043
    %v4045 = vpop.f32.mrb[0].mxu0
    %v4046 = vpop.f32.mrb[0].mxu0
    %v4047 = vadd.f32 %v3966, %v4046
    %v4048 = vpop.f32.mrb[0].mxu0
    %4049 = vmatprep.mubr.bf16.mxu0 %v2792
    %4050 = vmatmul.mubr.bf16.gmra.mrb[0].mxu0 %v2791
    %v4051 = vpop.f32.mrb[0].mxu0
    %v4052 = vadd.f32 %v3971, %v4051
    %v4053 = vpop.f32.mrb[0].mxu0
    %v4054 = vpop.f32.mrb[0].mxu0
    %v4055 = vadd.f32 %v3974, %v4054
    %v4056 = vpop.f32.mrb[0].mxu0
    %4057 = vmatprep.mubr.bf16.mxu0 %v2804
    %4058 = vmatmul.mubr.bf16.gmra.mrb[0].mxu0 %v2803
    %v4059 = vpop.f32.mrb[0].mxu0
    %v4060 = vadd.f32 %v3979, %v4059
    %v4061 = vpop.f32.mrb[0].mxu0
    %v4062 = vpop.f32.mrb[0].mxu0
    %v4063 = vadd.f32 %v3982, %v4062
    %v4064 = vpop.f32.mrb[0].mxu0
    %4065 = vdwg.mxu0
    %v4066 = vlaneseq
    %v4067 = vshrl.u32 %v4066, 7
    %v4068 = vadd.s32 %v4067, 8
    %v4069 = vadd.s32 %v4067, 16
    %v4070 = vadd.s32 %v4067, 24
    %v4071 = vadd.s32 %v4067, 32
    %v4072 = vadd.s32 %v4067, 40
    %v4073 = vadd.s32 %v4067, 48
    %v4074 = vadd.s32 %v4067, 56
    %v4075 = vadd.s32 %v4067, 64
    %v4076 = vadd.s32 %v4067, 72
    %v4077 = vadd.s32 %v4067, 80
    %v4078 = vadd.s32 %v4067, 88
    %vm4079 = vcmp.lt.s32.totalorder %v4067, 46
    %vm4080 = vcmp.lt.s32.totalorder %v4068, 46
    %vm4081 = vcmp.lt.s32.totalorder %v4069, 46
    %vm4082 = vcmp.lt.s32.totalorder %v4070, 46
    %vm4083 = vcmp.lt.s32.totalorder %v4071, 46
    %vm4084 = vcmp.lt.s32.totalorder %v4072, 46
    %vm4085 = vcmp.lt.s32.totalorder %v4073, 46
    %vm4086 = vcmp.lt.s32.totalorder %v4074, 46
    %vm4087 = vcmp.lt.s32.totalorder %v4075, 46
    %vm4088 = vcmp.lt.s32.totalorder %v4076, 46
    %vm4089 = vcmp.lt.s32.totalorder %v4077, 46
    %vm4090 = vcmp.lt.s32.totalorder %v4078, 46
    %vm4091 = vcmp.ge.s32.totalorder %v4067, 48
    %vm4092 = vcmp.ge.s32.totalorder %v4068, 48
    %vm4093 = vcmp.ge.s32.totalorder %v4069, 48
    %vm4094 = vcmp.ge.s32.totalorder %v4070, 48
    %vm4095 = vcmp.ge.s32.totalorder %v4071, 48
    %vm4096 = vcmp.ge.s32.totalorder %v4072, 48
    %vm4097 = vcmp.ge.s32.totalorder %v4073, 48
    %vm4098 = vcmp.ge.s32.totalorder %v4074, 48
    %vm4099 = vcmp.ge.s32.totalorder %v4075, 48
    %vm4100 = vcmp.ge.s32.totalorder %v4076, 48
    %vm4101 = vcmp.ge.s32.totalorder %v4077, 48
    %vm4102 = vcmp.ge.s32.totalorder %v4078, 48
    %vm4103 = vcmp.lt.s32.totalorder %v4067, 94
    %vm4104 = vcmp.lt.s32.totalorder %v4068, 94
    %vm4105 = vcmp.lt.s32.totalorder %v4069, 94
    %vm4106 = vcmp.lt.s32.totalorder %v4070, 94
    %vm4107 = vcmp.lt.s32.totalorder %v4071, 94
    %vm4108 = vcmp.lt.s32.totalorder %v4072, 94
    %vm4109 = vcmp.lt.s32.totalorder %v4073, 94
    %vm4110 = vcmp.lt.s32.totalorder %v4074, 94
    %vm4111 = vcmp.lt.s32.totalorder %v4075, 94
    %vm4112 = vcmp.lt.s32.totalorder %v4076, 94
    %vm4113 = vcmp.lt.s32.totalorder %v4077, 94
    %vm4114 = vcmp.lt.s32.totalorder %v4078, 94
    %vm4115 = vmand %vm4091, %vm4103
    %vm4116 = vmand %vm4092, %vm4104
    %vm4117 = vmand %vm4093, %vm4105
    %vm4118 = vmand %vm4094, %vm4106
    %vm4119 = vmand %vm4095, %vm4107
    %vm4120 = vmand %vm4096, %vm4108
    %vm4121 = vmand %vm4097, %vm4109
    %vm4122 = vmand %vm4098, %vm4110
    %vm4123 = vmand %vm4099, %vm4111
    %vm4124 = vmand %vm4100, %vm4112
    %vm4125 = vmand %vm4101, %vm4113
    %vm4126 = vmand %vm4102, %vm4114
    %vm4127 = vmor %vm4079, %vm4115
    %vm4128 = vmor %vm4080, %vm4116
    %vm4129 = vmor %vm4081, %vm4117
    %vm4130 = vmor %vm4082, %vm4118
    %vm4131 = vmor %vm4083, %vm4119
    %vm4132 = vmor %vm4084, %vm4120
    %vm4133 = vmor %vm4085, %vm4121
    %vm4134 = vmor %vm4086, %vm4122
    %vm4135 = vmor %vm4087, %vm4123
    %vm4136 = vmor %vm4088, %vm4124
    %vm4137 = vmor %vm4089, %vm4125
    %vm4138 = vmor %vm4090, %vm4126
    %v4139 = vsel %vm4127, 1, 0
    %v4140 = vsel %vm4128, 1, 0
    %v4141 = vsel %vm4129, 1, 0
    %v4142 = vsel %vm4130, 1, 0
    %v4143 = vsel %vm4131, 1, 0
    %v4144 = vsel %vm4132, 1, 0
    %v4145 = vsel %vm4133, 1, 0
    %v4146 = vsel %vm4134, 1, 0
    %v4147 = vsel %vm4135, 1, 0
    %v4148 = vsel %vm4136, 1, 0
    %v4149 = vsel %vm4137, 1, 0
    %v4150 = vsel %vm4138, 1, 0
    %v4151 = vcvt.s32.f32 %v4139
    %v4152 = vcvt.s32.f32 %v4140
    %v4153 = vcvt.s32.f32 %v4141
    %v4154 = vcvt.s32.f32 %v4142
    %v4155 = vcvt.s32.f32 %v4143
    %v4156 = vcvt.s32.f32 %v4144
    %v4157 = vcvt.s32.f32 %v4145
    %v4158 = vcvt.s32.f32 %v4146
    %v4159 = vcvt.s32.f32 %v4147
    %v4160 = vcvt.s32.f32 %v4148
    %v4161 = vcvt.s32.f32 %v4149
    %v4162 = vcvt.s32.f32 %v4150
    %v4163 = vmul.f32 %v4020, %v4151
    %v4164 = vmul.f32 %v4023, %v4152
    %v4165 = vmul.f32 %v4028, %v4153
    %v4166 = vmul.f32 %v4031, %v4154
    %v4167 = vmul.f32 %v4036, %v4155
    %v4168 = vmul.f32 %v4039, %v4156
    %v4169 = vmul.f32 %v4044, %v4157
    %v4170 = vmul.f32 %v4047, %v4158
    %v4171 = vmul.f32 %v4052, %v4159
    %v4172 = vmul.f32 %v4055, %v4160
    %v4173 = vmul.f32 %v4060, %v4161
    %v4174 = vmul.f32 %v4063, %v4162
    %v4175 = vadd.f32 %v4163, %v4164
    %v4176 = vadd.f32 %v4175, %v4165
    %v4177 = vadd.f32 %v4176, %v4166
    %v4178 = vadd.f32 %v4177, %v4167
    %v4179 = vadd.f32 %v4178, %v4168
    %v4180 = vadd.f32 %v4179, %v4169
    %v4181 = vadd.f32 %v4180, %v4170
    %v4182 = vadd.f32 %v4181, %v4171
    %v4183 = vadd.f32 %v4182, %v4172
    %v4184 = vadd.f32 %v4183, %v4173
    %v4185 = vadd.f32 %v4184, %v4174
    %v4186 = vrot.slane %v4185, 4
    %v4187 = vadd.f32 %v4185, %v4186
    %v4188 = vrot.slane %v4187, 2
    %v4189 = vadd.f32 %v4187, %v4188
    %v4190 = vrot.slane %v4189, 1
    %v4191 = vadd.f32 %v4189, %v4190
    %v4192 = vmul.f32 %v4191, 0.010869565
    %v4193 = vsub.f32 %v4020, %v4192
    %v4194 = vsub.f32 %v4023, %v4192
    %v4195 = vsub.f32 %v4028, %v4192
    %v4196 = vsub.f32 %v4031, %v4192
    %v4197 = vsub.f32 %v4036, %v4192
    %v4198 = vsub.f32 %v4039, %v4192
    %v4199 = vsub.f32 %v4044, %v4192
    %v4200 = vsub.f32 %v4047, %v4192
    %v4201 = vsub.f32 %v4052, %v4192
    %v4202 = vsub.f32 %v4055, %v4192
    %v4203 = vsub.f32 %v4060, %v4192
    %v4204 = vsub.f32 %v4063, %v4192
    %v4205 = vmul.f32 %v4193, %v4193
    %v4206 = vmul.f32 %v4194, %v4194
    %v4207 = vmul.f32 %v4195, %v4195
    %v4208 = vmul.f32 %v4196, %v4196
    %v4209 = vmul.f32 %v4197, %v4197
    %v4210 = vmul.f32 %v4198, %v4198
    %v4211 = vmul.f32 %v4199, %v4199
    %v4212 = vmul.f32 %v4200, %v4200
    %v4213 = vmul.f32 %v4201, %v4201
    %v4214 = vmul.f32 %v4202, %v4202
    %v4215 = vmul.f32 %v4203, %v4203
    %v4216 = vmul.f32 %v4204, %v4204
    %v4217 = vmul.f32 %v4205, %v4151
    %v4218 = vmul.f32 %v4206, %v4152
    %v4219 = vmul.f32 %v4207, %v4153
    %v4220 = vmul.f32 %v4208, %v4154
    %v4221 = vmul.f32 %v4209, %v4155
    %v4222 = vmul.f32 %v4210, %v4156
    %v4223 = vmul.f32 %v4211, %v4157
    %v4224 = vmul.f32 %v4212, %v4158
    %v4225 = vmul.f32 %v4213, %v4159
    %v4226 = vmul.f32 %v4214, %v4160
    %v4227 = vmul.f32 %v4215, %v4161
    %v4228 = vmul.f32 %v4216, %v4162
    %v4229 = vadd.f32 %v4217, %v4218
    %v4230 = vadd.f32 %v4229, %v4219
    %v4231 = vadd.f32 %v4230, %v4220
    %v4232 = vadd.f32 %v4231, %v4221
    %v4233 = vadd.f32 %v4232, %v4222
    %v4234 = vadd.f32 %v4233, %v4223
    %v4235 = vadd.f32 %v4234, %v4224
    %v4236 = vadd.f32 %v4235, %v4225
    %v4237 = vadd.f32 %v4236, %v4226
    %v4238 = vadd.f32 %v4237, %v4227
    %v4239 = vadd.f32 %v4238, %v4228
    %v4240 = vrot.slane %v4239, 4
    %v4241 = vadd.f32 %v4239, %v4240
    %v4242 = vrot.slane %v4241, 2
    %v4243 = vadd.f32 %v4241, %v4242
    %v4244 = vrot.slane %v4243, 1
    %v4245 = vadd.f32 %v4243, %v4244
    %v4246 = vmul.f32 %v4245, 0.010869565
    %v4247 = vadd.f32 %v4246, 1e-05
    %v4248 = vrsqrt.pop %v4247
    %v4249 = vmul.f32 %v4193, %v4248
    %v4250 = vmul.f32 %v4194, %v4248
    %v4251 = vmul.f32 %v4195, %v4248
    %v4252 = vmul.f32 %v4196, %v4248
    %v4253 = vmul.f32 %v4197, %v4248
    %v4254 = vmul.f32 %v4198, %v4248
    %v4255 = vmul.f32 %v4199, %v4248
    %v4256 = vmul.f32 %v4200, %v4248
    %v4257 = vmul.f32 %v4201, %v4248
    %v4258 = vmul.f32 %v4202, %v4248
    %v4259 = vmul.f32 %v4203, %v4248
    %v4260 = vmul.f32 %v4204, %v4248
    %v4261 = vmax.f32 %v4249, 0.0
    %v4262 = vmax.f32 %v4250, 0.0
    %v4263 = vmax.f32 %v4251, 0.0
    %v4264 = vmax.f32 %v4252, 0.0
    %v4265 = vmax.f32 %v4253, 0.0
    %v4266 = vmax.f32 %v4254, 0.0
    %v4267 = vmax.f32 %v4255, 0.0
    %v4268 = vmax.f32 %v4256, 0.0
    %v4269 = vmax.f32 %v4257, 0.0
    %v4270 = vmax.f32 %v4258, 0.0
    %v4271 = vmax.f32 %v4259, 0.0
    %v4272 = vmax.f32 %v4260, 0.0
    %v4285 = vrot.slane %v4261, 1
    %v4286 = vrot.slane %v4262, 1
    %v4287 = vsel %vm543, %v4285, %v4286
    %v4288 = vrot.slane %v4263, 1
    %v4289 = vsel %vm543, %v4286, %v4288
    %v4290 = vrot.slane %v4264, 1
    %v4291 = vsel %vm543, %v4288, %v4290
    %v4292 = vrot.slane %v4265, 1
    %v4293 = vsel %vm543, %v4290, %v4292
    %v4294 = vrot.slane %v4266, 1
    %v4295 = vsel %vm543, %v4292, %v4294
    %v4296 = vrot.slane %v4267, 1
    %v4297 = vsel %vm543, %v4294, %v4296
    %v4298 = vrot.slane %v4268, 1
    %v4299 = vsel %vm543, %v4296, %v4298
    %v4300 = vrot.slane %v4269, 1
    %v4301 = vsel %vm543, %v4298, %v4300
    %v4302 = vrot.slane %v4270, 1
    %v4303 = vsel %vm543, %v4300, %v4302
    %v4304 = vrot.slane %v4271, 1
    %v4305 = vsel %vm543, %v4302, %v4304
    %v4306 = vrot.slane %v4272, 1
    %v4307 = vsel %vm543, %v4304, %v4306
    %v4308 = vsel %vm543, %v4306, %v2535
    %v4321 = vmax.f32 %v4261, %v4287
    %v4322 = vmax.f32 %v4262, %v4289
    %v4323 = vmax.f32 %v4263, %v4291
    %v4324 = vmax.f32 %v4264, %v4293
    %v4325 = vmax.f32 %v4265, %v4295
    %v4326 = vmax.f32 %v4266, %v4297
    %v4327 = vmax.f32 %v4267, %v4299
    %v4328 = vmax.f32 %v4268, %v4301
    %v4329 = vmax.f32 %v4269, %v4303
    %v4330 = vmax.f32 %v4270, %v4305
    %v4331 = vmax.f32 %v4271, %v4307
    %v4332 = vmax.f32 %v4272, %v4308
    %v4345 = vrot.slane %v4321, 1
    %v4346 = vrot.slane %v4322, 1
    %v4347 = vsel %vm543, %v4345, %v4346
    %v4348 = vrot.slane %v4323, 1
    %v4349 = vsel %vm543, %v4346, %v4348
    %v4350 = vrot.slane %v4324, 1
    %v4351 = vsel %vm543, %v4348, %v4350
    %v4352 = vrot.slane %v4325, 1
    %v4353 = vsel %vm543, %v4350, %v4352
    %v4354 = vrot.slane %v4326, 1
    %v4355 = vsel %vm543, %v4352, %v4354
    %v4356 = vrot.slane %v4327, 1
    %v4357 = vsel %vm543, %v4354, %v4356
    %v4358 = vrot.slane %v4328, 1
    %v4359 = vsel %vm543, %v4356, %v4358
    %v4360 = vrot.slane %v4329, 1
    %v4361 = vsel %vm543, %v4358, %v4360
    %v4362 = vrot.slane %v4330, 1
    %v4363 = vsel %vm543, %v4360, %v4362
    %v4364 = vrot.slane %v4331, 1
    %v4365 = vsel %vm543, %v4362, %v4364
    %v4366 = vrot.slane %v4332, 1
    %v4367 = vsel %vm543, %v4364, %v4366
    %v4368 = vsel %vm543, %v4366, %v2535
    %v4381 = vrot.slane %v4321, 2
    %v4382 = vrot.slane %v4322, 2
    %v4383 = vsel %vm896, %v4381, %v4382
    %v4384 = vrot.slane %v4323, 2
    %v4385 = vsel %vm896, %v4382, %v4384
    %v4386 = vrot.slane %v4324, 2
    %v4387 = vsel %vm896, %v4384, %v4386
    %v4388 = vrot.slane %v4325, 2
    %v4389 = vsel %vm896, %v4386, %v4388
    %v4390 = vrot.slane %v4326, 2
    %v4391 = vsel %vm896, %v4388, %v4390
    %v4392 = vrot.slane %v4327, 2
    %v4393 = vsel %vm896, %v4390, %v4392
    %v4394 = vrot.slane %v4328, 2
    %v4395 = vsel %vm896, %v4392, %v4394
    %v4396 = vrot.slane %v4329, 2
    %v4397 = vsel %vm896, %v4394, %v4396
    %v4398 = vrot.slane %v4330, 2
    %v4399 = vsel %vm896, %v4396, %v4398
    %v4400 = vrot.slane %v4331, 2
    %v4401 = vsel %vm896, %v4398, %v4400
    %v4402 = vrot.slane %v4332, 2
    %v4403 = vsel %vm896, %v4400, %v4402
    %v4404 = vsel %vm896, %v4402, %v2680
    %v4417 = vpack.c.bf16 %v4322, %v4321
    %v4418 = vpack.c.bf16 %v4349, %v4347
    %v4419 = vpack.c.bf16 %v4385, %v4383
    %v4420 = vpack.c.bf16 %v4324, %v4323
    %v4421 = vpack.c.bf16 %v4353, %v4351
    %v4422 = vpack.c.bf16 %v4389, %v4387
    %v4423 = vpack.c.bf16 %v4326, %v4325
    %v4424 = vpack.c.bf16 %v4357, %v4355
    %v4425 = vpack.c.bf16 %v4393, %v4391
    %v4426 = vpack.c.bf16 %v4328, %v4327
    %v4427 = vpack.c.bf16 %v4361, %v4359
    %v4428 = vpack.c.bf16 %v4397, %v4395
    %v4429 = vpack.c.bf16 %v4330, %v4329
    %v4430 = vpack.c.bf16 %v4365, %v4363
    %v4431 = vpack.c.bf16 %v4401, %v4399
    %v4432 = vpack.c.bf16 %v4332, %v4331
    %v4433 = vpack.c.bf16 %v4368, %v4367
    %v4434 = vpack.c.bf16 %v4404, %v4403
    %v4435 = vld [vmem:[#allocation12] sm:$0xf]
    %v4436 = vld [vmem:[#allocation12 + $0x4] sm:$0xf]
    %v4437 = vld [vmem:[#allocation12 + $0x8] sm:$0xf]
    %v4438 = vld [vmem:[#allocation12 + $0xc] sm:$0xf]
    %v4439 = vld [vmem:[#allocation12 + $0x10] sm:$0xf]
    %v4440 = vld [vmem:[#allocation12 + $0x14] sm:$0xf]
    %v4441 = vld [vmem:[#allocation12 + $0x18] sm:$0xf]
    %v4442 = vld [vmem:[#allocation12 + $0x1c] sm:$0xf]
    %v4443 = vld [vmem:[#allocation12 + $0x20] sm:$0xf]
    %v4444 = vld [vmem:[#allocation12 + $0x24] sm:$0xf]
    %v4445 = vld [vmem:[#allocation12 + $0x28] sm:$0xf]
    %v4446 = vld [vmem:[#allocation12 + $0x2c] sm:$0xf]
    %v4447 = vld [vmem:[#allocation12 + $0x30] sm:$0xf]
    %v4448 = vld [vmem:[#allocation12 + $0x34] sm:$0xf]
    %v4449 = vld [vmem:[#allocation12 + $0x38] sm:$0xf]
    %v4450 = vld [vmem:[#allocation12 + $0x3c] sm:$0xf]
    %v4451 = vld [vmem:[#allocation12 + $0x40] sm:$0xf]
    %v4452 = vld [vmem:[#allocation12 + $0x44] sm:$0xf]
    %v4453 = vld [vmem:[#allocation12 + $0x48] sm:$0xf]
    %v4454 = vld [vmem:[#allocation12 + $0x4c] sm:$0xf]
    %v4455 = vld [vmem:[#allocation12 + $0x50] sm:$0xf]
    %v4456 = vld [vmem:[#allocation12 + $0x54] sm:$0xf]
    %v4457 = vld [vmem:[#allocation12 + $0x58] sm:$0xf]
    %v4458 = vld [vmem:[#allocation12 + $0x5c] sm:$0xf]
    %v4459 = vld [vmem:[#allocation12 + $0x60] sm:$0xf]
    %v4460 = vld [vmem:[#allocation12 + $0x64] sm:$0xf]
    %v4461 = vld [vmem:[#allocation12 + $0x68] sm:$0xf]
    %v4462 = vld [vmem:[#allocation12 + $0x6c] sm:$0xf]
    %v4463 = vld [vmem:[#allocation12 + $0x70] sm:$0xf]
    %v4464 = vld [vmem:[#allocation12 + $0x74] sm:$0xf]
    %v4465 = vld [vmem:[#allocation12 + $0x78] sm:$0xf]
    %v4466 = vld [vmem:[#allocation12 + $0x7c] sm:$0xf]
    %v4467 = vld [vmem:[#allocation12 + $0x80] sm:$0xf]
    %v4468 = vld [vmem:[#allocation12 + $0x84] sm:$0xf]
    %v4469 = vld [vmem:[#allocation12 + $0x88] sm:$0xf]
    %v4470 = vld [vmem:[#allocation12 + $0x8c] sm:$0xf]
    %v4471 = vld [vmem:[#allocation12 + $0x90] sm:$0xf]
    %v4472 = vld [vmem:[#allocation12 + $0x94] sm:$0xf]
    %v4473 = vld [vmem:[#allocation12 + $0x98] sm:$0xf]
    %v4474 = vld [vmem:[#allocation12 + $0x9c] sm:$0xf]
    %v4475 = vld [vmem:[#allocation12 + $0xa0] sm:$0xf]
    %v4476 = vld [vmem:[#allocation12 + $0xa4] sm:$0xf]
    %v4477 = vld [vmem:[#allocation12 + $0xa8] sm:$0xf]
    %v4478 = vld [vmem:[#allocation12 + $0xac] sm:$0xf]
    %v4479 = vld [vmem:[#allocation12 + $0xb0] sm:$0xf]
    %v4480 = vld [vmem:[#allocation12 + $0xb4] sm:$0xf]
    %v4481 = vld [vmem:[#allocation12 + $0xb8] sm:$0xf]
    %v4482 = vld [vmem:[#allocation12 + $0xbc] sm:$0xf]
    %v4483 = vld [vmem:[%s9] sm:$0x1]
    %v4485 = vlaneseq
    %v4486 = vshrl.u32 %v4485, 7
    %v4487 = vsub.s32 0, %v4486
    %v4488 = vrot.slane %v4483, %v4487
    %v4538 = vunpack.c.l.b16 %v4435
    %v4539 = vunpack.c.l.b16 %v4436
    %v4540 = vunpack.c.l.b16 %v4437
    %v4541 = vunpack.c.l.b16 %v4438
    %v4542 = vunpack.c.l.b16 %v4439
    %v4543 = vunpack.c.l.b16 %v4440
    %v4544 = vunpack.c.l.b16 %v4441
    %v4545 = vunpack.c.l.b16 %v4442
    %v4546 = vunpack.c.l.b16 %v4443
    %v4547 = vunpack.c.l.b16 %v4444
    %v4548 = vunpack.c.l.b16 %v4445
    %v4549 = vunpack.c.l.b16 %v4446
    %v4550 = vunpack.c.l.b16 %v4447
    %v4551 = vunpack.c.l.b16 %v4448
    %v4552 = vunpack.c.l.b16 %v4449
    %v4553 = vunpack.c.l.b16 %v4450
    %v4554 = vunpack.c.l.b16 %v4451
    %v4555 = vunpack.c.l.b16 %v4452
    %v4556 = vunpack.c.l.b16 %v4453
    %v4557 = vunpack.c.l.b16 %v4454
    %v4558 = vunpack.c.l.b16 %v4455
    %v4559 = vunpack.c.l.b16 %v4456
    %v4560 = vunpack.c.l.b16 %v4457
    %v4561 = vunpack.c.l.b16 %v4458
    %v4562 = vunpack.c.l.b16 %v4459
    %v4563 = vunpack.c.l.b16 %v4460
    %v4564 = vunpack.c.l.b16 %v4461
    %v4565 = vunpack.c.l.b16 %v4462
    %v4566 = vunpack.c.l.b16 %v4463
    %v4567 = vunpack.c.l.b16 %v4464
    %v4568 = vunpack.c.l.b16 %v4465
    %v4569 = vunpack.c.l.b16 %v4466
    %v4570 = vunpack.c.l.b16 %v4467
    %v4571 = vunpack.c.l.b16 %v4468
    %v4572 = vunpack.c.l.b16 %v4469
    %v4573 = vunpack.c.l.b16 %v4470
    %v4574 = vunpack.c.l.b16 %v4471
    %v4575 = vunpack.c.l.b16 %v4472
    %v4576 = vunpack.c.l.b16 %v4473
    %v4577 = vunpack.c.l.b16 %v4474
    %v4578 = vunpack.c.l.b16 %v4475
    %v4579 = vunpack.c.l.b16 %v4476
    %v4580 = vunpack.c.l.b16 %v4477
    %v4581 = vunpack.c.l.b16 %v4478
    %v4582 = vunpack.c.l.b16 %v4479
    %v4583 = vunpack.c.l.b16 %v4480
    %v4584 = vunpack.c.l.b16 %v4481
    %v4585 = vunpack.c.l.b16 %v4482
    %v4586 = vpack.c.b16 %v4539, %v4538
    %v4587 = vpack.c.b16 %v4541, %v4540
    %v4588 = vpack.c.b16 %v4543, %v4542
    %v4589 = vpack.c.b16 %v4545, %v4544
    %v4590 = vpack.c.b16 %v4547, %v4546
    %v4591 = vpack.c.b16 %v4549, %v4548
    %v4592 = vpack.c.b16 %v4551, %v4550
    %v4593 = vpack.c.b16 %v4553, %v4552
    %v4594 = vpack.c.b16 %v4555, %v4554
    %v4595 = vpack.c.b16 %v4557, %v4556
    %v4596 = vpack.c.b16 %v4559, %v4558
    %v4597 = vpack.c.b16 %v4561, %v4560
    %v4598 = vpack.c.b16 %v4563, %v4562
    %v4599 = vpack.c.b16 %v4565, %v4564
    %v4600 = vpack.c.b16 %v4567, %v4566
    %v4601 = vpack.c.b16 %v4569, %v4568
    %v4602 = vpack.c.b16 %v4571, %v4570
    %v4603 = vpack.c.b16 %v4573, %v4572
    %v4604 = vpack.c.b16 %v4575, %v4574
    %v4605 = vpack.c.b16 %v4577, %v4576
    %v4606 = vpack.c.b16 %v4579, %v4578
    %v4607 = vpack.c.b16 %v4581, %v4580
    %v4608 = vpack.c.b16 %v4583, %v4582
    %v4609 = vpack.c.b16 %v4585, %v4584
    %4634 = vmatprep.subr.bf16.mxu0 0
    %4635 = vmatpush1.bf16.msra.mxu0 %v4586
    %4636 = vmatprep.subr.bf16.mxu0 0
    %4637 = vmatpush1.bf16.msra.mxu0 %v4587
    %4638 = vmatprep.subr.bf16.mxu0 0
    %4639 = vmatpush1.bf16.msra.mxu0 %v4588
    %4640 = vmatprep.subr.bf16.mxu0 0
    %4641 = vmatpush1.bf16.msra.mxu0 %v4589
    %4642 = vmatprep.subr.bf16.mxu0 0
    %4643 = vmatpush1.bf16.msra.mxu0 %v4590
    %4644 = vmatprep.subr.bf16.mxu0 0
    %4645 = vmatpush1.bf16.msra.mxu0 %v4591
    %4646 = vmatprep.subr.bf16.mxu0 0
    %4647 = vmatpush1.bf16.msra.mxu0 %v4592
    %4648 = vmatprep.subr.bf16.mxu0 0
    %4649 = vmatpush1.bf16.msra.mxu0 %v4593
    %4650 = vmatprep.subr.bf16.mxu0 0
    %4651 = vmatpush1.bf16.msra.mxu0 %v4594
    %4652 = vmatprep.subr.bf16.mxu0 0
    %4653 = vmatpush1.bf16.msra.mxu0 %v4595
    %4654 = vmatprep.subr.bf16.mxu0 0
    %4655 = vmatpush1.bf16.msra.mxu0 %v4596
    %4656 = vmatprep.subr.bf16.mxu0 0
    %4657 = vmatpush1.bf16.msra.mxu0 %v4597
    %4658 = vmatprep.subr.bf16.mxu0 0
    %4659 = vmatpush1.bf16.msra.mxu0 %v4598
    %4660 = vmatprep.subr.bf16.mxu0 0
    %4661 = vmatpush1.bf16.msra.mxu0 %v4599
    %4662 = vmatprep.subr.bf16.mxu0 0
    %4663 = vmatpush1.bf16.msra.mxu0 %v4600
    %4664 = vmatprep.subr.bf16.mxu0 0
    %4665 = vmatpush1.bf16.msra.mxu0 %v4601
    %4666 = vmatprep.mubr.bf16.mxu0 %v4418
    %4667 = vmatmul.mubr.bf16.gmra.mrb[0].mxu0 %v4417
    %v4668 = vpop.f32.mrb[0].mxu0
    %v4669 = vadd.f32 %v4488, %v4668
    %v4670 = vpop.f32.mrb[0].mxu0
    %v4671 = vpop.f32.mrb[0].mxu0
    %v4672 = vadd.f32 %v4488, %v4671
    %v4673 = vpop.f32.mrb[0].mxu0
    %4674 = vmatprep.mubr.bf16.mxu0 %v4421
    %4675 = vmatmul.mubr.bf16.gmra.mrb[0].mxu0 %v4420
    %v4676 = vpop.f32.mrb[0].mxu0
    %v4677 = vadd.f32 %v4488, %v4676
    %v4678 = vpop.f32.mrb[0].mxu0
    %v4679 = vpop.f32.mrb[0].mxu0
    %v4680 = vadd.f32 %v4488, %v4679
    %v4681 = vpop.f32.mrb[0].mxu0
    %4682 = vmatprep.mubr.bf16.mxu0 %v4424
    %4683 = vmatmul.mubr.bf16.gmra.mrb[0].mxu0 %v4423
    %v4684 = vpop.f32.mrb[0].mxu0
    %v4685 = vadd.f32 %v4488, %v4684
    %v4686 = vpop.f32.mrb[0].mxu0
    %v4687 = vpop.f32.mrb[0].mxu0
    %v4688 = vadd.f32 %v4488, %v4687
    %v4689 = vpop.f32.mrb[0].mxu0
    %4690 = vmatprep.mubr.bf16.mxu0 %v4427
    %4691 = vmatmul.mubr.bf16.gmra.mrb[0].mxu0 %v4426
    %v4692 = vpop.f32.mrb[0].mxu0
    %v4693 = vadd.f32 %v4488, %v4692
    %v4694 = vpop.f32.mrb[0].mxu0
    %v4695 = vpop.f32.mrb[0].mxu0
    %v4696 = vadd.f32 %v4488, %v4695
    %v4697 = vpop.f32.mrb[0].mxu0
    %4698 = vmatprep.mubr.bf16.mxu0 %v4430
    %4699 = vmatmul.mubr.bf16.gmra.mrb[0].mxu0 %v4429
    %v4700 = vpop.f32.mrb[0].mxu0
    %v4701 = vadd.f32 %v4488, %v4700
    %v4702 = vpop.f32.mrb[0].mxu0
    %v4703 = vpop.f32.mrb[0].mxu0
    %v4704 = vadd.f32 %v4488, %v4703
    %v4705 = vpop.f32.mrb[0].mxu0
    %4706 = vmatprep.mubr.bf16.mxu0 %v4433
    %4707 = vmatmul.mubr.bf16.gmra.mrb[0].mxu0 %v4432
    %v4708 = vpop.f32.mrb[0].mxu0
    %v4709 = vadd.f32 %v4488, %v4708
    %v4710 = vpop.f32.mrb[0].mxu0
    %v4711 = vpop.f32.mrb[0].mxu0
    %v4712 = vadd.f32 %v4488, %v4711
    %v4713 = vpop.f32.mrb[0].mxu0
    %4714 = vdwg.mxu0
    %4715 = vmatprep.subr.bf16.mxu0 0
    %4716 = vmatpush1.bf16.msra.mxu0 %v4602
    %4717 = vmatprep.subr.bf16.mxu0 0
    %4718 = vmatpush1.bf16.msra.mxu0 %v4603
    %4719 = vmatprep.subr.bf16.mxu0 0
    %4720 = vmatpush1.bf16.msra.mxu0 %v4604
    %4721 = vmatprep.subr.bf16.mxu0 0
    %4722 = vmatpush1.bf16.msra.mxu0 %v4605
    %4723 = vmatprep.subr.bf16.mxu0 0
    %4724 = vmatpush1.bf16.msra.mxu0 %v4606
    %4725 = vmatprep.subr.bf16.mxu0 0
    %4726 = vmatpush1.bf16.msra.mxu0 %v4607
    %4727 = vmatprep.subr.bf16.mxu0 0
    %4728 = vmatpush1.bf16.msra.mxu0 %v4608
    %4729 = vmatprep.subr.bf16.mxu0 0
    %4730 = vmatpush1.bf16.msra.mxu0 %v4609
    %4731 = vmatprep.subr.bf16.mxu0 0
    %4732 = vmatpush1.bf16.msra.mxu0 0
    %4733 = vmatprep.subr.bf16.mxu0 0
    %4734 = vmatpush1.bf16.msra.mxu0 0
    %4735 = vmatprep.subr.bf16.mxu0 0
    %4736 = vmatpush1.bf16.msra.mxu0 0
    %4737 = vmatprep.subr.bf16.mxu0 0
    %4738 = vmatpush1.bf16.msra.mxu0 0
    %4739 = vmatprep.subr.bf16.mxu0 0
    %4740 = vmatpush1.bf16.msra.mxu0 0
    %4741 = vmatprep.subr.bf16.mxu0 0
    %4742 = vmatpush1.bf16.msra.mxu0 0
    %4743 = vmatprep.subr.bf16.mxu0 0
    %4744 = vmatpush1.bf16.msra.mxu0 0
    %4745 = vmatprep.subr.bf16.mxu0 0
    %4746 = vmatpush1.bf16.msra.mxu0 0
    %4747 = vmatprep.mubr.bf16.mxu0 0
    %4748 = vmatmul.mubr.bf16.gmra.mrb[0].mxu0 %v4419
    %v4749 = vpop.f32.mrb[0].mxu0
    %v4750 = vadd.f32 %v4669, %v4749
    %v4751 = vpop.f32.mrb[0].mxu0
    %v4752 = vpop.f32.mrb[0].mxu0
    %v4753 = vadd.f32 %v4672, %v4752
    %v4754 = vpop.f32.mrb[0].mxu0
    %4755 = vmatprep.mubr.bf16.mxu0 0
    %4756 = vmatmul.mubr.bf16.gmra.mrb[0].mxu0 %v4422
    %v4757 = vpop.f32.mrb[0].mxu0
    %v4758 = vadd.f32 %v4677, %v4757
    %v4759 = vpop.f32.mrb[0].mxu0
    %v4760 = vpop.f32.mrb[0].mxu0
    %v4761 = vadd.f32 %v4680, %v4760
    %v4762 = vpop.f32.mrb[0].mxu0
    %4763 = vmatprep.mubr.bf16.mxu0 0
    %4764 = vmatmul.mubr.bf16.gmra.mrb[0].mxu0 %v4425
    %v4765 = vpop.f32.mrb[0].mxu0
    %v4766 = vadd.f32 %v4685, %v4765
    %v4767 = vpop.f32.mrb[0].mxu0
    %v4768 = vpop.f32.mrb[0].mxu0
    %v4769 = vadd.f32 %v4688, %v4768
    %v4770 = vpop.f32.mrb[0].mxu0
    %4771 = vmatprep.mubr.bf16.mxu0 0
    %4772 = vmatmul.mubr.bf16.gmra.mrb[0].mxu0 %v4428
    %v4773 = vpop.f32.mrb[0].mxu0
    %v4774 = vadd.f32 %v4693, %v4773
    %v4775 = vpop.f32.mrb[0].mxu0
    %v4776 = vpop.f32.mrb[0].mxu0
    %v4777 = vadd.f32 %v4696, %v4776
    %v4778 = vpop.f32.mrb[0].mxu0
    %4779 = vmatprep.mubr.bf16.mxu0 0
    %4780 = vmatmul.mubr.bf16.gmra.mrb[0].mxu0 %v4431
    %v4781 = vpop.f32.mrb[0].mxu0
    %v4782 = vadd.f32 %v4701, %v4781
    %v4783 = vpop.f32.mrb[0].mxu0
    %v4784 = vpop.f32.mrb[0].mxu0
    %v4785 = vadd.f32 %v4704, %v4784
    %v4786 = vpop.f32.mrb[0].mxu0
    %4787 = vmatprep.mubr.bf16.mxu0 0
    %4788 = vmatmul.mubr.bf16.gmra.mrb[0].mxu0 %v4434
    %v4789 = vpop.f32.mrb[0].mxu0
    %v4790 = vadd.f32 %v4709, %v4789
    %v4791 = vpop.f32.mrb[0].mxu0
    %v4792 = vpop.f32.mrb[0].mxu0
    %v4793 = vadd.f32 %v4712, %v4792
    %v4794 = vpop.f32.mrb[0].mxu0
    %4795 = vdwg.mxu0
    %vm4796 = vcmp.lt.s32.totalorder %v4067, 43
    %vm4797 = vcmp.lt.s32.totalorder %v4068, 43
    %vm4798 = vcmp.lt.s32.totalorder %v4069, 43
    %vm4799 = vcmp.lt.s32.totalorder %v4070, 43
    %vm4800 = vcmp.lt.s32.totalorder %v4071, 43
    %vm4801 = vcmp.lt.s32.totalorder %v4072, 43
    %vm4802 = vcmp.lt.s32.totalorder %v4073, 43
    %vm4803 = vcmp.lt.s32.totalorder %v4074, 43
    %vm4804 = vcmp.lt.s32.totalorder %v4075, 43
    %vm4805 = vcmp.lt.s32.totalorder %v4076, 43
    %vm4806 = vcmp.lt.s32.totalorder %v4077, 43
    %vm4807 = vcmp.lt.s32.totalorder %v4078, 43
    %vm4808 = vcmp.lt.s32.totalorder %v4067, 91
    %vm4809 = vcmp.lt.s32.totalorder %v4068, 91
    %vm4810 = vcmp.lt.s32.totalorder %v4069, 91
    %vm4811 = vcmp.lt.s32.totalorder %v4070, 91
    %vm4812 = vcmp.lt.s32.totalorder %v4071, 91
    %vm4813 = vcmp.lt.s32.totalorder %v4072, 91
    %vm4814 = vcmp.lt.s32.totalorder %v4073, 91
    %vm4815 = vcmp.lt.s32.totalorder %v4074, 91
    %vm4816 = vcmp.lt.s32.totalorder %v4075, 91
    %vm4817 = vcmp.lt.s32.totalorder %v4076, 91
    %vm4818 = vcmp.lt.s32.totalorder %v4077, 91
    %vm4819 = vcmp.lt.s32.totalorder %v4078, 91
    %vm4820 = vmand %vm4091, %vm4808
    %vm4821 = vmand %vm4092, %vm4809
    %vm4822 = vmand %vm4093, %vm4810
    %vm4823 = vmand %vm4094, %vm4811
    %vm4824 = vmand %vm4095, %vm4812
    %vm4825 = vmand %vm4096, %vm4813
    %vm4826 = vmand %vm4097, %vm4814
    %vm4827 = vmand %vm4098, %vm4815
    %vm4828 = vmand %vm4099, %vm4816
    %vm4829 = vmand %vm4100, %vm4817
    %vm4830 = vmand %vm4101, %vm4818
    %vm4831 = vmand %vm4102, %vm4819
    %vm4832 = vmor %vm4796, %vm4820
    %vm4833 = vmor %vm4797, %vm4821
    %vm4834 = vmor %vm4798, %vm4822
    %vm4835 = vmor %vm4799, %vm4823
    %vm4836 = vmor %vm4800, %vm4824
    %vm4837 = vmor %vm4801, %vm4825
    %vm4838 = vmor %vm4802, %vm4826
    %vm4839 = vmor %vm4803, %vm4827
    %vm4840 = vmor %vm4804, %vm4828
    %vm4841 = vmor %vm4805, %vm4829
    %vm4842 = vmor %vm4806, %vm4830
    %vm4843 = vmor %vm4807, %vm4831
    %v4844 = vsel %vm4832, 1, 0
    %v4845 = vsel %vm4833, 1, 0
    %v4846 = vsel %vm4834, 1, 0
    %v4847 = vsel %vm4835, 1, 0
    %v4848 = vsel %vm4836, 1, 0
    %v4849 = vsel %vm4837, 1, 0
    %v4850 = vsel %vm4838, 1, 0
    %v4851 = vsel %vm4839, 1, 0
    %v4852 = vsel %vm4840, 1, 0
    %v4853 = vsel %vm4841, 1, 0
    %v4854 = vsel %vm4842, 1, 0
    %v4855 = vsel %vm4843, 1, 0
    %v4856 = vcvt.s32.f32 %v4844
    %v4857 = vcvt.s32.f32 %v4845
    %v4858 = vcvt.s32.f32 %v4846
    %v4859 = vcvt.s32.f32 %v4847
    %v4860 = vcvt.s32.f32 %v4848
    %v4861 = vcvt.s32.f32 %v4849
    %v4862 = vcvt.s32.f32 %v4850
    %v4863 = vcvt.s32.f32 %v4851
    %v4864 = vcvt.s32.f32 %v4852
    %v4865 = vcvt.s32.f32 %v4853
    %v4866 = vcvt.s32.f32 %v4854
    %v4867 = vcvt.s32.f32 %v4855
    %v4868 = vmul.f32 %v4750, %v4856
    %v4869 = vmul.f32 %v4753, %v4857
    %v4870 = vmul.f32 %v4758, %v4858
    %v4871 = vmul.f32 %v4761, %v4859
    %v4872 = vmul.f32 %v4766, %v4860
    %v4873 = vmul.f32 %v4769, %v4861
    %v4874 = vmul.f32 %v4774, %v4862
    %v4875 = vmul.f32 %v4777, %v4863
    %v4876 = vmul.f32 %v4782, %v4864
    %v4877 = vmul.f32 %v4785, %v4865
    %v4878 = vmul.f32 %v4790, %v4866
    %v4879 = vmul.f32 %v4793, %v4867
    %v4880 = vadd.f32 %v4868, %v4869
    %v4881 = vadd.f32 %v4880, %v4870
    %v4882 = vadd.f32 %v4881, %v4871
    %v4883 = vadd.f32 %v4882, %v4872
    %v4884 = vadd.f32 %v4883, %v4873
    %v4885 = vadd.f32 %v4884, %v4874
    %v4886 = vadd.f32 %v4885, %v4875
    %v4887 = vadd.f32 %v4886, %v4876
    %v4888 = vadd.f32 %v4887, %v4877
    %v4889 = vadd.f32 %v4888, %v4878
    %v4890 = vadd.f32 %v4889, %v4879
    %v4891 = vrot.slane %v4890, 4
    %v4892 = vadd.f32 %v4890, %v4891
    %v4893 = vrot.slane %v4892, 2
    %v4894 = vadd.f32 %v4892, %v4893
    %v4895 = vrot.slane %v4894, 1
    %v4896 = vadd.f32 %v4894, %v4895
    %v4897 = vmul.f32 %v4896, 0.011627907
    %v4898 = vsub.f32 %v4750, %v4897
    %v4899 = vsub.f32 %v4753, %v4897
    %v4900 = vsub.f32 %v4758, %v4897
    %v4901 = vsub.f32 %v4761, %v4897
    %v4902 = vsub.f32 %v4766, %v4897
    %v4903 = vsub.f32 %v4769, %v4897
    %v4904 = vsub.f32 %v4774, %v4897
    %v4905 = vsub.f32 %v4777, %v4897
    %v4906 = vsub.f32 %v4782, %v4897
    %v4907 = vsub.f32 %v4785, %v4897
    %v4908 = vsub.f32 %v4790, %v4897
    %v4909 = vsub.f32 %v4793, %v4897
    %v4910 = vmul.f32 %v4898, %v4898
    %v4911 = vmul.f32 %v4899, %v4899
    %v4912 = vmul.f32 %v4900, %v4900
    %v4913 = vmul.f32 %v4901, %v4901
    %v4914 = vmul.f32 %v4902, %v4902
    %v4915 = vmul.f32 %v4903, %v4903
    %v4916 = vmul.f32 %v4904, %v4904
    %v4917 = vmul.f32 %v4905, %v4905
    %v4918 = vmul.f32 %v4906, %v4906
    %v4919 = vmul.f32 %v4907, %v4907
    %v4920 = vmul.f32 %v4908, %v4908
    %v4921 = vmul.f32 %v4909, %v4909
    %v4922 = vmul.f32 %v4910, %v4856
    %v4923 = vmul.f32 %v4911, %v4857
    %v4924 = vmul.f32 %v4912, %v4858
    %v4925 = vmul.f32 %v4913, %v4859
    %v4926 = vmul.f32 %v4914, %v4860
    %v4927 = vmul.f32 %v4915, %v4861
    %v4928 = vmul.f32 %v4916, %v4862
    %v4929 = vmul.f32 %v4917, %v4863
    %v4930 = vmul.f32 %v4918, %v4864
    %v4931 = vmul.f32 %v4919, %v4865
    %v4932 = vmul.f32 %v4920, %v4866
    %v4933 = vmul.f32 %v4921, %v4867
    %v4934 = vadd.f32 %v4922, %v4923
    %v4935 = vadd.f32 %v4934, %v4924
    %v4936 = vadd.f32 %v4935, %v4925
    %v4937 = vadd.f32 %v4936, %v4926
    %v4938 = vadd.f32 %v4937, %v4927
    %v4939 = vadd.f32 %v4938, %v4928
    %v4940 = vadd.f32 %v4939, %v4929
    %v4941 = vadd.f32 %v4940, %v4930
    %v4942 = vadd.f32 %v4941, %v4931
    %v4943 = vadd.f32 %v4942, %v4932
    %v4944 = vadd.f32 %v4943, %v4933
    %v4945 = vrot.slane %v4944, 4
    %v4946 = vadd.f32 %v4944, %v4945
    %v4947 = vrot.slane %v4946, 2
    %v4948 = vadd.f32 %v4946, %v4947
    %v4949 = vrot.slane %v4948, 1
    %v4950 = vadd.f32 %v4948, %v4949
    %v4951 = vmul.f32 %v4950, 0.011627907
    %v4952 = vadd.f32 %v4951, 1e-05
    %v4953 = vrsqrt.pop %v4952
    %v4954 = vmul.f32 %v4898, %v4953
    %v4955 = vmul.f32 %v4899, %v4953
    %v4956 = vmul.f32 %v4900, %v4953
    %v4957 = vmul.f32 %v4901, %v4953
    %v4958 = vmul.f32 %v4902, %v4953
    %v4959 = vmul.f32 %v4903, %v4953
    %v4960 = vmul.f32 %v4904, %v4953
    %v4961 = vmul.f32 %v4905, %v4953
    %v4962 = vmul.f32 %v4906, %v4953
    %v4963 = vmul.f32 %v4907, %v4953
    %v4964 = vmul.f32 %v4908, %v4953
    %v4965 = vmul.f32 %v4909, %v4953
    %v4966 = vmax.f32 %v4954, 0.0
    %v4967 = vmax.f32 %v4955, 0.0
    %v4968 = vmax.f32 %v4956, 0.0
    %v4969 = vmax.f32 %v4957, 0.0
    %v4970 = vmax.f32 %v4958, 0.0
    %v4971 = vmax.f32 %v4959, 0.0
    %v4972 = vmax.f32 %v4960, 0.0
    %v4973 = vmax.f32 %v4961, 0.0
    %v4974 = vmax.f32 %v4962, 0.0
    %v4975 = vmax.f32 %v4963, 0.0
    %v4976 = vmax.f32 %v4964, 0.0
    %v4977 = vmax.f32 %v4965, 0.0
    %v4990 = vrot.slane %v4966, 1
    %v4991 = vrot.slane %v4967, 1
    %v4992 = vsel %vm543, %v4990, %v4991
    %v4993 = vrot.slane %v4968, 1
    %v4994 = vsel %vm543, %v4991, %v4993
    %v4995 = vrot.slane %v4969, 1
    %v4996 = vsel %vm543, %v4993, %v4995
    %v4997 = vrot.slane %v4970, 1
    %v4998 = vsel %vm543, %v4995, %v4997
    %v4999 = vrot.slane %v4971, 1
    %v5000 = vsel %vm543, %v4997, %v4999
    %v5001 = vrot.slane %v4972, 1
    %v5002 = vsel %vm543, %v4999, %v5001
    %v5003 = vrot.slane %v4973, 1
    %v5004 = vsel %vm543, %v5001, %v5003
    %v5005 = vrot.slane %v4974, 1
    %v5006 = vsel %vm543, %v5003, %v5005
    %v5007 = vrot.slane %v4975, 1
    %v5008 = vsel %vm543, %v5005, %v5007
    %v5009 = vrot.slane %v4976, 1
    %v5010 = vsel %vm543, %v5007, %v5009
    %v5011 = vrot.slane %v4977, 1
    %v5012 = vsel %vm543, %v5009, %v5011
    %v5013 = vsel %vm543, %v5011, %v2535
    %v5026 = vmax.f32 %v4966, %v4992
    %v5027 = vmax.f32 %v4967, %v4994
    %v5028 = vmax.f32 %v4968, %v4996
    %v5029 = vmax.f32 %v4969, %v4998
    %v5030 = vmax.f32 %v4970, %v5000
    %v5031 = vmax.f32 %v4971, %v5002
    %v5032 = vmax.f32 %v4972, %v5004
    %v5033 = vmax.f32 %v4973, %v5006
    %v5034 = vmax.f32 %v4974, %v5008
    %v5035 = vmax.f32 %v4975, %v5010
    %v5036 = vmax.f32 %v4976, %v5012
    %v5037 = vmax.f32 %v4977, %v5013
    %v5050 = vrot.slane %v5026, 1
    %v5051 = vrot.slane %v5027, 1
    %v5052 = vsel %vm543, %v5050, %v5051
    %v5053 = vrot.slane %v5028, 1
    %v5054 = vsel %vm543, %v5051, %v5053
    %v5055 = vrot.slane %v5029, 1
    %v5056 = vsel %vm543, %v5053, %v5055
    %v5057 = vrot.slane %v5030, 1
    %v5058 = vsel %vm543, %v5055, %v5057
    %v5059 = vrot.slane %v5031, 1
    %v5060 = vsel %vm543, %v5057, %v5059
    %v5061 = vrot.slane %v5032, 1
    %v5062 = vsel %vm543, %v5059, %v5061
    %v5063 = vrot.slane %v5033, 1
    %v5064 = vsel %vm543, %v5061, %v5063
    %v5065 = vrot.slane %v5034, 1
    %v5066 = vsel %vm543, %v5063, %v5065
    %v5067 = vrot.slane %v5035, 1
    %v5068 = vsel %vm543, %v5065, %v5067
    %v5069 = vrot.slane %v5036, 1
    %v5070 = vsel %vm543, %v5067, %v5069
    %v5071 = vrot.slane %v5037, 1
    %v5072 = vsel %vm543, %v5069, %v5071
    %v5073 = vsel %vm543, %v5071, %v2535
    %v5086 = vrot.slane %v5026, 2
    %v5087 = vrot.slane %v5027, 2
    %v5088 = vsel %vm896, %v5086, %v5087
    %v5089 = vrot.slane %v5028, 2
    %v5090 = vsel %vm896, %v5087, %v5089
    %v5091 = vrot.slane %v5029, 2
    %v5092 = vsel %vm896, %v5089, %v5091
    %v5093 = vrot.slane %v5030, 2
    %v5094 = vsel %vm896, %v5091, %v5093
    %v5095 = vrot.slane %v5031, 2
    %v5096 = vsel %vm896, %v5093, %v5095
    %v5097 = vrot.slane %v5032, 2
    %v5098 = vsel %vm896, %v5095, %v5097
    %v5099 = vrot.slane %v5033, 2
    %v5100 = vsel %vm896, %v5097, %v5099
    %v5101 = vrot.slane %v5034, 2
    %v5102 = vsel %vm896, %v5099, %v5101
    %v5103 = vrot.slane %v5035, 2
    %v5104 = vsel %vm896, %v5101, %v5103
    %v5105 = vrot.slane %v5036, 2
    %v5106 = vsel %vm896, %v5103, %v5105
    %v5107 = vrot.slane %v5037, 2
    %v5108 = vsel %vm896, %v5105, %v5107
    %v5109 = vsel %vm896, %v5107, %v2680
    %v5122 = vpack.c.bf16 %v5027, %v5026
    %v5123 = vpack.c.bf16 %v5054, %v5052
    %v5124 = vpack.c.bf16 %v5090, %v5088
    %v5125 = vpack.c.bf16 %v5029, %v5028
    %v5126 = vpack.c.bf16 %v5058, %v5056
    %v5127 = vpack.c.bf16 %v5094, %v5092
    %v5128 = vpack.c.bf16 %v5031, %v5030
    %v5129 = vpack.c.bf16 %v5062, %v5060
    %v5130 = vpack.c.bf16 %v5098, %v5096
    %v5131 = vpack.c.bf16 %v5033, %v5032
    %v5132 = vpack.c.bf16 %v5066, %v5064
    %v5133 = vpack.c.bf16 %v5102, %v5100
    %v5134 = vpack.c.bf16 %v5035, %v5034
    %v5135 = vpack.c.bf16 %v5070, %v5068
    %v5136 = vpack.c.bf16 %v5106, %v5104
    %v5137 = vpack.c.bf16 %v5037, %v5036
    %v5138 = vpack.c.bf16 %v5073, %v5072
    %v5139 = vpack.c.bf16 %v5109, %v5108
    %v5140 = vld [vmem:[#allocation13] sm:$0xf]
    %v5141 = vld [vmem:[#allocation13 + $0x4] sm:$0xf]
    %v5142 = vld [vmem:[#allocation13 + $0x8] sm:$0xf]
    %v5143 = vld [vmem:[#allocation13 + $0xc] sm:$0xf]
    %v5144 = vld [vmem:[#allocation13 + $0x10] sm:$0xf]
    %v5145 = vld [vmem:[#allocation13 + $0x14] sm:$0xf]
    %v5146 = vld [vmem:[#allocation13 + $0x18] sm:$0xf]
    %v5147 = vld [vmem:[#allocation13 + $0x1c] sm:$0xf]
    %v5148 = vld [vmem:[#allocation13 + $0x20] sm:$0xf]
    %v5149 = vld [vmem:[#allocation13 + $0x24] sm:$0xf]
    %v5150 = vld [vmem:[#allocation13 + $0x28] sm:$0xf]
    %v5151 = vld [vmem:[#allocation13 + $0x2c] sm:$0xf]
    %v5152 = vld [vmem:[#allocation13 + $0x30] sm:$0xf]
    %v5153 = vld [vmem:[#allocation13 + $0x34] sm:$0xf]
    %v5154 = vld [vmem:[#allocation13 + $0x38] sm:$0xf]
    %v5155 = vld [vmem:[#allocation13 + $0x3c] sm:$0xf]
    %v5156 = vld [vmem:[#allocation13 + $0x40] sm:$0xf]
    %v5157 = vld [vmem:[#allocation13 + $0x44] sm:$0xf]
    %v5158 = vld [vmem:[#allocation13 + $0x48] sm:$0xf]
    %v5159 = vld [vmem:[#allocation13 + $0x4c] sm:$0xf]
    %v5160 = vld [vmem:[#allocation13 + $0x50] sm:$0xf]
    %v5161 = vld [vmem:[#allocation13 + $0x54] sm:$0xf]
    %v5162 = vld [vmem:[#allocation13 + $0x58] sm:$0xf]
    %v5163 = vld [vmem:[#allocation13 + $0x5c] sm:$0xf]
    %v5164 = vld [vmem:[#allocation13 + $0x60] sm:$0xf]
    %v5165 = vld [vmem:[#allocation13 + $0x64] sm:$0xf]
    %v5166 = vld [vmem:[#allocation13 + $0x68] sm:$0xf]
    %v5167 = vld [vmem:[#allocation13 + $0x6c] sm:$0xf]
    %v5168 = vld [vmem:[#allocation13 + $0x70] sm:$0xf]
    %v5169 = vld [vmem:[#allocation13 + $0x74] sm:$0xf]
    %v5170 = vld [vmem:[#allocation13 + $0x78] sm:$0xf]
    %v5171 = vld [vmem:[#allocation13 + $0x7c] sm:$0xf]
    %v5172 = vld [vmem:[#allocation13 + $0x80] sm:$0xf]
    %v5173 = vld [vmem:[#allocation13 + $0x84] sm:$0xf]
    %v5174 = vld [vmem:[#allocation13 + $0x88] sm:$0xf]
    %v5175 = vld [vmem:[#allocation13 + $0x8c] sm:$0xf]
    %v5176 = vld [vmem:[#allocation13 + $0x90] sm:$0xf]
    %v5177 = vld [vmem:[#allocation13 + $0x94] sm:$0xf]
    %v5178 = vld [vmem:[#allocation13 + $0x98] sm:$0xf]
    %v5179 = vld [vmem:[#allocation13 + $0x9c] sm:$0xf]
    %v5180 = vld [vmem:[#allocation13 + $0xa0] sm:$0xf]
    %v5181 = vld [vmem:[#allocation13 + $0xa4] sm:$0xf]
    %v5182 = vld [vmem:[#allocation13 + $0xa8] sm:$0xf]
    %v5183 = vld [vmem:[#allocation13 + $0xac] sm:$0xf]
    %v5184 = vld [vmem:[#allocation13 + $0xb0] sm:$0xf]
    %v5185 = vld [vmem:[#allocation13 + $0xb4] sm:$0xf]
    %v5186 = vld [vmem:[#allocation13 + $0xb8] sm:$0xf]
    %v5187 = vld [vmem:[#allocation13 + $0xbc] sm:$0xf]
    %v5188 = vld [vmem:[%s11] sm:$0x1]
    %v5190 = vlaneseq
    %v5191 = vshrl.u32 %v5190, 7
    %v5192 = vsub.s32 0, %v5191
    %v5193 = vrot.slane %v5188, %v5192
    %v5243 = vunpack.c.l.b16 %v5140
    %v5244 = vunpack.c.l.b16 %v5141
    %v5245 = vunpack.c.l.b16 %v5142
    %v5246 = vunpack.c.l.b16 %v5143
    %v5247 = vunpack.c.l.b16 %v5144
    %v5248 = vunpack.c.l.b16 %v5145
    %v5249 = vunpack.c.l.b16 %v5146
    %v5250 = vunpack.c.l.b16 %v5147
    %v5251 = vunpack.c.l.b16 %v5148
    %v5252 = vunpack.c.l.b16 %v5149
    %v5253 = vunpack.c.l.b16 %v5150
    %v5254 = vunpack.c.l.b16 %v5151
    %v5255 = vunpack.c.l.b16 %v5152
    %v5256 = vunpack.c.l.b16 %v5153
    %v5257 = vunpack.c.l.b16 %v5154
    %v5258 = vunpack.c.l.b16 %v5155
    %v5259 = vunpack.c.l.b16 %v5156
    %v5260 = vunpack.c.l.b16 %v5157
    %v5261 = vunpack.c.l.b16 %v5158
    %v5262 = vunpack.c.l.b16 %v5159
    %v5263 = vunpack.c.l.b16 %v5160
    %v5264 = vunpack.c.l.b16 %v5161
    %v5265 = vunpack.c.l.b16 %v5162
    %v5266 = vunpack.c.l.b16 %v5163
    %v5267 = vunpack.c.l.b16 %v5164
    %v5268 = vunpack.c.l.b16 %v5165
    %v5269 = vunpack.c.l.b16 %v5166
    %v5270 = vunpack.c.l.b16 %v5167
    %v5271 = vunpack.c.l.b16 %v5168
    %v5272 = vunpack.c.l.b16 %v5169
    %v5273 = vunpack.c.l.b16 %v5170
    %v5274 = vunpack.c.l.b16 %v5171
    %v5275 = vunpack.c.l.b16 %v5172
    %v5276 = vunpack.c.l.b16 %v5173
    %v5277 = vunpack.c.l.b16 %v5174
    %v5278 = vunpack.c.l.b16 %v5175
    %v5279 = vunpack.c.l.b16 %v5176
    %v5280 = vunpack.c.l.b16 %v5177
    %v5281 = vunpack.c.l.b16 %v5178
    %v5282 = vunpack.c.l.b16 %v5179
    %v5283 = vunpack.c.l.b16 %v5180
    %v5284 = vunpack.c.l.b16 %v5181
    %v5285 = vunpack.c.l.b16 %v5182
    %v5286 = vunpack.c.l.b16 %v5183
    %v5287 = vunpack.c.l.b16 %v5184
    %v5288 = vunpack.c.l.b16 %v5185
    %v5289 = vunpack.c.l.b16 %v5186
    %v5290 = vunpack.c.l.b16 %v5187
    %v5291 = vpack.c.b16 %v5244, %v5243
    %v5292 = vpack.c.b16 %v5246, %v5245
    %v5293 = vpack.c.b16 %v5248, %v5247
    %v5294 = vpack.c.b16 %v5250, %v5249
    %v5295 = vpack.c.b16 %v5252, %v5251
    %v5296 = vpack.c.b16 %v5254, %v5253
    %v5297 = vpack.c.b16 %v5256, %v5255
    %v5298 = vpack.c.b16 %v5258, %v5257
    %v5299 = vpack.c.b16 %v5260, %v5259
    %v5300 = vpack.c.b16 %v5262, %v5261
    %v5301 = vpack.c.b16 %v5264, %v5263
    %v5302 = vpack.c.b16 %v5266, %v5265
    %v5303 = vpack.c.b16 %v5268, %v5267
    %v5304 = vpack.c.b16 %v5270, %v5269
    %v5305 = vpack.c.b16 %v5272, %v5271
    %v5306 = vpack.c.b16 %v5274, %v5273
    %v5307 = vpack.c.b16 %v5276, %v5275
    %v5308 = vpack.c.b16 %v5278, %v5277
    %v5309 = vpack.c.b16 %v5280, %v5279
    %v5310 = vpack.c.b16 %v5282, %v5281
    %v5311 = vpack.c.b16 %v5284, %v5283
    %v5312 = vpack.c.b16 %v5286, %v5285
    %v5313 = vpack.c.b16 %v5288, %v5287
    %v5314 = vpack.c.b16 %v5290, %v5289
    %5339 = vmatprep.subr.bf16.mxu0 0
    %5340 = vmatpush1.bf16.msra.mxu0 %v5291
    %5341 = vmatprep.subr.bf16.mxu0 0
    %5342 = vmatpush1.bf16.msra.mxu0 %v5292
    %5343 = vmatprep.subr.bf16.mxu0 0
    %5344 = vmatpush1.bf16.msra.mxu0 %v5293
    %5345 = vmatprep.subr.bf16.mxu0 0
    %5346 = vmatpush1.bf16.msra.mxu0 %v5294
    %5347 = vmatprep.subr.bf16.mxu0 0
    %5348 = vmatpush1.bf16.msra.mxu0 %v5295
    %5349 = vmatprep.subr.bf16.mxu0 0
    %5350 = vmatpush1.bf16.msra.mxu0 %v5296
    %5351 = vmatprep.subr.bf16.mxu0 0
    %5352 = vmatpush1.bf16.msra.mxu0 %v5297
    %5353 = vmatprep.subr.bf16.mxu0 0
    %5354 = vmatpush1.bf16.msra.mxu0 %v5298
    %5355 = vmatprep.subr.bf16.mxu0 0
    %5356 = vmatpush1.bf16.msra.mxu0 %v5299
    %5357 = vmatprep.subr.bf16.mxu0 0
    %5358 = vmatpush1.bf16.msra.mxu0 %v5300
    %5359 = vmatprep.subr.bf16.mxu0 0
    %5360 = vmatpush1.bf16.msra.mxu0 %v5301
    %5361 = vmatprep.subr.bf16.mxu0 0
    %5362 = vmatpush1.bf16.msra.mxu0 %v5302
    %5363 = vmatprep.subr.bf16.mxu0 0
    %5364 = vmatpush1.bf16.msra.mxu0 %v5303
    %5365 = vmatprep.subr.bf16.mxu0 0
    %5366 = vmatpush1.bf16.msra.mxu0 %v5304
    %5367 = vmatprep.subr.bf16.mxu0 0
    %5368 = vmatpush1.bf16.msra.mxu0 %v5305
    %5369 = vmatprep.subr.bf16.mxu0 0
    %5370 = vmatpush1.bf16.msra.mxu0 %v5306
    %5371 = vmatprep.mubr.bf16.mxu0 %v5123
    %5372 = vmatmul.mubr.bf16.gmra.mrb[0].mxu0 %v5122
    %v5373 = vpop.f32.mrb[0].mxu0
    %v5374 = vadd.f32 %v5193, %v5373
    %v5375 = vpop.f32.mrb[0].mxu0
    %v5376 = vpop.f32.mrb[0].mxu0
    %v5377 = vadd.f32 %v5193, %v5376
    %v5378 = vpop.f32.mrb[0].mxu0
    %5379 = vmatprep.mubr.bf16.mxu0 %v5126
    %5380 = vmatmul.mubr.bf16.gmra.mrb[0].mxu0 %v5125
    %v5381 = vpop.f32.mrb[0].mxu0
    %v5382 = vadd.f32 %v5193, %v5381
    %v5383 = vpop.f32.mrb[0].mxu0
    %v5384 = vpop.f32.mrb[0].mxu0
    %v5385 = vadd.f32 %v5193, %v5384
    %v5386 = vpop.f32.mrb[0].mxu0
    %5387 = vmatprep.mubr.bf16.mxu0 %v5129
    %5388 = vmatmul.mubr.bf16.gmra.mrb[0].mxu0 %v5128
    %v5389 = vpop.f32.mrb[0].mxu0
    %v5390 = vadd.f32 %v5193, %v5389
    %v5391 = vpop.f32.mrb[0].mxu0
    %v5392 = vpop.f32.mrb[0].mxu0
    %v5393 = vadd.f32 %v5193, %v5392
    %v5394 = vpop.f32.mrb[0].mxu0
    %5395 = vmatprep.mubr.bf16.mxu0 %v5132
    %5396 = vmatmul.mubr.bf16.gmra.mrb[0].mxu0 %v5131
    %v5397 = vpop.f32.mrb[0].mxu0
    %v5398 = vadd.f32 %v5193, %v5397
    %v5399 = vpop.f32.mrb[0].mxu0
    %v5400 = vpop.f32.mrb[0].mxu0
    %v5401 = vadd.f32 %v5193, %v5400
    %v5402 = vpop.f32.mrb[0].mxu0
    %5403 = vmatprep.mubr.bf16.mxu0 %v5135
    %5404 = vmatmul.mubr.bf16.gmra.mrb[0].mxu0 %v5134
    %v5405 = vpop.f32.mrb[0].mxu0
    %v5406 = vadd.f32 %v5193, %v5405
    %v5407 = vpop.f32.mrb[0].mxu0
    %v5408 = vpop.f32.mrb[0].mxu0
    %v5409 = vadd.f32 %v5193, %v5408
    %v5410 = vpop.f32.mrb[0].mxu0
    %5411 = vmatprep.mubr.bf16.mxu0 %v5138
    %5412 = vmatmul.mubr.bf16.gmra.mrb[0].mxu0 %v5137
    %v5413 = vpop.f32.mrb[0].mxu0
    %v5414 = vadd.f32 %v5193, %v5413
    %v5415 = vpop.f32.mrb[0].mxu0
    %v5416 = vpop.f32.mrb[0].mxu0
    %v5417 = vadd.f32 %v5193, %v5416
    %v5418 = vpop.f32.mrb[0].mxu0
    %5419 = vdwg.mxu0
    %5420 = vmatprep.subr.bf16.mxu0 0
    %5421 = vmatpush1.bf16.msra.mxu0 %v5307
    %5422 = vmatprep.subr.bf16.mxu0 0
    %5423 = vmatpush1.bf16.msra.mxu0 %v5308
    %5424 = vmatprep.subr.bf16.mxu0 0
    %5425 = vmatpush1.bf16.msra.mxu0 %v5309
    %5426 = vmatprep.subr.bf16.mxu0 0
    %5427 = vmatpush1.bf16.msra.mxu0 %v5310
    %5428 = vmatprep.subr.bf16.mxu0 0
    %5429 = vmatpush1.bf16.msra.mxu0 %v5311
    %5430 = vmatprep.subr.bf16.mxu0 0
    %5431 = vmatpush1.bf16.msra.mxu0 %v5312
    %5432 = vmatprep.subr.bf16.mxu0 0
    %5433 = vmatpush1.bf16.msra.mxu0 %v5313
    %5434 = vmatprep.subr.bf16.mxu0 0
    %5435 = vmatpush1.bf16.msra.mxu0 %v5314
    %5436 = vmatprep.subr.bf16.mxu0 0
    %5437 = vmatpush1.bf16.msra.mxu0 0
    %5438 = vmatprep.subr.bf16.mxu0 0
    %5439 = vmatpush1.bf16.msra.mxu0 0
    %5440 = vmatprep.subr.bf16.mxu0 0
    %5441 = vmatpush1.bf16.msra.mxu0 0
    %5442 = vmatprep.subr.bf16.mxu0 0
    %5443 = vmatpush1.bf16.msra.mxu0 0
    %5444 = vmatprep.subr.bf16.mxu0 0
    %5445 = vmatpush1.bf16.msra.mxu0 0
    %5446 = vmatprep.subr.bf16.mxu0 0
    %5447 = vmatpush1.bf16.msra.mxu0 0
    %5448 = vmatprep.subr.bf16.mxu0 0
    %5449 = vmatpush1.bf16.msra.mxu0 0
    %5450 = vmatprep.subr.bf16.mxu0 0
    %5451 = vmatpush1.bf16.msra.mxu0 0
    %5452 = vmatprep.mubr.bf16.mxu0 0
    %5453 = vmatmul.mubr.bf16.gmra.mrb[0].mxu0 %v5124
    %v5454 = vpop.f32.mrb[0].mxu0
    %v5455 = vadd.f32 %v5374, %v5454
    %v5456 = vpop.f32.mrb[0].mxu0
    %v5457 = vpop.f32.mrb[0].mxu0
    %v5458 = vadd.f32 %v5377, %v5457
    %v5459 = vpop.f32.mrb[0].mxu0
    %5460 = vmatprep.mubr.bf16.mxu0 0
    %5461 = vmatmul.mubr.bf16.gmra.mrb[0].mxu0 %v5127
    %v5462 = vpop.f32.mrb[0].mxu0
    %v5463 = vadd.f32 %v5382, %v5462
    %v5464 = vpop.f32.mrb[0].mxu0
    %v5465 = vpop.f32.mrb[0].mxu0
    %v5466 = vadd.f32 %v5385, %v5465
    %v5467 = vpop.f32.mrb[0].mxu0
    %5468 = vmatprep.mubr.bf16.mxu0 0
    %5469 = vmatmul.mubr.bf16.gmra.mrb[0].mxu0 %v5130
    %v5470 = vpop.f32.mrb[0].mxu0
    %v5471 = vadd.f32 %v5390, %v5470
    %v5472 = vpop.f32.mrb[0].mxu0
    %v5473 = vpop.f32.mrb[0].mxu0
    %v5474 = vadd.f32 %v5393, %v5473
    %v5475 = vpop.f32.mrb[0].mxu0
    %5476 = vmatprep.mubr.bf16.mxu0 0
    %5477 = vmatmul.mubr.bf16.gmra.mrb[0].mxu0 %v5133
    %v5478 = vpop.f32.mrb[0].mxu0
    %v5479 = vadd.f32 %v5398, %v5478
    %v5480 = vpop.f32.mrb[0].mxu0
    %v5481 = vpop.f32.mrb[0].mxu0
    %v5482 = vadd.f32 %v5401, %v5481
    %v5483 = vpop.f32.mrb[0].mxu0
    %5484 = vmatprep.mubr.bf16.mxu0 0
    %5485 = vmatmul.mubr.bf16.gmra.mrb[0].mxu0 %v5136
    %v5486 = vpop.f32.mrb[0].mxu0
    %v5487 = vadd.f32 %v5406, %v5486
    %v5488 = vpop.f32.mrb[0].mxu0
    %v5489 = vpop.f32.mrb[0].mxu0
    %v5490 = vadd.f32 %v5409, %v5489
    %v5491 = vpop.f32.mrb[0].mxu0
    %5492 = vmatprep.mubr.bf16.mxu0 0
    %5493 = vmatmul.mubr.bf16.gmra.mrb[0].mxu0 %v5139
    %v5494 = vpop.f32.mrb[0].mxu0
    %v5495 = vadd.f32 %v5414, %v5494
    %v5496 = vpop.f32.mrb[0].mxu0
    %v5497 = vpop.f32.mrb[0].mxu0
    %v5498 = vadd.f32 %v5417, %v5497
    %v5499 = vpop.f32.mrb[0].mxu0
    %5500 = vdwg.mxu0
    %vm5501 = vcmp.lt.s32.totalorder %v4067, 40
    %vm5502 = vcmp.lt.s32.totalorder %v4068, 40
    %vm5503 = vcmp.lt.s32.totalorder %v4069, 40
    %vm5504 = vcmp.lt.s32.totalorder %v4070, 40
    %vm5505 = vcmp.lt.s32.totalorder %v4071, 40
    %vm5506 = vcmp.lt.s32.totalorder %v4072, 40
    %vm5507 = vcmp.lt.s32.totalorder %v4073, 40
    %vm5508 = vcmp.lt.s32.totalorder %v4074, 40
    %vm5509 = vcmp.lt.s32.totalorder %v4075, 40
    %vm5510 = vcmp.lt.s32.totalorder %v4076, 40
    %vm5511 = vcmp.lt.s32.totalorder %v4077, 40
    %vm5512 = vcmp.lt.s32.totalorder %v4078, 40
    %vm5513 = vcmp.lt.s32.totalorder %v4067, 88
    %vm5514 = vcmp.lt.s32.totalorder %v4068, 88
    %vm5515 = vcmp.lt.s32.totalorder %v4069, 88
    %vm5516 = vcmp.lt.s32.totalorder %v4070, 88
    %vm5517 = vcmp.lt.s32.totalorder %v4071, 88
    %vm5518 = vcmp.lt.s32.totalorder %v4072, 88
    %vm5519 = vcmp.lt.s32.totalorder %v4073, 88
    %vm5520 = vcmp.lt.s32.totalorder %v4074, 88
    %vm5521 = vcmp.lt.s32.totalorder %v4075, 88
    %vm5522 = vcmp.lt.s32.totalorder %v4076, 88
    %vm5523 = vcmp.lt.s32.totalorder %v4077, 88
    %vm5524 = vcmp.lt.s32.totalorder %v4078, 88
    %vm5525 = vmand %vm4091, %vm5513
    %vm5526 = vmand %vm4092, %vm5514
    %vm5527 = vmand %vm4093, %vm5515
    %vm5528 = vmand %vm4094, %vm5516
    %vm5529 = vmand %vm4095, %vm5517
    %vm5530 = vmand %vm4096, %vm5518
    %vm5531 = vmand %vm4097, %vm5519
    %vm5532 = vmand %vm4098, %vm5520
    %vm5533 = vmand %vm4099, %vm5521
    %vm5534 = vmand %vm4100, %vm5522
    %vm5535 = vmand %vm4101, %vm5523
    %vm5536 = vmand %vm4102, %vm5524
    %vm5537 = vmor %vm5501, %vm5525
    %vm5538 = vmor %vm5502, %vm5526
    %vm5539 = vmor %vm5503, %vm5527
    %vm5540 = vmor %vm5504, %vm5528
    %vm5541 = vmor %vm5505, %vm5529
    %vm5542 = vmor %vm5506, %vm5530
    %vm5543 = vmor %vm5507, %vm5531
    %vm5544 = vmor %vm5508, %vm5532
    %vm5545 = vmor %vm5509, %vm5533
    %vm5546 = vmor %vm5510, %vm5534
    %vm5547 = vmor %vm5511, %vm5535
    %vm5548 = vmor %vm5512, %vm5536
    %v5549 = vsel %vm5537, 1, 0
    %v5550 = vsel %vm5538, 1, 0
    %v5551 = vsel %vm5539, 1, 0
    %v5552 = vsel %vm5540, 1, 0
    %v5553 = vsel %vm5541, 1, 0
    %v5554 = vsel %vm5542, 1, 0
    %v5555 = vsel %vm5543, 1, 0
    %v5556 = vsel %vm5544, 1, 0
    %v5557 = vsel %vm5545, 1, 0
    %v5558 = vsel %vm5546, 1, 0
    %v5559 = vsel %vm5547, 1, 0
    %v5560 = vsel %vm5548, 1, 0
    %v5561 = vcvt.s32.f32 %v5549
    %v5562 = vcvt.s32.f32 %v5550
    %v5563 = vcvt.s32.f32 %v5551
    %v5564 = vcvt.s32.f32 %v5552
    %v5565 = vcvt.s32.f32 %v5553
    %v5566 = vcvt.s32.f32 %v5554
    %v5567 = vcvt.s32.f32 %v5555
    %v5568 = vcvt.s32.f32 %v5556
    %v5569 = vcvt.s32.f32 %v5557
    %v5570 = vcvt.s32.f32 %v5558
    %v5571 = vcvt.s32.f32 %v5559
    %v5572 = vcvt.s32.f32 %v5560
    %v5573 = vmul.f32 %v5455, %v5561
    %v5574 = vmul.f32 %v5458, %v5562
    %v5575 = vmul.f32 %v5463, %v5563
    %v5576 = vmul.f32 %v5466, %v5564
    %v5577 = vmul.f32 %v5471, %v5565
    %v5578 = vmul.f32 %v5474, %v5566
    %v5579 = vmul.f32 %v5479, %v5567
    %v5580 = vmul.f32 %v5482, %v5568
    %v5581 = vmul.f32 %v5487, %v5569
    %v5582 = vmul.f32 %v5490, %v5570
    %v5583 = vmul.f32 %v5495, %v5571
    %v5584 = vmul.f32 %v5498, %v5572
    %v5585 = vadd.f32 %v5573, %v5574
    %v5586 = vadd.f32 %v5585, %v5575
    %v5587 = vadd.f32 %v5586, %v5576
    %v5588 = vadd.f32 %v5587, %v5577
    %v5589 = vadd.f32 %v5588, %v5578
    %v5590 = vadd.f32 %v5589, %v5579
    %v5591 = vadd.f32 %v5590, %v5580
    %v5592 = vadd.f32 %v5591, %v5581
    %v5593 = vadd.f32 %v5592, %v5582
    %v5594 = vadd.f32 %v5593, %v5583
    %v5595 = vadd.f32 %v5594, %v5584
    %v5596 = vrot.slane %v5595, 4
    %v5597 = vadd.f32 %v5595, %v5596
    %v5598 = vrot.slane %v5597, 2
    %v5599 = vadd.f32 %v5597, %v5598
    %v5600 = vrot.slane %v5599, 1
    %v5601 = vadd.f32 %v5599, %v5600
    %v5602 = vmul.f32 %v5601, 0.0125
    %v5603 = vsub.f32 %v5455, %v5602
    %v5604 = vsub.f32 %v5458, %v5602
    %v5605 = vsub.f32 %v5463, %v5602
    %v5606 = vsub.f32 %v5466, %v5602
    %v5607 = vsub.f32 %v5471, %v5602
    %v5608 = vsub.f32 %v5474, %v5602
    %v5609 = vsub.f32 %v5479, %v5602
    %v5610 = vsub.f32 %v5482, %v5602
    %v5611 = vsub.f32 %v5487, %v5602
    %v5612 = vsub.f32 %v5490, %v5602
    %v5613 = vsub.f32 %v5495, %v5602
    %v5614 = vsub.f32 %v5498, %v5602
    %v5615 = vmul.f32 %v5603, %v5603
    %v5616 = vmul.f32 %v5604, %v5604
    %v5617 = vmul.f32 %v5605, %v5605
    %v5618 = vmul.f32 %v5606, %v5606
    %v5619 = vmul.f32 %v5607, %v5607
    %v5620 = vmul.f32 %v5608, %v5608
    %v5621 = vmul.f32 %v5609, %v5609
    %v5622 = vmul.f32 %v5610, %v5610
    %v5623 = vmul.f32 %v5611, %v5611
    %v5624 = vmul.f32 %v5612, %v5612
    %v5625 = vmul.f32 %v5613, %v5613
    %v5626 = vmul.f32 %v5614, %v5614
    %v5627 = vmul.f32 %v5615, %v5561
    %v5628 = vmul.f32 %v5616, %v5562
    %v5629 = vmul.f32 %v5617, %v5563
    %v5630 = vmul.f32 %v5618, %v5564
    %v5631 = vmul.f32 %v5619, %v5565
    %v5632 = vmul.f32 %v5620, %v5566
    %v5633 = vmul.f32 %v5621, %v5567
    %v5634 = vmul.f32 %v5622, %v5568
    %v5635 = vmul.f32 %v5623, %v5569
    %v5636 = vmul.f32 %v5624, %v5570
    %v5637 = vmul.f32 %v5625, %v5571
    %v5638 = vmul.f32 %v5626, %v5572
    %v5639 = vadd.f32 %v5627, %v5628
    %v5640 = vadd.f32 %v5639, %v5629
    %v5641 = vadd.f32 %v5640, %v5630
    %v5642 = vadd.f32 %v5641, %v5631
    %v5643 = vadd.f32 %v5642, %v5632
    %v5644 = vadd.f32 %v5643, %v5633
    %v5645 = vadd.f32 %v5644, %v5634
    %v5646 = vadd.f32 %v5645, %v5635
    %v5647 = vadd.f32 %v5646, %v5636
    %v5648 = vadd.f32 %v5647, %v5637
    %v5649 = vadd.f32 %v5648, %v5638
    %v5650 = vrot.slane %v5649, 4
    %v5651 = vadd.f32 %v5649, %v5650
    %v5652 = vrot.slane %v5651, 2
    %v5653 = vadd.f32 %v5651, %v5652
    %v5654 = vrot.slane %v5653, 1
    %v5655 = vadd.f32 %v5653, %v5654
    %v5656 = vmul.f32 %v5655, 0.0125
    %v5657 = vadd.f32 %v5656, 1e-05
    %v5658 = vrsqrt.pop %v5657
    %v5659 = vmul.f32 %v5603, %v5658
    %v5660 = vmul.f32 %v5604, %v5658
    %v5661 = vmul.f32 %v5605, %v5658
    %v5662 = vmul.f32 %v5606, %v5658
    %v5663 = vmul.f32 %v5607, %v5658
    %v5664 = vmul.f32 %v5608, %v5658
    %v5665 = vmul.f32 %v5609, %v5658
    %v5666 = vmul.f32 %v5610, %v5658
    %v5667 = vmul.f32 %v5611, %v5658
    %v5668 = vmul.f32 %v5612, %v5658
    %v5669 = vmul.f32 %v5613, %v5658
    %v5670 = vmul.f32 %v5614, %v5658
    %v5671 = vmax.f32 %v5659, 0.0
    %v5672 = vmax.f32 %v5660, 0.0
    %v5673 = vmax.f32 %v5661, 0.0
    %v5674 = vmax.f32 %v5662, 0.0
    %v5675 = vmax.f32 %v5663, 0.0
    %v5676 = vmax.f32 %v5664, 0.0
    %v5677 = vmax.f32 %v5665, 0.0
    %v5678 = vmax.f32 %v5666, 0.0
    %v5679 = vmax.f32 %v5667, 0.0
    %v5680 = vmax.f32 %v5668, 0.0
    %v5681 = vmax.f32 %v5669, 0.0
    %v5682 = vmax.f32 %v5670, 0.0
    %v5695 = vrot.slane %v5671, 1
    %v5696 = vrot.slane %v5672, 1
    %v5697 = vsel %vm543, %v5695, %v5696
    %v5698 = vrot.slane %v5673, 1
    %v5699 = vsel %vm543, %v5696, %v5698
    %v5700 = vrot.slane %v5674, 1
    %v5701 = vsel %vm543, %v5698, %v5700
    %v5702 = vrot.slane %v5675, 1
    %v5703 = vsel %vm543, %v5700, %v5702
    %v5704 = vrot.slane %v5676, 1
    %v5705 = vsel %vm543, %v5702, %v5704
    %v5706 = vrot.slane %v5677, 1
    %v5707 = vsel %vm543, %v5704, %v5706
    %v5708 = vrot.slane %v5678, 1
    %v5709 = vsel %vm543, %v5706, %v5708
    %v5710 = vrot.slane %v5679, 1
    %v5711 = vsel %vm543, %v5708, %v5710
    %v5712 = vrot.slane %v5680, 1
    %v5713 = vsel %vm543, %v5710, %v5712
    %v5714 = vrot.slane %v5681, 1
    %v5715 = vsel %vm543, %v5712, %v5714
    %v5716 = vrot.slane %v5682, 1
    %v5717 = vsel %vm543, %v5714, %v5716
    %v5718 = vsel %vm543, %v5716, %v2535
    %v5731 = vmax.f32 %v5671, %v5697
    %v5732 = vmax.f32 %v5672, %v5699
    %v5733 = vmax.f32 %v5673, %v5701
    %v5734 = vmax.f32 %v5674, %v5703
    %v5735 = vmax.f32 %v5675, %v5705
    %v5736 = vmax.f32 %v5676, %v5707
    %v5737 = vmax.f32 %v5677, %v5709
    %v5738 = vmax.f32 %v5678, %v5711
    %v5739 = vmax.f32 %v5679, %v5713
    %v5740 = vmax.f32 %v5680, %v5715
    %v5741 = vmax.f32 %v5681, %v5717
    %v5742 = vmax.f32 %v5682, %v5718
    %v5755 = vrot.slane %v5731, 1
    %v5756 = vrot.slane %v5732, 1
    %v5757 = vsel %vm543, %v5755, %v5756
    %v5758 = vrot.slane %v5733, 1
    %v5759 = vsel %vm543, %v5756, %v5758
    %v5760 = vrot.slane %v5734, 1
    %v5761 = vsel %vm543, %v5758, %v5760
    %v5762 = vrot.slane %v5735, 1
    %v5763 = vsel %vm543, %v5760, %v5762
    %v5764 = vrot.slane %v5736, 1
    %v5765 = vsel %vm543, %v5762, %v5764
    %v5766 = vrot.slane %v5737, 1
    %v5767 = vsel %vm543, %v5764, %v5766
    %v5768 = vrot.slane %v5738, 1
    %v5769 = vsel %vm543, %v5766, %v5768
    %v5770 = vrot.slane %v5739, 1
    %v5771 = vsel %vm543, %v5768, %v5770
    %v5772 = vrot.slane %v5740, 1
    %v5773 = vsel %vm543, %v5770, %v5772
    %v5774 = vrot.slane %v5741, 1
    %v5775 = vsel %vm543, %v5772, %v5774
    %v5776 = vrot.slane %v5742, 1
    %v5777 = vsel %vm543, %v5774, %v5776
    %v5778 = vsel %vm543, %v5776, %v2535
    %v5791 = vrot.slane %v5731, 2
    %v5792 = vrot.slane %v5732, 2
    %v5793 = vsel %vm896, %v5791, %v5792
    %v5794 = vrot.slane %v5733, 2
    %v5795 = vsel %vm896, %v5792, %v5794
    %v5796 = vrot.slane %v5734, 2
    %v5797 = vsel %vm896, %v5794, %v5796
    %v5798 = vrot.slane %v5735, 2
    %v5799 = vsel %vm896, %v5796, %v5798
    %v5800 = vrot.slane %v5736, 2
    %v5801 = vsel %vm896, %v5798, %v5800
    %v5802 = vrot.slane %v5737, 2
    %v5803 = vsel %vm896, %v5800, %v5802
    %v5804 = vrot.slane %v5738, 2
    %v5805 = vsel %vm896, %v5802, %v5804
    %v5806 = vrot.slane %v5739, 2
    %v5807 = vsel %vm896, %v5804, %v5806
    %v5808 = vrot.slane %v5740, 2
    %v5809 = vsel %vm896, %v5806, %v5808
    %v5810 = vrot.slane %v5741, 2
    %v5811 = vsel %vm896, %v5808, %v5810
    %v5812 = vrot.slane %v5742, 2
    %v5813 = vsel %vm896, %v5810, %v5812
    %v5814 = vsel %vm896, %v5812, %v2680
    %vm5827 = vcmask 1044480
    %v5828 = vrot.slane %v5731, 3
    %v5829 = vrot.slane %v5732, 3
    %v5830 = vsel %vm5827, %v5828, %v5829
    %v5831 = vrot.slane %v5733, 3
    %v5832 = vsel %vm5827, %v5829, %v5831
    %v5833 = vrot.slane %v5734, 3
    %v5834 = vsel %vm5827, %v5831, %v5833
    %v5835 = vrot.slane %v5735, 3
    %v5836 = vsel %vm5827, %v5833, %v5835
    %v5837 = vrot.slane %v5736, 3
    %v5838 = vsel %vm5827, %v5835, %v5837
    %v5839 = vrot.slane %v5737, 3
    %v5840 = vsel %vm5827, %v5837, %v5839
    %v5841 = vrot.slane %v5738, 3
    %v5842 = vsel %vm5827, %v5839, %v5841
    %v5843 = vrot.slane %v5739, 3
    %v5844 = vsel %vm5827, %v5841, %v5843
    %v5845 = vrot.slane %v5740, 3
    %v5846 = vsel %vm5827, %v5843, %v5845
    %v5847 = vrot.slane %v5741, 3
    %v5848 = vsel %vm5827, %v5845, %v5847
    %v5849 = vrot.slane %v5742, 3
    %v5850 = vsel %vm5827, %v5847, %v5849
    %v5851 = vrot.slane 0.0, 3
    %v5852 = vsel %vm5827, %v5849, %v5851
    %vm5865 = vcmask 1043456
    %v5866 = vrot.slane %v5731, 4
    %v5867 = vrot.slane %v5732, 4
    %v5868 = vsel %vm5865, %v5866, %v5867
    %v5869 = vrot.slane %v5733, 4
    %v5870 = vsel %vm5865, %v5867, %v5869
    %v5871 = vrot.slane %v5734, 4
    %v5872 = vsel %vm5865, %v5869, %v5871
    %v5873 = vrot.slane %v5735, 4
    %v5874 = vsel %vm5865, %v5871, %v5873
    %v5875 = vrot.slane %v5736, 4
    %v5876 = vsel %vm5865, %v5873, %v5875
    %v5877 = vrot.slane %v5737, 4
    %v5878 = vsel %vm5865, %v5875, %v5877
    %v5879 = vrot.slane %v5738, 4
    %v5880 = vsel %vm5865, %v5877, %v5879
    %v5881 = vrot.slane %v5739, 4
    %v5882 = vsel %vm5865, %v5879, %v5881
    %v5883 = vrot.slane %v5740, 4
    %v5884 = vsel %vm5865, %v5881, %v5883
    %v5885 = vrot.slane %v5741, 4
    %v5886 = vsel %vm5865, %v5883, %v5885
    %v5887 = vrot.slane %v5742, 4
    %v5888 = vsel %vm5865, %v5885, %v5887
    %v5889 = vrot.slane 0.0, 4
    %v5890 = vsel %vm5865, %v5887, %v5889
    %v5903 = vpack.c.bf16 %v5732, %v5731
    %v5904 = vpack.c.bf16 %v5759, %v5757
    %v5905 = vpack.c.bf16 %v5795, %v5793
    %v5906 = vpack.c.bf16 %v5832, %v5830
    %v5907 = vpack.c.bf16 %v5870, %v5868
    %v5908 = vpack.c.bf16 %v5734, %v5733
    %v5909 = vpack.c.bf16 %v5763, %v5761
    %v5910 = vpack.c.bf16 %v5799, %v5797
    %v5911 = vpack.c.bf16 %v5836, %v5834
    %v5912 = vpack.c.bf16 %v5874, %v5872
    %v5913 = vpack.c.bf16 %v5736, %v5735
    %v5914 = vpack.c.bf16 %v5767, %v5765
    %v5915 = vpack.c.bf16 %v5803, %v5801
    %v5916 = vpack.c.bf16 %v5840, %v5838
    %v5917 = vpack.c.bf16 %v5878, %v5876
    %v5918 = vpack.c.bf16 %v5738, %v5737
    %v5919 = vpack.c.bf16 %v5771, %v5769
    %v5920 = vpack.c.bf16 %v5807, %v5805
    %v5921 = vpack.c.bf16 %v5844, %v5842
    %v5922 = vpack.c.bf16 %v5882, %v5880
    %v5923 = vpack.c.bf16 %v5740, %v5739
    %v5924 = vpack.c.bf16 %v5775, %v5773
    %v5925 = vpack.c.bf16 %v5811, %v5809
    %v5926 = vpack.c.bf16 %v5848, %v5846
    %v5927 = vpack.c.bf16 %v5886, %v5884
    %v5928 = vpack.c.bf16 %v5742, %v5741
    %v5929 = vpack.c.bf16 %v5778, %v5777
    %v5930 = vpack.c.bf16 %v5814, %v5813
    %v5931 = vpack.c.bf16 %v5852, %v5850
    %v5932 = vpack.c.bf16 %v5890, %v5888
    %v5933 = vld [vmem:[%s12] sm:$0xf]
    %v5934 = vld [vmem:[%s12 + $0x4] sm:$0xf]
    %v5935 = vld [vmem:[%s12 + $0x8] sm:$0xf]
    %v5936 = vld [vmem:[%s12 + $0xc] sm:$0xf]
    %v5937 = vld [vmem:[%s12 + $0x10] sm:$0xf]
    %v5938 = vld [vmem:[%s12 + $0x14] sm:$0xf]
    %v5939 = vld [vmem:[%s12 + $0x18] sm:$0xf]
    %v5940 = vld [vmem:[%s12 + $0x1c] sm:$0xf]
    %v5941 = vld [vmem:[%s12 + $0x20] sm:$0xf]
    %v5942 = vld [vmem:[%s12 + $0x24] sm:$0xf]
    %v5943 = vld [vmem:[%s12 + $0x28] sm:$0xf]
    %v5944 = vld [vmem:[%s12 + $0x2c] sm:$0xf]
    %v5945 = vld [vmem:[%s12 + $0x30] sm:$0xf]
    %v5946 = vld [vmem:[%s12 + $0x34] sm:$0xf]
    %v5947 = vld [vmem:[%s12 + $0x38] sm:$0xf]
    %v5948 = vld [vmem:[%s12 + $0x3c] sm:$0xf]
    %v5949 = vld [vmem:[%s12 + $0x40] sm:$0xf]
    %v5950 = vld [vmem:[%s12 + $0x44] sm:$0xf]
    %v5951 = vld [vmem:[%s12 + $0x48] sm:$0xf]
    %v5952 = vld [vmem:[%s12 + $0x4c] sm:$0xf]
    %v5953 = vld [vmem:[%s12 + $0x50] sm:$0xf]
    %v5954 = vld [vmem:[%s12 + $0x54] sm:$0xf]
    %v5955 = vld [vmem:[%s12 + $0x58] sm:$0xf]
    %v5956 = vld [vmem:[%s12 + $0x5c] sm:$0xf]
    %v5957 = vld [vmem:[%s12 + $0x60] sm:$0xf]
    %v5958 = vld [vmem:[%s12 + $0x64] sm:$0xf]
    %v5959 = vld [vmem:[%s12 + $0x68] sm:$0xf]
    %v5960 = vld [vmem:[%s12 + $0x6c] sm:$0xf]
    %v5961 = vld [vmem:[%s12 + $0x70] sm:$0xf]
    %v5962 = vld [vmem:[%s12 + $0x74] sm:$0xf]
    %v5963 = vld [vmem:[%s12 + $0x78] sm:$0xf]
    %v5964 = vld [vmem:[%s12 + $0x7c] sm:$0xf]
    %v5965 = vld [vmem:[%s12 + $0x80] sm:$0xf]
    %v5966 = vld [vmem:[%s12 + $0x84] sm:$0xf]
    %v5967 = vld [vmem:[%s12 + $0x88] sm:$0xf]
    %v5968 = vld [vmem:[%s12 + $0x8c] sm:$0xf]
    %v5969 = vld [vmem:[%s12 + $0x90] sm:$0xf]
    %v5970 = vld [vmem:[%s12 + $0x94] sm:$0xf]
    %v5971 = vld [vmem:[%s12 + $0x98] sm:$0xf]
    %v5972 = vld [vmem:[%s12 + $0x9c] sm:$0xf]
    %v5973 = vld [vmem:[%s12 + $0xa0] sm:$0xf]
    %v5974 = vld [vmem:[%s12 + $0xa4] sm:$0xf]
    %v5975 = vld [vmem:[%s12 + $0xa8] sm:$0xf]
    %v5976 = vld [vmem:[%s12 + $0xac] sm:$0xf]
    %v5977 = vld [vmem:[%s12 + $0xb0] sm:$0xf]
    %v5978 = vld [vmem:[%s12 + $0xb4] sm:$0xf]
    %v5979 = vld [vmem:[%s12 + $0xb8] sm:$0xf]
    %v5980 = vld [vmem:[%s12 + $0xbc] sm:$0xf]
    %v5981 = vld [vmem:[%s12 + $0xc0] sm:$0xf]
    %v5982 = vld [vmem:[%s12 + $0xc4] sm:$0xf]
    %v5983 = vld [vmem:[%s12 + $0xc8] sm:$0xf]
    %v5984 = vld [vmem:[%s12 + $0xcc] sm:$0xf]
    %v5985 = vld [vmem:[%s12 + $0xd0] sm:$0xf]
    %v5986 = vld [vmem:[%s12 + $0xd4] sm:$0xf]
    %v5987 = vld [vmem:[%s12 + $0xd8] sm:$0xf]
    %v5988 = vld [vmem:[%s12 + $0xdc] sm:$0xf]
    %v5989 = vld [vmem:[%s12 + $0xe0] sm:$0xf]
    %v5990 = vld [vmem:[%s12 + $0xe4] sm:$0xf]
    %v5991 = vld [vmem:[%s12 + $0xe8] sm:$0xf]
    %v5992 = vld [vmem:[%s12 + $0xec] sm:$0xf]
    %v5993 = vld [vmem:[%s12 + $0xf0] sm:$0xf]
    %v5994 = vld [vmem:[%s12 + $0xf4] sm:$0xf]
    %v5995 = vld [vmem:[%s12 + $0xf8] sm:$0xf]
    %v5996 = vld [vmem:[%s12 + $0xfc] sm:$0xf]
    %v5997 = vld [vmem:[%s12 + $0x100] sm:$0xf]
    %v5998 = vld [vmem:[%s12 + $0x104] sm:$0xf]
    %v5999 = vld [vmem:[%s12 + $0x108] sm:$0xf]
    %v6000 = vld [vmem:[%s12 + $0x10c] sm:$0xf]
    %v6001 = vld [vmem:[%s12 + $0x110] sm:$0xf]
    %v6002 = vld [vmem:[%s12 + $0x114] sm:$0xf]
    %v6003 = vld [vmem:[%s12 + $0x118] sm:$0xf]
    %v6004 = vld [vmem:[%s12 + $0x11c] sm:$0xf]
    %v6005 = vld [vmem:[%s12 + $0x120] sm:$0xf]
    %v6006 = vld [vmem:[%s12 + $0x124] sm:$0xf]
    %v6007 = vld [vmem:[%s12 + $0x128] sm:$0xf]
    %v6008 = vld [vmem:[%s12 + $0x12c] sm:$0xf]
    %v6009 = vld [vmem:[%s12 + $0x130] sm:$0xf]
    %v6010 = vld [vmem:[%s12 + $0x134] sm:$0xf]
    %v6011 = vld [vmem:[%s12 + $0x138] sm:$0xf]
    %v6012 = vld [vmem:[%s12 + $0x13c] sm:$0xf]
    %v6013 = vld [vmem:[%s13] sm:$0x1]
    %v6015 = vlaneseq
    %v6016 = vshrl.u32 %v6015, 7
    %v6017 = vsub.s32 0, %v6016
    %v6018 = vrot.slane %v6013, %v6017
    %v6100 = vunpack.c.l.b16 %v5933
    %v6101 = vunpack.c.l.b16 %v5934
    %v6102 = vunpack.c.l.b16 %v5935
    %v6103 = vunpack.c.l.b16 %v5936
    %v6104 = vunpack.c.l.b16 %v5937
    %v6105 = vunpack.c.l.b16 %v5938
    %v6106 = vunpack.c.l.b16 %v5939
    %v6107 = vunpack.c.l.b16 %v5940
    %v6108 = vunpack.c.l.b16 %v5941
    %v6109 = vunpack.c.l.b16 %v5942
    %v6110 = vunpack.c.l.b16 %v5943
    %v6111 = vunpack.c.l.b16 %v5944
    %v6112 = vunpack.c.l.b16 %v5945
    %v6113 = vunpack.c.l.b16 %v5946
    %v6114 = vunpack.c.l.b16 %v5947
    %v6115 = vunpack.c.l.b16 %v5948
    %v6116 = vunpack.c.l.b16 %v5949
    %v6117 = vunpack.c.l.b16 %v5950
    %v6118 = vunpack.c.l.b16 %v5951
    %v6119 = vunpack.c.l.b16 %v5952
    %v6120 = vunpack.c.l.b16 %v5953
    %v6121 = vunpack.c.l.b16 %v5954
    %v6122 = vunpack.c.l.b16 %v5955
    %v6123 = vunpack.c.l.b16 %v5956
    %v6124 = vunpack.c.l.b16 %v5957
    %v6125 = vunpack.c.l.b16 %v5958
    %v6126 = vunpack.c.l.b16 %v5959
    %v6127 = vunpack.c.l.b16 %v5960
    %v6128 = vunpack.c.l.b16 %v5961
    %v6129 = vunpack.c.l.b16 %v5962
    %v6130 = vunpack.c.l.b16 %v5963
    %v6131 = vunpack.c.l.b16 %v5964
    %v6132 = vunpack.c.l.b16 %v5965
    %v6133 = vunpack.c.l.b16 %v5966
    %v6134 = vunpack.c.l.b16 %v5967
    %v6135 = vunpack.c.l.b16 %v5968
    %v6136 = vunpack.c.l.b16 %v5969
    %v6137 = vunpack.c.l.b16 %v5970
    %v6138 = vunpack.c.l.b16 %v5971
    %v6139 = vunpack.c.l.b16 %v5972
    %v6140 = vunpack.c.l.b16 %v5973
    %v6141 = vunpack.c.l.b16 %v5974
    %v6142 = vunpack.c.l.b16 %v5975
    %v6143 = vunpack.c.l.b16 %v5976
    %v6144 = vunpack.c.l.b16 %v5977
    %v6145 = vunpack.c.l.b16 %v5978
    %v6146 = vunpack.c.l.b16 %v5979
    %v6147 = vunpack.c.l.b16 %v5980
    %v6148 = vunpack.c.l.b16 %v5981
    %v6149 = vunpack.c.l.b16 %v5982
    %v6150 = vunpack.c.l.b16 %v5983
    %v6151 = vunpack.c.l.b16 %v5984
    %v6152 = vunpack.c.l.b16 %v5985
    %v6153 = vunpack.c.l.b16 %v5986
    %v6154 = vunpack.c.l.b16 %v5987
    %v6155 = vunpack.c.l.b16 %v5988
    %v6156 = vunpack.c.l.b16 %v5989
    %v6157 = vunpack.c.l.b16 %v5990
    %v6158 = vunpack.c.l.b16 %v5991
    %v6159 = vunpack.c.l.b16 %v5992
    %v6160 = vunpack.c.l.b16 %v5993
    %v6161 = vunpack.c.l.b16 %v5994
    %v6162 = vunpack.c.l.b16 %v5995
    %v6163 = vunpack.c.l.b16 %v5996
    %v6164 = vunpack.c.l.b16 %v5997
    %v6165 = vunpack.c.l.b16 %v5998
    %v6166 = vunpack.c.l.b16 %v5999
    %v6167 = vunpack.c.l.b16 %v6000
    %v6168 = vunpack.c.l.b16 %v6001
    %v6169 = vunpack.c.l.b16 %v6002
    %v6170 = vunpack.c.l.b16 %v6003
    %v6171 = vunpack.c.l.b16 %v6004
    %v6172 = vunpack.c.l.b16 %v6005
    %v6173 = vunpack.c.l.b16 %v6006
    %v6174 = vunpack.c.l.b16 %v6007
    %v6175 = vunpack.c.l.b16 %v6008
    %v6176 = vunpack.c.l.b16 %v6009
    %v6177 = vunpack.c.l.b16 %v6010
    %v6178 = vunpack.c.l.b16 %v6011
    %v6179 = vunpack.c.l.b16 %v6012
    %v6180 = vpack.c.b16 %v6101, %v6100
    %v6181 = vpack.c.b16 %v6103, %v6102
    %v6182 = vpack.c.b16 %v6105, %v6104
    %v6183 = vpack.c.b16 %v6107, %v6106
    %v6184 = vpack.c.b16 %v6109, %v6108
    %v6185 = vpack.c.b16 %v6111, %v6110
    %v6186 = vpack.c.b16 %v6113, %v6112
    %v6187 = vpack.c.b16 %v6115, %v6114
    %v6188 = vpack.c.b16 %v6117, %v6116
    %v6189 = vpack.c.b16 %v6119, %v6118
    %v6190 = vpack.c.b16 %v6121, %v6120
    %v6191 = vpack.c.b16 %v6123, %v6122
    %v6192 = vpack.c.b16 %v6125, %v6124
    %v6193 = vpack.c.b16 %v6127, %v6126
    %v6194 = vpack.c.b16 %v6129, %v6128
    %v6195 = vpack.c.b16 %v6131, %v6130
    %v6196 = vpack.c.b16 %v6133, %v6132
    %v6197 = vpack.c.b16 %v6135, %v6134
    %v6198 = vpack.c.b16 %v6137, %v6136
    %v6199 = vpack.c.b16 %v6139, %v6138
    %v6200 = vpack.c.b16 %v6141, %v6140
    %v6201 = vpack.c.b16 %v6143, %v6142
    %v6202 = vpack.c.b16 %v6145, %v6144
    %v6203 = vpack.c.b16 %v6147, %v6146
    %v6204 = vpack.c.b16 %v6149, %v6148
    %v6205 = vpack.c.b16 %v6151, %v6150
    %v6206 = vpack.c.b16 %v6153, %v6152
    %v6207 = vpack.c.b16 %v6155, %v6154
    %v6208 = vpack.c.b16 %v6157, %v6156
    %v6209 = vpack.c.b16 %v6159, %v6158
    %v6210 = vpack.c.b16 %v6161, %v6160
    %v6211 = vpack.c.b16 %v6163, %v6162
    %v6212 = vpack.c.b16 %v6165, %v6164
    %v6213 = vpack.c.b16 %v6167, %v6166
    %v6214 = vpack.c.b16 %v6169, %v6168
    %v6215 = vpack.c.b16 %v6171, %v6170
    %v6216 = vpack.c.b16 %v6173, %v6172
    %v6217 = vpack.c.b16 %v6175, %v6174
    %v6218 = vpack.c.b16 %v6177, %v6176
    %v6219 = vpack.c.b16 %v6179, %v6178
    %6260 = vmatprep.subr.bf16.mxu0 0
    %6261 = vmatpush1.bf16.msra.mxu0 %v6180
    %6262 = vmatprep.subr.bf16.mxu0 0
    %6263 = vmatpush1.bf16.msra.mxu0 %v6181
    %6264 = vmatprep.subr.bf16.mxu0 0
    %6265 = vmatpush1.bf16.msra.mxu0 %v6182
    %6266 = vmatprep.subr.bf16.mxu0 0
    %6267 = vmatpush1.bf16.msra.mxu0 %v6183
    %6268 = vmatprep.subr.bf16.mxu0 0
    %6269 = vmatpush1.bf16.msra.mxu0 %v6184
    %6270 = vmatprep.subr.bf16.mxu0 0
    %6271 = vmatpush1.bf16.msra.mxu0 %v6185
    %6272 = vmatprep.subr.bf16.mxu0 0
    %6273 = vmatpush1.bf16.msra.mxu0 %v6186
    %6274 = vmatprep.subr.bf16.mxu0 0
    %6275 = vmatpush1.bf16.msra.mxu0 %v6187
    %6276 = vmatprep.subr.bf16.mxu0 0
    %6277 = vmatpush1.bf16.msra.mxu0 %v6188
    %6278 = vmatprep.subr.bf16.mxu0 0
    %6279 = vmatpush1.bf16.msra.mxu0 %v6189
    %6280 = vmatprep.subr.bf16.mxu0 0
    %6281 = vmatpush1.bf16.msra.mxu0 %v6190
    %6282 = vmatprep.subr.bf16.mxu0 0
    %6283 = vmatpush1.bf16.msra.mxu0 %v6191
    %6284 = vmatprep.subr.bf16.mxu0 0
    %6285 = vmatpush1.bf16.msra.mxu0 %v6192
    %6286 = vmatprep.subr.bf16.mxu0 0
    %6287 = vmatpush1.bf16.msra.mxu0 %v6193
    %6288 = vmatprep.subr.bf16.mxu0 0
    %6289 = vmatpush1.bf16.msra.mxu0 %v6194
    %6290 = vmatprep.subr.bf16.mxu0 0
    %6291 = vmatpush1.bf16.msra.mxu0 %v6195
    %6292 = vmatprep.mubr.bf16.mxu0 %v5904
    %6293 = vmatmul.mubr.bf16.gmra.mrb[0].mxu0 %v5903
    %v6294 = vpop.f32.mrb[0].mxu0
    %v6295 = vadd.f32 %v6018, %v6294
    %v6296 = vpop.f32.mrb[0].mxu0
    %v6297 = vpop.f32.mrb[0].mxu0
    %v6298 = vadd.f32 %v6018, %v6297
    %v6299 = vpop.f32.mrb[0].mxu0
    %6300 = vmatprep.mubr.bf16.mxu0 %v5909
    %6301 = vmatmul.mubr.bf16.gmra.mrb[0].mxu0 %v5908
    %v6302 = vpop.f32.mrb[0].mxu0
    %v6303 = vadd.f32 %v6018, %v6302
    %v6304 = vpop.f32.mrb[0].mxu0
    %v6305 = vpop.f32.mrb[0].mxu0
    %v6306 = vadd.f32 %v6018, %v6305
    %v6307 = vpop.f32.mrb[0].mxu0
    %6308 = vmatprep.mubr.bf16.mxu0 %v5914
    %6309 = vmatmul.mubr.bf16.gmra.mrb[0].mxu0 %v5913
    %v6310 = vpop.f32.mrb[0].mxu0
    %v6311 = vadd.f32 %v6018, %v6310
    %v6312 = vpop.f32.mrb[0].mxu0
    %v6313 = vpop.f32.mrb[0].mxu0
    %v6314 = vadd.f32 %v6018, %v6313
    %v6315 = vpop.f32.mrb[0].mxu0
    %6316 = vmatprep.mubr.bf16.mxu0 %v5919
    %6317 = vmatmul.mubr.bf16.gmra.mrb[0].mxu0 %v5918
    %v6318 = vpop.f32.mrb[0].mxu0
    %v6319 = vadd.f32 %v6018, %v6318
    %v6320 = vpop.f32.mrb[0].mxu0
    %v6321 = vpop.f32.mrb[0].mxu0
    %v6322 = vadd.f32 %v6018, %v6321
    %v6323 = vpop.f32.mrb[0].mxu0
    %6324 = vmatprep.mubr.bf16.mxu0 %v5924
    %6325 = vmatmul.mubr.bf16.gmra.mrb[0].mxu0 %v5923
    %v6326 = vpop.f32.mrb[0].mxu0
    %v6327 = vadd.f32 %v6018, %v6326
    %v6328 = vpop.f32.mrb[0].mxu0
    %v6329 = vpop.f32.mrb[0].mxu0
    %v6330 = vadd.f32 %v6018, %v6329
    %v6331 = vpop.f32.mrb[0].mxu0
    %6332 = vmatprep.mubr.bf16.mxu0 %v5929
    %6333 = vmatmul.mubr.bf16.gmra.mrb[0].mxu0 %v5928
    %v6334 = vpop.f32.mrb[0].mxu0
    %v6335 = vadd.f32 %v6018, %v6334
    %v6336 = vpop.f32.mrb[0].mxu0
    %v6337 = vpop.f32.mrb[0].mxu0
    %v6338 = vadd.f32 %v6018, %v6337
    %v6339 = vpop.f32.mrb[0].mxu0
    %6340 = vdwg.mxu0
    %6341 = vmatprep.subr.bf16.mxu0 0
    %6342 = vmatpush1.bf16.msra.mxu0 %v6196
    %6343 = vmatprep.subr.bf16.mxu0 0
    %6344 = vmatpush1.bf16.msra.mxu0 %v6197
    %6345 = vmatprep.subr.bf16.mxu0 0
    %6346 = vmatpush1.bf16.msra.mxu0 %v6198
    %6347 = vmatprep.subr.bf16.mxu0 0
    %6348 = vmatpush1.bf16.msra.mxu0 %v6199
    %6349 = vmatprep.subr.bf16.mxu0 0
    %6350 = vmatpush1.bf16.msra.mxu0 %v6200
    %6351 = vmatprep.subr.bf16.mxu0 0
    %6352 = vmatpush1.bf16.msra.mxu0 %v6201
    %6353 = vmatprep.subr.bf16.mxu0 0
    %6354 = vmatpush1.bf16.msra.mxu0 %v6202
    %6355 = vmatprep.subr.bf16.mxu0 0
    %6356 = vmatpush1.bf16.msra.mxu0 %v6203
    %6357 = vmatprep.subr.bf16.mxu0 0
    %6358 = vmatpush1.bf16.msra.mxu0 %v6204
    %6359 = vmatprep.subr.bf16.mxu0 0
    %6360 = vmatpush1.bf16.msra.mxu0 %v6205
    %6361 = vmatprep.subr.bf16.mxu0 0
    %6362 = vmatpush1.bf16.msra.mxu0 %v6206
    %6363 = vmatprep.subr.bf16.mxu0 0
    %6364 = vmatpush1.bf16.msra.mxu0 %v6207
    %6365 = vmatprep.subr.bf16.mxu0 0
    %6366 = vmatpush1.bf16.msra.mxu0 %v6208
    %6367 = vmatprep.subr.bf16.mxu0 0
    %6368 = vmatpush1.bf16.msra.mxu0 %v6209
    %6369 = vmatprep.subr.bf16.mxu0 0
    %6370 = vmatpush1.bf16.msra.mxu0 %v6210
    %6371 = vmatprep.subr.bf16.mxu0 0
    %6372 = vmatpush1.bf16.msra.mxu0 %v6211
    %6373 = vmatprep.mubr.bf16.mxu0 %v5906
    %6374 = vmatmul.mubr.bf16.gmra.mrb[0].mxu0 %v5905
    %v6375 = vpop.f32.mrb[0].mxu0
    %v6376 = vadd.f32 %v6295, %v6375
    %v6377 = vpop.f32.mrb[0].mxu0
    %v6378 = vpop.f32.mrb[0].mxu0
    %v6379 = vadd.f32 %v6298, %v6378
    %v6380 = vpop.f32.mrb[0].mxu0
    %6381 = vmatprep.mubr.bf16.mxu0 %v5911
    %6382 = vmatmul.mubr.bf16.gmra.mrb[0].mxu0 %v5910
    %v6383 = vpop.f32.mrb[0].mxu0
    %v6384 = vadd.f32 %v6303, %v6383
    %v6385 = vpop.f32.mrb[0].mxu0
    %v6386 = vpop.f32.mrb[0].mxu0
    %v6387 = vadd.f32 %v6306, %v6386
    %v6388 = vpop.f32.mrb[0].mxu0
    %6389 = vmatprep.mubr.bf16.mxu0 %v5916
    %6390 = vmatmul.mubr.bf16.gmra.mrb[0].mxu0 %v5915
    %v6391 = vpop.f32.mrb[0].mxu0
    %v6392 = vadd.f32 %v6311, %v6391
    %v6393 = vpop.f32.mrb[0].mxu0
    %v6394 = vpop.f32.mrb[0].mxu0
    %v6395 = vadd.f32 %v6314, %v6394
    %v6396 = vpop.f32.mrb[0].mxu0
    %6397 = vmatprep.mubr.bf16.mxu0 %v5921
    %6398 = vmatmul.mubr.bf16.gmra.mrb[0].mxu0 %v5920
    %v6399 = vpop.f32.mrb[0].mxu0
    %v6400 = vadd.f32 %v6319, %v6399
    %v6401 = vpop.f32.mrb[0].mxu0
    %v6402 = vpop.f32.mrb[0].mxu0
    %v6403 = vadd.f32 %v6322, %v6402
    %v6404 = vpop.f32.mrb[0].mxu0
    %6405 = vmatprep.mubr.bf16.mxu0 %v5926
    %6406 = vmatmul.mubr.bf16.gmra.mrb[0].mxu0 %v5925
    %v6407 = vpop.f32.mrb[0].mxu0
    %v6408 = vadd.f32 %v6327, %v6407
    %v6409 = vpop.f32.mrb[0].mxu0
    %v6410 = vpop.f32.mrb[0].mxu0
    %v6411 = vadd.f32 %v6330, %v6410
    %v6412 = vpop.f32.mrb[0].mxu0
    %6413 = vmatprep.mubr.bf16.mxu0 %v5931
    %6414 = vmatmul.mubr.bf16.gmra.mrb[0].mxu0 %v5930
    %v6415 = vpop.f32.mrb[0].mxu0
    %v6416 = vadd.f32 %v6335, %v6415
    %v6417 = vpop.f32.mrb[0].mxu0
    %v6418 = vpop.f32.mrb[0].mxu0
    %v6419 = vadd.f32 %v6338, %v6418
    %v6420 = vpop.f32.mrb[0].mxu0
    %6421 = vdwg.mxu0
    %6422 = vmatprep.subr.bf16.mxu0 0
    %6423 = vmatpush1.bf16.msra.mxu0 %v6212
    %6424 = vmatprep.subr.bf16.mxu0 0
    %6425 = vmatpush1.bf16.msra.mxu0 %v6213
    %6426 = vmatprep.subr.bf16.mxu0 0
    %6427 = vmatpush1.bf16.msra.mxu0 %v6214
    %6428 = vmatprep.subr.bf16.mxu0 0
    %6429 = vmatpush1.bf16.msra.mxu0 %v6215
    %6430 = vmatprep.subr.bf16.mxu0 0
    %6431 = vmatpush1.bf16.msra.mxu0 %v6216
    %6432 = vmatprep.subr.bf16.mxu0 0
    %6433 = vmatpush1.bf16.msra.mxu0 %v6217
    %6434 = vmatprep.subr.bf16.mxu0 0
    %6435 = vmatpush1.bf16.msra.mxu0 %v6218
    %6436 = vmatprep.subr.bf16.mxu0 0
    %6437 = vmatpush1.bf16.msra.mxu0 %v6219
    %6438 = vmatprep.subr.bf16.mxu0 0
    %6439 = vmatpush1.bf16.msra.mxu0 0
    %6440 = vmatprep.subr.bf16.mxu0 0
    %6441 = vmatpush1.bf16.msra.mxu0 0
    %6442 = vmatprep.subr.bf16.mxu0 0
    %6443 = vmatpush1.bf16.msra.mxu0 0
    %6444 = vmatprep.subr.bf16.mxu0 0
    %6445 = vmatpush1.bf16.msra.mxu0 0
    %6446 = vmatprep.subr.bf16.mxu0 0
    %6447 = vmatpush1.bf16.msra.mxu0 0
    %6448 = vmatprep.subr.bf16.mxu0 0
    %6449 = vmatpush1.bf16.msra.mxu0 0
    %6450 = vmatprep.subr.bf16.mxu0 0
    %6451 = vmatpush1.bf16.msra.mxu0 0
    %6452 = vmatprep.subr.bf16.mxu0 0
    %6453 = vmatpush1.bf16.msra.mxu0 0
    %6454 = vmatprep.mubr.bf16.mxu0 0
    %6455 = vmatmul.mubr.bf16.gmra.mrb[0].mxu0 %v5907
    %v6456 = vpop.f32.mrb[0].mxu0
    %v6457 = vadd.f32 %v6376, %v6456
    %v6458 = vpop.f32.mrb[0].mxu0
    %v6459 = vpop.f32.mrb[0].mxu0
    %v6460 = vadd.f32 %v6379, %v6459
    %v6461 = vpop.f32.mrb[0].mxu0
    %6462 = vmatprep.mubr.bf16.mxu0 0
    %6463 = vmatmul.mubr.bf16.gmra.mrb[0].mxu0 %v5912
    %v6464 = vpop.f32.mrb[0].mxu0
    %v6465 = vadd.f32 %v6384, %v6464
    %v6466 = vpop.f32.mrb[0].mxu0
    %v6467 = vpop.f32.mrb[0].mxu0
    %v6468 = vadd.f32 %v6387, %v6467
    %v6469 = vpop.f32.mrb[0].mxu0
    %6470 = vmatprep.mubr.bf16.mxu0 0
    %6471 = vmatmul.mubr.bf16.gmra.mrb[0].mxu0 %v5917
    %v6472 = vpop.f32.mrb[0].mxu0
    %v6473 = vadd.f32 %v6392, %v6472
    %v6474 = vpop.f32.mrb[0].mxu0
    %v6475 = vpop.f32.mrb[0].mxu0
    %v6476 = vadd.f32 %v6395, %v6475
    %v6477 = vpop.f32.mrb[0].mxu0
    %6478 = vmatprep.mubr.bf16.mxu0 0
    %6479 = vmatmul.mubr.bf16.gmra.mrb[0].mxu0 %v5922
    %v6480 = vpop.f32.mrb[0].mxu0
    %v6481 = vadd.f32 %v6400, %v6480
    %v6482 = vpop.f32.mrb[0].mxu0
    %v6483 = vpop.f32.mrb[0].mxu0
    %v6484 = vadd.f32 %v6403, %v6483
    %v6485 = vpop.f32.mrb[0].mxu0
    %6486 = vmatprep.mubr.bf16.mxu0 0
    %6487 = vmatmul.mubr.bf16.gmra.mrb[0].mxu0 %v5927
    %v6488 = vpop.f32.mrb[0].mxu0
    %v6489 = vadd.f32 %v6408, %v6488
    %v6490 = vpop.f32.mrb[0].mxu0
    %v6491 = vpop.f32.mrb[0].mxu0
    %v6492 = vadd.f32 %v6411, %v6491
    %v6493 = vpop.f32.mrb[0].mxu0
    %6494 = vmatprep.mubr.bf16.mxu0 0
    %6495 = vmatmul.mubr.bf16.gmra.mrb[0].mxu0 %v5932
    %v6496 = vpop.f32.mrb[0].mxu0
    %v6497 = vadd.f32 %v6416, %v6496
    %v6498 = vpop.f32.mrb[0].mxu0
    %v6499 = vpop.f32.mrb[0].mxu0
    %v6500 = vadd.f32 %v6419, %v6499
    %v6501 = vpop.f32.mrb[0].mxu0
    %6502 = vdwg.mxu0
    %vm6503 = vcmp.lt.s32.totalorder %v4067, 35
    %vm6504 = vcmp.lt.s32.totalorder %v4068, 35
    %vm6505 = vcmp.lt.s32.totalorder %v4069, 35
    %vm6506 = vcmp.lt.s32.totalorder %v4070, 35
    %vm6507 = vcmp.lt.s32.totalorder %v4071, 35
    %vm6508 = vcmp.lt.s32.totalorder %v4072, 35
    %vm6509 = vcmp.lt.s32.totalorder %v4073, 35
    %vm6510 = vcmp.lt.s32.totalorder %v4074, 35
    %vm6511 = vcmp.lt.s32.totalorder %v4075, 35
    %vm6512 = vcmp.lt.s32.totalorder %v4076, 35
    %vm6513 = vcmp.lt.s32.totalorder %v4077, 35
    %vm6514 = vcmp.lt.s32.totalorder %v4078, 35
    %vm6515 = vcmp.lt.s32.totalorder %v4067, 83
    %vm6516 = vcmp.lt.s32.totalorder %v4068, 83
    %vm6517 = vcmp.lt.s32.totalorder %v4069, 83
    %vm6518 = vcmp.lt.s32.totalorder %v4070, 83
    %vm6519 = vcmp.lt.s32.totalorder %v4071, 83
    %vm6520 = vcmp.lt.s32.totalorder %v4072, 83
    %vm6521 = vcmp.lt.s32.totalorder %v4073, 83
    %vm6522 = vcmp.lt.s32.totalorder %v4074, 83
    %vm6523 = vcmp.lt.s32.totalorder %v4075, 83
    %vm6524 = vcmp.lt.s32.totalorder %v4076, 83
    %vm6525 = vcmp.lt.s32.totalorder %v4077, 83
    %vm6526 = vcmp.lt.s32.totalorder %v4078, 83
    %vm6527 = vmand %vm4091, %vm6515
    %vm6528 = vmand %vm4092, %vm6516
    %vm6529 = vmand %vm4093, %vm6517
    %vm6530 = vmand %vm4094, %vm6518
    %vm6531 = vmand %vm4095, %vm6519
    %vm6532 = vmand %vm4096, %vm6520
    %vm6533 = vmand %vm4097, %vm6521
    %vm6534 = vmand %vm4098, %vm6522
    %vm6535 = vmand %vm4099, %vm6523
    %vm6536 = vmand %vm4100, %vm6524
    %vm6537 = vmand %vm4101, %vm6525
    %vm6538 = vmand %vm4102, %vm6526
    %vm6539 = vmor %vm6503, %vm6527
    %vm6540 = vmor %vm6504, %vm6528
    %vm6541 = vmor %vm6505, %vm6529
    %vm6542 = vmor %vm6506, %vm6530
    %vm6543 = vmor %vm6507, %vm6531
    %vm6544 = vmor %vm6508, %vm6532
    %vm6545 = vmor %vm6509, %vm6533
    %vm6546 = vmor %vm6510, %vm6534
    %vm6547 = vmor %vm6511, %vm6535
    %vm6548 = vmor %vm6512, %vm6536
    %vm6549 = vmor %vm6513, %vm6537
    %vm6550 = vmor %vm6514, %vm6538
    %v6551 = vsel %vm6539, 1, 0
    %v6552 = vsel %vm6540, 1, 0
    %v6553 = vsel %vm6541, 1, 0
    %v6554 = vsel %vm6542, 1, 0
    %v6555 = vsel %vm6543, 1, 0
    %v6556 = vsel %vm6544, 1, 0
    %v6557 = vsel %vm6545, 1, 0
    %v6558 = vsel %vm6546, 1, 0
    %v6559 = vsel %vm6547, 1, 0
    %v6560 = vsel %vm6548, 1, 0
    %v6561 = vsel %vm6549, 1, 0
    %v6562 = vsel %vm6550, 1, 0
    %v6563 = vcvt.s32.f32 %v6551
    %v6564 = vcvt.s32.f32 %v6552
    %v6565 = vcvt.s32.f32 %v6553
    %v6566 = vcvt.s32.f32 %v6554
    %v6567 = vcvt.s32.f32 %v6555
    %v6568 = vcvt.s32.f32 %v6556
    %v6569 = vcvt.s32.f32 %v6557
    %v6570 = vcvt.s32.f32 %v6558
    %v6571 = vcvt.s32.f32 %v6559
    %v6572 = vcvt.s32.f32 %v6560
    %v6573 = vcvt.s32.f32 %v6561
    %v6574 = vcvt.s32.f32 %v6562
    %v6575 = vmul.f32 %v6457, %v6563
    %v6576 = vmul.f32 %v6460, %v6564
    %v6577 = vmul.f32 %v6465, %v6565
    %v6578 = vmul.f32 %v6468, %v6566
    %v6579 = vmul.f32 %v6473, %v6567
    %v6580 = vmul.f32 %v6476, %v6568
    %v6581 = vmul.f32 %v6481, %v6569
    %v6582 = vmul.f32 %v6484, %v6570
    %v6583 = vmul.f32 %v6489, %v6571
    %v6584 = vmul.f32 %v6492, %v6572
    %v6585 = vmul.f32 %v6497, %v6573
    %v6586 = vmul.f32 %v6500, %v6574
    %v6587 = vadd.f32 %v6575, %v6576
    %v6588 = vadd.f32 %v6587, %v6577
    %v6589 = vadd.f32 %v6588, %v6578
    %v6590 = vadd.f32 %v6589, %v6579
    %v6591 = vadd.f32 %v6590, %v6580
    %v6592 = vadd.f32 %v6591, %v6581
    %v6593 = vadd.f32 %v6592, %v6582
    %v6594 = vadd.f32 %v6593, %v6583
    %v6595 = vadd.f32 %v6594, %v6584
    %v6596 = vadd.f32 %v6595, %v6585
    %v6597 = vadd.f32 %v6596, %v6586
    %v6598 = vrot.slane %v6597, 4
    %v6599 = vadd.f32 %v6597, %v6598
    %v6600 = vrot.slane %v6599, 2
    %v6601 = vadd.f32 %v6599, %v6600
    %v6602 = vrot.slane %v6601, 1
    %v6603 = vadd.f32 %v6601, %v6602
    %v6604 = vmul.f32 %v6603, 0.014285714
    %v6605 = vsub.f32 %v6457, %v6604
    %v6606 = vsub.f32 %v6460, %v6604
    %v6607 = vsub.f32 %v6465, %v6604
    %v6608 = vsub.f32 %v6468, %v6604
    %v6609 = vsub.f32 %v6473, %v6604
    %v6610 = vsub.f32 %v6476, %v6604
    %v6611 = vsub.f32 %v6481, %v6604
    %v6612 = vsub.f32 %v6484, %v6604
    %v6613 = vsub.f32 %v6489, %v6604
    %v6614 = vsub.f32 %v6492, %v6604
    %v6615 = vsub.f32 %v6497, %v6604
    %v6616 = vsub.f32 %v6500, %v6604
    %v6617 = vmul.f32 %v6605, %v6605
    %v6618 = vmul.f32 %v6606, %v6606
    %v6619 = vmul.f32 %v6607, %v6607
    %v6620 = vmul.f32 %v6608, %v6608
    %v6621 = vmul.f32 %v6609, %v6609
    %v6622 = vmul.f32 %v6610, %v6610
    %v6623 = vmul.f32 %v6611, %v6611
    %v6624 = vmul.f32 %v6612, %v6612
    %v6625 = vmul.f32 %v6613, %v6613
    %v6626 = vmul.f32 %v6614, %v6614
    %v6627 = vmul.f32 %v6615, %v6615
    %v6628 = vmul.f32 %v6616, %v6616
    %v6629 = vmul.f32 %v6617, %v6563
    %v6630 = vmul.f32 %v6618, %v6564
    %v6631 = vmul.f32 %v6619, %v6565
    %v6632 = vmul.f32 %v6620, %v6566
    %v6633 = vmul.f32 %v6621, %v6567
    %v6634 = vmul.f32 %v6622, %v6568
    %v6635 = vmul.f32 %v6623, %v6569
    %v6636 = vmul.f32 %v6624, %v6570
    %v6637 = vmul.f32 %v6625, %v6571
    %v6638 = vmul.f32 %v6626, %v6572
    %v6639 = vmul.f32 %v6627, %v6573
    %v6640 = vmul.f32 %v6628, %v6574
    %v6641 = vadd.f32 %v6629, %v6630
    %v6642 = vadd.f32 %v6641, %v6631
    %v6643 = vadd.f32 %v6642, %v6632
    %v6644 = vadd.f32 %v6643, %v6633
    %v6645 = vadd.f32 %v6644, %v6634
    %v6646 = vadd.f32 %v6645, %v6635
    %v6647 = vadd.f32 %v6646, %v6636
    %v6648 = vadd.f32 %v6647, %v6637
    %v6649 = vadd.f32 %v6648, %v6638
    %v6650 = vadd.f32 %v6649, %v6639
    %v6651 = vadd.f32 %v6650, %v6640
    %v6652 = vrot.slane %v6651, 4
    %v6653 = vadd.f32 %v6651, %v6652
    %v6654 = vrot.slane %v6653, 2
    %v6655 = vadd.f32 %v6653, %v6654
    %v6656 = vrot.slane %v6655, 1
    %v6657 = vadd.f32 %v6655, %v6656
    %v6658 = vmul.f32 %v6657, 0.014285714
    %v6659 = vadd.f32 %v6658, 1e-05
    %v6660 = vrsqrt.pop %v6659
    %v6661 = vmul.f32 %v6605, %v6660
    %v6662 = vmul.f32 %v6606, %v6660
    %v6663 = vmul.f32 %v6607, %v6660
    %v6664 = vmul.f32 %v6608, %v6660
    %v6665 = vmul.f32 %v6609, %v6660
    %v6666 = vmul.f32 %v6610, %v6660
    %v6667 = vmul.f32 %v6611, %v6660
    %v6668 = vmul.f32 %v6612, %v6660
    %v6669 = vmul.f32 %v6613, %v6660
    %v6670 = vmul.f32 %v6614, %v6660
    %v6671 = vmul.f32 %v6615, %v6660
    %v6672 = vmul.f32 %v6616, %v6660
    %v6673 = vmax.f32 %v6661, 0.0
    %v6674 = vmax.f32 %v6662, 0.0
    %v6675 = vmax.f32 %v6663, 0.0
    %v6676 = vmax.f32 %v6664, 0.0
    %v6677 = vmax.f32 %v6665, 0.0
    %v6678 = vmax.f32 %v6666, 0.0
    %v6679 = vmax.f32 %v6667, 0.0
    %v6680 = vmax.f32 %v6668, 0.0
    %v6681 = vmax.f32 %v6669, 0.0
    %v6682 = vmax.f32 %v6670, 0.0
    %v6683 = vmax.f32 %v6671, 0.0
    %v6684 = vmax.f32 %v6672, 0.0
    %v6697 = vrot.slane %v6673, 1
    %v6698 = vrot.slane %v6674, 1
    %v6699 = vsel %vm543, %v6697, %v6698
    %v6700 = vrot.slane %v6675, 1
    %v6701 = vsel %vm543, %v6698, %v6700
    %v6702 = vrot.slane %v6676, 1
    %v6703 = vsel %vm543, %v6700, %v6702
    %v6704 = vrot.slane %v6677, 1
    %v6705 = vsel %vm543, %v6702, %v6704
    %v6706 = vrot.slane %v6678, 1
    %v6707 = vsel %vm543, %v6704, %v6706
    %v6708 = vrot.slane %v6679, 1
    %v6709 = vsel %vm543, %v6706, %v6708
    %v6710 = vrot.slane %v6680, 1
    %v6711 = vsel %vm543, %v6708, %v6710
    %v6712 = vrot.slane %v6681, 1
    %v6713 = vsel %vm543, %v6710, %v6712
    %v6714 = vrot.slane %v6682, 1
    %v6715 = vsel %vm543, %v6712, %v6714
    %v6716 = vrot.slane %v6683, 1
    %v6717 = vsel %vm543, %v6714, %v6716
    %v6718 = vrot.slane %v6684, 1
    %v6719 = vsel %vm543, %v6716, %v6718
    %v6720 = vsel %vm543, %v6718, %v2535
    %v6733 = vmax.f32 %v6673, %v6699
    %v6734 = vmax.f32 %v6674, %v6701
    %v6735 = vmax.f32 %v6675, %v6703
    %v6736 = vmax.f32 %v6676, %v6705
    %v6737 = vmax.f32 %v6677, %v6707
    %v6738 = vmax.f32 %v6678, %v6709
    %v6739 = vmax.f32 %v6679, %v6711
    %v6740 = vmax.f32 %v6680, %v6713
    %v6741 = vmax.f32 %v6681, %v6715
    %v6742 = vmax.f32 %v6682, %v6717
    %v6743 = vmax.f32 %v6683, %v6719
    %v6744 = vmax.f32 %v6684, %v6720
    %v6757 = vrot.slane %v6733, 1
    %v6758 = vrot.slane %v6734, 1
    %v6759 = vsel %vm543, %v6757, %v6758
    %v6760 = vrot.slane %v6735, 1
    %v6761 = vsel %vm543, %v6758, %v6760
    %v6762 = vrot.slane %v6736, 1
    %v6763 = vsel %vm543, %v6760, %v6762
    %v6764 = vrot.slane %v6737, 1
    %v6765 = vsel %vm543, %v6762, %v6764
    %v6766 = vrot.slane %v6738, 1
    %v6767 = vsel %vm543, %v6764, %v6766
    %v6768 = vrot.slane %v6739, 1
    %v6769 = vsel %vm543, %v6766, %v6768
    %v6770 = vrot.slane %v6740, 1
    %v6771 = vsel %vm543, %v6768, %v6770
    %v6772 = vrot.slane %v6741, 1
    %v6773 = vsel %vm543, %v6770, %v6772
    %v6774 = vrot.slane %v6742, 1
    %v6775 = vsel %vm543, %v6772, %v6774
    %v6776 = vrot.slane %v6743, 1
    %v6777 = vsel %vm543, %v6774, %v6776
    %v6778 = vrot.slane %v6744, 1
    %v6779 = vsel %vm543, %v6776, %v6778
    %v6780 = vsel %vm543, %v6778, %v2535
    %v6793 = vrot.slane %v6733, 2
    %v6794 = vrot.slane %v6734, 2
    %v6795 = vsel %vm896, %v6793, %v6794
    %v6796 = vrot.slane %v6735, 2
    %v6797 = vsel %vm896, %v6794, %v6796
    %v6798 = vrot.slane %v6736, 2
    %v6799 = vsel %vm896, %v6796, %v6798
    %v6800 = vrot.slane %v6737, 2
    %v6801 = vsel %vm896, %v6798, %v6800
    %v6802 = vrot.slane %v6738, 2
    %v6803 = vsel %vm896, %v6800, %v6802
    %v6804 = vrot.slane %v6739, 2
    %v6805 = vsel %vm896, %v6802, %v6804
    %v6806 = vrot.slane %v6740, 2
    %v6807 = vsel %vm896, %v6804, %v6806
    %v6808 = vrot.slane %v6741, 2
    %v6809 = vsel %vm896, %v6806, %v6808
    %v6810 = vrot.slane %v6742, 2
    %v6811 = vsel %vm896, %v6808, %v6810
    %v6812 = vrot.slane %v6743, 2
    %v6813 = vsel %vm896, %v6810, %v6812
    %v6814 = vrot.slane %v6744, 2
    %v6815 = vsel %vm896, %v6812, %v6814
    %v6816 = vsel %vm896, %v6814, %v2680
    %v6829 = vrot.slane %v6733, 3
    %v6830 = vrot.slane %v6734, 3
    %v6831 = vsel %vm5827, %v6829, %v6830
    %v6832 = vrot.slane %v6735, 3
    %v6833 = vsel %vm5827, %v6830, %v6832
    %v6834 = vrot.slane %v6736, 3
    %v6835 = vsel %vm5827, %v6832, %v6834
    %v6836 = vrot.slane %v6737, 3
    %v6837 = vsel %vm5827, %v6834, %v6836
    %v6838 = vrot.slane %v6738, 3
    %v6839 = vsel %vm5827, %v6836, %v6838
    %v6840 = vrot.slane %v6739, 3
    %v6841 = vsel %vm5827, %v6838, %v6840
    %v6842 = vrot.slane %v6740, 3
    %v6843 = vsel %vm5827, %v6840, %v6842
    %v6844 = vrot.slane %v6741, 3
    %v6845 = vsel %vm5827, %v6842, %v6844
    %v6846 = vrot.slane %v6742, 3
    %v6847 = vsel %vm5827, %v6844, %v6846
    %v6848 = vrot.slane %v6743, 3
    %v6849 = vsel %vm5827, %v6846, %v6848
    %v6850 = vrot.slane %v6744, 3
    %v6851 = vsel %vm5827, %v6848, %v6850
    %v6852 = vsel %vm5827, %v6850, %v5851
    %v6865 = vrot.slane %v6733, 4
    %v6866 = vrot.slane %v6734, 4
    %v6867 = vsel %vm5865, %v6865, %v6866
    %v6868 = vrot.slane %v6735, 4
    %v6869 = vsel %vm5865, %v6866, %v6868
    %v6870 = vrot.slane %v6736, 4
    %v6871 = vsel %vm5865, %v6868, %v6870
    %v6872 = vrot.slane %v6737, 4
    %v6873 = vsel %vm5865, %v6870, %v6872
    %v6874 = vrot.slane %v6738, 4
    %v6875 = vsel %vm5865, %v6872, %v6874
    %v6876 = vrot.slane %v6739, 4
    %v6877 = vsel %vm5865, %v6874, %v6876
    %v6878 = vrot.slane %v6740, 4
    %v6879 = vsel %vm5865, %v6876, %v6878
    %v6880 = vrot.slane %v6741, 4
    %v6881 = vsel %vm5865, %v6878, %v6880
    %v6882 = vrot.slane %v6742, 4
    %v6883 = vsel %vm5865, %v6880, %v6882
    %v6884 = vrot.slane %v6743, 4
    %v6885 = vsel %vm5865, %v6882, %v6884
    %v6886 = vrot.slane %v6744, 4
    %v6887 = vsel %vm5865, %v6884, %v6886
    %v6888 = vsel %vm5865, %v6886, %v5889
    %v6901 = vpack.c.bf16 %v6734, %v6733
    %v6902 = vpack.c.bf16 %v6761, %v6759
    %v6903 = vpack.c.bf16 %v6797, %v6795
    %v6904 = vpack.c.bf16 %v6833, %v6831
    %v6905 = vpack.c.bf16 %v6869, %v6867
    %v6906 = vpack.c.bf16 %v6736, %v6735
    %v6907 = vpack.c.bf16 %v6765, %v6763
    %v6908 = vpack.c.bf16 %v6801, %v6799
    %v6909 = vpack.c.bf16 %v6837, %v6835
    %v6910 = vpack.c.bf16 %v6873, %v6871
    %v6911 = vpack.c.bf16 %v6738, %v6737
    %v6912 = vpack.c.bf16 %v6769, %v6767
    %v6913 = vpack.c.bf16 %v6805, %v6803
    %v6914 = vpack.c.bf16 %v6841, %v6839
    %v6915 = vpack.c.bf16 %v6877, %v6875
    %v6916 = vpack.c.bf16 %v6740, %v6739
    %v6917 = vpack.c.bf16 %v6773, %v6771
    %v6918 = vpack.c.bf16 %v6809, %v6807
    %v6919 = vpack.c.bf16 %v6845, %v6843
    %v6920 = vpack.c.bf16 %v6881, %v6879
    %v6921 = vpack.c.bf16 %v6742, %v6741
    %v6922 = vpack.c.bf16 %v6777, %v6775
    %v6923 = vpack.c.bf16 %v6813, %v6811
    %v6924 = vpack.c.bf16 %v6849, %v6847
    %v6925 = vpack.c.bf16 %v6885, %v6883
    %v6926 = vpack.c.bf16 %v6744, %v6743
    %v6927 = vpack.c.bf16 %v6780, %v6779
    %v6928 = vpack.c.bf16 %v6816, %v6815
    %v6929 = vpack.c.bf16 %v6852, %v6851
    %v6930 = vpack.c.bf16 %v6888, %v6887
    %v6931 = vld [vmem:[#allocation15] sm:$0xf]
    %v6932 = vld [vmem:[#allocation15 + $0x4] sm:$0xf]
    %v6933 = vld [vmem:[#allocation15 + $0x8] sm:$0xf]
    %v6934 = vld [vmem:[#allocation15 + $0xc] sm:$0xf]
    %v6935 = vld [vmem:[#allocation15 + $0x10] sm:$0xf]
    %v6936 = vld [vmem:[#allocation15 + $0x14] sm:$0xf]
    %v6937 = vld [vmem:[#allocation15 + $0x18] sm:$0xf]
    %v6938 = vld [vmem:[#allocation15 + $0x1c] sm:$0xf]
    %v6939 = vld [vmem:[#allocation15 + $0x20] sm:$0xf]
    %v6940 = vld [vmem:[#allocation15 + $0x24] sm:$0xf]
    %v6941 = vld [vmem:[#allocation15 + $0x28] sm:$0xf]
    %v6942 = vld [vmem:[#allocation15 + $0x2c] sm:$0xf]
    %v6943 = vld [vmem:[#allocation15 + $0x30] sm:$0xf]
    %v6944 = vld [vmem:[#allocation15 + $0x34] sm:$0xf]
    %v6945 = vld [vmem:[#allocation15 + $0x38] sm:$0xf]
    %v6946 = vld [vmem:[#allocation15 + $0x3c] sm:$0xf]
    %v6947 = vld [vmem:[#allocation15 + $0x40] sm:$0xf]
    %v6948 = vld [vmem:[#allocation15 + $0x44] sm:$0xf]
    %v6949 = vld [vmem:[#allocation15 + $0x48] sm:$0xf]
    %v6950 = vld [vmem:[#allocation15 + $0x4c] sm:$0xf]
    %v6951 = vld [vmem:[#allocation15 + $0x50] sm:$0xf]
    %v6952 = vld [vmem:[#allocation15 + $0x54] sm:$0xf]
    %v6953 = vld [vmem:[#allocation15 + $0x58] sm:$0xf]
    %v6954 = vld [vmem:[#allocation15 + $0x5c] sm:$0xf]
    %v6955 = vld [vmem:[#allocation15 + $0x60] sm:$0xf]
    %v6956 = vld [vmem:[#allocation15 + $0x64] sm:$0xf]
    %v6957 = vld [vmem:[#allocation15 + $0x68] sm:$0xf]
    %v6958 = vld [vmem:[#allocation15 + $0x6c] sm:$0xf]
    %v6959 = vld [vmem:[#allocation15 + $0x70] sm:$0xf]
    %v6960 = vld [vmem:[#allocation15 + $0x74] sm:$0xf]
    %v6961 = vld [vmem:[#allocation15 + $0x78] sm:$0xf]
    %v6962 = vld [vmem:[#allocation15 + $0x7c] sm:$0xf]
    %v6963 = vld [vmem:[#allocation15 + $0x80] sm:$0xf]
    %v6964 = vld [vmem:[#allocation15 + $0x84] sm:$0xf]
    %v6965 = vld [vmem:[#allocation15 + $0x88] sm:$0xf]
    %v6966 = vld [vmem:[#allocation15 + $0x8c] sm:$0xf]
    %v6967 = vld [vmem:[#allocation15 + $0x90] sm:$0xf]
    %v6968 = vld [vmem:[#allocation15 + $0x94] sm:$0xf]
    %v6969 = vld [vmem:[#allocation15 + $0x98] sm:$0xf]
    %v6970 = vld [vmem:[#allocation15 + $0x9c] sm:$0xf]
    %v6971 = vld [vmem:[#allocation15 + $0xa0] sm:$0xf]
    %v6972 = vld [vmem:[#allocation15 + $0xa4] sm:$0xf]
    %v6973 = vld [vmem:[#allocation15 + $0xa8] sm:$0xf]
    %v6974 = vld [vmem:[#allocation15 + $0xac] sm:$0xf]
    %v6975 = vld [vmem:[#allocation15 + $0xb0] sm:$0xf]
    %v6976 = vld [vmem:[#allocation15 + $0xb4] sm:$0xf]
    %v6977 = vld [vmem:[#allocation15 + $0xb8] sm:$0xf]
    %v6978 = vld [vmem:[#allocation15 + $0xbc] sm:$0xf]
    %v6979 = vld [vmem:[#allocation15 + $0xc0] sm:$0xf]
    %v6980 = vld [vmem:[#allocation15 + $0xc4] sm:$0xf]
    %v6981 = vld [vmem:[#allocation15 + $0xc8] sm:$0xf]
    %v6982 = vld [vmem:[#allocation15 + $0xcc] sm:$0xf]
    %v6983 = vld [vmem:[#allocation15 + $0xd0] sm:$0xf]
    %v6984 = vld [vmem:[#allocation15 + $0xd4] sm:$0xf]
    %v6985 = vld [vmem:[#allocation15 + $0xd8] sm:$0xf]
    %v6986 = vld [vmem:[#allocation15 + $0xdc] sm:$0xf]
    %v6987 = vld [vmem:[#allocation15 + $0xe0] sm:$0xf]
    %v6988 = vld [vmem:[#allocation15 + $0xe4] sm:$0xf]
    %v6989 = vld [vmem:[#allocation15 + $0xe8] sm:$0xf]
    %v6990 = vld [vmem:[#allocation15 + $0xec] sm:$0xf]
    %v6991 = vld [vmem:[#allocation15 + $0xf0] sm:$0xf]
    %v6992 = vld [vmem:[#allocation15 + $0xf4] sm:$0xf]
    %v6993 = vld [vmem:[#allocation15 + $0xf8] sm:$0xf]
    %v6994 = vld [vmem:[#allocation15 + $0xfc] sm:$0xf]
    %v6995 = vld [vmem:[#allocation15 + $0x100] sm:$0xf]
    %v6996 = vld [vmem:[#allocation15 + $0x104] sm:$0xf]
    %v6997 = vld [vmem:[#allocation15 + $0x108] sm:$0xf]
    %v6998 = vld [vmem:[#allocation15 + $0x10c] sm:$0xf]
    %v6999 = vld [vmem:[#allocation15 + $0x110] sm:$0xf]
    %v7000 = vld [vmem:[#allocation15 + $0x114] sm:$0xf]
    %v7001 = vld [vmem:[#allocation15 + $0x118] sm:$0xf]
    %v7002 = vld [vmem:[#allocation15 + $0x11c] sm:$0xf]
    %v7003 = vld [vmem:[#allocation15 + $0x120] sm:$0xf]
    %v7004 = vld [vmem:[#allocation15 + $0x124] sm:$0xf]
    %v7005 = vld [vmem:[#allocation15 + $0x128] sm:$0xf]
    %v7006 = vld [vmem:[#allocation15 + $0x12c] sm:$0xf]
    %v7007 = vld [vmem:[#allocation15 + $0x130] sm:$0xf]
    %v7008 = vld [vmem:[#allocation15 + $0x134] sm:$0xf]
    %v7009 = vld [vmem:[#allocation15 + $0x138] sm:$0xf]
    %v7010 = vld [vmem:[#allocation15 + $0x13c] sm:$0xf]
    %v7011 = vld [vmem:[%s15] sm:$0x1]
    %v7013 = vlaneseq
    %v7014 = vshrl.u32 %v7013, 7
    %v7015 = vsub.s32 0, %v7014
    %v7016 = vrot.slane %v7011, %v7015
    %v7098 = vunpack.c.l.b16 %v6931
    %v7099 = vunpack.c.l.b16 %v6932
    %v7100 = vunpack.c.l.b16 %v6933
    %v7101 = vunpack.c.l.b16 %v6934
    %v7102 = vunpack.c.l.b16 %v6935
    %v7103 = vunpack.c.l.b16 %v6936
    %v7104 = vunpack.c.l.b16 %v6937
    %v7105 = vunpack.c.l.b16 %v6938
    %v7106 = vunpack.c.l.b16 %v6939
    %v7107 = vunpack.c.l.b16 %v6940
    %v7108 = vunpack.c.l.b16 %v6941
    %v7109 = vunpack.c.l.b16 %v6942
    %v7110 = vunpack.c.l.b16 %v6943
    %v7111 = vunpack.c.l.b16 %v6944
    %v7112 = vunpack.c.l.b16 %v6945
    %v7113 = vunpack.c.l.b16 %v6946
    %v7114 = vunpack.c.l.b16 %v6947
    %v7115 = vunpack.c.l.b16 %v6948
    %v7116 = vunpack.c.l.b16 %v6949
    %v7117 = vunpack.c.l.b16 %v6950
    %v7118 = vunpack.c.l.b16 %v6951
    %v7119 = vunpack.c.l.b16 %v6952
    %v7120 = vunpack.c.l.b16 %v6953
    %v7121 = vunpack.c.l.b16 %v6954
    %v7122 = vunpack.c.l.b16 %v6955
    %v7123 = vunpack.c.l.b16 %v6956
    %v7124 = vunpack.c.l.b16 %v6957
    %v7125 = vunpack.c.l.b16 %v6958
    %v7126 = vunpack.c.l.b16 %v6959
    %v7127 = vunpack.c.l.b16 %v6960
    %v7128 = vunpack.c.l.b16 %v6961
    %v7129 = vunpack.c.l.b16 %v6962
    %v7130 = vunpack.c.l.b16 %v6963
    %v7131 = vunpack.c.l.b16 %v6964
    %v7132 = vunpack.c.l.b16 %v6965
    %v7133 = vunpack.c.l.b16 %v6966
    %v7134 = vunpack.c.l.b16 %v6967
    %v7135 = vunpack.c.l.b16 %v6968
    %v7136 = vunpack.c.l.b16 %v6969
    %v7137 = vunpack.c.l.b16 %v6970
    %v7138 = vunpack.c.l.b16 %v6971
    %v7139 = vunpack.c.l.b16 %v6972
    %v7140 = vunpack.c.l.b16 %v6973
    %v7141 = vunpack.c.l.b16 %v6974
    %v7142 = vunpack.c.l.b16 %v6975
    %v7143 = vunpack.c.l.b16 %v6976
    %v7144 = vunpack.c.l.b16 %v6977
    %v7145 = vunpack.c.l.b16 %v6978
    %v7146 = vunpack.c.l.b16 %v6979
    %v7147 = vunpack.c.l.b16 %v6980
    %v7148 = vunpack.c.l.b16 %v6981
    %v7149 = vunpack.c.l.b16 %v6982
    %v7150 = vunpack.c.l.b16 %v6983
    %v7151 = vunpack.c.l.b16 %v6984
    %v7152 = vunpack.c.l.b16 %v6985
    %v7153 = vunpack.c.l.b16 %v6986
    %v7154 = vunpack.c.l.b16 %v6987
    %v7155 = vunpack.c.l.b16 %v6988
    %v7156 = vunpack.c.l.b16 %v6989
    %v7157 = vunpack.c.l.b16 %v6990
    %v7158 = vunpack.c.l.b16 %v6991
    %v7159 = vunpack.c.l.b16 %v6992
    %v7160 = vunpack.c.l.b16 %v6993
    %v7161 = vunpack.c.l.b16 %v6994
    %v7162 = vunpack.c.l.b16 %v6995
    %v7163 = vunpack.c.l.b16 %v6996
    %v7164 = vunpack.c.l.b16 %v6997
    %v7165 = vunpack.c.l.b16 %v6998
    %v7166 = vunpack.c.l.b16 %v6999
    %v7167 = vunpack.c.l.b16 %v7000
    %v7168 = vunpack.c.l.b16 %v7001
    %v7169 = vunpack.c.l.b16 %v7002
    %v7170 = vunpack.c.l.b16 %v7003
    %v7171 = vunpack.c.l.b16 %v7004
    %v7172 = vunpack.c.l.b16 %v7005
    %v7173 = vunpack.c.l.b16 %v7006
    %v7174 = vunpack.c.l.b16 %v7007
    %v7175 = vunpack.c.l.b16 %v7008
    %v7176 = vunpack.c.l.b16 %v7009
    %v7177 = vunpack.c.l.b16 %v7010
    %v7178 = vpack.c.b16 %v7099, %v7098
    %v7179 = vpack.c.b16 %v7101, %v7100
    %v7180 = vpack.c.b16 %v7103, %v7102
    %v7181 = vpack.c.b16 %v7105, %v7104
    %v7182 = vpack.c.b16 %v7107, %v7106
    %v7183 = vpack.c.b16 %v7109, %v7108
    %v7184 = vpack.c.b16 %v7111, %v7110
    %v7185 = vpack.c.b16 %v7113, %v7112
    %v7186 = vpack.c.b16 %v7115, %v7114
    %v7187 = vpack.c.b16 %v7117, %v7116
    %v7188 = vpack.c.b16 %v7119, %v7118
    %v7189 = vpack.c.b16 %v7121, %v7120
    %v7190 = vpack.c.b16 %v7123, %v7122
    %v7191 = vpack.c.b16 %v7125, %v7124
    %v7192 = vpack.c.b16 %v7127, %v7126
    %v7193 = vpack.c.b16 %v7129, %v7128
    %v7194 = vpack.c.b16 %v7131, %v7130
    %v7195 = vpack.c.b16 %v7133, %v7132
    %v7196 = vpack.c.b16 %v7135, %v7134
    %v7197 = vpack.c.b16 %v7137, %v7136
    %v7198 = vpack.c.b16 %v7139, %v7138
    %v7199 = vpack.c.b16 %v7141, %v7140
    %v7200 = vpack.c.b16 %v7143, %v7142
    %v7201 = vpack.c.b16 %v7145, %v7144
    %v7202 = vpack.c.b16 %v7147, %v7146
    %v7203 = vpack.c.b16 %v7149, %v7148
    %v7204 = vpack.c.b16 %v7151, %v7150
    %v7205 = vpack.c.b16 %v7153, %v7152
    %v7206 = vpack.c.b16 %v7155, %v7154
    %v7207 = vpack.c.b16 %v7157, %v7156
    %v7208 = vpack.c.b16 %v7159, %v7158
    %v7209 = vpack.c.b16 %v7161, %v7160
    %v7210 = vpack.c.b16 %v7163, %v7162
    %v7211 = vpack.c.b16 %v7165, %v7164
    %v7212 = vpack.c.b16 %v7167, %v7166
    %v7213 = vpack.c.b16 %v7169, %v7168
    %v7214 = vpack.c.b16 %v7171, %v7170
    %v7215 = vpack.c.b16 %v7173, %v7172
    %v7216 = vpack.c.b16 %v7175, %v7174
    %v7217 = vpack.c.b16 %v7177, %v7176
    %7258 = vmatprep.subr.bf16.mxu0 0
    %7259 = vmatpush1.bf16.msra.mxu0 %v7178
    %7260 = vmatprep.subr.bf16.mxu0 0
    %7261 = vmatpush1.bf16.msra.mxu0 %v7179
    %7262 = vmatprep.subr.bf16.mxu0 0
    %7263 = vmatpush1.bf16.msra.mxu0 %v7180
    %7264 = vmatprep.subr.bf16.mxu0 0
    %7265 = vmatpush1.bf16.msra.mxu0 %v7181
    %7266 = vmatprep.subr.bf16.mxu0 0
    %7267 = vmatpush1.bf16.msra.mxu0 %v7182
    %7268 = vmatprep.subr.bf16.mxu0 0
    %7269 = vmatpush1.bf16.msra.mxu0 %v7183
    %7270 = vmatprep.subr.bf16.mxu0 0
    %7271 = vmatpush1.bf16.msra.mxu0 %v7184
    %7272 = vmatprep.subr.bf16.mxu0 0
    %7273 = vmatpush1.bf16.msra.mxu0 %v7185
    %7274 = vmatprep.subr.bf16.mxu0 0
    %7275 = vmatpush1.bf16.msra.mxu0 %v7186
    %7276 = vmatprep.subr.bf16.mxu0 0
    %7277 = vmatpush1.bf16.msra.mxu0 %v7187
    %7278 = vmatprep.subr.bf16.mxu0 0
    %7279 = vmatpush1.bf16.msra.mxu0 %v7188
    %7280 = vmatprep.subr.bf16.mxu0 0
    %7281 = vmatpush1.bf16.msra.mxu0 %v7189
    %7282 = vmatprep.subr.bf16.mxu0 0
    %7283 = vmatpush1.bf16.msra.mxu0 %v7190
    %7284 = vmatprep.subr.bf16.mxu0 0
    %7285 = vmatpush1.bf16.msra.mxu0 %v7191
    %7286 = vmatprep.subr.bf16.mxu0 0
    %7287 = vmatpush1.bf16.msra.mxu0 %v7192
    %7288 = vmatprep.subr.bf16.mxu0 0
    %7289 = vmatpush1.bf16.msra.mxu0 %v7193
    %7290 = vmatprep.mubr.bf16.mxu0 %v6902
    %7291 = vmatmul.mubr.bf16.gmra.mrb[0].mxu0 %v6901
    %v7292 = vpop.f32.mrb[0].mxu0
    %v7293 = vadd.f32 %v7016, %v7292
    %v7294 = vpop.f32.mrb[0].mxu0
    %v7295 = vpop.f32.mrb[0].mxu0
    %v7296 = vadd.f32 %v7016, %v7295
    %v7297 = vpop.f32.mrb[0].mxu0
    %7298 = vmatprep.mubr.bf16.mxu0 %v6907
    %7299 = vmatmul.mubr.bf16.gmra.mrb[0].mxu0 %v6906
    %v7300 = vpop.f32.mrb[0].mxu0
    %v7301 = vadd.f32 %v7016, %v7300
    %v7302 = vpop.f32.mrb[0].mxu0
    %v7303 = vpop.f32.mrb[0].mxu0
    %v7304 = vadd.f32 %v7016, %v7303
    %v7305 = vpop.f32.mrb[0].mxu0
    %7306 = vmatprep.mubr.bf16.mxu0 %v6912
    %7307 = vmatmul.mubr.bf16.gmra.mrb[0].mxu0 %v6911
    %v7308 = vpop.f32.mrb[0].mxu0
    %v7309 = vadd.f32 %v7016, %v7308
    %v7310 = vpop.f32.mrb[0].mxu0
    %v7311 = vpop.f32.mrb[0].mxu0
    %v7312 = vadd.f32 %v7016, %v7311
    %v7313 = vpop.f32.mrb[0].mxu0
    %7314 = vmatprep.mubr.bf16.mxu0 %v6917
    %7315 = vmatmul.mubr.bf16.gmra.mrb[0].mxu0 %v6916
    %v7316 = vpop.f32.mrb[0].mxu0
    %v7317 = vadd.f32 %v7016, %v7316
    %v7318 = vpop.f32.mrb[0].mxu0
    %v7319 = vpop.f32.mrb[0].mxu0
    %v7320 = vadd.f32 %v7016, %v7319
    %v7321 = vpop.f32.mrb[0].mxu0
    %7322 = vmatprep.mubr.bf16.mxu0 %v6922
    %7323 = vmatmul.mubr.bf16.gmra.mrb[0].mxu0 %v6921
    %v7324 = vpop.f32.mrb[0].mxu0
    %v7325 = vadd.f32 %v7016, %v7324
    %v7326 = vpop.f32.mrb[0].mxu0
    %v7327 = vpop.f32.mrb[0].mxu0
    %v7328 = vadd.f32 %v7016, %v7327
    %v7329 = vpop.f32.mrb[0].mxu0
    %7330 = vmatprep.mubr.bf16.mxu0 %v6927
    %7331 = vmatmul.mubr.bf16.gmra.mrb[0].mxu0 %v6926
    %v7332 = vpop.f32.mrb[0].mxu0
    %v7333 = vadd.f32 %v7016, %v7332
    %v7334 = vpop.f32.mrb[0].mxu0
    %v7335 = vpop.f32.mrb[0].mxu0
    %v7336 = vadd.f32 %v7016, %v7335
    %v7337 = vpop.f32.mrb[0].mxu0
    %7338 = vdwg.mxu0
    %7339 = vmatprep.subr.bf16.mxu0 0
    %7340 = vmatpush1.bf16.msra.mxu0 %v7194
    %7341 = vmatprep.subr.bf16.mxu0 0
    %7342 = vmatpush1.bf16.msra.mxu0 %v7195
    %7343 = vmatprep.subr.bf16.mxu0 0
    %7344 = vmatpush1.bf16.msra.mxu0 %v7196
    %7345 = vmatprep.subr.bf16.mxu0 0
    %7346 = vmatpush1.bf16.msra.mxu0 %v7197
    %7347 = vmatprep.subr.bf16.mxu0 0
    %7348 = vmatpush1.bf16.msra.mxu0 %v7198
    %7349 = vmatprep.subr.bf16.mxu0 0
    %7350 = vmatpush1.bf16.msra.mxu0 %v7199
    %7351 = vmatprep.subr.bf16.mxu0 0
    %7352 = vmatpush1.bf16.msra.mxu0 %v7200
    %7353 = vmatprep.subr.bf16.mxu0 0
    %7354 = vmatpush1.bf16.msra.mxu0 %v7201
    %7355 = vmatprep.subr.bf16.mxu0 0
    %7356 = vmatpush1.bf16.msra.mxu0 %v7202
    %7357 = vmatprep.subr.bf16.mxu0 0
    %7358 = vmatpush1.bf16.msra.mxu0 %v7203
    %7359 = vmatprep.subr.bf16.mxu0 0
    %7360 = vmatpush1.bf16.msra.mxu0 %v7204
    %7361 = vmatprep.subr.bf16.mxu0 0
    %7362 = vmatpush1.bf16.msra.mxu0 %v7205
    %7363 = vmatprep.subr.bf16.mxu0 0
    %7364 = vmatpush1.bf16.msra.mxu0 %v7206
    %7365 = vmatprep.subr.bf16.mxu0 0
    %7366 = vmatpush1.bf16.msra.mxu0 %v7207
    %7367 = vmatprep.subr.bf16.mxu0 0
    %7368 = vmatpush1.bf16.msra.mxu0 %v7208
    %7369 = vmatprep.subr.bf16.mxu0 0
    %7370 = vmatpush1.bf16.msra.mxu0 %v7209
    %7371 = vmatprep.mubr.bf16.mxu0 %v6904
    %7372 = vmatmul.mubr.bf16.gmra.mrb[0].mxu0 %v6903
    %v7373 = vpop.f32.mrb[0].mxu0
    %v7374 = vadd.f32 %v7293, %v7373
    %v7375 = vpop.f32.mrb[0].mxu0
    %v7376 = vpop.f32.mrb[0].mxu0
    %v7377 = vadd.f32 %v7296, %v7376
    %v7378 = vpop.f32.mrb[0].mxu0
    %7379 = vmatprep.mubr.bf16.mxu0 %v6909
    %7380 = vmatmul.mubr.bf16.gmra.mrb[0].mxu0 %v6908
    %v7381 = vpop.f32.mrb[0].mxu0
    %v7382 = vadd.f32 %v7301, %v7381
    %v7383 = vpop.f32.mrb[0].mxu0
    %v7384 = vpop.f32.mrb[0].mxu0
    %v7385 = vadd.f32 %v7304, %v7384
    %v7386 = vpop.f32.mrb[0].mxu0
    %7387 = vmatprep.mubr.bf16.mxu0 %v6914
    %7388 = vmatmul.mubr.bf16.gmra.mrb[0].mxu0 %v6913
    %v7389 = vpop.f32.mrb[0].mxu0
    %v7390 = vadd.f32 %v7309, %v7389
    %v7391 = vpop.f32.mrb[0].mxu0
    %v7392 = vpop.f32.mrb[0].mxu0
    %v7393 = vadd.f32 %v7312, %v7392
    %v7394 = vpop.f32.mrb[0].mxu0
    %7395 = vmatprep.mubr.bf16.mxu0 %v6919
    %7396 = vmatmul.mubr.bf16.gmra.mrb[0].mxu0 %v6918
    %v7397 = vpop.f32.mrb[0].mxu0
    %v7398 = vadd.f32 %v7317, %v7397
    %v7399 = vpop.f32.mrb[0].mxu0
    %v7400 = vpop.f32.mrb[0].mxu0
    %v7401 = vadd.f32 %v7320, %v7400
    %v7402 = vpop.f32.mrb[0].mxu0
    %7403 = vmatprep.mubr.bf16.mxu0 %v6924
    %7404 = vmatmul.mubr.bf16.gmra.mrb[0].mxu0 %v6923
    %v7405 = vpop.f32.mrb[0].mxu0
    %v7406 = vadd.f32 %v7325, %v7405
    %v7407 = vpop.f32.mrb[0].mxu0
    %v7408 = vpop.f32.mrb[0].mxu0
    %v7409 = vadd.f32 %v7328, %v7408
    %v7410 = vpop.f32.mrb[0].mxu0
    %7411 = vmatprep.mubr.bf16.mxu0 %v6929
    %7412 = vmatmul.mubr.bf16.gmra.mrb[0].mxu0 %v6928
    %v7413 = vpop.f32.mrb[0].mxu0
    %v7414 = vadd.f32 %v7333, %v7413
    %v7415 = vpop.f32.mrb[0].mxu0
    %v7416 = vpop.f32.mrb[0].mxu0
    %v7417 = vadd.f32 %v7336, %v7416
    %v7418 = vpop.f32.mrb[0].mxu0
    %7419 = vdwg.mxu0
    %7420 = vmatprep.subr.bf16.mxu0 0
    %7421 = vmatpush1.bf16.msra.mxu0 %v7210
    %7422 = vmatprep.subr.bf16.mxu0 0
    %7423 = vmatpush1.bf16.msra.mxu0 %v7211
    %7424 = vmatprep.subr.bf16.mxu0 0
    %7425 = vmatpush1.bf16.msra.mxu0 %v7212
    %7426 = vmatprep.subr.bf16.mxu0 0
    %7427 = vmatpush1.bf16.msra.mxu0 %v7213
    %7428 = vmatprep.subr.bf16.mxu0 0
    %7429 = vmatpush1.bf16.msra.mxu0 %v7214
    %7430 = vmatprep.subr.bf16.mxu0 0
    %7431 = vmatpush1.bf16.msra.mxu0 %v7215
    %7432 = vmatprep.subr.bf16.mxu0 0
    %7433 = vmatpush1.bf16.msra.mxu0 %v7216
    %7434 = vmatprep.subr.bf16.mxu0 0
    %7435 = vmatpush1.bf16.msra.mxu0 %v7217
    %7436 = vmatprep.subr.bf16.mxu0 0
    %7437 = vmatpush1.bf16.msra.mxu0 0
    %7438 = vmatprep.subr.bf16.mxu0 0
    %7439 = vmatpush1.bf16.msra.mxu0 0
    %7440 = vmatprep.subr.bf16.mxu0 0
    %7441 = vmatpush1.bf16.msra.mxu0 0
    %7442 = vmatprep.subr.bf16.mxu0 0
    %7443 = vmatpush1.bf16.msra.mxu0 0
    %7444 = vmatprep.subr.bf16.mxu0 0
    %7445 = vmatpush1.bf16.msra.mxu0 0
    %7446 = vmatprep.subr.bf16.mxu0 0
    %7447 = vmatpush1.bf16.msra.mxu0 0
    %7448 = vmatprep.subr.bf16.mxu0 0
    %7449 = vmatpush1.bf16.msra.mxu0 0
    %7450 = vmatprep.subr.bf16.mxu0 0
    %7451 = vmatpush1.bf16.msra.mxu0 0
    %7452 = vmatprep.mubr.bf16.mxu0 0
    %7453 = vmatmul.mubr.bf16.gmra.mrb[0].mxu0 %v6905
    %v7454 = vpop.f32.mrb[0].mxu0
    %v7455 = vadd.f32 %v7374, %v7454
    %v7456 = vpop.f32.mrb[0].mxu0
    %v7457 = vpop.f32.mrb[0].mxu0
    %v7458 = vadd.f32 %v7377, %v7457
    %v7459 = vpop.f32.mrb[0].mxu0
    %7460 = vmatprep.mubr.bf16.mxu0 0
    %7461 = vmatmul.mubr.bf16.gmra.mrb[0].mxu0 %v6910
    %v7462 = vpop.f32.mrb[0].mxu0
    %v7463 = vadd.f32 %v7382, %v7462
    %v7464 = vpop.f32.mrb[0].mxu0
    %v7465 = vpop.f32.mrb[0].mxu0
    %v7466 = vadd.f32 %v7385, %v7465
    %v7467 = vpop.f32.mrb[0].mxu0
    %7468 = vmatprep.mubr.bf16.mxu0 0
    %7469 = vmatmul.mubr.bf16.gmra.mrb[0].mxu0 %v6915
    %v7470 = vpop.f32.mrb[0].mxu0
    %v7471 = vadd.f32 %v7390, %v7470
    %v7472 = vpop.f32.mrb[0].mxu0
    %v7473 = vpop.f32.mrb[0].mxu0
    %v7474 = vadd.f32 %v7393, %v7473
    %v7475 = vpop.f32.mrb[0].mxu0
    %7476 = vmatprep.mubr.bf16.mxu0 0
    %7477 = vmatmul.mubr.bf16.gmra.mrb[0].mxu0 %v6920
    %v7478 = vpop.f32.mrb[0].mxu0
    %v7479 = vadd.f32 %v7398, %v7478
    %v7480 = vpop.f32.mrb[0].mxu0
    %v7481 = vpop.f32.mrb[0].mxu0
    %v7482 = vadd.f32 %v7401, %v7481
    %v7483 = vpop.f32.mrb[0].mxu0
    %7484 = vmatprep.mubr.bf16.mxu0 0
    %7485 = vmatmul.mubr.bf16.gmra.mrb[0].mxu0 %v6925
    %v7486 = vpop.f32.mrb[0].mxu0
    %v7487 = vadd.f32 %v7406, %v7486
    %v7488 = vpop.f32.mrb[0].mxu0
    %v7489 = vpop.f32.mrb[0].mxu0
    %v7490 = vadd.f32 %v7409, %v7489
    %v7491 = vpop.f32.mrb[0].mxu0
    %7492 = vmatprep.mubr.bf16.mxu0 0
    %7493 = vmatmul.mubr.bf16.gmra.mrb[0].mxu0 %v6930
    %v7494 = vpop.f32.mrb[0].mxu0
    %v7495 = vadd.f32 %v7414, %v7494
    %v7496 = vpop.f32.mrb[0].mxu0
    %v7497 = vpop.f32.mrb[0].mxu0
    %v7498 = vadd.f32 %v7417, %v7497
    %v7499 = vpop.f32.mrb[0].mxu0
    %7500 = vdwg.mxu0
    %vm7501 = vcmp.lt.s32.totalorder %v4067, 30
    %vm7502 = vcmp.lt.s32.totalorder %v4068, 30
    %vm7503 = vcmp.lt.s32.totalorder %v4069, 30
    %vm7504 = vcmp.lt.s32.totalorder %v4070, 30
    %vm7505 = vcmp.lt.s32.totalorder %v4071, 30
    %vm7506 = vcmp.lt.s32.totalorder %v4072, 30
    %vm7507 = vcmp.lt.s32.totalorder %v4073, 30
    %vm7508 = vcmp.lt.s32.totalorder %v4074, 30
    %vm7509 = vcmp.lt.s32.totalorder %v4075, 30
    %vm7510 = vcmp.lt.s32.totalorder %v4076, 30
    %vm7511 = vcmp.lt.s32.totalorder %v4077, 30
    %vm7512 = vcmp.lt.s32.totalorder %v4078, 30
    %vm7513 = vcmp.lt.s32.totalorder %v4067, 78
    %vm7514 = vcmp.lt.s32.totalorder %v4068, 78
    %vm7515 = vcmp.lt.s32.totalorder %v4069, 78
    %vm7516 = vcmp.lt.s32.totalorder %v4070, 78
    %vm7517 = vcmp.lt.s32.totalorder %v4071, 78
    %vm7518 = vcmp.lt.s32.totalorder %v4072, 78
    %vm7519 = vcmp.lt.s32.totalorder %v4073, 78
    %vm7520 = vcmp.lt.s32.totalorder %v4074, 78
    %vm7521 = vcmp.lt.s32.totalorder %v4075, 78
    %vm7522 = vcmp.lt.s32.totalorder %v4076, 78
    %vm7523 = vcmp.lt.s32.totalorder %v4077, 78
    %vm7524 = vcmp.lt.s32.totalorder %v4078, 78
    %vm7525 = vmand %vm4091, %vm7513
    %vm7526 = vmand %vm4092, %vm7514
    %vm7527 = vmand %vm4093, %vm7515
    %vm7528 = vmand %vm4094, %vm7516
    %vm7529 = vmand %vm4095, %vm7517
    %vm7530 = vmand %vm4096, %vm7518
    %vm7531 = vmand %vm4097, %vm7519
    %vm7532 = vmand %vm4098, %vm7520
    %vm7533 = vmand %vm4099, %vm7521
    %vm7534 = vmand %vm4100, %vm7522
    %vm7535 = vmand %vm4101, %vm7523
    %vm7536 = vmand %vm4102, %vm7524
    %vm7537 = vmor %vm7501, %vm7525
    %vm7538 = vmor %vm7502, %vm7526
    %vm7539 = vmor %vm7503, %vm7527
    %vm7540 = vmor %vm7504, %vm7528
    %vm7541 = vmor %vm7505, %vm7529
    %vm7542 = vmor %vm7506, %vm7530
    %vm7543 = vmor %vm7507, %vm7531
    %vm7544 = vmor %vm7508, %vm7532
    %vm7545 = vmor %vm7509, %vm7533
    %vm7546 = vmor %vm7510, %vm7534
    %vm7547 = vmor %vm7511, %vm7535
    %vm7548 = vmor %vm7512, %vm7536
    %v7549 = vsel %vm7537, 1, 0
    %v7550 = vsel %vm7538, 1, 0
    %v7551 = vsel %vm7539, 1, 0
    %v7552 = vsel %vm7540, 1, 0
    %v7553 = vsel %vm7541, 1, 0
    %v7554 = vsel %vm7542, 1, 0
    %v7555 = vsel %vm7543, 1, 0
    %v7556 = vsel %vm7544, 1, 0
    %v7557 = vsel %vm7545, 1, 0
    %v7558 = vsel %vm7546, 1, 0
    %v7559 = vsel %vm7547, 1, 0
    %v7560 = vsel %vm7548, 1, 0
    %v7561 = vcvt.s32.f32 %v7549
    %v7562 = vcvt.s32.f32 %v7550
    %v7563 = vcvt.s32.f32 %v7551
    %v7564 = vcvt.s32.f32 %v7552
    %v7565 = vcvt.s32.f32 %v7553
    %v7566 = vcvt.s32.f32 %v7554
    %v7567 = vcvt.s32.f32 %v7555
    %v7568 = vcvt.s32.f32 %v7556
    %v7569 = vcvt.s32.f32 %v7557
    %v7570 = vcvt.s32.f32 %v7558
    %v7571 = vcvt.s32.f32 %v7559
    %v7572 = vcvt.s32.f32 %v7560
    %v7573 = vmul.f32 %v7455, %v7561
    %v7574 = vmul.f32 %v7458, %v7562
    %v7575 = vmul.f32 %v7463, %v7563
    %v7576 = vmul.f32 %v7466, %v7564
    %v7577 = vmul.f32 %v7471, %v7565
    %v7578 = vmul.f32 %v7474, %v7566
    %v7579 = vmul.f32 %v7479, %v7567
    %v7580 = vmul.f32 %v7482, %v7568
    %v7581 = vmul.f32 %v7487, %v7569
    %v7582 = vmul.f32 %v7490, %v7570
    %v7583 = vmul.f32 %v7495, %v7571
    %v7584 = vmul.f32 %v7498, %v7572
    %v7585 = vadd.f32 %v7573, %v7574
    %v7586 = vadd.f32 %v7585, %v7575
    %v7587 = vadd.f32 %v7586, %v7576
    %v7588 = vadd.f32 %v7587, %v7577
    %v7589 = vadd.f32 %v7588, %v7578
    %v7590 = vadd.f32 %v7589, %v7579
    %v7591 = vadd.f32 %v7590, %v7580
    %v7592 = vadd.f32 %v7591, %v7581
    %v7593 = vadd.f32 %v7592, %v7582
    %v7594 = vadd.f32 %v7593, %v7583
    %v7595 = vadd.f32 %v7594, %v7584
    %v7596 = vrot.slane %v7595, 4
    %v7597 = vadd.f32 %v7595, %v7596
    %v7598 = vrot.slane %v7597, 2
    %v7599 = vadd.f32 %v7597, %v7598
    %v7600 = vrot.slane %v7599, 1
    %v7601 = vadd.f32 %v7599, %v7600
    %v7602 = vmul.f32 %v7601, 0.016666668
    %v7603 = vsub.f32 %v7455, %v7602
    %v7604 = vsub.f32 %v7458, %v7602
    %v7605 = vsub.f32 %v7463, %v7602
    %v7606 = vsub.f32 %v7466, %v7602
    %v7607 = vsub.f32 %v7471, %v7602
    %v7608 = vsub.f32 %v7474, %v7602
    %v7609 = vsub.f32 %v7479, %v7602
    %v7610 = vsub.f32 %v7482, %v7602
    %v7611 = vsub.f32 %v7487, %v7602
    %v7612 = vsub.f32 %v7490, %v7602
    %v7613 = vsub.f32 %v7495, %v7602
    %v7614 = vsub.f32 %v7498, %v7602
    %v7615 = vmul.f32 %v7603, %v7603
    %v7616 = vmul.f32 %v7604, %v7604
    %v7617 = vmul.f32 %v7605, %v7605
    %v7618 = vmul.f32 %v7606, %v7606
    %v7619 = vmul.f32 %v7607, %v7607
    %v7620 = vmul.f32 %v7608, %v7608
    %v7621 = vmul.f32 %v7609, %v7609
    %v7622 = vmul.f32 %v7610, %v7610
    %v7623 = vmul.f32 %v7611, %v7611
    %v7624 = vmul.f32 %v7612, %v7612
    %v7625 = vmul.f32 %v7613, %v7613
    %v7626 = vmul.f32 %v7614, %v7614
    %v7627 = vmul.f32 %v7615, %v7561
    %v7628 = vmul.f32 %v7616, %v7562
    %v7629 = vmul.f32 %v7617, %v7563
    %v7630 = vmul.f32 %v7618, %v7564
    %v7631 = vmul.f32 %v7619, %v7565
    %v7632 = vmul.f32 %v7620, %v7566
    %v7633 = vmul.f32 %v7621, %v7567
    %v7634 = vmul.f32 %v7622, %v7568
    %v7635 = vmul.f32 %v7623, %v7569
    %v7636 = vmul.f32 %v7624, %v7570
    %v7637 = vmul.f32 %v7625, %v7571
    %v7638 = vmul.f32 %v7626, %v7572
    %v7639 = vadd.f32 %v7627, %v7628
    %v7640 = vadd.f32 %v7639, %v7629
    %v7641 = vadd.f32 %v7640, %v7630
    %v7642 = vadd.f32 %v7641, %v7631
    %v7643 = vadd.f32 %v7642, %v7632
    %v7644 = vadd.f32 %v7643, %v7633
    %v7645 = vadd.f32 %v7644, %v7634
    %v7646 = vadd.f32 %v7645, %v7635
    %v7647 = vadd.f32 %v7646, %v7636
    %v7648 = vadd.f32 %v7647, %v7637
    %v7649 = vadd.f32 %v7648, %v7638
    %v7650 = vrot.slane %v7649, 4
    %v7651 = vadd.f32 %v7649, %v7650
    %v7652 = vrot.slane %v7651, 2
    %v7653 = vadd.f32 %v7651, %v7652
    %v7654 = vrot.slane %v7653, 1
    %v7655 = vadd.f32 %v7653, %v7654
    %v7656 = vmul.f32 %v7655, 0.016666668
    %v7657 = vadd.f32 %v7656, 1e-05
    %v7658 = vrsqrt.pop %v7657
    %v7659 = vmul.f32 %v7603, %v7658
    %v7660 = vmul.f32 %v7604, %v7658
    %v7661 = vmul.f32 %v7605, %v7658
    %v7662 = vmul.f32 %v7606, %v7658
    %v7663 = vmul.f32 %v7607, %v7658
    %v7664 = vmul.f32 %v7609, %v7658
    %v7665 = vmul.f32 %v7610, %v7658
    %v7666 = vmul.f32 %v7611, %v7658
    %v7667 = vmul.f32 %v7612, %v7658
    %v7668 = vmul.f32 %v7613, %v7658
    %v7669 = vmax.f32 %v7659, 0.0
    %v7670 = vmax.f32 %v7660, 0.0
    %v7671 = vmax.f32 %v7661, 0.0
    %v7672 = vmax.f32 %v7662, 0.0
    %v7673 = vmax.f32 %v7663, 0.0
    %v7674 = vmax.f32 %v7664, 0.0
    %v7675 = vmax.f32 %v7665, 0.0
    %v7676 = vmax.f32 %v7666, 0.0
    %v7677 = vmax.f32 %v7667, 0.0
    %v7678 = vmax.f32 %v7668, 0.0
    %v7689 = vrot.slane %v7669, 1
    %v7690 = vrot.slane %v7670, 1
    %v7691 = vsel %vm543, %v7689, %v7690
    %v7692 = vrot.slane %v7671, 1
    %v7693 = vsel %vm543, %v7690, %v7692
    %v7694 = vrot.slane %v7672, 1
    %v7695 = vsel %vm543, %v7692, %v7694
    %v7696 = vrot.slane %v7673, 1
    %v7697 = vsel %vm543, %v7694, %v7696
    %v7698 = vrot.slane %v7674, 1
    %v7699 = vrot.slane %v7675, 1
    %v7700 = vsel %vm543, %v7698, %v7699
    %v7701 = vrot.slane %v7676, 1
    %v7702 = vsel %vm543, %v7699, %v7701
    %v7703 = vrot.slane %v7677, 1
    %v7704 = vsel %vm543, %v7701, %v7703
    %v7705 = vrot.slane %v7678, 1
    %v7706 = vsel %vm543, %v7703, %v7705
    %v7715 = vmax.f32 %v7669, %v7691
    %v7716 = vmax.f32 %v7670, %v7693
    %v7717 = vmax.f32 %v7671, %v7695
    %v7718 = vmax.f32 %v7672, %v7697
    %v7719 = vmax.f32 %v7674, %v7700
    %v7720 = vmax.f32 %v7675, %v7702
    %v7721 = vmax.f32 %v7676, %v7704
    %v7722 = vmax.f32 %v7677, %v7706
    %s7723 = smul.u32 4, 464
    %s7724 = smul.u32 %s7723, 1
    %s7725 = sshll.u32 %s7724, 4
    %7726 = dma.done [#allocation3], %s7725
    %v7727 = vld [vmem:[#allocation2] sm:$0xff]
    %v7728 = vld [vmem:[#allocation2 + $0x8] sm:$0xff]
    %v7729 = vld [vmem:[#allocation2 + $0x10] sm:$0xff]
    %v7730 = vld [vmem:[#allocation2 + $0x18] sm:$0xff]
    %v7731 = vld [vmem:[#allocation2 + $0x20] sm:$0xff]
    %v7732 = vld [vmem:[#allocation2 + $0x28] sm:$0xff]
    %v7733 = vld [vmem:[#allocation2 + $0x30] sm:$0xff]
    %v7734 = vld [vmem:[#allocation2 + $0x38] sm:$0xff]
    %v7735 = vld [vmem:[#allocation2 + $0x40] sm:$0xff]
    %v7736 = vld [vmem:[#allocation2 + $0x48] sm:$0xff]
    %v7737 = vld [vmem:[#allocation2 + $0x50] sm:$0xff]
    %v7738 = vld [vmem:[#allocation2 + $0x58] sm:$0xff]
    %v7739 = vld [vmem:[#allocation2 + $0x60] sm:$0xff]
    %v7740 = vld [vmem:[#allocation2 + $0x68] sm:$0xff]
    %v7741 = vld [vmem:[#allocation2 + $0x70] sm:$0xff]
    %v7742 = vld [vmem:[#allocation2 + $0x78] sm:$0xff]
    %v7743 = vld [vmem:[#allocation2 + $0x80] sm:$0xff]
    %v7744 = vld [vmem:[#allocation2 + $0x88] sm:$0xff]
    %v7745 = vld [vmem:[#allocation2 + $0x90] sm:$0xff]
    %v7746 = vld [vmem:[#allocation2 + $0x98] sm:$0xff]
    %v7747 = vld [vmem:[#allocation2 + $0xa0] sm:$0xff]
    %v7748 = vld [vmem:[#allocation2 + $0xa8] sm:$0xff]
    %v7749 = vld [vmem:[#allocation2 + $0xb0] sm:$0xff]
    %v7750 = vld [vmem:[#allocation2 + $0xb8] sm:$0xff]
    %v7751 = vld [vmem:[#allocation2 + $0xc0] sm:$0xff]
    %v7752 = vld [vmem:[#allocation2 + $0xc8] sm:$0xff]
    %v7753 = vld [vmem:[#allocation2 + $0xd0] sm:$0xff]
    %v7754 = vld [vmem:[#allocation2 + $0xd8] sm:$0xff]
    %v7755 = vld [vmem:[#allocation2 + $0xe0] sm:$0xff]
    %v7756 = vld [vmem:[#allocation2 + $0xe8] sm:$0xff]
    %v7757 = vld [vmem:[#allocation2 + $0xf0] sm:$0xff]
    %v7758 = vld [vmem:[#allocation2 + $0xf8] sm:$0xff]
    %v7759 = vld [vmem:[#allocation2 + $0x100] sm:$0xff]
    %v7760 = vld [vmem:[#allocation2 + $0x108] sm:$0xff]
    %v7761 = vld [vmem:[#allocation2 + $0x110] sm:$0xff]
    %v7762 = vld [vmem:[#allocation2 + $0x118] sm:$0xff]
    %v7763 = vld [vmem:[#allocation2 + $0x120] sm:$0xff]
    %v7764 = vld [vmem:[#allocation2 + $0x128] sm:$0xff]
    %v7765 = vld [vmem:[#allocation2 + $0x130] sm:$0xff]
    %v7766 = vld [vmem:[#allocation2 + $0x138] sm:$0xff]
    %v7767 = vld [vmem:[#allocation2 + $0x140] sm:$0xff]
    %v7768 = vld [vmem:[#allocation2 + $0x148] sm:$0xff]
    %v7769 = vld [vmem:[#allocation2 + $0x150] sm:$0xff]
    %v7770 = vld [vmem:[#allocation2 + $0x158] sm:$0xff]
    %v7771 = vld [vmem:[#allocation2 + $0x160] sm:$0xff]
    %v7772 = vld [vmem:[#allocation2 + $0x168] sm:$0xff]
    %v7773 = vld [vmem:[#allocation2 + $0x170] sm:$0xff]
    %v7774 = vld [vmem:[#allocation2 + $0x178] sm:$0xff]
    %v7775 = vld [vmem:[#allocation2 + $0x180] sm:$0xff]
    %v7776 = vld [vmem:[#allocation2 + $0x188] sm:$0xff]
    %v7777 = vld [vmem:[#allocation2 + $0x190] sm:$0xff]
    %v7778 = vld [vmem:[#allocation2 + $0x198] sm:$0xff]
    %v7779 = vld [vmem:[#allocation2 + $0x1a0] sm:$0xff]
    %v7780 = vld [vmem:[#allocation2 + $0x1a8] sm:$0xff]
    %v7781 = vld [vmem:[#allocation2 + $0x1b0] sm:$0xff]
    %v7782 = vld [vmem:[#allocation2 + $0x1b8] sm:$0xff]
    %v7783 = vld [vmem:[#allocation2 + $0x1c0] sm:$0xff]
    %v7784 = vld [vmem:[#allocation2 + $0x1c8] sm:$0xff]
    %v7785 = vld [vmem:[#allocation2 + $0x1d0] sm:$0xff]
    %v7786 = vld [vmem:[#allocation2 + $0x1d8] sm:$0xff]
    %v7787 = vld [vmem:[#allocation2 + $0x1e0] sm:$0xff]
    %v7788 = vld [vmem:[#allocation2 + $0x1e8] sm:$0xff]
    %v7789 = vld [vmem:[#allocation2 + $0x1f0] sm:$0xff]
    %v7790 = vld [vmem:[#allocation2 + $0x1f8] sm:$0xff]
    %v7791 = vld [vmem:[#allocation2 + $0x200] sm:$0xff]
    %v7792 = vld [vmem:[#allocation2 + $0x208] sm:$0xff]
    %v7793 = vld [vmem:[#allocation2 + $0x210] sm:$0xff]
    %v7794 = vld [vmem:[#allocation2 + $0x218] sm:$0xff]
    %v7795 = vld [vmem:[#allocation2 + $0x220] sm:$0xff]
    %v7796 = vld [vmem:[#allocation2 + $0x228] sm:$0xff]
    %v7797 = vld [vmem:[#allocation2 + $0x230] sm:$0xff]
    %v7798 = vld [vmem:[#allocation2 + $0x238] sm:$0xff]
    %v7799 = vld [vmem:[#allocation2 + $0x240] sm:$0xff]
    %v7800 = vld [vmem:[#allocation2 + $0x248] sm:$0xff]
    %v7801 = vld [vmem:[#allocation2 + $0x250] sm:$0xff]
    %v7802 = vld [vmem:[#allocation2 + $0x258] sm:$0xff]
    %v7803 = vld [vmem:[#allocation2 + $0x260] sm:$0xff]
    %v7804 = vld [vmem:[#allocation2 + $0x268] sm:$0xff]
    %v7805 = vld [vmem:[#allocation2 + $0x270] sm:$0xff]
    %v7806 = vld [vmem:[#allocation2 + $0x278] sm:$0xff]
    %v7807 = vld [vmem:[#allocation2 + $0x280] sm:$0xff]
    %v7808 = vld [vmem:[#allocation2 + $0x288] sm:$0xff]
    %v7809 = vld [vmem:[#allocation2 + $0x290] sm:$0xff]
    %v7810 = vld [vmem:[#allocation2 + $0x298] sm:$0xff]
    %v7811 = vld [vmem:[#allocation2 + $0x2a0] sm:$0xff]
    %v7812 = vld [vmem:[#allocation2 + $0x2a8] sm:$0xff]
    %v7813 = vld [vmem:[#allocation2 + $0x2b0] sm:$0xff]
    %v7814 = vld [vmem:[#allocation2 + $0x2b8] sm:$0xff]
    %v7815 = vld [vmem:[#allocation2 + $0x2c0] sm:$0xff]
    %v7816 = vld [vmem:[#allocation2 + $0x2c8] sm:$0xff]
    %v7817 = vld [vmem:[#allocation2 + $0x2d0] sm:$0xff]
    %v7818 = vld [vmem:[#allocation2 + $0x2d8] sm:$0xff]
    %v7819 = vld [vmem:[#allocation2 + $0x2e0] sm:$0xff]
    %v7820 = vld [vmem:[#allocation2 + $0x2e8] sm:$0xff]
    %v7821 = vld [vmem:[#allocation2 + $0x2f0] sm:$0xff]
    %v7822 = vld [vmem:[#allocation2 + $0x2f8] sm:$0xff]
    %v7823 = vld [vmem:[#allocation2 + $0x300] sm:$0xff]
    %v7824 = vld [vmem:[#allocation2 + $0x308] sm:$0xff]
    %v7825 = vld [vmem:[#allocation2 + $0x310] sm:$0xff]
    %v7826 = vld [vmem:[#allocation2 + $0x318] sm:$0xff]
    %v7827 = vld [vmem:[#allocation2 + $0x320] sm:$0xff]
    %v7828 = vld [vmem:[#allocation2 + $0x328] sm:$0xff]
    %v7829 = vld [vmem:[#allocation2 + $0x330] sm:$0xff]
    %v7830 = vld [vmem:[#allocation2 + $0x338] sm:$0xff]
    %v7831 = vld [vmem:[#allocation2 + $0x340] sm:$0xff]
    %v7832 = vld [vmem:[#allocation2 + $0x348] sm:$0xff]
    %v7833 = vld [vmem:[#allocation2 + $0x350] sm:$0xff]
    %v7834 = vld [vmem:[#allocation2 + $0x358] sm:$0xff]
    %v7835 = vld [vmem:[#allocation2 + $0x360] sm:$0xff]
    %v7836 = vld [vmem:[#allocation2 + $0x368] sm:$0xff]
    %v7837 = vld [vmem:[#allocation2 + $0x370] sm:$0xff]
    %v7838 = vld [vmem:[#allocation2 + $0x378] sm:$0xff]
    %v7839 = vld [vmem:[#allocation2 + $0x380] sm:$0xff]
    %v7840 = vld [vmem:[#allocation2 + $0x388] sm:$0xff]
    %v7841 = vld [vmem:[#allocation2 + $0x390] sm:$0xff]
    %v7842 = vld [vmem:[#allocation2 + $0x398] sm:$0xff]
    %v7843 = vld [vmem:[#allocation2 + $0x3a0] sm:$0xff]
    %v7844 = vld [vmem:[#allocation2 + $0x3a8] sm:$0xff]
    %v7845 = vld [vmem:[#allocation2 + $0x3b0] sm:$0xff]
    %v7846 = vld [vmem:[#allocation2 + $0x3b8] sm:$0xff]
    %v7847 = vld [vmem:[#allocation2 + $0x3c0] sm:$0xff]
    %v7848 = vld [vmem:[#allocation2 + $0x3c8] sm:$0xff]
    %v7849 = vld [vmem:[#allocation2 + $0x3d0] sm:$0xff]
    %v7850 = vld [vmem:[#allocation2 + $0x3d8] sm:$0xff]
    %v7851 = vld [vmem:[#allocation2 + $0x3e0] sm:$0xff]
    %v7852 = vld [vmem:[#allocation2 + $0x3e8] sm:$0xff]
    %v7853 = vld [vmem:[#allocation2 + $0x3f0] sm:$0xff]
    %v7854 = vld [vmem:[#allocation2 + $0x3f8] sm:$0xff]
    %v7855 = vld [vmem:[#allocation2 + $0x400] sm:$0xff]
    %v7856 = vld [vmem:[#allocation2 + $0x408] sm:$0xff]
    %v7857 = vld [vmem:[#allocation2 + $0x410] sm:$0xff]
    %v7858 = vld [vmem:[#allocation2 + $0x418] sm:$0xff]
    %v7859 = vld [vmem:[#allocation2 + $0x420] sm:$0xff]
    %v7860 = vld [vmem:[#allocation2 + $0x428] sm:$0xff]
    %v7861 = vld [vmem:[#allocation2 + $0x430] sm:$0xff]
    %v7862 = vld [vmem:[#allocation2 + $0x438] sm:$0xff]
    %v7863 = vld [vmem:[#allocation2 + $0x440] sm:$0xff]
    %v7864 = vld [vmem:[#allocation2 + $0x448] sm:$0xff]
    %v7865 = vld [vmem:[#allocation2 + $0x450] sm:$0xff]
    %v7866 = vld [vmem:[#allocation2 + $0x458] sm:$0xff]
    %v7867 = vld [vmem:[#allocation2 + $0x460] sm:$0xff]
    %v7868 = vld [vmem:[#allocation2 + $0x468] sm:$0xff]
    %v7869 = vld [vmem:[#allocation2 + $0x470] sm:$0xff]
    %v7870 = vld [vmem:[#allocation2 + $0x478] sm:$0xff]
    %v7871 = vld [vmem:[#allocation2 + $0x480] sm:$0xff]
    %v7872 = vld [vmem:[#allocation2 + $0x488] sm:$0xff]
    %v7873 = vld [vmem:[#allocation2 + $0x490] sm:$0xff]
    %v7874 = vld [vmem:[#allocation2 + $0x498] sm:$0xff]
    %v7875 = vld [vmem:[#allocation2 + $0x4a0] sm:$0xff]
    %v7876 = vld [vmem:[#allocation2 + $0x4a8] sm:$0xff]
    %v7877 = vld [vmem:[#allocation2 + $0x4b0] sm:$0xff]
    %v7878 = vld [vmem:[#allocation2 + $0x4b8] sm:$0xff]
    %v7879 = vld [vmem:[#allocation2 + $0x4c0] sm:$0xff]
    %v7880 = vld [vmem:[#allocation2 + $0x4c8] sm:$0xff]
    %v7881 = vld [vmem:[#allocation2 + $0x4d0] sm:$0xff]
    %v7882 = vld [vmem:[#allocation2 + $0x4d8] sm:$0xff]
    %v7883 = vld [vmem:[#allocation2 + $0x4e0] sm:$0xff]
    %v7884 = vld [vmem:[#allocation2 + $0x4e8] sm:$0xff]
    %v7885 = vld [vmem:[#allocation2 + $0x4f0] sm:$0xff]
    %v7886 = vld [vmem:[#allocation2 + $0x4f8] sm:$0xff]
    %v7887 = vld [vmem:[#allocation2 + $0x500] sm:$0xff]
    %v7888 = vld [vmem:[#allocation2 + $0x508] sm:$0xff]
    %v7889 = vld [vmem:[#allocation2 + $0x510] sm:$0xff]
    %v7890 = vld [vmem:[#allocation2 + $0x518] sm:$0xff]
    %v7891 = vld [vmem:[#allocation2 + $0x520] sm:$0xff]
    %v7892 = vld [vmem:[#allocation2 + $0x528] sm:$0xff]
    %v7893 = vld [vmem:[#allocation2 + $0x530] sm:$0xff]
    %v7894 = vld [vmem:[#allocation2 + $0x538] sm:$0xff]
    %v7895 = vld [vmem:[#allocation2 + $0x540] sm:$0xff]
    %v7896 = vld [vmem:[#allocation2 + $0x548] sm:$0xff]
    %v7897 = vld [vmem:[#allocation2 + $0x550] sm:$0xff]
    %v7898 = vld [vmem:[#allocation2 + $0x558] sm:$0xff]
    %v7899 = vld [vmem:[#allocation2 + $0x560] sm:$0xff]
    %v7900 = vld [vmem:[#allocation2 + $0x568] sm:$0xff]
    %v7901 = vld [vmem:[#allocation2 + $0x570] sm:$0xff]
    %v7902 = vld [vmem:[#allocation2 + $0x578] sm:$0xff]
    %v7903 = vld [vmem:[#allocation2 + $0x580] sm:$0xff]
    %v7904 = vld [vmem:[#allocation2 + $0x588] sm:$0xff]
    %v7905 = vld [vmem:[#allocation2 + $0x590] sm:$0xff]
    %v7906 = vld [vmem:[#allocation2 + $0x598] sm:$0xff]
    %v7907 = vld [vmem:[#allocation2 + $0x5a0] sm:$0xff]
    %v7908 = vld [vmem:[#allocation2 + $0x5a8] sm:$0xff]
    %v7909 = vld [vmem:[#allocation2 + $0x5b0] sm:$0xff]
    %v7910 = vld [vmem:[#allocation2 + $0x5b8] sm:$0xff]
    %v7911 = vld [vmem:[#allocation2 + $0x5c0] sm:$0xff]
    %v7912 = vld [vmem:[#allocation2 + $0x5c8] sm:$0xff]
    %v7913 = vld [vmem:[#allocation2 + $0x5d0] sm:$0xff]
    %v7914 = vld [vmem:[#allocation2 + $0x5d8] sm:$0xff]
    %v7915 = vld [vmem:[#allocation2 + $0x5e0] sm:$0xff]
    %v7916 = vld [vmem:[#allocation2 + $0x5e8] sm:$0xff]
    %v7917 = vld [vmem:[#allocation2 + $0x5f0] sm:$0xff]
    %v7918 = vld [vmem:[#allocation2 + $0x5f8] sm:$0xff]
    %v7919 = vld [vmem:[#allocation2 + $0x600] sm:$0xff]
    %v7920 = vld [vmem:[#allocation2 + $0x608] sm:$0xff]
    %v7921 = vld [vmem:[#allocation2 + $0x610] sm:$0xff]
    %v7922 = vld [vmem:[#allocation2 + $0x618] sm:$0xff]
    %v7923 = vld [vmem:[#allocation2 + $0x620] sm:$0xff]
    %v7924 = vld [vmem:[#allocation2 + $0x628] sm:$0xff]
    %v7925 = vld [vmem:[#allocation2 + $0x630] sm:$0xff]
    %v7926 = vld [vmem:[#allocation2 + $0x638] sm:$0xff]
    %v7927 = vld [vmem:[#allocation2 + $0x640] sm:$0xff]
    %v7928 = vld [vmem:[#allocation2 + $0x648] sm:$0xff]
    %v7929 = vld [vmem:[#allocation2 + $0x650] sm:$0xff]
    %v7930 = vld [vmem:[#allocation2 + $0x658] sm:$0xff]
    %v7931 = vld [vmem:[#allocation2 + $0x660] sm:$0xff]
    %v7932 = vld [vmem:[#allocation2 + $0x668] sm:$0xff]
    %v7933 = vld [vmem:[#allocation2 + $0x670] sm:$0xff]
    %v7934 = vld [vmem:[#allocation2 + $0x678] sm:$0xff]
    %v7935 = vld [vmem:[#allocation2 + $0x680] sm:$0xff]
    %v7936 = vld [vmem:[#allocation2 + $0x688] sm:$0xff]
    %v7937 = vld [vmem:[#allocation2 + $0x690] sm:$0xff]
    %v7938 = vld [vmem:[#allocation2 + $0x698] sm:$0xff]
    %v7939 = vld [vmem:[#allocation2 + $0x6a0] sm:$0xff]
    %v7940 = vld [vmem:[#allocation2 + $0x6a8] sm:$0xff]
    %v7941 = vld [vmem:[#allocation2 + $0x6b0] sm:$0xff]
    %v7942 = vld [vmem:[#allocation2 + $0x6b8] sm:$0xff]
    %v7943 = vld [vmem:[#allocation2 + $0x6c0] sm:$0xff]
    %v7944 = vld [vmem:[#allocation2 + $0x6c8] sm:$0xff]
    %v7945 = vld [vmem:[#allocation2 + $0x6d0] sm:$0xff]
    %v7946 = vld [vmem:[#allocation2 + $0x6d8] sm:$0xff]
    %v7947 = vld [vmem:[#allocation2 + $0x6e0] sm:$0xff]
    %v7948 = vld [vmem:[#allocation2 + $0x6e8] sm:$0xff]
    %v7949 = vld [vmem:[#allocation2 + $0x6f0] sm:$0xff]
    %v7950 = vld [vmem:[#allocation2 + $0x6f8] sm:$0xff]
    %v7951 = vld [vmem:[#allocation2 + $0x700] sm:$0xff]
    %v7952 = vld [vmem:[#allocation2 + $0x708] sm:$0xff]
    %v7953 = vld [vmem:[#allocation2 + $0x710] sm:$0xff]
    %v7954 = vld [vmem:[#allocation2 + $0x718] sm:$0xff]
    %v7955 = vld [vmem:[#allocation2 + $0x720] sm:$0xff]
    %v7956 = vld [vmem:[#allocation2 + $0x728] sm:$0xff]
    %v7957 = vld [vmem:[#allocation2 + $0x730] sm:$0xff]
    %v7958 = vld [vmem:[#allocation2 + $0x738] sm:$0xff]
    %v7959 = vld [vmem:[%s17] sm:$0x1]
    %v7960 = vld [vmem:[%s18] sm:$0xf]
    %v7961 = vld [vmem:[%s18 + $0x4] sm:$0xf]
    %v7962 = vld [vmem:[%s18 + $0x8] sm:$0xf]
    %v7963 = vld [vmem:[%s18 + $0xc] sm:$0xf]
    %v7964 = vld [vmem:[%s18 + $0x10] sm:$0xf]
    %v7965 = vld [vmem:[%s18 + $0x14] sm:$0xf]
    %v7966 = vld [vmem:[%s18 + $0x18] sm:$0xf]
    %v7967 = vld [vmem:[%s18 + $0x1c] sm:$0xf]
    %v7968 = vld [vmem:[%s18 + $0x20] sm:$0xf]
    %v7969 = vld [vmem:[%s18 + $0x24] sm:$0xf]
    %v7970 = vld [vmem:[%s18 + $0x28] sm:$0xf]
    %v7971 = vld [vmem:[%s18 + $0x2c] sm:$0xf]
    %v7972 = vld [vmem:[%s18 + $0x30] sm:$0xf]
    %v7973 = vld [vmem:[%s18 + $0x34] sm:$0xf]
    %v7974 = vld [vmem:[%s18 + $0x38] sm:$0xf]
    %v7975 = vld [vmem:[%s18 + $0x3c] sm:$0xf]
    %v7976 = vld [vmem:[%s19] sm:$0x1]
    %v7978 = vrot.slane %v7715, 1
    %v7980 = vrot.slane %v7715, 2
    %v7982 = vrot.slane %v7715, 3
    %v7984 = vrot.slane %v7715, 4
    %v7986 = vrot.slane %v7715, 5
    %v7988 = vrot.slane %v7715, 6
    %v7990 = vrot.slane %v7715, 7
    %v7993 = vrot.slane %v7716, 1
    %v7995 = vrot.slane %v7716, 2
    %v7997 = vrot.slane %v7716, 3
    %v7999 = vrot.slane %v7716, 4
    %v8001 = vrot.slane %v7716, 5
    %v8003 = vrot.slane %v7716, 6
    %v8005 = vrot.slane %v7716, 7
    %v8008 = vrot.slane %v7717, 1
    %v8010 = vrot.slane %v7717, 2
    %v8012 = vrot.slane %v7717, 3
    %v8014 = vrot.slane %v7717, 4
    %v8016 = vrot.slane %v7717, 5
    %v8018 = vrot.slane %v7717, 6
    %v8020 = vrot.slane %v7717, 7
    %v8023 = vrot.slane %v7718, 1
    %v8025 = vrot.slane %v7718, 2
    %v8027 = vrot.slane %v7718, 3
    %v8029 = vrot.slane %v7718, 4
    %v8031 = vpack.c.bf16 %v7715, %v7715
    %v8032 = vpack.c.bf16 %v7978, %v7978
    %v8033 = vpack.c.bf16 %v7980, %v7980
    %v8034 = vpack.c.bf16 %v7982, %v7982
    %v8035 = vpack.c.bf16 %v7984, %v7984
    %v8036 = vpack.c.bf16 %v7986, %v7986
    %v8037 = vpack.c.bf16 %v7988, %v7988
    %v8038 = vpack.c.bf16 %v7990, %v7990
    %v8039 = vpack.c.bf16 %v7716, %v7716
    %v8040 = vpack.c.bf16 %v7993, %v7993
    %v8041 = vpack.c.bf16 %v7995, %v7995
    %v8042 = vpack.c.bf16 %v7997, %v7997
    %v8043 = vpack.c.bf16 %v7999, %v7999
    %v8044 = vpack.c.bf16 %v8001, %v8001
    %v8045 = vpack.c.bf16 %v8003, %v8003
    %v8046 = vpack.c.bf16 %v8005, %v8005
    %v8047 = vpack.c.bf16 %v7717, %v7717
    %v8048 = vpack.c.bf16 %v8008, %v8008
    %v8049 = vpack.c.bf16 %v8010, %v8010
    %v8050 = vpack.c.bf16 %v8012, %v8012
    %v8051 = vpack.c.bf16 %v8014, %v8014
    %v8052 = vpack.c.bf16 %v8016, %v8016
    %v8053 = vpack.c.bf16 %v8018, %v8018
    %v8054 = vpack.c.bf16 %v8020, %v8020
    %v8055 = vpack.c.bf16 %v7718, %v7718
    %v8056 = vpack.c.bf16 %v8023, %v8023
    %v8057 = vpack.c.bf16 %v8025, %v8025
    %v8058 = vpack.c.bf16 %v8027, %v8027
    %v8059 = vpack.c.bf16 %v8029, %v8029
    %8060 = vmatprep.subr.bf16.mxu0 0
    %8061 = vmatpush1.bf16.msra.mxu0 %v7727
    %8062 = vmatprep.subr.bf16.mxu0 0
    %8063 = vmatpush1.bf16.msra.mxu0 %v7728
    %8064 = vmatprep.subr.bf16.mxu0 0
    %8065 = vmatpush1.bf16.msra.mxu0 %v7729
    %8066 = vmatprep.subr.bf16.mxu0 0
    %8067 = vmatpush1.bf16.msra.mxu0 %v7730
    %8068 = vmatprep.subr.bf16.mxu0 0
    %8069 = vmatpush1.bf16.msra.mxu0 %v7731
    %8070 = vmatprep.subr.bf16.mxu0 0
    %8071 = vmatpush1.bf16.msra.mxu0 %v7732
    %8072 = vmatprep.subr.bf16.mxu0 0
    %8073 = vmatpush1.bf16.msra.mxu0 %v7733
    %8074 = vmatprep.subr.bf16.mxu0 0
    %8075 = vmatpush1.bf16.msra.mxu0 %v7734
    %8076 = vmatprep.subr.bf16.mxu0 0
    %8077 = vmatpush1.bf16.msra.mxu0 %v7735
    %8078 = vmatprep.subr.bf16.mxu0 0
    %8079 = vmatpush1.bf16.msra.mxu0 %v7736
    %8080 = vmatprep.subr.bf16.mxu0 0
    %8081 = vmatpush1.bf16.msra.mxu0 %v7737
    %8082 = vmatprep.subr.bf16.mxu0 0
    %8083 = vmatpush1.bf16.msra.mxu0 %v7738
    %8084 = vmatprep.subr.bf16.mxu0 0
    %8085 = vmatpush1.bf16.msra.mxu0 %v7739
    %8086 = vmatprep.subr.bf16.mxu0 0
    %8087 = vmatpush1.bf16.msra.mxu0 %v7740
    %8088 = vmatprep.subr.bf16.mxu0 0
    %8089 = vmatpush1.bf16.msra.mxu0 %v7741
    %8090 = vmatprep.subr.bf16.mxu0 0
    %8091 = vmatpush1.bf16.msra.mxu0 %v7742
    %8092 = vmatprep.mubr.bf16.mxu0 %v8032
    %8093 = vmatmul.mubr.bf16.gmra.mrb[0].mxu0 %v8031
    %v8094 = vpop.f32.mrb[0].mxu0
    %v8095 = vadd.f32 %v7959, %v8094
    %v8096 = vpop.f32.mrb[0].mxu0
    %v8097 = vpop.f32.mrb[0].mxu0
    %v8098 = vpop.f32.mrb[0].mxu0
    %8099 = vdwg.mxu0
    %8100 = vmatprep.subr.bf16.mxu0 0
    %8101 = vmatpush1.bf16.msra.mxu0 %v7743
    %8102 = vmatprep.subr.bf16.mxu0 0
    %8103 = vmatpush1.bf16.msra.mxu0 %v7744
    %8104 = vmatprep.subr.bf16.mxu0 0
    %8105 = vmatpush1.bf16.msra.mxu0 %v7745
    %8106 = vmatprep.subr.bf16.mxu0 0
    %8107 = vmatpush1.bf16.msra.mxu0 %v7746
    %8108 = vmatprep.subr.bf16.mxu0 0
    %8109 = vmatpush1.bf16.msra.mxu0 %v7747
    %8110 = vmatprep.subr.bf16.mxu0 0
    %8111 = vmatpush1.bf16.msra.mxu0 %v7748
    %8112 = vmatprep.subr.bf16.mxu0 0
    %8113 = vmatpush1.bf16.msra.mxu0 %v7749
    %8114 = vmatprep.subr.bf16.mxu0 0
    %8115 = vmatpush1.bf16.msra.mxu0 %v7750
    %8116 = vmatprep.subr.bf16.mxu0 0
    %8117 = vmatpush1.bf16.msra.mxu0 %v7751
    %8118 = vmatprep.subr.bf16.mxu0 0
    %8119 = vmatpush1.bf16.msra.mxu0 %v7752
    %8120 = vmatprep.subr.bf16.mxu0 0
    %8121 = vmatpush1.bf16.msra.mxu0 %v7753
    %8122 = vmatprep.subr.bf16.mxu0 0
    %8123 = vmatpush1.bf16.msra.mxu0 %v7754
    %8124 = vmatprep.subr.bf16.mxu0 0
    %8125 = vmatpush1.bf16.msra.mxu0 %v7755
    %8126 = vmatprep.subr.bf16.mxu0 0
    %8127 = vmatpush1.bf16.msra.mxu0 %v7756
    %8128 = vmatprep.subr.bf16.mxu0 0
    %8129 = vmatpush1.bf16.msra.mxu0 %v7757
    %8130 = vmatprep.subr.bf16.mxu0 0
    %8131 = vmatpush1.bf16.msra.mxu0 %v7758
    %8132 = vmatprep.mubr.bf16.mxu0 %v8034
    %8133 = vmatmul.mubr.bf16.gmra.mrb[0].mxu0 %v8033
    %v8134 = vpop.f32.mrb[0].mxu0
    %v8135 = vadd.f32 %v8095, %v8134
    %v8136 = vpop.f32.mrb[0].mxu0
    %v8137 = vpop.f32.mrb[0].mxu0
    %v8138 = vpop.f32.mrb[0].mxu0
    %8139 = vdwg.mxu0
    %8140 = vmatprep.subr.bf16.mxu0 0
    %8141 = vmatpush1.bf16.msra.mxu0 %v7759
    %8142 = vmatprep.subr.bf16.mxu0 0
    %8143 = vmatpush1.bf16.msra.mxu0 %v7760
    %8144 = vmatprep.subr.bf16.mxu0 0
    %8145 = vmatpush1.bf16.msra.mxu0 %v7761
    %8146 = vmatprep.subr.bf16.mxu0 0
    %8147 = vmatpush1.bf16.msra.mxu0 %v7762
    %8148 = vmatprep.subr.bf16.mxu0 0
    %8149 = vmatpush1.bf16.msra.mxu0 %v7763
    %8150 = vmatprep.subr.bf16.mxu0 0
    %8151 = vmatpush1.bf16.msra.mxu0 %v7764
    %8152 = vmatprep.subr.bf16.mxu0 0
    %8153 = vmatpush1.bf16.msra.mxu0 %v7765
    %8154 = vmatprep.subr.bf16.mxu0 0
    %8155 = vmatpush1.bf16.msra.mxu0 %v7766
    %8156 = vmatprep.subr.bf16.mxu0 0
    %8157 = vmatpush1.bf16.msra.mxu0 %v7767
    %8158 = vmatprep.subr.bf16.mxu0 0
    %8159 = vmatpush1.bf16.msra.mxu0 %v7768
    %8160 = vmatprep.subr.bf16.mxu0 0
    %8161 = vmatpush1.bf16.msra.mxu0 %v7769
    %8162 = vmatprep.subr.bf16.mxu0 0
    %8163 = vmatpush1.bf16.msra.mxu0 %v7770
    %8164 = vmatprep.subr.bf16.mxu0 0
    %8165 = vmatpush1.bf16.msra.mxu0 %v7771
    %8166 = vmatprep.subr.bf16.mxu0 0
    %8167 = vmatpush1.bf16.msra.mxu0 %v7772
    %8168 = vmatprep.subr.bf16.mxu0 0
    %8169 = vmatpush1.bf16.msra.mxu0 %v7773
    %8170 = vmatprep.subr.bf16.mxu0 0
    %8171 = vmatpush1.bf16.msra.mxu0 %v7774
    %8172 = vmatprep.mubr.bf16.mxu0 %v8036
    %8173 = vmatmul.mubr.bf16.gmra.mrb[0].mxu0 %v8035
    %v8174 = vpop.f32.mrb[0].mxu0
    %v8175 = vadd.f32 %v8135, %v8174
    %v8176 = vpop.f32.mrb[0].mxu0
    %v8177 = vpop.f32.mrb[0].mxu0
    %v8178 = vpop.f32.mrb[0].mxu0
    %8179 = vdwg.mxu0
    %8180 = vmatprep.subr.bf16.mxu0 0
    %8181 = vmatpush1.bf16.msra.mxu0 %v7775
    %8182 = vmatprep.subr.bf16.mxu0 0
    %8183 = vmatpush1.bf16.msra.mxu0 %v7776
    %8184 = vmatprep.subr.bf16.mxu0 0
    %8185 = vmatpush1.bf16.msra.mxu0 %v7777
    %8186 = vmatprep.subr.bf16.mxu0 0
    %8187 = vmatpush1.bf16.msra.mxu0 %v7778
    %8188 = vmatprep.subr.bf16.mxu0 0
    %8189 = vmatpush1.bf16.msra.mxu0 %v7779
    %8190 = vmatprep.subr.bf16.mxu0 0
    %8191 = vmatpush1.bf16.msra.mxu0 %v7780
    %8192 = vmatprep.subr.bf16.mxu0 0
    %8193 = vmatpush1.bf16.msra.mxu0 %v7781
    %8194 = vmatprep.subr.bf16.mxu0 0
    %8195 = vmatpush1.bf16.msra.mxu0 %v7782
    %8196 = vmatprep.subr.bf16.mxu0 0
    %8197 = vmatpush1.bf16.msra.mxu0 %v7783
    %8198 = vmatprep.subr.bf16.mxu0 0
    %8199 = vmatpush1.bf16.msra.mxu0 %v7784
    %8200 = vmatprep.subr.bf16.mxu0 0
    %8201 = vmatpush1.bf16.msra.mxu0 %v7785
    %8202 = vmatprep.subr.bf16.mxu0 0
    %8203 = vmatpush1.bf16.msra.mxu0 %v7786
    %8204 = vmatprep.subr.bf16.mxu0 0
    %8205 = vmatpush1.bf16.msra.mxu0 %v7787
    %8206 = vmatprep.subr.bf16.mxu0 0
    %8207 = vmatpush1.bf16.msra.mxu0 %v7788
    %8208 = vmatprep.subr.bf16.mxu0 0
    %8209 = vmatpush1.bf16.msra.mxu0 %v7789
    %8210 = vmatprep.subr.bf16.mxu0 0
    %8211 = vmatpush1.bf16.msra.mxu0 %v7790
    %8212 = vmatprep.mubr.bf16.mxu0 %v8038
    %8213 = vmatmul.mubr.bf16.gmra.mrb[0].mxu0 %v8037
    %v8214 = vpop.f32.mrb[0].mxu0
    %v8215 = vadd.f32 %v8175, %v8214
    %v8216 = vpop.f32.mrb[0].mxu0
    %v8217 = vpop.f32.mrb[0].mxu0
    %v8218 = vpop.f32.mrb[0].mxu0
    %8219 = vdwg.mxu0
    %8220 = vmatprep.subr.bf16.mxu0 0
    %8221 = vmatpush1.bf16.msra.mxu0 %v7791
    %8222 = vmatprep.subr.bf16.mxu0 0
    %8223 = vmatpush1.bf16.msra.mxu0 %v7792
    %8224 = vmatprep.subr.bf16.mxu0 0
    %8225 = vmatpush1.bf16.msra.mxu0 %v7793
    %8226 = vmatprep.subr.bf16.mxu0 0
    %8227 = vmatpush1.bf16.msra.mxu0 %v7794
    %8228 = vmatprep.subr.bf16.mxu0 0
    %8229 = vmatpush1.bf16.msra.mxu0 %v7795
    %8230 = vmatprep.subr.bf16.mxu0 0
    %8231 = vmatpush1.bf16.msra.mxu0 %v7796
    %8232 = vmatprep.subr.bf16.mxu0 0
    %8233 = vmatpush1.bf16.msra.mxu0 %v7797
    %8234 = vmatprep.subr.bf16.mxu0 0
    %8235 = vmatpush1.bf16.msra.mxu0 %v7798
    %8236 = vmatprep.subr.bf16.mxu0 0
    %8237 = vmatpush1.bf16.msra.mxu0 %v7799
    %8238 = vmatprep.subr.bf16.mxu0 0
    %8239 = vmatpush1.bf16.msra.mxu0 %v7800
    %8240 = vmatprep.subr.bf16.mxu0 0
    %8241 = vmatpush1.bf16.msra.mxu0 %v7801
    %8242 = vmatprep.subr.bf16.mxu0 0
    %8243 = vmatpush1.bf16.msra.mxu0 %v7802
    %8244 = vmatprep.subr.bf16.mxu0 0
    %8245 = vmatpush1.bf16.msra.mxu0 %v7803
    %8246 = vmatprep.subr.bf16.mxu0 0
    %8247 = vmatpush1.bf16.msra.mxu0 %v7804
    %8248 = vmatprep.subr.bf16.mxu0 0
    %8249 = vmatpush1.bf16.msra.mxu0 %v7805
    %8250 = vmatprep.subr.bf16.mxu0 0
    %8251 = vmatpush1.bf16.msra.mxu0 %v7806
    %8252 = vmatprep.mubr.bf16.mxu0 %v8040
    %8253 = vmatmul.mubr.bf16.gmra.mrb[0].mxu0 %v8039
    %v8254 = vpop.f32.mrb[0].mxu0
    %v8255 = vadd.f32 %v8215, %v8254
    %v8256 = vpop.f32.mrb[0].mxu0
    %v8257 = vpop.f32.mrb[0].mxu0
    %v8258 = vpop.f32.mrb[0].mxu0
    %8259 = vdwg.mxu0
    %8260 = vmatprep.subr.bf16.mxu0 0
    %8261 = vmatpush1.bf16.msra.mxu0 %v7807
    %8262 = vmatprep.subr.bf16.mxu0 0
    %8263 = vmatpush1.bf16.msra.mxu0 %v7808
    %8264 = vmatprep.subr.bf16.mxu0 0
    %8265 = vmatpush1.bf16.msra.mxu0 %v7809
    %8266 = vmatprep.subr.bf16.mxu0 0
    %8267 = vmatpush1.bf16.msra.mxu0 %v7810
    %8268 = vmatprep.subr.bf16.mxu0 0
    %8269 = vmatpush1.bf16.msra.mxu0 %v7811
    %8270 = vmatprep.subr.bf16.mxu0 0
    %8271 = vmatpush1.bf16.msra.mxu0 %v7812
    %8272 = vmatprep.subr.bf16.mxu0 0
    %8273 = vmatpush1.bf16.msra.mxu0 %v7813
    %8274 = vmatprep.subr.bf16.mxu0 0
    %8275 = vmatpush1.bf16.msra.mxu0 %v7814
    %8276 = vmatprep.subr.bf16.mxu0 0
    %8277 = vmatpush1.bf16.msra.mxu0 %v7815
    %8278 = vmatprep.subr.bf16.mxu0 0
    %8279 = vmatpush1.bf16.msra.mxu0 %v7816
    %8280 = vmatprep.subr.bf16.mxu0 0
    %8281 = vmatpush1.bf16.msra.mxu0 %v7817
    %8282 = vmatprep.subr.bf16.mxu0 0
    %8283 = vmatpush1.bf16.msra.mxu0 %v7818
    %8284 = vmatprep.subr.bf16.mxu0 0
    %8285 = vmatpush1.bf16.msra.mxu0 %v7819
    %8286 = vmatprep.subr.bf16.mxu0 0
    %8287 = vmatpush1.bf16.msra.mxu0 %v7820
    %8288 = vmatprep.subr.bf16.mxu0 0
    %8289 = vmatpush1.bf16.msra.mxu0 %v7821
    %8290 = vmatprep.subr.bf16.mxu0 0
    %8291 = vmatpush1.bf16.msra.mxu0 %v7822
    %8292 = vmatprep.mubr.bf16.mxu0 %v8042
    %8293 = vmatmul.mubr.bf16.gmra.mrb[0].mxu0 %v8041
    %v8294 = vpop.f32.mrb[0].mxu0
    %v8295 = vadd.f32 %v8255, %v8294
    %v8296 = vpop.f32.mrb[0].mxu0
    %v8297 = vpop.f32.mrb[0].mxu0
    %v8298 = vpop.f32.mrb[0].mxu0
    %8299 = vdwg.mxu0
    %8300 = vmatprep.subr.bf16.mxu0 0
    %8301 = vmatpush1.bf16.msra.mxu0 %v7823
    %8302 = vmatprep.subr.bf16.mxu0 0
    %8303 = vmatpush1.bf16.msra.mxu0 %v7824
    %8304 = vmatprep.subr.bf16.mxu0 0
    %8305 = vmatpush1.bf16.msra.mxu0 %v7825
    %8306 = vmatprep.subr.bf16.mxu0 0
    %8307 = vmatpush1.bf16.msra.mxu0 %v7826
    %8308 = vmatprep.subr.bf16.mxu0 0
    %8309 = vmatpush1.bf16.msra.mxu0 %v7827
    %8310 = vmatprep.subr.bf16.mxu0 0
    %8311 = vmatpush1.bf16.msra.mxu0 %v7828
    %8312 = vmatprep.subr.bf16.mxu0 0
    %8313 = vmatpush1.bf16.msra.mxu0 %v7829
    %8314 = vmatprep.subr.bf16.mxu0 0
    %8315 = vmatpush1.bf16.msra.mxu0 %v7830
    %8316 = vmatprep.subr.bf16.mxu0 0
    %8317 = vmatpush1.bf16.msra.mxu0 %v7831
    %8318 = vmatprep.subr.bf16.mxu0 0
    %8319 = vmatpush1.bf16.msra.mxu0 %v7832
    %8320 = vmatprep.subr.bf16.mxu0 0
    %8321 = vmatpush1.bf16.msra.mxu0 %v7833
    %8322 = vmatprep.subr.bf16.mxu0 0
    %8323 = vmatpush1.bf16.msra.mxu0 %v7834
    %8324 = vmatprep.subr.bf16.mxu0 0
    %8325 = vmatpush1.bf16.msra.mxu0 %v7835
    %8326 = vmatprep.subr.bf16.mxu0 0
    %8327 = vmatpush1.bf16.msra.mxu0 %v7836
    %8328 = vmatprep.subr.bf16.mxu0 0
    %8329 = vmatpush1.bf16.msra.mxu0 %v7837
    %8330 = vmatprep.subr.bf16.mxu0 0
    %8331 = vmatpush1.bf16.msra.mxu0 %v7838
    %8332 = vmatprep.mubr.bf16.mxu0 %v8044
    %8333 = vmatmul.mubr.bf16.gmra.mrb[0].mxu0 %v8043
    %v8334 = vpop.f32.mrb[0].mxu0
    %v8335 = vadd.f32 %v8295, %v8334
    %v8336 = vpop.f32.mrb[0].mxu0
    %v8337 = vpop.f32.mrb[0].mxu0
    %v8338 = vpop.f32.mrb[0].mxu0
    %8339 = vdwg.mxu0
    %8340 = vmatprep.subr.bf16.mxu0 0
    %8341 = vmatpush1.bf16.msra.mxu0 %v7839
    %8342 = vmatprep.subr.bf16.mxu0 0
    %8343 = vmatpush1.bf16.msra.mxu0 %v7840
    %8344 = vmatprep.subr.bf16.mxu0 0
    %8345 = vmatpush1.bf16.msra.mxu0 %v7841
    %8346 = vmatprep.subr.bf16.mxu0 0
    %8347 = vmatpush1.bf16.msra.mxu0 %v7842
    %8348 = vmatprep.subr.bf16.mxu0 0
    %8349 = vmatpush1.bf16.msra.mxu0 %v7843
    %8350 = vmatprep.subr.bf16.mxu0 0
    %8351 = vmatpush1.bf16.msra.mxu0 %v7844
    %8352 = vmatprep.subr.bf16.mxu0 0
    %8353 = vmatpush1.bf16.msra.mxu0 %v7845
    %8354 = vmatprep.subr.bf16.mxu0 0
    %8355 = vmatpush1.bf16.msra.mxu0 %v7846
    %8356 = vmatprep.subr.bf16.mxu0 0
    %8357 = vmatpush1.bf16.msra.mxu0 %v7847
    %8358 = vmatprep.subr.bf16.mxu0 0
    %8359 = vmatpush1.bf16.msra.mxu0 %v7848
    %8360 = vmatprep.subr.bf16.mxu0 0
    %8361 = vmatpush1.bf16.msra.mxu0 %v7849
    %8362 = vmatprep.subr.bf16.mxu0 0
    %8363 = vmatpush1.bf16.msra.mxu0 %v7850
    %8364 = vmatprep.subr.bf16.mxu0 0
    %8365 = vmatpush1.bf16.msra.mxu0 %v7851
    %8366 = vmatprep.subr.bf16.mxu0 0
    %8367 = vmatpush1.bf16.msra.mxu0 %v7852
    %8368 = vmatprep.subr.bf16.mxu0 0
    %8369 = vmatpush1.bf16.msra.mxu0 %v7853
    %8370 = vmatprep.subr.bf16.mxu0 0
    %8371 = vmatpush1.bf16.msra.mxu0 %v7854
    %8372 = vmatprep.mubr.bf16.mxu0 %v8046
    %8373 = vmatmul.mubr.bf16.gmra.mrb[0].mxu0 %v8045
    %v8374 = vpop.f32.mrb[0].mxu0
    %v8375 = vadd.f32 %v8335, %v8374
    %v8376 = vpop.f32.mrb[0].mxu0
    %v8377 = vpop.f32.mrb[0].mxu0
    %v8378 = vpop.f32.mrb[0].mxu0
    %8379 = vdwg.mxu0
    %8380 = vmatprep.subr.bf16.mxu0 0
    %8381 = vmatpush1.bf16.msra.mxu0 %v7855
    %8382 = vmatprep.subr.bf16.mxu0 0
    %8383 = vmatpush1.bf16.msra.mxu0 %v7856
    %8384 = vmatprep.subr.bf16.mxu0 0
    %8385 = vmatpush1.bf16.msra.mxu0 %v7857
    %8386 = vmatprep.subr.bf16.mxu0 0
    %8387 = vmatpush1.bf16.msra.mxu0 %v7858
    %8388 = vmatprep.subr.bf16.mxu0 0
    %8389 = vmatpush1.bf16.msra.mxu0 %v7859
    %8390 = vmatprep.subr.bf16.mxu0 0
    %8391 = vmatpush1.bf16.msra.mxu0 %v7860
    %8392 = vmatprep.subr.bf16.mxu0 0
    %8393 = vmatpush1.bf16.msra.mxu0 %v7861
    %8394 = vmatprep.subr.bf16.mxu0 0
    %8395 = vmatpush1.bf16.msra.mxu0 %v7862
    %8396 = vmatprep.subr.bf16.mxu0 0
    %8397 = vmatpush1.bf16.msra.mxu0 %v7863
    %8398 = vmatprep.subr.bf16.mxu0 0
    %8399 = vmatpush1.bf16.msra.mxu0 %v7864
    %8400 = vmatprep.subr.bf16.mxu0 0
    %8401 = vmatpush1.bf16.msra.mxu0 %v7865
    %8402 = vmatprep.subr.bf16.mxu0 0
    %8403 = vmatpush1.bf16.msra.mxu0 %v7866
    %8404 = vmatprep.subr.bf16.mxu0 0
    %8405 = vmatpush1.bf16.msra.mxu0 %v7867
    %8406 = vmatprep.subr.bf16.mxu0 0
    %8407 = vmatpush1.bf16.msra.mxu0 %v7868
    %8408 = vmatprep.subr.bf16.mxu0 0
    %8409 = vmatpush1.bf16.msra.mxu0 %v7869
    %8410 = vmatprep.subr.bf16.mxu0 0
    %8411 = vmatpush1.bf16.msra.mxu0 %v7870
    %8412 = vmatprep.mubr.bf16.mxu0 %v8048
    %8413 = vmatmul.mubr.bf16.gmra.mrb[0].mxu0 %v8047
    %v8414 = vpop.f32.mrb[0].mxu0
    %v8415 = vadd.f32 %v8375, %v8414
    %v8416 = vpop.f32.mrb[0].mxu0
    %v8417 = vpop.f32.mrb[0].mxu0
    %v8418 = vpop.f32.mrb[0].mxu0
    %8419 = vdwg.mxu0
    %8420 = vmatprep.subr.bf16.mxu0 0
    %8421 = vmatpush1.bf16.msra.mxu0 %v7871
    %8422 = vmatprep.subr.bf16.mxu0 0
    %8423 = vmatpush1.bf16.msra.mxu0 %v7872
    %8424 = vmatprep.subr.bf16.mxu0 0
    %8425 = vmatpush1.bf16.msra.mxu0 %v7873
    %8426 = vmatprep.subr.bf16.mxu0 0
    %8427 = vmatpush1.bf16.msra.mxu0 %v7874
    %8428 = vmatprep.subr.bf16.mxu0 0
    %8429 = vmatpush1.bf16.msra.mxu0 %v7875
    %8430 = vmatprep.subr.bf16.mxu0 0
    %8431 = vmatpush1.bf16.msra.mxu0 %v7876
    %8432 = vmatprep.subr.bf16.mxu0 0
    %8433 = vmatpush1.bf16.msra.mxu0 %v7877
    %8434 = vmatprep.subr.bf16.mxu0 0
    %8435 = vmatpush1.bf16.msra.mxu0 %v7878
    %8436 = vmatprep.subr.bf16.mxu0 0
    %8437 = vmatpush1.bf16.msra.mxu0 %v7879
    %8438 = vmatprep.subr.bf16.mxu0 0
    %8439 = vmatpush1.bf16.msra.mxu0 %v7880
    %8440 = vmatprep.subr.bf16.mxu0 0
    %8441 = vmatpush1.bf16.msra.mxu0 %v7881
    %8442 = vmatprep.subr.bf16.mxu0 0
    %8443 = vmatpush1.bf16.msra.mxu0 %v7882
    %8444 = vmatprep.subr.bf16.mxu0 0
    %8445 = vmatpush1.bf16.msra.mxu0 %v7883
    %8446 = vmatprep.subr.bf16.mxu0 0
    %8447 = vmatpush1.bf16.msra.mxu0 %v7884
    %8448 = vmatprep.subr.bf16.mxu0 0
    %8449 = vmatpush1.bf16.msra.mxu0 %v7885
    %8450 = vmatprep.subr.bf16.mxu0 0
    %8451 = vmatpush1.bf16.msra.mxu0 %v7886
    %8452 = vmatprep.mubr.bf16.mxu0 %v8050
    %8453 = vmatmul.mubr.bf16.gmra.mrb[0].mxu0 %v8049
    %v8454 = vpop.f32.mrb[0].mxu0
    %v8455 = vadd.f32 %v8415, %v8454
    %v8456 = vpop.f32.mrb[0].mxu0
    %v8457 = vpop.f32.mrb[0].mxu0
    %v8458 = vpop.f32.mrb[0].mxu0
    %8459 = vdwg.mxu0
    %8460 = vmatprep.subr.bf16.mxu0 0
    %8461 = vmatpush1.bf16.msra.mxu0 %v7887
    %8462 = vmatprep.subr.bf16.mxu0 0
    %8463 = vmatpush1.bf16.msra.mxu0 %v7888
    %8464 = vmatprep.subr.bf16.mxu0 0
    %8465 = vmatpush1.bf16.msra.mxu0 %v7889
    %8466 = vmatprep.subr.bf16.mxu0 0
    %8467 = vmatpush1.bf16.msra.mxu0 %v7890
    %8468 = vmatprep.subr.bf16.mxu0 0
    %8469 = vmatpush1.bf16.msra.mxu0 %v7891
    %8470 = vmatprep.subr.bf16.mxu0 0
    %8471 = vmatpush1.bf16.msra.mxu0 %v7892
    %8472 = vmatprep.subr.bf16.mxu0 0
    %8473 = vmatpush1.bf16.msra.mxu0 %v7893
    %8474 = vmatprep.subr.bf16.mxu0 0
    %8475 = vmatpush1.bf16.msra.mxu0 %v7894
    %8476 = vmatprep.subr.bf16.mxu0 0
    %8477 = vmatpush1.bf16.msra.mxu0 %v7895
    %8478 = vmatprep.subr.bf16.mxu0 0
    %8479 = vmatpush1.bf16.msra.mxu0 %v7896
    %8480 = vmatprep.subr.bf16.mxu0 0
    %8481 = vmatpush1.bf16.msra.mxu0 %v7897
    %8482 = vmatprep.subr.bf16.mxu0 0
    %8483 = vmatpush1.bf16.msra.mxu0 %v7898
    %8484 = vmatprep.subr.bf16.mxu0 0
    %8485 = vmatpush1.bf16.msra.mxu0 %v7899
    %8486 = vmatprep.subr.bf16.mxu0 0
    %8487 = vmatpush1.bf16.msra.mxu0 %v7900
    %8488 = vmatprep.subr.bf16.mxu0 0
    %8489 = vmatpush1.bf16.msra.mxu0 %v7901
    %8490 = vmatprep.subr.bf16.mxu0 0
    %8491 = vmatpush1.bf16.msra.mxu0 %v7902
    %8492 = vmatprep.mubr.bf16.mxu0 %v8052
    %8493 = vmatmul.mubr.bf16.gmra.mrb[0].mxu0 %v8051
    %v8494 = vpop.f32.mrb[0].mxu0
    %v8495 = vadd.f32 %v8455, %v8494
    %v8496 = vpop.f32.mrb[0].mxu0
    %v8497 = vpop.f32.mrb[0].mxu0
    %v8498 = vpop.f32.mrb[0].mxu0
    %8499 = vdwg.mxu0
    %8500 = vmatprep.subr.bf16.mxu0 0
    %8501 = vmatpush1.bf16.msra.mxu0 %v7903
    %8502 = vmatprep.subr.bf16.mxu0 0
    %8503 = vmatpush1.bf16.msra.mxu0 %v7904
    %8504 = vmatprep.subr.bf16.mxu0 0
    %8505 = vmatpush1.bf16.msra.mxu0 %v7905
    %8506 = vmatprep.subr.bf16.mxu0 0
    %8507 = vmatpush1.bf16.msra.mxu0 %v7906
    %8508 = vmatprep.subr.bf16.mxu0 0
    %8509 = vmatpush1.bf16.msra.mxu0 %v7907
    %8510 = vmatprep.subr.bf16.mxu0 0
    %8511 = vmatpush1.bf16.msra.mxu0 %v7908
    %8512 = vmatprep.subr.bf16.mxu0 0
    %8513 = vmatpush1.bf16.msra.mxu0 %v7909
    %8514 = vmatprep.subr.bf16.mxu0 0
    %8515 = vmatpush1.bf16.msra.mxu0 %v7910
    %8516 = vmatprep.subr.bf16.mxu0 0
    %8517 = vmatpush1.bf16.msra.mxu0 %v7911
    %8518 = vmatprep.subr.bf16.mxu0 0
    %8519 = vmatpush1.bf16.msra.mxu0 %v7912
    %8520 = vmatprep.subr.bf16.mxu0 0
    %8521 = vmatpush1.bf16.msra.mxu0 %v7913
    %8522 = vmatprep.subr.bf16.mxu0 0
    %8523 = vmatpush1.bf16.msra.mxu0 %v7914
    %8524 = vmatprep.subr.bf16.mxu0 0
    %8525 = vmatpush1.bf16.msra.mxu0 %v7915
    %8526 = vmatprep.subr.bf16.mxu0 0
    %8527 = vmatpush1.bf16.msra.mxu0 %v7916
    %8528 = vmatprep.subr.bf16.mxu0 0
    %8529 = vmatpush1.bf16.msra.mxu0 %v7917
    %8530 = vmatprep.subr.bf16.mxu0 0
    %8531 = vmatpush1.bf16.msra.mxu0 %v7918
    %8532 = vmatprep.mubr.bf16.mxu0 %v8054
    %8533 = vmatmul.mubr.bf16.gmra.mrb[0].mxu0 %v8053
    %v8534 = vpop.f32.mrb[0].mxu0
    %v8535 = vadd.f32 %v8495, %v8534
    %v8536 = vpop.f32.mrb[0].mxu0
    %v8537 = vpop.f32.mrb[0].mxu0
    %v8538 = vpop.f32.mrb[0].mxu0
    %8539 = vdwg.mxu0
    %8540 = vmatprep.subr.bf16.mxu0 0
    %8541 = vmatpush1.bf16.msra.mxu0 %v7919
    %8542 = vmatprep.subr.bf16.mxu0 0
    %8543 = vmatpush1.bf16.msra.mxu0 %v7920
    %8544 = vmatprep.subr.bf16.mxu0 0
    %8545 = vmatpush1.bf16.msra.mxu0 %v7921
    %8546 = vmatprep.subr.bf16.mxu0 0
    %8547 = vmatpush1.bf16.msra.mxu0 %v7922
    %8548 = vmatprep.subr.bf16.mxu0 0
    %8549 = vmatpush1.bf16.msra.mxu0 %v7923
    %8550 = vmatprep.subr.bf16.mxu0 0
    %8551 = vmatpush1.bf16.msra.mxu0 %v7924
    %8552 = vmatprep.subr.bf16.mxu0 0
    %8553 = vmatpush1.bf16.msra.mxu0 %v7925
    %8554 = vmatprep.subr.bf16.mxu0 0
    %8555 = vmatpush1.bf16.msra.mxu0 %v7926
    %8556 = vmatprep.subr.bf16.mxu0 0
    %8557 = vmatpush1.bf16.msra.mxu0 %v7927
    %8558 = vmatprep.subr.bf16.mxu0 0
    %8559 = vmatpush1.bf16.msra.mxu0 %v7928
    %8560 = vmatprep.subr.bf16.mxu0 0
    %8561 = vmatpush1.bf16.msra.mxu0 %v7929
    %8562 = vmatprep.subr.bf16.mxu0 0
    %8563 = vmatpush1.bf16.msra.mxu0 %v7930
    %8564 = vmatprep.subr.bf16.mxu0 0
    %8565 = vmatpush1.bf16.msra.mxu0 %v7931
    %8566 = vmatprep.subr.bf16.mxu0 0
    %8567 = vmatpush1.bf16.msra.mxu0 %v7932
    %8568 = vmatprep.subr.bf16.mxu0 0
    %8569 = vmatpush1.bf16.msra.mxu0 %v7933
    %8570 = vmatprep.subr.bf16.mxu0 0
    %8571 = vmatpush1.bf16.msra.mxu0 %v7934
    %8572 = vmatprep.mubr.bf16.mxu0 %v8056
    %8573 = vmatmul.mubr.bf16.gmra.mrb[0].mxu0 %v8055
    %v8574 = vpop.f32.mrb[0].mxu0
    %v8575 = vadd.f32 %v8535, %v8574
    %v8576 = vpop.f32.mrb[0].mxu0
    %v8577 = vpop.f32.mrb[0].mxu0
    %v8578 = vpop.f32.mrb[0].mxu0
    %8579 = vdwg.mxu0
    %8580 = vmatprep.subr.bf16.mxu0 0
    %8581 = vmatpush1.bf16.msra.mxu0 %v7935
    %8582 = vmatprep.subr.bf16.mxu0 0
    %8583 = vmatpush1.bf16.msra.mxu0 %v7936
    %8584 = vmatprep.subr.bf16.mxu0 0
    %8585 = vmatpush1.bf16.msra.mxu0 %v7937
    %8586 = vmatprep.subr.bf16.mxu0 0
    %8587 = vmatpush1.bf16.msra.mxu0 %v7938
    %8588 = vmatprep.subr.bf16.mxu0 0
    %8589 = vmatpush1.bf16.msra.mxu0 %v7939
    %8590 = vmatprep.subr.bf16.mxu0 0
    %8591 = vmatpush1.bf16.msra.mxu0 %v7940
    %8592 = vmatprep.subr.bf16.mxu0 0
    %8593 = vmatpush1.bf16.msra.mxu0 %v7941
    %8594 = vmatprep.subr.bf16.mxu0 0
    %8595 = vmatpush1.bf16.msra.mxu0 %v7942
    %8596 = vmatprep.subr.bf16.mxu0 0
    %8597 = vmatpush1.bf16.msra.mxu0 %v7943
    %8598 = vmatprep.subr.bf16.mxu0 0
    %8599 = vmatpush1.bf16.msra.mxu0 %v7944
    %8600 = vmatprep.subr.bf16.mxu0 0
    %8601 = vmatpush1.bf16.msra.mxu0 %v7945
    %8602 = vmatprep.subr.bf16.mxu0 0
    %8603 = vmatpush1.bf16.msra.mxu0 %v7946
    %8604 = vmatprep.subr.bf16.mxu0 0
    %8605 = vmatpush1.bf16.msra.mxu0 %v7947
    %8606 = vmatprep.subr.bf16.mxu0 0
    %8607 = vmatpush1.bf16.msra.mxu0 %v7948
    %8608 = vmatprep.subr.bf16.mxu0 0
    %8609 = vmatpush1.bf16.msra.mxu0 %v7949
    %8610 = vmatprep.subr.bf16.mxu0 0
    %8611 = vmatpush1.bf16.msra.mxu0 %v7950
    %8612 = vmatprep.mubr.bf16.mxu0 %v8058
    %8613 = vmatmul.mubr.bf16.gmra.mrb[0].mxu0 %v8057
    %v8614 = vpop.f32.mrb[0].mxu0
    %v8615 = vadd.f32 %v8575, %v8614
    %v8616 = vpop.f32.mrb[0].mxu0
    %v8617 = vpop.f32.mrb[0].mxu0
    %v8618 = vpop.f32.mrb[0].mxu0
    %8619 = vdwg.mxu0
    %8620 = vmatprep.subr.bf16.mxu0 0
    %8621 = vmatpush1.bf16.msra.mxu0 %v7951
    %8622 = vmatprep.subr.bf16.mxu0 0
    %8623 = vmatpush1.bf16.msra.mxu0 %v7952
    %8624 = vmatprep.subr.bf16.mxu0 0
    %8625 = vmatpush1.bf16.msra.mxu0 %v7953
    %8626 = vmatprep.subr.bf16.mxu0 0
    %8627 = vmatpush1.bf16.msra.mxu0 %v7954
    %8628 = vmatprep.subr.bf16.mxu0 0
    %8629 = vmatpush1.bf16.msra.mxu0 %v7955
    %8630 = vmatprep.subr.bf16.mxu0 0
    %8631 = vmatpush1.bf16.msra.mxu0 %v7956
    %8632 = vmatprep.subr.bf16.mxu0 0
    %8633 = vmatpush1.bf16.msra.mxu0 %v7957
    %8634 = vmatprep.subr.bf16.mxu0 0
    %8635 = vmatpush1.bf16.msra.mxu0 %v7958
    %8636 = vmatprep.subr.bf16.mxu0 0
    %8637 = vmatpush1.bf16.msra.mxu0 0
    %8638 = vmatprep.subr.bf16.mxu0 0
    %8639 = vmatpush1.bf16.msra.mxu0 0
    %8640 = vmatprep.subr.bf16.mxu0 0
    %8641 = vmatpush1.bf16.msra.mxu0 0
    %8642 = vmatprep.subr.bf16.mxu0 0
    %8643 = vmatpush1.bf16.msra.mxu0 0
    %8644 = vmatprep.subr.bf16.mxu0 0
    %8645 = vmatpush1.bf16.msra.mxu0 0
    %8646 = vmatprep.subr.bf16.mxu0 0
    %8647 = vmatpush1.bf16.msra.mxu0 0
    %8648 = vmatprep.subr.bf16.mxu0 0
    %8649 = vmatpush1.bf16.msra.mxu0 0
    %8650 = vmatprep.subr.bf16.mxu0 0
    %8651 = vmatpush1.bf16.msra.mxu0 0
    %8652 = vmatprep.mubr.bf16.mxu0 0
    %8653 = vmatmul.mubr.bf16.gmra.mrb[0].mxu0 %v8059
    %v8654 = vpop.f32.mrb[0].mxu0
    %v8655 = vadd.f32 %v8615, %v8654
    %v8656 = vpop.f32.mrb[0].mxu0
    %v8657 = vpop.f32.mrb[0].mxu0
    %v8658 = vpop.f32.mrb[0].mxu0
    %8659 = vdwg.mxu0
    %v8660 = vmax.f32 %v8655, 0.0
    %v8661 = vpack.c.bf16 %v8660, %v8660
    %v8678 = vunpack.c.l.b16 %v7960
    %v8679 = vunpack.c.l.b16 %v7961
    %v8680 = vunpack.c.l.b16 %v7962
    %v8681 = vunpack.c.l.b16 %v7963
    %v8682 = vunpack.c.l.b16 %v7964
    %v8683 = vunpack.c.l.b16 %v7965
    %v8684 = vunpack.c.l.b16 %v7966
    %v8685 = vunpack.c.l.b16 %v7967
    %v8686 = vunpack.c.l.b16 %v7968
    %v8687 = vunpack.c.l.b16 %v7969
    %v8688 = vunpack.c.l.b16 %v7970
    %v8689 = vunpack.c.l.b16 %v7971
    %v8690 = vunpack.c.l.b16 %v7972
    %v8691 = vunpack.c.l.b16 %v7973
    %v8692 = vunpack.c.l.b16 %v7974
    %v8693 = vunpack.c.l.b16 %v7975
    %v8694 = vpack.c.b16 %v8679, %v8678
    %v8695 = vpack.c.b16 %v8681, %v8680
    %v8696 = vpack.c.b16 %v8683, %v8682
    %v8697 = vpack.c.b16 %v8685, %v8684
    %v8698 = vpack.c.b16 %v8687, %v8686
    %v8699 = vpack.c.b16 %v8689, %v8688
    %v8700 = vpack.c.b16 %v8691, %v8690
    %v8701 = vpack.c.b16 %v8693, %v8692
    %8710 = vmatprep.subr.bf16.mxu0 0
    %8711 = vmatpush1.bf16.msra.mxu0 %v8694
    %8712 = vmatprep.subr.bf16.mxu0 0
    %8713 = vmatpush1.bf16.msra.mxu0 %v8695
    %8714 = vmatprep.subr.bf16.mxu0 0
    %8715 = vmatpush1.bf16.msra.mxu0 %v8696
    %8716 = vmatprep.subr.bf16.mxu0 0
    %8717 = vmatpush1.bf16.msra.mxu0 %v8697
    %8718 = vmatprep.subr.bf16.mxu0 0
    %8719 = vmatpush1.bf16.msra.mxu0 %v8698
    %8720 = vmatprep.subr.bf16.mxu0 0
    %8721 = vmatpush1.bf16.msra.mxu0 %v8699
    %8722 = vmatprep.subr.bf16.mxu0 0
    %8723 = vmatpush1.bf16.msra.mxu0 %v8700
    %8724 = vmatprep.subr.bf16.mxu0 0
    %8725 = vmatpush1.bf16.msra.mxu0 %v8701
    %8726 = vmatprep.subr.bf16.mxu0 0
    %8727 = vmatpush1.bf16.msra.mxu0 0
    %8728 = vmatprep.subr.bf16.mxu0 0
    %8729 = vmatpush1.bf16.msra.mxu0 0
    %8730 = vmatprep.subr.bf16.mxu0 0
    %8731 = vmatpush1.bf16.msra.mxu0 0
    %8732 = vmatprep.subr.bf16.mxu0 0
    %8733 = vmatpush1.bf16.msra.mxu0 0
    %8734 = vmatprep.subr.bf16.mxu0 0
    %8735 = vmatpush1.bf16.msra.mxu0 0
    %8736 = vmatprep.subr.bf16.mxu0 0
    %8737 = vmatpush1.bf16.msra.mxu0 0
    %8738 = vmatprep.subr.bf16.mxu0 0
    %8739 = vmatpush1.bf16.msra.mxu0 0
    %8740 = vmatprep.subr.bf16.mxu0 0
    %8741 = vmatpush1.bf16.msra.mxu0 0
    %8742 = vmatprep.mubr.bf16.mxu0 0
    %8743 = vmatmul.mubr.bf16.gmra.mrb[0].mxu0 %v8661
    %v8744 = vpop.f32.mrb[0].mxu0
    %v8745 = vadd.f32 %v7976, %v8744
    %v8746 = vpop.f32.mrb[0].mxu0
    %v8747 = vpop.f32.mrb[0].mxu0
    %v8748 = vpop.f32.mrb[0].mxu0
    %8749 = vdwg.mxu0
    %8750 = vst [vmem:[#allocation16] sm:$0x1] %v8745
    %v8752 = vrot.slane %v7719, 1
    %v8754 = vrot.slane %v7719, 2
    %v8756 = vrot.slane %v7719, 3
    %v8758 = vrot.slane %v7719, 4
    %v8760 = vrot.slane %v7719, 5
    %v8762 = vrot.slane %v7719, 6
    %v8764 = vrot.slane %v7719, 7
    %v8767 = vrot.slane %v7720, 1
    %v8769 = vrot.slane %v7720, 2
    %v8771 = vrot.slane %v7720, 3
    %v8773 = vrot.slane %v7720, 4
    %v8775 = vrot.slane %v7720, 5
    %v8777 = vrot.slane %v7720, 6
    %v8779 = vrot.slane %v7720, 7
    %v8782 = vrot.slane %v7721, 1
    %v8784 = vrot.slane %v7721, 2
    %v8786 = vrot.slane %v7721, 3
    %v8788 = vrot.slane %v7721, 4
    %v8790 = vrot.slane %v7721, 5
    %v8792 = vrot.slane %v7721, 6
    %v8794 = vrot.slane %v7721, 7
    %v8797 = vrot.slane %v7722, 1
    %v8799 = vrot.slane %v7722, 2
    %v8801 = vrot.slane %v7722, 3
    %v8803 = vrot.slane %v7722, 4
    %v8805 = vpack.c.bf16 %v7719, %v7719
    %v8806 = vpack.c.bf16 %v8752, %v8752
    %v8807 = vpack.c.bf16 %v8754, %v8754
    %v8808 = vpack.c.bf16 %v8756, %v8756
    %v8809 = vpack.c.bf16 %v8758, %v8758
    %v8810 = vpack.c.bf16 %v8760, %v8760
    %v8811 = vpack.c.bf16 %v8762, %v8762
    %v8812 = vpack.c.bf16 %v8764, %v8764
    %v8813 = vpack.c.bf16 %v7720, %v7720
    %v8814 = vpack.c.bf16 %v8767, %v8767
    %v8815 = vpack.c.bf16 %v8769, %v8769
    %v8816 = vpack.c.bf16 %v8771, %v8771
    %v8817 = vpack.c.bf16 %v8773, %v8773
    %v8818 = vpack.c.bf16 %v8775, %v8775
    %v8819 = vpack.c.bf16 %v8777, %v8777
    %v8820 = vpack.c.bf16 %v8779, %v8779
    %v8821 = vpack.c.bf16 %v7721, %v7721
    %v8822 = vpack.c.bf16 %v8782, %v8782
    %v8823 = vpack.c.bf16 %v8784, %v8784
    %v8824 = vpack.c.bf16 %v8786, %v8786
    %v8825 = vpack.c.bf16 %v8788, %v8788
    %v8826 = vpack.c.bf16 %v8790, %v8790
    %v8827 = vpack.c.bf16 %v8792, %v8792
    %v8828 = vpack.c.bf16 %v8794, %v8794
    %v8829 = vpack.c.bf16 %v7722, %v7722
    %v8830 = vpack.c.bf16 %v8797, %v8797
    %v8831 = vpack.c.bf16 %v8799, %v8799
    %v8832 = vpack.c.bf16 %v8801, %v8801
    %v8833 = vpack.c.bf16 %v8803, %v8803
    %8834 = vmatprep.subr.bf16.mxu0 0
    %8835 = vmatpush1.bf16.msra.mxu0 %v7727
    %8836 = vmatprep.subr.bf16.mxu0 0
    %8837 = vmatpush1.bf16.msra.mxu0 %v7728
    %8838 = vmatprep.subr.bf16.mxu0 0
    %8839 = vmatpush1.bf16.msra.mxu0 %v7729
    %8840 = vmatprep.subr.bf16.mxu0 0
    %8841 = vmatpush1.bf16.msra.mxu0 %v7730
    %8842 = vmatprep.subr.bf16.mxu0 0
    %8843 = vmatpush1.bf16.msra.mxu0 %v7731
    %8844 = vmatprep.subr.bf16.mxu0 0
    %8845 = vmatpush1.bf16.msra.mxu0 %v7732
    %8846 = vmatprep.subr.bf16.mxu0 0
    %8847 = vmatpush1.bf16.msra.mxu0 %v7733
    %8848 = vmatprep.subr.bf16.mxu0 0
    %8849 = vmatpush1.bf16.msra.mxu0 %v7734
    %8850 = vmatprep.subr.bf16.mxu0 0
    %8851 = vmatpush1.bf16.msra.mxu0 %v7735
    %8852 = vmatprep.subr.bf16.mxu0 0
    %8853 = vmatpush1.bf16.msra.mxu0 %v7736
    %8854 = vmatprep.subr.bf16.mxu0 0
    %8855 = vmatpush1.bf16.msra.mxu0 %v7737
    %8856 = vmatprep.subr.bf16.mxu0 0
    %8857 = vmatpush1.bf16.msra.mxu0 %v7738
    %8858 = vmatprep.subr.bf16.mxu0 0
    %8859 = vmatpush1.bf16.msra.mxu0 %v7739
    %8860 = vmatprep.subr.bf16.mxu0 0
    %8861 = vmatpush1.bf16.msra.mxu0 %v7740
    %8862 = vmatprep.subr.bf16.mxu0 0
    %8863 = vmatpush1.bf16.msra.mxu0 %v7741
    %8864 = vmatprep.subr.bf16.mxu0 0
    %8865 = vmatpush1.bf16.msra.mxu0 %v7742
    %8866 = vmatprep.mubr.bf16.mxu0 %v8806
    %8867 = vmatmul.mubr.bf16.gmra.mrb[0].mxu0 %v8805
    %v8868 = vpop.f32.mrb[0].mxu0
    %v8869 = vadd.f32 %v7959, %v8868
    %v8870 = vpop.f32.mrb[0].mxu0
    %v8871 = vpop.f32.mrb[0].mxu0
    %v8872 = vpop.f32.mrb[0].mxu0
    %8873 = vdwg.mxu0
    %8874 = vmatprep.subr.bf16.mxu0 0
    %8875 = vmatpush1.bf16.msra.mxu0 %v7743
    %8876 = vmatprep.subr.bf16.mxu0 0
    %8877 = vmatpush1.bf16.msra.mxu0 %v7744
    %8878 = vmatprep.subr.bf16.mxu0 0
    %8879 = vmatpush1.bf16.msra.mxu0 %v7745
    %8880 = vmatprep.subr.bf16.mxu0 0
    %8881 = vmatpush1.bf16.msra.mxu0 %v7746
    %8882 = vmatprep.subr.bf16.mxu0 0
    %8883 = vmatpush1.bf16.msra.mxu0 %v7747
    %8884 = vmatprep.subr.bf16.mxu0 0
    %8885 = vmatpush1.bf16.msra.mxu0 %v7748
    %8886 = vmatprep.subr.bf16.mxu0 0
    %8887 = vmatpush1.bf16.msra.mxu0 %v7749
    %8888 = vmatprep.subr.bf16.mxu0 0
    %8889 = vmatpush1.bf16.msra.mxu0 %v7750
    %8890 = vmatprep.subr.bf16.mxu0 0
    %8891 = vmatpush1.bf16.msra.mxu0 %v7751
    %8892 = vmatprep.subr.bf16.mxu0 0
    %8893 = vmatpush1.bf16.msra.mxu0 %v7752
    %8894 = vmatprep.subr.bf16.mxu0 0
    %8895 = vmatpush1.bf16.msra.mxu0 %v7753
    %8896 = vmatprep.subr.bf16.mxu0 0
    %8897 = vmatpush1.bf16.msra.mxu0 %v7754
    %8898 = vmatprep.subr.bf16.mxu0 0
    %8899 = vmatpush1.bf16.msra.mxu0 %v7755
    %8900 = vmatprep.subr.bf16.mxu0 0
    %8901 = vmatpush1.bf16.msra.mxu0 %v7756
    %8902 = vmatprep.subr.bf16.mxu0 0
    %8903 = vmatpush1.bf16.msra.mxu0 %v7757
    %8904 = vmatprep.subr.bf16.mxu0 0
    %8905 = vmatpush1.bf16.msra.mxu0 %v7758
    %8906 = vmatprep.mubr.bf16.mxu0 %v8808
    %8907 = vmatmul.mubr.bf16.gmra.mrb[0].mxu0 %v8807
    %v8908 = vpop.f32.mrb[0].mxu0
    %v8909 = vadd.f32 %v8869, %v8908
    %v8910 = vpop.f32.mrb[0].mxu0
    %v8911 = vpop.f32.mrb[0].mxu0
    %v8912 = vpop.f32.mrb[0].mxu0
    %8913 = vdwg.mxu0
    %8914 = vmatprep.subr.bf16.mxu0 0
    %8915 = vmatpush1.bf16.msra.mxu0 %v7759
    %8916 = vmatprep.subr.bf16.mxu0 0
    %8917 = vmatpush1.bf16.msra.mxu0 %v7760
    %8918 = vmatprep.subr.bf16.mxu0 0
    %8919 = vmatpush1.bf16.msra.mxu0 %v7761
    %8920 = vmatprep.subr.bf16.mxu0 0
    %8921 = vmatpush1.bf16.msra.mxu0 %v7762
    %8922 = vmatprep.subr.bf16.mxu0 0
    %8923 = vmatpush1.bf16.msra.mxu0 %v7763
    %8924 = vmatprep.subr.bf16.mxu0 0
    %8925 = vmatpush1.bf16.msra.mxu0 %v7764
    %8926 = vmatprep.subr.bf16.mxu0 0
    %8927 = vmatpush1.bf16.msra.mxu0 %v7765
    %8928 = vmatprep.subr.bf16.mxu0 0
    %8929 = vmatpush1.bf16.msra.mxu0 %v7766
    %8930 = vmatprep.subr.bf16.mxu0 0
    %8931 = vmatpush1.bf16.msra.mxu0 %v7767
    %8932 = vmatprep.subr.bf16.mxu0 0
    %8933 = vmatpush1.bf16.msra.mxu0 %v7768
    %8934 = vmatprep.subr.bf16.mxu0 0
    %8935 = vmatpush1.bf16.msra.mxu0 %v7769
    %8936 = vmatprep.subr.bf16.mxu0 0
    %8937 = vmatpush1.bf16.msra.mxu0 %v7770
    %8938 = vmatprep.subr.bf16.mxu0 0
    %8939 = vmatpush1.bf16.msra.mxu0 %v7771
    %8940 = vmatprep.subr.bf16.mxu0 0
    %8941 = vmatpush1.bf16.msra.mxu0 %v7772
    %8942 = vmatprep.subr.bf16.mxu0 0
    %8943 = vmatpush1.bf16.msra.mxu0 %v7773
    %8944 = vmatprep.subr.bf16.mxu0 0
    %8945 = vmatpush1.bf16.msra.mxu0 %v7774
    %8946 = vmatprep.mubr.bf16.mxu0 %v8810
    %8947 = vmatmul.mubr.bf16.gmra.mrb[0].mxu0 %v8809
    %v8948 = vpop.f32.mrb[0].mxu0
    %v8949 = vadd.f32 %v8909, %v8948
    %v8950 = vpop.f32.mrb[0].mxu0
    %v8951 = vpop.f32.mrb[0].mxu0
    %v8952 = vpop.f32.mrb[0].mxu0
    %8953 = vdwg.mxu0
    %8954 = vmatprep.subr.bf16.mxu0 0
    %8955 = vmatpush1.bf16.msra.mxu0 %v7775
    %8956 = vmatprep.subr.bf16.mxu0 0
    %8957 = vmatpush1.bf16.msra.mxu0 %v7776
    %8958 = vmatprep.subr.bf16.mxu0 0
    %8959 = vmatpush1.bf16.msra.mxu0 %v7777
    %8960 = vmatprep.subr.bf16.mxu0 0
    %8961 = vmatpush1.bf16.msra.mxu0 %v7778
    %8962 = vmatprep.subr.bf16.mxu0 0
    %8963 = vmatpush1.bf16.msra.mxu0 %v7779
    %8964 = vmatprep.subr.bf16.mxu0 0
    %8965 = vmatpush1.bf16.msra.mxu0 %v7780
    %8966 = vmatprep.subr.bf16.mxu0 0
    %8967 = vmatpush1.bf16.msra.mxu0 %v7781
    %8968 = vmatprep.subr.bf16.mxu0 0
    %8969 = vmatpush1.bf16.msra.mxu0 %v7782
    %8970 = vmatprep.subr.bf16.mxu0 0
    %8971 = vmatpush1.bf16.msra.mxu0 %v7783
    %8972 = vmatprep.subr.bf16.mxu0 0
    %8973 = vmatpush1.bf16.msra.mxu0 %v7784
    %8974 = vmatprep.subr.bf16.mxu0 0
    %8975 = vmatpush1.bf16.msra.mxu0 %v7785
    %8976 = vmatprep.subr.bf16.mxu0 0
    %8977 = vmatpush1.bf16.msra.mxu0 %v7786
    %8978 = vmatprep.subr.bf16.mxu0 0
    %8979 = vmatpush1.bf16.msra.mxu0 %v7787
    %8980 = vmatprep.subr.bf16.mxu0 0
    %8981 = vmatpush1.bf16.msra.mxu0 %v7788
    %8982 = vmatprep.subr.bf16.mxu0 0
    %8983 = vmatpush1.bf16.msra.mxu0 %v7789
    %8984 = vmatprep.subr.bf16.mxu0 0
    %8985 = vmatpush1.bf16.msra.mxu0 %v7790
    %8986 = vmatprep.mubr.bf16.mxu0 %v8812
    %8987 = vmatmul.mubr.bf16.gmra.mrb[0].mxu0 %v8811
    %v8988 = vpop.f32.mrb[0].mxu0
    %v8989 = vadd.f32 %v8949, %v8988
    %v8990 = vpop.f32.mrb[0].mxu0
    %v8991 = vpop.f32.mrb[0].mxu0
    %v8992 = vpop.f32.mrb[0].mxu0
    %8993 = vdwg.mxu0
    %8994 = vmatprep.subr.bf16.mxu0 0
    %8995 = vmatpush1.bf16.msra.mxu0 %v7791
    %8996 = vmatprep.subr.bf16.mxu0 0
    %8997 = vmatpush1.bf16.msra.mxu0 %v7792
    %8998 = vmatprep.subr.bf16.mxu0 0
    %8999 = vmatpush1.bf16.msra.mxu0 %v7793
    %9000 = vmatprep.subr.bf16.mxu0 0
    %9001 = vmatpush1.bf16.msra.mxu0 %v7794
    %9002 = vmatprep.subr.bf16.mxu0 0
    %9003 = vmatpush1.bf16.msra.mxu0 %v7795
    %9004 = vmatprep.subr.bf16.mxu0 0
    %9005 = vmatpush1.bf16.msra.mxu0 %v7796
    %9006 = vmatprep.subr.bf16.mxu0 0
    %9007 = vmatpush1.bf16.msra.mxu0 %v7797
    %9008 = vmatprep.subr.bf16.mxu0 0
    %9009 = vmatpush1.bf16.msra.mxu0 %v7798
    %9010 = vmatprep.subr.bf16.mxu0 0
    %9011 = vmatpush1.bf16.msra.mxu0 %v7799
    %9012 = vmatprep.subr.bf16.mxu0 0
    %9013 = vmatpush1.bf16.msra.mxu0 %v7800
    %9014 = vmatprep.subr.bf16.mxu0 0
    %9015 = vmatpush1.bf16.msra.mxu0 %v7801
    %9016 = vmatprep.subr.bf16.mxu0 0
    %9017 = vmatpush1.bf16.msra.mxu0 %v7802
    %9018 = vmatprep.subr.bf16.mxu0 0
    %9019 = vmatpush1.bf16.msra.mxu0 %v7803
    %9020 = vmatprep.subr.bf16.mxu0 0
    %9021 = vmatpush1.bf16.msra.mxu0 %v7804
    %9022 = vmatprep.subr.bf16.mxu0 0
    %9023 = vmatpush1.bf16.msra.mxu0 %v7805
    %9024 = vmatprep.subr.bf16.mxu0 0
    %9025 = vmatpush1.bf16.msra.mxu0 %v7806
    %9026 = vmatprep.mubr.bf16.mxu0 %v8814
    %9027 = vmatmul.mubr.bf16.gmra.mrb[0].mxu0 %v8813
    %v9028 = vpop.f32.mrb[0].mxu0
    %v9029 = vadd.f32 %v8989, %v9028
    %v9030 = vpop.f32.mrb[0].mxu0
    %v9031 = vpop.f32.mrb[0].mxu0
    %v9032 = vpop.f32.mrb[0].mxu0
    %9033 = vdwg.mxu0
    %9034 = vmatprep.subr.bf16.mxu0 0
    %9035 = vmatpush1.bf16.msra.mxu0 %v7807
    %9036 = vmatprep.subr.bf16.mxu0 0
    %9037 = vmatpush1.bf16.msra.mxu0 %v7808
    %9038 = vmatprep.subr.bf16.mxu0 0
    %9039 = vmatpush1.bf16.msra.mxu0 %v7809
    %9040 = vmatprep.subr.bf16.mxu0 0
    %9041 = vmatpush1.bf16.msra.mxu0 %v7810
    %9042 = vmatprep.subr.bf16.mxu0 0
    %9043 = vmatpush1.bf16.msra.mxu0 %v7811
    %9044 = vmatprep.subr.bf16.mxu0 0
    %9045 = vmatpush1.bf16.msra.mxu0 %v7812
    %9046 = vmatprep.subr.bf16.mxu0 0
    %9047 = vmatpush1.bf16.msra.mxu0 %v7813
    %9048 = vmatprep.subr.bf16.mxu0 0
    %9049 = vmatpush1.bf16.msra.mxu0 %v7814
    %9050 = vmatprep.subr.bf16.mxu0 0
    %9051 = vmatpush1.bf16.msra.mxu0 %v7815
    %9052 = vmatprep.subr.bf16.mxu0 0
    %9053 = vmatpush1.bf16.msra.mxu0 %v7816
    %9054 = vmatprep.subr.bf16.mxu0 0
    %9055 = vmatpush1.bf16.msra.mxu0 %v7817
    %9056 = vmatprep.subr.bf16.mxu0 0
    %9057 = vmatpush1.bf16.msra.mxu0 %v7818
    %9058 = vmatprep.subr.bf16.mxu0 0
    %9059 = vmatpush1.bf16.msra.mxu0 %v7819
    %9060 = vmatprep.subr.bf16.mxu0 0
    %9061 = vmatpush1.bf16.msra.mxu0 %v7820
    %9062 = vmatprep.subr.bf16.mxu0 0
    %9063 = vmatpush1.bf16.msra.mxu0 %v7821
    %9064 = vmatprep.subr.bf16.mxu0 0
    %9065 = vmatpush1.bf16.msra.mxu0 %v7822
    %9066 = vmatprep.mubr.bf16.mxu0 %v8816
    %9067 = vmatmul.mubr.bf16.gmra.mrb[0].mxu0 %v8815
    %v9068 = vpop.f32.mrb[0].mxu0
    %v9069 = vadd.f32 %v9029, %v9068
    %v9070 = vpop.f32.mrb[0].mxu0
    %v9071 = vpop.f32.mrb[0].mxu0
    %v9072 = vpop.f32.mrb[0].mxu0
    %9073 = vdwg.mxu0
    %9074 = vmatprep.subr.bf16.mxu0 0
    %9075 = vmatpush1.bf16.msra.mxu0 %v7823
    %9076 = vmatprep.subr.bf16.mxu0 0
    %9077 = vmatpush1.bf16.msra.mxu0 %v7824
    %9078 = vmatprep.subr.bf16.mxu0 0
    %9079 = vmatpush1.bf16.msra.mxu0 %v7825
    %9080 = vmatprep.subr.bf16.mxu0 0
    %9081 = vmatpush1.bf16.msra.mxu0 %v7826
    %9082 = vmatprep.subr.bf16.mxu0 0
    %9083 = vmatpush1.bf16.msra.mxu0 %v7827
    %9084 = vmatprep.subr.bf16.mxu0 0
    %9085 = vmatpush1.bf16.msra.mxu0 %v7828
    %9086 = vmatprep.subr.bf16.mxu0 0
    %9087 = vmatpush1.bf16.msra.mxu0 %v7829
    %9088 = vmatprep.subr.bf16.mxu0 0
    %9089 = vmatpush1.bf16.msra.mxu0 %v7830
    %9090 = vmatprep.subr.bf16.mxu0 0
    %9091 = vmatpush1.bf16.msra.mxu0 %v7831
    %9092 = vmatprep.subr.bf16.mxu0 0
    %9093 = vmatpush1.bf16.msra.mxu0 %v7832
    %9094 = vmatprep.subr.bf16.mxu0 0
    %9095 = vmatpush1.bf16.msra.mxu0 %v7833
    %9096 = vmatprep.subr.bf16.mxu0 0
    %9097 = vmatpush1.bf16.msra.mxu0 %v7834
    %9098 = vmatprep.subr.bf16.mxu0 0
    %9099 = vmatpush1.bf16.msra.mxu0 %v7835
    %9100 = vmatprep.subr.bf16.mxu0 0
    %9101 = vmatpush1.bf16.msra.mxu0 %v7836
    %9102 = vmatprep.subr.bf16.mxu0 0
    %9103 = vmatpush1.bf16.msra.mxu0 %v7837
    %9104 = vmatprep.subr.bf16.mxu0 0
    %9105 = vmatpush1.bf16.msra.mxu0 %v7838
    %9106 = vmatprep.mubr.bf16.mxu0 %v8818
    %9107 = vmatmul.mubr.bf16.gmra.mrb[0].mxu0 %v8817
    %v9108 = vpop.f32.mrb[0].mxu0
    %v9109 = vadd.f32 %v9069, %v9108
    %v9110 = vpop.f32.mrb[0].mxu0
    %v9111 = vpop.f32.mrb[0].mxu0
    %v9112 = vpop.f32.mrb[0].mxu0
    %9113 = vdwg.mxu0
    %9114 = vmatprep.subr.bf16.mxu0 0
    %9115 = vmatpush1.bf16.msra.mxu0 %v7839
    %9116 = vmatprep.subr.bf16.mxu0 0
    %9117 = vmatpush1.bf16.msra.mxu0 %v7840
    %9118 = vmatprep.subr.bf16.mxu0 0
    %9119 = vmatpush1.bf16.msra.mxu0 %v7841
    %9120 = vmatprep.subr.bf16.mxu0 0
    %9121 = vmatpush1.bf16.msra.mxu0 %v7842
    %9122 = vmatprep.subr.bf16.mxu0 0
    %9123 = vmatpush1.bf16.msra.mxu0 %v7843
    %9124 = vmatprep.subr.bf16.mxu0 0
    %9125 = vmatpush1.bf16.msra.mxu0 %v7844
    %9126 = vmatprep.subr.bf16.mxu0 0
    %9127 = vmatpush1.bf16.msra.mxu0 %v7845
    %9128 = vmatprep.subr.bf16.mxu0 0
    %9129 = vmatpush1.bf16.msra.mxu0 %v7846
    %9130 = vmatprep.subr.bf16.mxu0 0
    %9131 = vmatpush1.bf16.msra.mxu0 %v7847
    %9132 = vmatprep.subr.bf16.mxu0 0
    %9133 = vmatpush1.bf16.msra.mxu0 %v7848
    %9134 = vmatprep.subr.bf16.mxu0 0
    %9135 = vmatpush1.bf16.msra.mxu0 %v7849
    %9136 = vmatprep.subr.bf16.mxu0 0
    %9137 = vmatpush1.bf16.msra.mxu0 %v7850
    %9138 = vmatprep.subr.bf16.mxu0 0
    %9139 = vmatpush1.bf16.msra.mxu0 %v7851
    %9140 = vmatprep.subr.bf16.mxu0 0
    %9141 = vmatpush1.bf16.msra.mxu0 %v7852
    %9142 = vmatprep.subr.bf16.mxu0 0
    %9143 = vmatpush1.bf16.msra.mxu0 %v7853
    %9144 = vmatprep.subr.bf16.mxu0 0
    %9145 = vmatpush1.bf16.msra.mxu0 %v7854
    %9146 = vmatprep.mubr.bf16.mxu0 %v8820
    %9147 = vmatmul.mubr.bf16.gmra.mrb[0].mxu0 %v8819
    %v9148 = vpop.f32.mrb[0].mxu0
    %v9149 = vadd.f32 %v9109, %v9148
    %v9150 = vpop.f32.mrb[0].mxu0
    %v9151 = vpop.f32.mrb[0].mxu0
    %v9152 = vpop.f32.mrb[0].mxu0
    %9153 = vdwg.mxu0
    %9154 = vmatprep.subr.bf16.mxu0 0
    %9155 = vmatpush1.bf16.msra.mxu0 %v7855
    %9156 = vmatprep.subr.bf16.mxu0 0
    %9157 = vmatpush1.bf16.msra.mxu0 %v7856
    %9158 = vmatprep.subr.bf16.mxu0 0
    %9159 = vmatpush1.bf16.msra.mxu0 %v7857
    %9160 = vmatprep.subr.bf16.mxu0 0
    %9161 = vmatpush1.bf16.msra.mxu0 %v7858
    %9162 = vmatprep.subr.bf16.mxu0 0
    %9163 = vmatpush1.bf16.msra.mxu0 %v7859
    %9164 = vmatprep.subr.bf16.mxu0 0
    %9165 = vmatpush1.bf16.msra.mxu0 %v7860
    %9166 = vmatprep.subr.bf16.mxu0 0
    %9167 = vmatpush1.bf16.msra.mxu0 %v7861
    %9168 = vmatprep.subr.bf16.mxu0 0
    %9169 = vmatpush1.bf16.msra.mxu0 %v7862
    %9170 = vmatprep.subr.bf16.mxu0 0
    %9171 = vmatpush1.bf16.msra.mxu0 %v7863
    %9172 = vmatprep.subr.bf16.mxu0 0
    %9173 = vmatpush1.bf16.msra.mxu0 %v7864
    %9174 = vmatprep.subr.bf16.mxu0 0
    %9175 = vmatpush1.bf16.msra.mxu0 %v7865
    %9176 = vmatprep.subr.bf16.mxu0 0
    %9177 = vmatpush1.bf16.msra.mxu0 %v7866
    %9178 = vmatprep.subr.bf16.mxu0 0
    %9179 = vmatpush1.bf16.msra.mxu0 %v7867
    %9180 = vmatprep.subr.bf16.mxu0 0
    %9181 = vmatpush1.bf16.msra.mxu0 %v7868
    %9182 = vmatprep.subr.bf16.mxu0 0
    %9183 = vmatpush1.bf16.msra.mxu0 %v7869
    %9184 = vmatprep.subr.bf16.mxu0 0
    %9185 = vmatpush1.bf16.msra.mxu0 %v7870
    %9186 = vmatprep.mubr.bf16.mxu0 %v8822
    %9187 = vmatmul.mubr.bf16.gmra.mrb[0].mxu0 %v8821
    %v9188 = vpop.f32.mrb[0].mxu0
    %v9189 = vadd.f32 %v9149, %v9188
    %v9190 = vpop.f32.mrb[0].mxu0
    %v9191 = vpop.f32.mrb[0].mxu0
    %v9192 = vpop.f32.mrb[0].mxu0
    %9193 = vdwg.mxu0
    %9194 = vmatprep.subr.bf16.mxu0 0
    %9195 = vmatpush1.bf16.msra.mxu0 %v7871
    %9196 = vmatprep.subr.bf16.mxu0 0
    %9197 = vmatpush1.bf16.msra.mxu0 %v7872
    %9198 = vmatprep.subr.bf16.mxu0 0
    %9199 = vmatpush1.bf16.msra.mxu0 %v7873
    %9200 = vmatprep.subr.bf16.mxu0 0
    %9201 = vmatpush1.bf16.msra.mxu0 %v7874
    %9202 = vmatprep.subr.bf16.mxu0 0
    %9203 = vmatpush1.bf16.msra.mxu0 %v7875
    %9204 = vmatprep.subr.bf16.mxu0 0
    %9205 = vmatpush1.bf16.msra.mxu0 %v7876
    %9206 = vmatprep.subr.bf16.mxu0 0
    %9207 = vmatpush1.bf16.msra.mxu0 %v7877
    %9208 = vmatprep.subr.bf16.mxu0 0
    %9209 = vmatpush1.bf16.msra.mxu0 %v7878
    %9210 = vmatprep.subr.bf16.mxu0 0
    %9211 = vmatpush1.bf16.msra.mxu0 %v7879
    %9212 = vmatprep.subr.bf16.mxu0 0
    %9213 = vmatpush1.bf16.msra.mxu0 %v7880
    %9214 = vmatprep.subr.bf16.mxu0 0
    %9215 = vmatpush1.bf16.msra.mxu0 %v7881
    %9216 = vmatprep.subr.bf16.mxu0 0
    %9217 = vmatpush1.bf16.msra.mxu0 %v7882
    %9218 = vmatprep.subr.bf16.mxu0 0
    %9219 = vmatpush1.bf16.msra.mxu0 %v7883
    %9220 = vmatprep.subr.bf16.mxu0 0
    %9221 = vmatpush1.bf16.msra.mxu0 %v7884
    %9222 = vmatprep.subr.bf16.mxu0 0
    %9223 = vmatpush1.bf16.msra.mxu0 %v7885
    %9224 = vmatprep.subr.bf16.mxu0 0
    %9225 = vmatpush1.bf16.msra.mxu0 %v7886
    %9226 = vmatprep.mubr.bf16.mxu0 %v8824
    %9227 = vmatmul.mubr.bf16.gmra.mrb[0].mxu0 %v8823
    %v9228 = vpop.f32.mrb[0].mxu0
    %v9229 = vadd.f32 %v9189, %v9228
    %v9230 = vpop.f32.mrb[0].mxu0
    %v9231 = vpop.f32.mrb[0].mxu0
    %v9232 = vpop.f32.mrb[0].mxu0
    %9233 = vdwg.mxu0
    %9234 = vmatprep.subr.bf16.mxu0 0
    %9235 = vmatpush1.bf16.msra.mxu0 %v7887
    %9236 = vmatprep.subr.bf16.mxu0 0
    %9237 = vmatpush1.bf16.msra.mxu0 %v7888
    %9238 = vmatprep.subr.bf16.mxu0 0
    %9239 = vmatpush1.bf16.msra.mxu0 %v7889
    %9240 = vmatprep.subr.bf16.mxu0 0
    %9241 = vmatpush1.bf16.msra.mxu0 %v7890
    %9242 = vmatprep.subr.bf16.mxu0 0
    %9243 = vmatpush1.bf16.msra.mxu0 %v7891
    %9244 = vmatprep.subr.bf16.mxu0 0
    %9245 = vmatpush1.bf16.msra.mxu0 %v7892
    %9246 = vmatprep.subr.bf16.mxu0 0
    %9247 = vmatpush1.bf16.msra.mxu0 %v7893
    %9248 = vmatprep.subr.bf16.mxu0 0
    %9249 = vmatpush1.bf16.msra.mxu0 %v7894
    %9250 = vmatprep.subr.bf16.mxu0 0
    %9251 = vmatpush1.bf16.msra.mxu0 %v7895
    %9252 = vmatprep.subr.bf16.mxu0 0
    %9253 = vmatpush1.bf16.msra.mxu0 %v7896
    %9254 = vmatprep.subr.bf16.mxu0 0
    %9255 = vmatpush1.bf16.msra.mxu0 %v7897
    %9256 = vmatprep.subr.bf16.mxu0 0
    %9257 = vmatpush1.bf16.msra.mxu0 %v7898
    %9258 = vmatprep.subr.bf16.mxu0 0
    %9259 = vmatpush1.bf16.msra.mxu0 %v7899
    %9260 = vmatprep.subr.bf16.mxu0 0
    %9261 = vmatpush1.bf16.msra.mxu0 %v7900
    %9262 = vmatprep.subr.bf16.mxu0 0
    %9263 = vmatpush1.bf16.msra.mxu0 %v7901
    %9264 = vmatprep.subr.bf16.mxu0 0
    %9265 = vmatpush1.bf16.msra.mxu0 %v7902
    %9266 = vmatprep.mubr.bf16.mxu0 %v8826
    %9267 = vmatmul.mubr.bf16.gmra.mrb[0].mxu0 %v8825
    %v9268 = vpop.f32.mrb[0].mxu0
    %v9269 = vadd.f32 %v9229, %v9268
    %v9270 = vpop.f32.mrb[0].mxu0
    %v9271 = vpop.f32.mrb[0].mxu0
    %v9272 = vpop.f32.mrb[0].mxu0
    %9273 = vdwg.mxu0
    %9274 = vmatprep.subr.bf16.mxu0 0
    %9275 = vmatpush1.bf16.msra.mxu0 %v7903
    %9276 = vmatprep.subr.bf16.mxu0 0
    %9277 = vmatpush1.bf16.msra.mxu0 %v7904
    %9278 = vmatprep.subr.bf16.mxu0 0
    %9279 = vmatpush1.bf16.msra.mxu0 %v7905
    %9280 = vmatprep.subr.bf16.mxu0 0
    %9281 = vmatpush1.bf16.msra.mxu0 %v7906
    %9282 = vmatprep.subr.bf16.mxu0 0
    %9283 = vmatpush1.bf16.msra.mxu0 %v7907
    %9284 = vmatprep.subr.bf16.mxu0 0
    %9285 = vmatpush1.bf16.msra.mxu0 %v7908
    %9286 = vmatprep.subr.bf16.mxu0 0
    %9287 = vmatpush1.bf16.msra.mxu0 %v7909
    %9288 = vmatprep.subr.bf16.mxu0 0
    %9289 = vmatpush1.bf16.msra.mxu0 %v7910
    %9290 = vmatprep.subr.bf16.mxu0 0
    %9291 = vmatpush1.bf16.msra.mxu0 %v7911
    %9292 = vmatprep.subr.bf16.mxu0 0
    %9293 = vmatpush1.bf16.msra.mxu0 %v7912
    %9294 = vmatprep.subr.bf16.mxu0 0
    %9295 = vmatpush1.bf16.msra.mxu0 %v7913
    %9296 = vmatprep.subr.bf16.mxu0 0
    %9297 = vmatpush1.bf16.msra.mxu0 %v7914
    %9298 = vmatprep.subr.bf16.mxu0 0
    %9299 = vmatpush1.bf16.msra.mxu0 %v7915
    %9300 = vmatprep.subr.bf16.mxu0 0
    %9301 = vmatpush1.bf16.msra.mxu0 %v7916
    %9302 = vmatprep.subr.bf16.mxu0 0
    %9303 = vmatpush1.bf16.msra.mxu0 %v7917
    %9304 = vmatprep.subr.bf16.mxu0 0
    %9305 = vmatpush1.bf16.msra.mxu0 %v7918
    %9306 = vmatprep.mubr.bf16.mxu0 %v8828
    %9307 = vmatmul.mubr.bf16.gmra.mrb[0].mxu0 %v8827
    %v9308 = vpop.f32.mrb[0].mxu0
    %v9309 = vadd.f32 %v9269, %v9308
    %v9310 = vpop.f32.mrb[0].mxu0
    %v9311 = vpop.f32.mrb[0].mxu0
    %v9312 = vpop.f32.mrb[0].mxu0
    %9313 = vdwg.mxu0
    %9314 = vmatprep.subr.bf16.mxu0 0
    %9315 = vmatpush1.bf16.msra.mxu0 %v7919
    %9316 = vmatprep.subr.bf16.mxu0 0
    %9317 = vmatpush1.bf16.msra.mxu0 %v7920
    %9318 = vmatprep.subr.bf16.mxu0 0
    %9319 = vmatpush1.bf16.msra.mxu0 %v7921
    %9320 = vmatprep.subr.bf16.mxu0 0
    %9321 = vmatpush1.bf16.msra.mxu0 %v7922
    %9322 = vmatprep.subr.bf16.mxu0 0
    %9323 = vmatpush1.bf16.msra.mxu0 %v7923
    %9324 = vmatprep.subr.bf16.mxu0 0
    %9325 = vmatpush1.bf16.msra.mxu0 %v7924
    %9326 = vmatprep.subr.bf16.mxu0 0
    %9327 = vmatpush1.bf16.msra.mxu0 %v7925
    %9328 = vmatprep.subr.bf16.mxu0 0
    %9329 = vmatpush1.bf16.msra.mxu0 %v7926
    %9330 = vmatprep.subr.bf16.mxu0 0
    %9331 = vmatpush1.bf16.msra.mxu0 %v7927
    %9332 = vmatprep.subr.bf16.mxu0 0
    %9333 = vmatpush1.bf16.msra.mxu0 %v7928
    %9334 = vmatprep.subr.bf16.mxu0 0
    %9335 = vmatpush1.bf16.msra.mxu0 %v7929
    %9336 = vmatprep.subr.bf16.mxu0 0
    %9337 = vmatpush1.bf16.msra.mxu0 %v7930
    %9338 = vmatprep.subr.bf16.mxu0 0
    %9339 = vmatpush1.bf16.msra.mxu0 %v7931
    %9340 = vmatprep.subr.bf16.mxu0 0
    %9341 = vmatpush1.bf16.msra.mxu0 %v7932
    %9342 = vmatprep.subr.bf16.mxu0 0
    %9343 = vmatpush1.bf16.msra.mxu0 %v7933
    %9344 = vmatprep.subr.bf16.mxu0 0
    %9345 = vmatpush1.bf16.msra.mxu0 %v7934
    %9346 = vmatprep.mubr.bf16.mxu0 %v8830
    %9347 = vmatmul.mubr.bf16.gmra.mrb[0].mxu0 %v8829
    %v9348 = vpop.f32.mrb[0].mxu0
    %v9349 = vadd.f32 %v9309, %v9348
    %v9350 = vpop.f32.mrb[0].mxu0
    %v9351 = vpop.f32.mrb[0].mxu0
    %v9352 = vpop.f32.mrb[0].mxu0
    %9353 = vdwg.mxu0
    %9354 = vmatprep.subr.bf16.mxu0 0
    %9355 = vmatpush1.bf16.msra.mxu0 %v7935
    %9356 = vmatprep.subr.bf16.mxu0 0
    %9357 = vmatpush1.bf16.msra.mxu0 %v7936
    %9358 = vmatprep.subr.bf16.mxu0 0
    %9359 = vmatpush1.bf16.msra.mxu0 %v7937
    %9360 = vmatprep.subr.bf16.mxu0 0
    %9361 = vmatpush1.bf16.msra.mxu0 %v7938
    %9362 = vmatprep.subr.bf16.mxu0 0
    %9363 = vmatpush1.bf16.msra.mxu0 %v7939
    %9364 = vmatprep.subr.bf16.mxu0 0
    %9365 = vmatpush1.bf16.msra.mxu0 %v7940
    %9366 = vmatprep.subr.bf16.mxu0 0
    %9367 = vmatpush1.bf16.msra.mxu0 %v7941
    %9368 = vmatprep.subr.bf16.mxu0 0
    %9369 = vmatpush1.bf16.msra.mxu0 %v7942
    %9370 = vmatprep.subr.bf16.mxu0 0
    %9371 = vmatpush1.bf16.msra.mxu0 %v7943
    %9372 = vmatprep.subr.bf16.mxu0 0
    %9373 = vmatpush1.bf16.msra.mxu0 %v7944
    %9374 = vmatprep.subr.bf16.mxu0 0
    %9375 = vmatpush1.bf16.msra.mxu0 %v7945
    %9376 = vmatprep.subr.bf16.mxu0 0
    %9377 = vmatpush1.bf16.msra.mxu0 %v7946
    %9378 = vmatprep.subr.bf16.mxu0 0
    %9379 = vmatpush1.bf16.msra.mxu0 %v7947
    %9380 = vmatprep.subr.bf16.mxu0 0
    %9381 = vmatpush1.bf16.msra.mxu0 %v7948
    %9382 = vmatprep.subr.bf16.mxu0 0
    %9383 = vmatpush1.bf16.msra.mxu0 %v7949
    %9384 = vmatprep.subr.bf16.mxu0 0
    %9385 = vmatpush1.bf16.msra.mxu0 %v7950
    %9386 = vmatprep.mubr.bf16.mxu0 %v8832
    %9387 = vmatmul.mubr.bf16.gmra.mrb[0].mxu0 %v8831
    %v9388 = vpop.f32.mrb[0].mxu0
    %v9389 = vadd.f32 %v9349, %v9388
    %v9390 = vpop.f32.mrb[0].mxu0
    %v9391 = vpop.f32.mrb[0].mxu0
    %v9392 = vpop.f32.mrb[0].mxu0
    %9393 = vdwg.mxu0
    %9394 = vmatprep.subr.bf16.mxu0 0
    %9395 = vmatpush1.bf16.msra.mxu0 %v7951
    %9396 = vmatprep.subr.bf16.mxu0 0
    %9397 = vmatpush1.bf16.msra.mxu0 %v7952
    %9398 = vmatprep.subr.bf16.mxu0 0
    %9399 = vmatpush1.bf16.msra.mxu0 %v7953
    %9400 = vmatprep.subr.bf16.mxu0 0
    %9401 = vmatpush1.bf16.msra.mxu0 %v7954
    %9402 = vmatprep.subr.bf16.mxu0 0
    %9403 = vmatpush1.bf16.msra.mxu0 %v7955
    %9404 = vmatprep.subr.bf16.mxu0 0
    %9405 = vmatpush1.bf16.msra.mxu0 %v7956
    %9406 = vmatprep.subr.bf16.mxu0 0
    %9407 = vmatpush1.bf16.msra.mxu0 %v7957
    %9408 = vmatprep.subr.bf16.mxu0 0
    %9409 = vmatpush1.bf16.msra.mxu0 %v7958
    %9410 = vmatprep.subr.bf16.mxu0 0
    %9411 = vmatpush1.bf16.msra.mxu0 0
    %9412 = vmatprep.subr.bf16.mxu0 0
    %9413 = vmatpush1.bf16.msra.mxu0 0
    %9414 = vmatprep.subr.bf16.mxu0 0
    %9415 = vmatpush1.bf16.msra.mxu0 0
    %9416 = vmatprep.subr.bf16.mxu0 0
    %9417 = vmatpush1.bf16.msra.mxu0 0
    %9418 = vmatprep.subr.bf16.mxu0 0
    %9419 = vmatpush1.bf16.msra.mxu0 0
    %9420 = vmatprep.subr.bf16.mxu0 0
    %9421 = vmatpush1.bf16.msra.mxu0 0
    %9422 = vmatprep.subr.bf16.mxu0 0
    %9423 = vmatpush1.bf16.msra.mxu0 0
    %9424 = vmatprep.subr.bf16.mxu0 0
    %9425 = vmatpush1.bf16.msra.mxu0 0
    %9426 = vmatprep.mubr.bf16.mxu0 0
    %9427 = vmatmul.mubr.bf16.gmra.mrb[0].mxu0 %v8833
    %v9428 = vpop.f32.mrb[0].mxu0
    %v9429 = vadd.f32 %v9389, %v9428
    %v9430 = vpop.f32.mrb[0].mxu0
    %v9431 = vpop.f32.mrb[0].mxu0
    %v9432 = vpop.f32.mrb[0].mxu0
    %9433 = vdwg.mxu0
    %v9434 = vmax.f32 %v9429, 0.0
    %v9435 = vpack.c.bf16 %v9434, %v9434
    %9436 = vmatprep.subr.bf16.mxu0 0
    %9437 = vmatpush1.bf16.msra.mxu0 %v8694
    %9438 = vmatprep.subr.bf16.mxu0 0
    %9439 = vmatpush1.bf16.msra.mxu0 %v8695
    %9440 = vmatprep.subr.bf16.mxu0 0
    %9441 = vmatpush1.bf16.msra.mxu0 %v8696
    %9442 = vmatprep.subr.bf16.mxu0 0
    %9443 = vmatpush1.bf16.msra.mxu0 %v8697
    %9444 = vmatprep.subr.bf16.mxu0 0
    %9445 = vmatpush1.bf16.msra.mxu0 %v8698
    %9446 = vmatprep.subr.bf16.mxu0 0
    %9447 = vmatpush1.bf16.msra.mxu0 %v8699
    %9448 = vmatprep.subr.bf16.mxu0 0
    %9449 = vmatpush1.bf16.msra.mxu0 %v8700
    %9450 = vmatprep.subr.bf16.mxu0 0
    %9451 = vmatpush1.bf16.msra.mxu0 %v8701
    %9452 = vmatprep.subr.bf16.mxu0 0
    %9453 = vmatpush1.bf16.msra.mxu0 0
    %9454 = vmatprep.subr.bf16.mxu0 0
    %9455 = vmatpush1.bf16.msra.mxu0 0
    %9456 = vmatprep.subr.bf16.mxu0 0
    %9457 = vmatpush1.bf16.msra.mxu0 0
    %9458 = vmatprep.subr.bf16.mxu0 0
    %9459 = vmatpush1.bf16.msra.mxu0 0
    %9460 = vmatprep.subr.bf16.mxu0 0
    %9461 = vmatpush1.bf16.msra.mxu0 0
    %9462 = vmatprep.subr.bf16.mxu0 0
    %9463 = vmatpush1.bf16.msra.mxu0 0
    %9464 = vmatprep.subr.bf16.mxu0 0
    %9465 = vmatpush1.bf16.msra.mxu0 0
    %9466 = vmatprep.subr.bf16.mxu0 0
    %9467 = vmatpush1.bf16.msra.mxu0 0
    %9468 = vmatprep.mubr.bf16.mxu0 0
    %9469 = vmatmul.mubr.bf16.gmra.mrb[0].mxu0 %v9435
    %v9470 = vpop.f32.mrb[0].mxu0
    %v9471 = vadd.f32 %v7976, %v9470
    %v9472 = vpop.f32.mrb[0].mxu0
    %v9473 = vpop.f32.mrb[0].mxu0
    %v9474 = vpop.f32.mrb[0].mxu0
    %9475 = vdwg.mxu0
    %9476 = vst [vmem:[#allocation16 + $0x1] sm:$0x1] %v9471
    // Predicated region
    $region110: #{spike_deeptector_forward.1} parent=1 // pred_check
      _
    $region111: #{spike_deeptector_forward.1} parent=1 // pred_check_branch
      %9478 = sbr.rel (0) target = $region113
    $region112: #{spike_deeptector_forward.1} parent=1 // pred_region
      %s9480 = ssub.s32 32, 32
      %9481 = vsyncadd [#allocation6], %s9480
      %s9483 = sshll.u32 [#allocation16], 4
      %s9484 = int_to_ptr.vmem [resolvable:$true] %s9483
      %9486 = dma.vmem_to_hbm [thread:$0]  %s9484, 32, %s20, [#allocation6]
    $region113: #{spike_deeptector_forward.1} parent=1 // pred_fallthru
      _
    // Predicated region
    $region114: #{spike_deeptector_forward.1} parent=1 // pred_check
      _
    $region115: #{spike_deeptector_forward.1} parent=1 // pred_check_branch
      %9488 = sbr.rel (0) target = $region117
    $region116: #{spike_deeptector_forward.1} parent=1 // pred_region
      %9489 = dma.done [#allocation6], 32
    $region117: #{spike_deeptector_forward.1} parent=1 // pred_fallthru
      _
    %9490 = vsyncpa [#allocation5], 1
    %9491 = vsyncpa [#allocation8], 1
    %9492 = vsyncpa [#allocation11], 1
    %9493 = vsyncpa [#allocation14], 1
    %9494 = vsyncpa [#allocation6], 1
  %9495 = vsyncmov [#allocation3]
  %s9496 = vpop.sfrf %9495
  %p9497 = scmp.eq.s32.totalorder %s9496, 0
  %p9498 = pneg %p9497
  %9500 = shalt.err (%p9498)

</llo_original>
